<compile_context>
chip_gen: v7x
topology: tpu7x:2x2x1
jax: 0.10.0
libtpu: 0.0.40
codegen_flags: <defaults>
</compile_context>

<pallas_src>
import functools

import jax
import jax.numpy as jnp
from jax.experimental import pallas as pl
from jax.experimental.pallas import tpu as pltpu


STEM_OUT = 48          # EfficientNet-B4 stem width
STEM_OUT_PAD = 128     # zero-padded stem width: lane-dense store + MXU K depth
HEAD_OUT = 1792        # EfficientNet-B4 head width (classifier in_features)
NUM_CLASSES = 2
NC_PAD = 128           # zero-padded classifier width: lane-dense output store


def _round_up(x, m):
    return (x + m - 1) // m * m


def _compiler_params(**kwargs):
    cls = getattr(pltpu, "CompilerParams", None) or getattr(
        pltpu, "TPUCompilerParams", None)
    if cls is None:
        return None
    try:
        return cls(**kwargs)
    except TypeError:
        kwargs.pop("vmem_limit_bytes", None)
        return cls(**kwargs)


def _const_spec(shape):
    """BlockSpec for grid-invariant operands: single-buffered (saves VMEM)."""
    index_map = lambda b, j: (0, 0)
    if hasattr(pl, "Buffered"):
        try:
            return pl.BlockSpec(shape, index_map, pipeline_mode=pl.Buffered(1))
        except TypeError:
            pass
    return pl.BlockSpec(shape, index_map)


def _sigmoid(x):
    """sigmoid with exp + approx reciprocal on the EUP (no VPU divide)."""
    if hasattr(pl, "reciprocal"):
        return pl.reciprocal(1.0 + jnp.exp(-x), approx=True)
    return jax.nn.sigmoid(x)


# --------------------------------------------------------------------------- #
# Fused Pallas kernel
# --------------------------------------------------------------------------- #
def _fused_forward_kernel(p_ref, ws_ref, s0_ref, b0_ref,
                          wh_ref, s1_ref, b1_ref,
                          fcw_ref, fcb_ref,
                          o_ref, acc_ref, *, hw, inv_hw):
    """One (batch b, spatial tile j) grid step.

    stem matmul + BN + SiLU -> head matmul + BN + SiLU -> masked pooled-sum
    accumulation (bf16 MXU, f32 acc); classifier Linear at the last tile.
    """
    j = pl.program_id(1)

    @pl.when(j == 0)
    def _():
        acc_ref[...] = jnp.zeros_like(acc_ref)

    a = p_ref[0]                                             # (thw, 27) bf16
    thw = a.shape[0]

    # ---- Stem conv-as-matmul: bf16 x bf16 -> f32 acc, folded BN + SiLU -----
    # (pl.reciprocal approx lowering is f32-only, so the epilogue stays f32;
    #  one downcast to bf16 feeds the head matmul.)
    s = jnp.dot(a, ws_ref[...], preferred_element_type=jnp.float32)
    s = s * s0_ref[...] + b0_ref[...]
    s = (s * _sigmoid(s)).astype(jnp.bfloat16)               # (thw, 128) bf16

    # ---- Head 1x1 conv: bf16 x bf16 -> f32 acc, folded BN + SiLU -----------
    h = jnp.dot(s, wh_ref[...], preferred_element_type=jnp.float32)
    h = h * s1_ref[...] + b1_ref[...]
    h = (h * _sigmoid(h)).astype(jnp.bfloat16)               # (thw, 1792) bf16

    # ---- Partial global-average-pool as a masked bf16 ones-row MXU matmul --
    # (single-pass MXU, f32 accumulation; the mask drops zero-padded HW rows
    #  whose bias-only SiLU output must not leak into the mean).
    col = jax.lax.broadcasted_iota(jnp.int32, (1, thw), 1) + j * thw
    ones_row = (col < hw).astype(jnp.bfloat16)               # (1, thw)
    acc_ref[...] += jnp.dot(ones_row, h, preferred_element_type=jnp.float32)

    # ---- Finalize: mean + Linear(1792 -> NC_PAD) on the last spatial tile --
    @pl.when(j == pl.num_programs(1) - 1)
    def _():
        pooled = (acc_ref[...] * inv_hw).astype(jnp.bfloat16)   # (1, 1792)
        logits = jnp.dot(pooled, fcw_ref[...],
                         preferred_element_type=jnp.float32) + fcb_ref[...]
        o_ref[0] = logits.astype(o_ref.dtype)


def fused_forward(patches, w_stem, s0, b0, w_head, s1, b1, fc_w, fc_b,
                  *, thw_cap=None):
    """patches: (B, HW, K) bf16; weights pre-transposed / zero-padded."""
    B, HW, K = patches.shape

    # Chip-aware tile cap + scoped-VMEM limit (safe fallback if query fails).
    try:
        vmem_cap = int(pltpu.get_tpu_info().vmem_capacity_bytes)
    except Exception:  # noqa: BLE001 - hardware query is best-effort
        vmem_cap = 128 * 1024 * 1024
    if thw_cap is None:
        # 2048 on 128 MiB parts (v5e/v6e); 1024 under v7x's 64 MiB VMEM.
        thw_cap = 2048 if vmem_cap > 64 * 1024 * 1024 else 1024
    vmem_limit = int(min(64 * 1024 * 1024, vmem_cap * 3 // 4))

    # Spatial tile: multiple of 256 (clean MXU M, bf16 sublane packing), capped.
    thw = min(thw_cap, _round_up(HW, 256))
    hw_pad = _round_up(HW, thw)
    if hw_pad != HW:
        patches = jnp.pad(patches, ((0, 0), (0, hw_pad - HW), (0, 0)))
    n_hw = hw_pad // thw

    m = B * hw_pad

    def _nbytes(a):
        return a.size * a.dtype.itemsize

    cost = pl.CostEstimate(
        flops=2 * m * (K * STEM_OUT_PAD + STEM_OUT_PAD * HEAD_OUT + HEAD_OUT)
        + 2 * B * HEAD_OUT * NC_PAD,
        transcendentals=2 * m * (STEM_OUT_PAD + HEAD_OUT),
        bytes_accessed=sum(_nbytes(t) for t in
                           (patches, w_stem, s0, b0, w_head, s1, b1, fc_w, fc_b))
        + B * NC_PAD * 4,
    )

    kernel = functools.partial(_fused_forward_kernel, hw=HW, inv_hw=1.0 / HW)

    call_kwargs = {}
    cp = _compiler_params(dimension_semantics=("parallel", "arbitrary"),
                          vmem_limit_bytes=vmem_limit)
    if cp is not None:
        call_kwargs["compiler_params"] = cp

    out = pl.pallas_call(
        kernel,
        out_shape=jax.ShapeDtypeStruct((B, 1, NC_PAD), jnp.float32),
        grid_spec=pltpu.PrefetchScalarGridSpec(
            num_scalar_prefetch=0,
            grid=(B, n_hw),
            in_specs=[
                pl.BlockSpec((1, thw, K), lambda b, j: (b, j, 0)),
                _const_spec((K, STEM_OUT_PAD)),
                _const_spec((1, STEM_OUT_PAD)),
                _const_spec((1, STEM_OUT_PAD)),
                _const_spec((STEM_OUT_PAD, HEAD_OUT)),
                _const_spec((1, HEAD_OUT)),
                _const_spec((1, HEAD_OUT)),
                _const_spec((HEAD_OUT, NC_PAD)),
                _const_spec((1, NC_PAD)),
            ],
            out_specs=pl.BlockSpec((1, 1, NC_PAD), lambda b, j: (b, 0, 0)),
            scratch_shapes=[pltpu.VMEM((1, HEAD_OUT), jnp.float32)],
        ),
        cost_estimate=cost,
        **call_kwargs,
    )(patches, w_stem, s0, b0, w_head, s1, b1, fc_w, fc_b)
    return out[:, 0, :NUM_CLASSES]


# --------------------------------------------------------------------------- #
# JAX glue: im2col patch extraction + BN folding (layout plumbing only)
# --------------------------------------------------------------------------- #
def im2col(x_nhwc, kh, kw, stride, pad):
    B, H, W, C = x_nhwc.shape
    xp = jnp.pad(x_nhwc, ((0, 0), (pad, pad), (pad, pad), (0, 0)))
    Ho = (H + 2 * pad - kh) // stride + 1
    Wo = (W + 2 * pad - kw) // stride + 1
    cols = []
    for i in range(kh):
        for j in range(kw):
            cols.append(xp[:, i:i + stride * Ho:stride,
                           j:j + stride * Wo:stride, :])
    patches = jnp.stack(cols, axis=-2)               # (B, Ho, Wo, kh*kw, C)
    return patches.reshape(B, Ho * Wo, kh * kw * C), Ho, Wo


def fold_bn(gamma, beta, mean, var, eps=1e-3):
    # eps=1e-3 matches efficientnet_pytorch's BatchNorm; use eps=1e-5 if
    # loading torchvision / PyTorch-default BatchNorm statistics.
    scale = gamma / jnp.sqrt(var + eps)
    bias = beta - mean * scale
    return scale[None, :], bias[None, :]


# --------------------------------------------------------------------------- #
# Parameter init (deterministic, synthetic) and forward pass
# --------------------------------------------------------------------------- #
def init_params(key):
    ks = jax.random.split(key, 8)
    p = {}
    # Stem conv: PyTorch layout (Cout, Cin, kh, kw), bias=False.
    p["stem_w"] = 0.1 * jax.random.normal(ks[0], (STEM_OUT, 3, 3, 3), jnp.float32)
    p["stem_bn"] = (jnp.ones((STEM_OUT,), jnp.float32),
                    0.01 * jax.random.normal(ks[1], (STEM_OUT,), jnp.float32),
                    jnp.zeros((STEM_OUT,), jnp.float32),
                    jnp.ones((STEM_OUT,), jnp.float32))
    # Head 1x1 conv: (Cout, Cin, 1, 1), bias=False.
    p["head_w"] = 0.05 * jax.random.normal(ks[2], (HEAD_OUT, STEM_OUT, 1, 1),
                                           jnp.float32)
    p["head_bn"] = (jnp.ones((HEAD_OUT,), jnp.float32),
                    0.01 * jax.random.normal(ks[3], (HEAD_OUT,), jnp.float32),
                    jnp.zeros((HEAD_OUT,), jnp.float32),
                    jnp.ones((HEAD_OUT,), jnp.float32))
    # Classifier Linear(1792, num_classes): PyTorch layout (out, in) + bias.
    p["fc_w"] = 0.02 * jax.random.normal(ks[4], (NUM_CLASSES, HEAD_OUT),
                                         jnp.float32)
    p["fc_b"] = 0.01 * jax.random.normal(ks[5], (NUM_CLASSES,), jnp.float32)
    return p


@jax.jit
def melanoma_classifier_forward(params, x_nchw):
    x = jnp.transpose(x_nchw, (0, 2, 3, 1))                     # NCHW -> NHWC

    # ---- Stem: Conv2d(3, 48, k=3, s=2, p=1, bias=False) + BN + SiLU --------
    patches, _, _ = im2col(x, 3, 3, stride=2, pad=1)            # (B, HW, 27)

    w_stem = jnp.transpose(params["stem_w"], (2, 3, 1, 0)).reshape(-1, STEM_OUT)
    w_stem = jnp.pad(w_stem, ((0, 0), (0, STEM_OUT_PAD - STEM_OUT)))
    s0, b0 = fold_bn(*params["stem_bn"])
    s0 = jnp.pad(s0, ((0, 0), (0, STEM_OUT_PAD - STEM_OUT)), constant_values=1.0)
    b0 = jnp.pad(b0, ((0, 0), (0, STEM_OUT_PAD - STEM_OUT)))

    # TODO(synk): EfficientNet-B4 MBConv stages (blocks 1-7, depthwise convs +
    # squeeze-excitation) are not reproduced; stem feeds the head directly.

    # ---- Head: Conv2d(48, 1792, k=1, bias=False) + BN + SiLU ---------------
    w_head = params["head_w"].reshape(HEAD_OUT, STEM_OUT).T     # (48, 1792)
    w_head = jnp.pad(w_head, ((0, STEM_OUT_PAD - STEM_OUT), (0, 0)))
    s1, b1 = fold_bn(*params["head_bn"])

    # ---- AdaptiveAvgPool2d(1) + Dropout(eval: identity) + Linear(1792, 2) --
    # fc_w in bf16 (halves resident VMEM, single-pass MXU); fc_b kept f32.
    fc_w = jnp.pad(params["fc_w"].T, ((0, 0), (0, NC_PAD - NUM_CLASSES)))
    fc_w = fc_w.astype(jnp.bfloat16)
    fc_b = jnp.pad(params["fc_b"][None, :], ((0, 0), (0, NC_PAD - NUM_CLASSES)))

    return fused_forward(patches.astype(jnp.bfloat16),
                         w_stem.astype(jnp.bfloat16), s0, b0,
                         w_head.astype(jnp.bfloat16), s1, b1,
                         fc_w, fc_b)                            # (B, NUM_CLASSES)


def _reference_forward(params, x_nchw):
    """Pure-JAX f32 reference of the same (stem -> head -> pool -> fc) path."""
    x = jnp.transpose(x_nchw, (0, 2, 3, 1))
    patches, _, _ = im2col(x, 3, 3, stride=2, pad=1)
    B, HW, _ = patches.shape
    w_stem = jnp.transpose(params["stem_w"], (2, 3, 1, 0)).reshape(-1, STEM_OUT)
    s0, b0 = fold_bn(*params["stem_bn"])
    f = jnp.dot(patches.reshape(B * HW, -1), w_stem) * s0 + b0
    f = f * jax.nn.sigmoid(f)
    w_head = params["head_w"].reshape(HEAD_OUT, STEM_OUT).T
    s1, b1 = fold_bn(*params["head_bn"])
    f = jnp.dot(f, w_head) * s1 + b1
    f = f * jax.nn.sigmoid(f)
    pooled = jnp.mean(f.reshape(B, HW, HEAD_OUT), axis=1)
    return pooled @ params["fc_w"].T + params["fc_b"][None, :]


# --------------------------------------------------------------------------- #
if __name__ == "__main__":
    key = jax.random.PRNGKey(0)
    k_param, k_x = jax.random.split(key)
    params = init_params(k_param)

    # Small NCHW RGB batch (PyTorch convention): (batch=2, channels=3, 32, 32).
    x = jax.random.normal(k_x, (2, 3, 32, 32), jnp.float32)

    logits = melanoma_classifier_forward(params, x)
    jax.block_until_ready(logits)
    assert logits.shape == (2, NUM_CLASSES)

    ref = _reference_forward(params, x)
    assert bool(jnp.allclose(logits, ref, rtol=5e-2, atol=5e-2)), \
        "kernel output deviates from f32 reference"
    print("KERNEL_OK")
</pallas_src>

<mosaic_0001>
module attributes {stable_mosaic.version = 11 : i64} {
  func.func @_fused_forward_kernel(%arg0: i32, %arg1: i32, %arg2: memref<1x256x27xbf16, #tpu.memory_space<vmem>>, %arg3: memref<27x128xbf16, #tpu.memory_space<vmem>>, %arg4: memref<1x128xf32, #tpu.memory_space<vmem>>, %arg5: memref<1x128xf32, #tpu.memory_space<vmem>>, %arg6: memref<128x1792xbf16, #tpu.memory_space<vmem>>, %arg7: memref<1x1792xf32, #tpu.memory_space<vmem>>, %arg8: memref<1x1792xf32, #tpu.memory_space<vmem>>, %arg9: memref<1792x128xbf16, #tpu.memory_space<vmem>>, %arg10: memref<1x128xf32, #tpu.memory_space<vmem>>, %arg11: memref<1x1x128xf32, #tpu.memory_space<vmem>>, %arg12: memref<1x1792xf32, #tpu.memory_space<vmem>>) attributes {dimension_semantics = [#tpu.dimension_semantics<parallel>, #tpu.dimension_semantics<arbitrary>], iteration_bounds = array<i64: 2, 1>, scalar_prefetch = 0 : i64, scratch_operands = 1 : i64, tpu.core_type = #tpu.core_type<tc>, window_params = [{transform_indices = @transform_0, window_bounds = array<i64: 1, 256, 27>}, {pipeline_mode = #tpu.pipeline_mode<synchronous>, transform_indices = @transform_1, window_bounds = array<i64: 27, 128>}, {pipeline_mode = #tpu.pipeline_mode<synchronous>, transform_indices = @transform_2, window_bounds = array<i64: 1, 128>}, {pipeline_mode = #tpu.pipeline_mode<synchronous>, transform_indices = @transform_3, window_bounds = array<i64: 1, 128>}, {pipeline_mode = #tpu.pipeline_mode<synchronous>, transform_indices = @transform_4, window_bounds = array<i64: 128, 1792>}, {pipeline_mode = #tpu.pipeline_mode<synchronous>, transform_indices = @transform_5, window_bounds = array<i64: 1, 1792>}, {pipeline_mode = #tpu.pipeline_mode<synchronous>, transform_indices = @transform_6, window_bounds = array<i64: 1, 1792>}, {pipeline_mode = #tpu.pipeline_mode<synchronous>, transform_indices = @transform_7, window_bounds = array<i64: 1792, 128>}, {pipeline_mode = #tpu.pipeline_mode<synchronous>, transform_indices = @transform_8, window_bounds = array<i64: 1, 128>}, {transform_indices = @transform_9, window_bounds = array<i64: 1, 1, 128>}]} {
    %c0_i32 = arith.constant 0 : i32
    %0 = arith.cmpi eq, %arg1, %c0_i32 : i32
    %1 = arith.extui %0 : i1 to i32
    %c0_i32_0 = arith.constant 0 : i32
    %2 = arith.cmpi ne, %1, %c0_i32_0 : i32
    scf.if %2 {
      %cst_28 = arith.constant 0.000000e+00 : f32
      %53 = vector.broadcast %cst_28 : f32 to vector<1x1792xf32>
      %c0_29 = arith.constant 0 : index
      %c0_30 = arith.constant 0 : index
      %54 = vector.load %arg12[%c0_29, %c0_30] : memref<1x1792xf32, #tpu.memory_space<vmem>>, vector<1x1792xf32>
      tpu.vector_store %arg12[%c0_29, %c0_30], %53 {strides = array<i32>} : memref<1x1792xf32, #tpu.memory_space<vmem>>, vector<1x1792xf32>,
    } else {
    }
    %c0 = arith.constant 0 : index
    %c0_1 = arith.constant 0 : index
    %c0_2 = arith.constant 0 : index
    %3 = vector.load %arg2[%c0, %c0_1, %c0_2] : memref<1x256x27xbf16, #tpu.memory_space<vmem>>, vector<1x256x27xbf16>
    %4 = vector.shape_cast %3 : vector<1x256x27xbf16> to vector<256x27xbf16>
    %c0_3 = arith.constant 0 : index
    %c0_4 = arith.constant 0 : index
    %5 = vector.load %arg3[%c0_3, %c0_4] : memref<27x128xbf16, #tpu.memory_space<vmem>>, vector<27x128xbf16>
    %cst = arith.constant dense<0.000000e+00> : vector<256x128xf32>
    %6 = tpu.matmul %4, %5, %cst {dimension_numbers = #tpu.dot_dimension_numbers<[1], [0], [0], [1], [0, 0, 1, 1], [], []>} : vector<256x27xbf16>, vector<27x128xbf16>, vector<256x128xf32> -> vector<256x128xf32>
    %c0_5 = arith.constant 0 : index
    %c0_6 = arith.constant 0 : index
    %7 = vector.load %arg4[%c0_5, %c0_6] : memref<1x128xf32, #tpu.memory_space<vmem>>, vector<1x128xf32>
    %8 = vector.broadcast %7 : vector<1x128xf32> to vector<256x128xf32>
    %9 = arith.mulf %6, %8 : vector<256x128xf32>
    %c0_7 = arith.constant 0 : index
    %c0_8 = arith.constant 0 : index
    %10 = vector.load %arg5[%c0_7, %c0_8] : memref<1x128xf32, #tpu.memory_space<vmem>>, vector<1x128xf32>
    %11 = vector.broadcast %10 : vector<1x128xf32> to vector<256x128xf32>
    %12 = arith.addf %9, %11 : vector<256x128xf32>
    %cst_9 = arith.constant 0.000000e+00 : f32
    %13 = vector.broadcast %cst_9 : f32 to vector<256x128xf32>
    %14 = arith.subf %13, %12 : vector<256x128xf32>
    %15 = math.exp %14 : vector<256x128xf32>
    %cst_10 = arith.constant 1.000000e+00 : f32
    %16 = vector.broadcast %cst_10 : f32 to vector<256x128xf32>
    %17 = arith.addf %16, %15 : vector<256x128xf32>
    %18 = tpu.reciprocal %17 {approx = true} : vector<256x128xf32> -> vector<256x128xf32>
    %19 = arith.mulf %12, %18 : vector<256x128xf32>
    %20 = arith.truncf %19 : vector<256x128xf32> to vector<256x128xbf16>
    %c0_11 = arith.constant 0 : index
    %c0_12 = arith.constant 0 : index
    %21 = vector.load %arg6[%c0_11, %c0_12] : memref<128x1792xbf16, #tpu.memory_space<vmem>>, vector<128x1792xbf16>
    %cst_13 = arith.constant dense<0.000000e+00> : vector<256x1792xf32>
    %22 = tpu.matmul %20, %21, %cst_13 {dimension_numbers = #tpu.dot_dimension_numbers<[1], [0], [0], [1], [0, 0, 1, 1], [], []>} : vector<256x128xbf16>, vector<128x1792xbf16>, vector<256x1792xf32> -> vector<256x1792xf32>
    %c0_14 = arith.constant 0 : index
    %c0_15 = arith.constant 0 : index
    %23 = vector.load %arg7[%c0_14, %c0_15] : memref<1x1792xf32, #tpu.memory_space<vmem>>, vector<1x1792xf32>
    %24 = vector.broadcast %23 : vector<1x1792xf32> to vector<256x1792xf32>
    %25 = arith.mulf %22, %24 : vector<256x1792xf32>
    %c0_16 = arith.constant 0 : index
    %c0_17 = arith.constant 0 : index
    %26 = vector.load %arg8[%c0_16, %c0_17] : memref<1x1792xf32, #tpu.memory_space<vmem>>, vector<1x1792xf32>
    %27 = vector.broadcast %26 : vector<1x1792xf32> to vector<256x1792xf32>
    %28 = arith.addf %25, %27 : vector<256x1792xf32>
    %cst_18 = arith.constant 0.000000e+00 : f32
    %29 = vector.broadcast %cst_18 : f32 to vector<256x1792xf32>
    %30 = arith.subf %29, %28 : vector<256x1792xf32>
    %31 = math.exp %30 : vector<256x1792xf32>
    %cst_19 = arith.constant 1.000000e+00 : f32
    %32 = vector.broadcast %cst_19 : f32 to vector<256x1792xf32>
    %33 = arith.addf %32, %31 : vector<256x1792xf32>
    %34 = tpu.reciprocal %33 {approx = true} : vector<256x1792xf32> -> vector<256x1792xf32>
    %35 = arith.mulf %28, %34 : vector<256x1792xf32>
    %36 = arith.truncf %35 : vector<256x1792xf32> to vector<256x1792xbf16>
    %37 = tpu.iota {dimensions = array<i32: 1>} : vector<1x256xi32>
    %c256_i32 = arith.constant 256 : i32
    %38 = arith.muli %arg1, %c256_i32 : i32
    %39 = vector.broadcast %38 : i32 to vector<1x256xi32>
    %40 = arith.addi %37, %39 : vector<1x256xi32>
    %c256_i32_20 = arith.constant 256 : i32
    %41 = vector.broadcast %c256_i32_20 : i32 to vector<1x256xi32>
    %42 = arith.cmpi slt, %40, %41 : vector<1x256xi32>
    %43 = arith.extui %42 : vector<1x256xi1> to vector<1x256xi32>
    %44 = arith.sitofp %43 : vector<1x256xi32> to vector<1x256xf32>
    %45 = arith.truncf %44 : vector<1x256xf32> to vector<1x256xbf16>
    %c0_21 = arith.constant 0 : index
    %c0_22 = arith.constant 0 : index
    %46 = vector.load %arg12[%c0_21, %c0_22] : memref<1x1792xf32, #tpu.memory_space<vmem>>, vector<1x1792xf32>
    %cst_23 = arith.constant dense<0.000000e+00> : vector<1x1792xf32>
    %47 = tpu.matmul %45, %36, %cst_23 {dimension_numbers = #tpu.dot_dimension_numbers<[1], [0], [0], [1], [0, 0, 1, 1], [], []>} : vector<1x256xbf16>, vector<256x1792xbf16>, vector<1x1792xf32> -> vector<1x1792xf32>
    %48 = arith.addf %46, %47 : vector<1x1792xf32>
    %c0_24 = arith.constant 0 : index
    %c0_25 = arith.constant 0 : index
    %49 = vector.load %arg12[%c0_24, %c0_25] : memref<1x1792xf32, #tpu.memory_space<vmem>>, vector<1x1792xf32>
    tpu.vector_store %arg12[%c0_24, %c0_25], %48 {strides = array<i32>} : memref<1x1792xf32, #tpu.memory_space<vmem>>, vector<1x1792xf32>,
    %c0_i32_26 = arith.constant 0 : i32
    %50 = arith.cmpi eq, %arg1, %c0_i32_26 : i32
    %51 = arith.extui %50 : i1 to i32
    %c0_i32_27 = arith.constant 0 : i32
    %52 = arith.cmpi ne, %51, %c0_i32_27 : i32
    scf.if %52 {
      %c0_28 = arith.constant 0 : index
      %c0_29 = arith.constant 0 : index
      %53 = vector.load %arg12[%c0_28, %c0_29] : memref<1x1792xf32, #tpu.memory_space<vmem>>, vector<1x1792xf32>
      %cst_30 = arith.constant 3.906250e-03 : f32
      %54 = vector.broadcast %cst_30 : f32 to vector<1x1792xf32>
      %55 = arith.mulf %53, %54 : vector<1x1792xf32>
      %56 = arith.truncf %55 : vector<1x1792xf32> to vector<1x1792xbf16>
      %c0_31 = arith.constant 0 : index
      %c0_32 = arith.constant 0 : index
      %57 = vector.load %arg9[%c0_31, %c0_32] : memref<1792x128xbf16, #tpu.memory_space<vmem>>, vector<1792x128xbf16>
      %cst_33 = arith.constant dense<0.000000e+00> : vector<1x128xf32>
      %58 = tpu.matmul %56, %57, %cst_33 {dimension_numbers = #tpu.dot_dimension_numbers<[1], [0], [0], [1], [0, 0, 1, 1], [], []>} : vector<1x1792xbf16>, vector<1792x128xbf16>, vector<1x128xf32> -> vector<1x128xf32>
      %c0_34 = arith.constant 0 : index
      %c0_35 = arith.constant 0 : index
      %59 = vector.load %arg10[%c0_34, %c0_35] : memref<1x128xf32, #tpu.memory_space<vmem>>, vector<1x128xf32>
      %60 = arith.addf %58, %59 : vector<1x128xf32>
      %c0_36 = arith.constant 0 : index
      %c0_37 = arith.constant 0 : index
      %c0_38 = arith.constant 0 : index
      %61 = vector.load %arg11[%c0_36, %c0_37, %c0_38] : memref<1x1x128xf32, #tpu.memory_space<vmem>>, vector<1x1x128xf32>
      %62 = vector.shape_cast %61 : vector<1x1x128xf32> to vector<1x128xf32>
      %63 = vector.shape_cast %60 : vector<1x128xf32> to vector<1x1x128xf32>
      tpu.vector_store %arg11[%c0_36, %c0_37, %c0_38], %63 {strides = array<i32>} : memref<1x1x128xf32, #tpu.memory_space<vmem>>, vector<1x1x128xf32>,
    } else {
    }
    return
  }
  func.func @transform_0(%arg0: i32, %arg1: i32) -> (i32, i32, i32) {
    %c0_i32 = arith.constant 0 : i32
    %c0_i32_0 = arith.constant 0 : i32
    return %arg0, %arg1, %c0_i32 : i32, i32, i32
  }
  func.func @transform_1(%arg0: i32, %arg1: i32) -> (i32, i32) {
    %c0_i32 = arith.constant 0 : i32
    %c0_i32_0 = arith.constant 0 : i32
    %c0_i32_1 = arith.constant 0 : i32
    return %c0_i32, %c0_i32_0 : i32, i32
  }
  func.func @transform_2(%arg0: i32, %arg1: i32) -> (i32, i32) {
    %c0_i32 = arith.constant 0 : i32
    %c0_i32_0 = arith.constant 0 : i32
    %c0_i32_1 = arith.constant 0 : i32
    return %c0_i32, %c0_i32_0 : i32, i32
  }
  func.func @transform_3(%arg0: i32, %arg1: i32) -> (i32, i32) {
    %c0_i32 = arith.constant 0 : i32
    %c0_i32_0 = arith.constant 0 : i32
    %c0_i32_1 = arith.constant 0 : i32
    return %c0_i32, %c0_i32_0 : i32, i32
  }
  func.func @transform_4(%arg0: i32, %arg1: i32) -> (i32, i32) {
    %c0_i32 = arith.constant 0 : i32
    %c0_i32_0 = arith.constant 0 : i32
    %c0_i32_1 = arith.constant 0 : i32
    return %c0_i32, %c0_i32_0 : i32, i32
  }
  func.func @transform_5(%arg0: i32, %arg1: i32) -> (i32, i32) {
    %c0_i32 = arith.constant 0 : i32
    %c0_i32_0 = arith.constant 0 : i32
    %c0_i32_1 = arith.constant 0 : i32
    return %c0_i32, %c0_i32_0 : i32, i32
  }
  func.func @transform_6(%arg0: i32, %arg1: i32) -> (i32, i32) {
    %c0_i32 = arith.constant 0 : i32
    %c0_i32_0 = arith.constant 0 : i32
    %c0_i32_1 = arith.constant 0 : i32
    return %c0_i32, %c0_i32_0 : i32, i32
  }
  func.func @transform_7(%arg0: i32, %arg1: i32) -> (i32, i32) {
    %c0_i32 = arith.constant 0 : i32
    %c0_i32_0 = arith.constant 0 : i32
    %c0_i32_1 = arith.constant 0 : i32
    return %c0_i32, %c0_i32_0 : i32, i32
  }
  func.func @transform_8(%arg0: i32, %arg1: i32) -> (i32, i32) {
    %c0_i32 = arith.constant 0 : i32
    %c0_i32_0 = arith.constant 0 : i32
    %c0_i32_1 = arith.constant 0 : i32
    return %c0_i32, %c0_i32_0 : i32, i32
  }
  func.func @transform_9(%arg0: i32, %arg1: i32) -> (i32, i32, i32) {
    %c0_i32 = arith.constant 0 : i32
    %c0_i32_0 = arith.constant 0 : i32
    %c0_i32_1 = arith.constant 0 : i32
    return %arg0, %c0_i32, %c0_i32_0 : i32, i32, i32
  }
}

</mosaic_0001>

<llo_original>
// kernel: melanoma_classifier_forward.1
$region0: #{melanoma_classifier_forward.1}
  #allocation0 [shape = 'u32[]', space=smem, size = 0x4, offset = 0x4, fixed_abs, tag = 'smem constant byte address 0x4 - core index']
  #allocation1 [shape = 'u32[144,128]{1,0:T(1,128)}', space=vmem, size = 0x12000, scoped, tag = 'internal scratch']
  #allocation2 [shape = 'f32[1,1792]{1,0:T(1,128)}', space=vmem, size = 0x1c00, scoped, tag = 'scratch operand']
  %s0 = inlined_call_operand.hbm [shape: bf16[2,256,27], index: 0, kind: input, shape index: {}]
  %s1 = inlined_call_operand.hbm [shape: bf16[27,128], index: 1, kind: input, shape index: {}]
  %s2 = inlined_call_operand.hbm [shape: f32[1,128], index: 2, kind: input, shape index: {}]
  %s3 = inlined_call_operand.hbm [shape: f32[1,128], index: 3, kind: input, shape index: {}]
  %s4 = inlined_call_operand.hbm [shape: bf16[128,1792], index: 4, kind: input, shape index: {}]
  %s5 = inlined_call_operand.hbm [shape: f32[1,1792], index: 5, kind: input, shape index: {}]
  %s6 = inlined_call_operand.hbm [shape: f32[1,1792], index: 6, kind: input, shape index: {}]
  %s7 = inlined_call_operand.hbm [shape: bf16[1792,128], index: 7, kind: input, shape index: {}]
  %s8 = inlined_call_operand.hbm [shape: f32[1,128], index: 8, kind: input, shape index: {}]
  %s9 = inlined_call_operand.hbm [shape: f32[2,1,128], index: 9, kind: output, shape index: {}]
  %s10 = sld [smem:[#allocation0]]
  $region113: #{melanoma_classifier_forward.1} parent=0
    _
  %s12 = ssub.s32 1, %s10
  %s13 = scalar_select 0, %s12, %s10
  $region1: #{melanoma_classifier_forward.1} parent=0
    #allocation3 [shape = 'u8[131072]{0}', space=vmem, size = 0x20000, scoped, tag = 'input window, operand 0']
    #allocation4 [shape = 's32[2]{0}', space=sflag, size = 0x8, scoped, tag = 'scoped memory for melanoma_classifier_forward.1']
    #allocation5 [shape = 's32[2]{0}', space=sflag, size = 0x8, scoped, tag = 'scoped memory for melanoma_classifier_forward.1']
    #allocation6 [shape = 'u8[8192]{0}', space=vmem, size = 0x2000, scoped, tag = 'input window, operand 1, single buffered']
    #allocation7 [shape = 's32[1]{0}', space=sflag, size = 0x4, scoped, tag = 'scoped memory for melanoma_classifier_forward.1']
    #allocation8 [shape = 'u8[512]{0}', space=vmem, size = 0x400, scoped, tag = 'input window, operand 2, single buffered']
    #allocation9 [shape = 'u8[512]{0}', space=vmem, size = 0x400, scoped, tag = 'input window, operand 3, single buffered']
    #allocation10 [shape = 's32[1]{0}', space=sflag, size = 0x4, scoped, tag = 'scoped memory for melanoma_classifier_forward.1']
    #allocation11 [shape = 'u8[458752]{0}', space=vmem, size = 0x70000, scoped, tag = 'input window, operand 4, single buffered']
    #allocation12 [shape = 'u8[7168]{0}', space=vmem, size = 0x1c00, scoped, tag = 'input window, operand 5, single buffered']
    #allocation13 [shape = 's32[1]{0}', space=sflag, size = 0x4, scoped, tag = 'scoped memory for melanoma_classifier_forward.1']
    #allocation14 [shape = 'u8[7168]{0}', space=vmem, size = 0x1c00, scoped, tag = 'input window, operand 6, single buffered']
    #allocation15 [shape = 'u8[458752]{0}', space=vmem, size = 0x70000, scoped, tag = 'input window, operand 7, single buffered']
    #allocation16 [shape = 's32[1]{0}', space=sflag, size = 0x4, scoped, tag = 'scoped memory for melanoma_classifier_forward.1']
    #allocation17 [shape = 'u8[512]{0}', space=vmem, size = 0x400, scoped, tag = 'input window, operand 8, single buffered']
    #allocation18 [shape = 'u8[1024]{0}', space=vmem, size = 0x400, scoped, tag = 'output window, operand 0']
    %14 = vsyncpa [#allocation4], 0
    %s15 = scalar_lea.sflag [#allocation4], 1
    %16 = vsyncpa %s15, 0
    %17 = vsyncpa [#allocation7], 0
    %18 = vsyncpa [#allocation10], 0
    %19 = vsyncpa [#allocation13], 0
    %20 = vsyncpa [#allocation16], 0
    %21 = vsyncpa [#allocation5], 0
    %s22 = scalar_lea.sflag [#allocation5], 1
    %23 = vsyncpa %s22, 0
    loop: start=0, step=1, limit=4
    $region2: #{melanoma_classifier_forward.1} parent=1 // loop_pre_header
      _
    $region3: #{melanoma_classifier_forward.1} parent=1 // loop_header
      %s25 = sphi 0, %s29
      %p26 = scmp.ge.s32.totalorder %s25, 4
      %s32 = sphi 0, %s44
      %s33 = sphi 0, %s40
      %s34 = sphi 0, %s32
      %s35 = sphi 0, %s33
      %s36 = sphi 0, %s34
      %s37 = sphi 0, %s35
      %s49 = sphi 0, %s51
      %s52 = sphi 0, %s49
      %s53 = sphi 0, %s52
      %s69 = sphi 0, %s53
      %s73 = sphi 0, %s73
      %s75 = sphi 0, %s73
      %s76 = sphi 0, %s75
      %s90 = sphi 0, %s76
      %s94 = sphi 0, %s94
      %s96 = sphi 0, %s94
      %s97 = sphi 0, %s96
      %s111 = sphi 0, %s97
      %s115 = sphi 0, %s115
      %s117 = sphi 0, %s115
      %s118 = sphi 0, %s117
      %s132 = sphi 0, %s118
      %s136 = sphi 0, %s136
      %s138 = sphi 0, %s136
      %s139 = sphi 0, %s138
      %s153 = sphi 0, %s139
      %s157 = sphi 0, %s157
      %s159 = sphi 0, %s157
      %s160 = sphi 0, %s159
      %s174 = sphi 0, %s160
      %s178 = sphi 0, %s178
      %s180 = sphi 0, %s178
      %s181 = sphi 0, %s180
      %s195 = sphi 0, %s181
      %s199 = sphi 0, %s199
      %s201 = sphi 0, %s199
      %s202 = sphi 0, %s201
      %s216 = sphi 0, %s202
      %s220 = sphi 0, %s220
      %s222 = sphi 0, %s220
      %s223 = sphi 0, %s222
      %s237 = sphi 0, %s223
      %s243 = sphi 0, %s245
      %s246 = sphi 0, %s243
      %s247 = sphi 0, %s246
      %s263 = sphi 0, %s247
    $region4: #{melanoma_classifier_forward.1} parent=1 // loop_header_branch
      %28 = sbr.rel (%p26) target = $region8
    $region5: #{melanoma_classifier_forward.1} parent=1 // loop_body
      %s30 = ssub.s32 %s25, 1
      %s31 = ssub.s32 %s25, 2
      %s38 = sadd.s32 1, %s33
      %p39 = scmp.ge.s32.totalorder %s38, 1
      %s40 = scalar_select %p39, 0, %s38
      %s41 = sadd.s32 1, %s32
      %s42 = scalar_select %p39, %s41, %s32
      %p43 = scmp.ge.s32.totalorder %s42, 2
      %s44 = scalar_select %p43, 0, %s42
      %s45 = ssub.s32 %s32, %s44
      %s46 = ssub.s32 %s33, %s40
      %s47 = sor.u32 %s45, %s46
      %p48 = scmp.eq.s32.totalorder %s47, 0
      %s50 = sadd.s32 %s49, 1
      %s51 = scalar_select %p48, %s49, %s50
      %p54 = pneg %p48
      %p55 = scmp.eq.s32.totalorder %s25, 1
      %p56 = por %p54, %p55
      %p57 = scmp.ne.s32.totalorder %s49, %s52
      %p58 = scmp.eq.s32.totalorder %s25, 0
      %p59 = por %p57, %p58
      %p60 = scmp.ne.s32.totalorder %s49, %s52
      %p61 = scmp.eq.s32.totalorder %s30, 1
      %p62 = por %p60, %p61
      %p63 = scmp.ne.s32.totalorder %s52, %s53
      %p64 = scmp.eq.s32.totalorder %s30, 0
      %p65 = por %p63, %p64
      %p66 = scmp.ne.s32.totalorder %s52, %s53
      %p67 = scmp.eq.s32.totalorder %s31, 1
      %p68 = por %p66, %p67
      %p70 = scmp.ne.s32.totalorder %s53, %s69
      %p71 = scmp.eq.s32.totalorder %s31, 0
      %p72 = por %p70, %p71
      %s74 = sadd.s32 %s73, 1
      %p77 = scmp.eq.s32.totalorder %s25, 1
      %p78 = scmp.ne.s32.totalorder %s73, %s75
      %p79 = scmp.eq.s32.totalorder %s25, 0
      %p80 = por %p78, %p79
      %p81 = scmp.ne.s32.totalorder %s73, %s75
      %p82 = scmp.eq.s32.totalorder %s30, 1
      %p83 = por %p81, %p82
      %p84 = scmp.ne.s32.totalorder %s75, %s76
      %p85 = scmp.eq.s32.totalorder %s30, 0
      %p86 = por %p84, %p85
      %p87 = scmp.ne.s32.totalorder %s75, %s76
      %p88 = scmp.eq.s32.totalorder %s31, 1
      %p89 = por %p87, %p88
      %p91 = scmp.ne.s32.totalorder %s76, %s90
      %p92 = scmp.eq.s32.totalorder %s31, 0
      %p93 = por %p91, %p92
      %s95 = sadd.s32 %s94, 1
      %p98 = scmp.eq.s32.totalorder %s25, 1
      %p99 = scmp.ne.s32.totalorder %s94, %s96
      %p100 = scmp.eq.s32.totalorder %s25, 0
      %p101 = por %p99, %p100
      %p102 = scmp.ne.s32.totalorder %s94, %s96
      %p103 = scmp.eq.s32.totalorder %s30, 1
      %p104 = por %p102, %p103
      %p105 = scmp.ne.s32.totalorder %s96, %s97
      %p106 = scmp.eq.s32.totalorder %s30, 0
      %p107 = por %p105, %p106
      %p108 = scmp.ne.s32.totalorder %s96, %s97
      %p109 = scmp.eq.s32.totalorder %s31, 1
      %p110 = por %p108, %p109
      %p112 = scmp.ne.s32.totalorder %s97, %s111
      %p113 = scmp.eq.s32.totalorder %s31, 0
      %p114 = por %p112, %p113
      %s116 = sadd.s32 %s115, 1
      %p119 = scmp.eq.s32.totalorder %s25, 1
      %p120 = scmp.ne.s32.totalorder %s115, %s117
      %p121 = scmp.eq.s32.totalorder %s25, 0
      %p122 = por %p120, %p121
      %p123 = scmp.ne.s32.totalorder %s115, %s117
      %p124 = scmp.eq.s32.totalorder %s30, 1
      %p125 = por %p123, %p124
      %p126 = scmp.ne.s32.totalorder %s117, %s118
      %p127 = scmp.eq.s32.totalorder %s30, 0
      %p128 = por %p126, %p127
      %p129 = scmp.ne.s32.totalorder %s117, %s118
      %p130 = scmp.eq.s32.totalorder %s31, 1
      %p131 = por %p129, %p130
      %p133 = scmp.ne.s32.totalorder %s118, %s132
      %p134 = scmp.eq.s32.totalorder %s31, 0
      %p135 = por %p133, %p134
      %s137 = sadd.s32 %s136, 1
      %p140 = scmp.eq.s32.totalorder %s25, 1
      %p141 = scmp.ne.s32.totalorder %s136, %s138
      %p142 = scmp.eq.s32.totalorder %s25, 0
      %p143 = por %p141, %p142
      %p144 = scmp.ne.s32.totalorder %s136, %s138
      %p145 = scmp.eq.s32.totalorder %s30, 1
      %p146 = por %p144, %p145
      %p147 = scmp.ne.s32.totalorder %s138, %s139
      %p148 = scmp.eq.s32.totalorder %s30, 0
      %p149 = por %p147, %p148
      %p150 = scmp.ne.s32.totalorder %s138, %s139
      %p151 = scmp.eq.s32.totalorder %s31, 1
      %p152 = por %p150, %p151
      %p154 = scmp.ne.s32.totalorder %s139, %s153
      %p155 = scmp.eq.s32.totalorder %s31, 0
      %p156 = por %p154, %p155
      %s158 = sadd.s32 %s157, 1
      %p161 = scmp.eq.s32.totalorder %s25, 1
      %p162 = scmp.ne.s32.totalorder %s157, %s159
      %p163 = scmp.eq.s32.totalorder %s25, 0
      %p164 = por %p162, %p163
      %p165 = scmp.ne.s32.totalorder %s157, %s159
      %p166 = scmp.eq.s32.totalorder %s30, 1
      %p167 = por %p165, %p166
      %p168 = scmp.ne.s32.totalorder %s159, %s160
      %p169 = scmp.eq.s32.totalorder %s30, 0
      %p170 = por %p168, %p169
      %p171 = scmp.ne.s32.totalorder %s159, %s160
      %p172 = scmp.eq.s32.totalorder %s31, 1
      %p173 = por %p171, %p172
      %p175 = scmp.ne.s32.totalorder %s160, %s174
      %p176 = scmp.eq.s32.totalorder %s31, 0
      %p177 = por %p175, %p176
      %s179 = sadd.s32 %s178, 1
      %p182 = scmp.eq.s32.totalorder %s25, 1
      %p183 = scmp.ne.s32.totalorder %s178, %s180
      %p184 = scmp.eq.s32.totalorder %s25, 0
      %p185 = por %p183, %p184
      %p186 = scmp.ne.s32.totalorder %s178, %s180
      %p187 = scmp.eq.s32.totalorder %s30, 1
      %p188 = por %p186, %p187
      %p189 = scmp.ne.s32.totalorder %s180, %s181
      %p190 = scmp.eq.s32.totalorder %s30, 0
      %p191 = por %p189, %p190
      %p192 = scmp.ne.s32.totalorder %s180, %s181
      %p193 = scmp.eq.s32.totalorder %s31, 1
      %p194 = por %p192, %p193
      %p196 = scmp.ne.s32.totalorder %s181, %s195
      %p197 = scmp.eq.s32.totalorder %s31, 0
      %p198 = por %p196, %p197
      %s200 = sadd.s32 %s199, 1
      %p203 = scmp.eq.s32.totalorder %s25, 1
      %p204 = scmp.ne.s32.totalorder %s199, %s201
      %p205 = scmp.eq.s32.totalorder %s25, 0
      %p206 = por %p204, %p205
      %p207 = scmp.ne.s32.totalorder %s199, %s201
      %p208 = scmp.eq.s32.totalorder %s30, 1
      %p209 = por %p207, %p208
      %p210 = scmp.ne.s32.totalorder %s201, %s202
      %p211 = scmp.eq.s32.totalorder %s30, 0
      %p212 = por %p210, %p211
      %p213 = scmp.ne.s32.totalorder %s201, %s202
      %p214 = scmp.eq.s32.totalorder %s31, 1
      %p215 = por %p213, %p214
      %p217 = scmp.ne.s32.totalorder %s202, %s216
      %p218 = scmp.eq.s32.totalorder %s31, 0
      %p219 = por %p217, %p218
      %s221 = sadd.s32 %s220, 1
      %p224 = scmp.eq.s32.totalorder %s25, 1
      %p225 = scmp.ne.s32.totalorder %s220, %s222
      %p226 = scmp.eq.s32.totalorder %s25, 0
      %p227 = por %p225, %p226
      %p228 = scmp.ne.s32.totalorder %s220, %s222
      %p229 = scmp.eq.s32.totalorder %s30, 1
      %p230 = por %p228, %p229
      %p231 = scmp.ne.s32.totalorder %s222, %s223
      %p232 = scmp.eq.s32.totalorder %s30, 0
      %p233 = por %p231, %p232
      %p234 = scmp.ne.s32.totalorder %s222, %s223
      %p235 = scmp.eq.s32.totalorder %s31, 1
      %p236 = por %p234, %p235
      %p238 = scmp.ne.s32.totalorder %s223, %s237
      %p239 = scmp.eq.s32.totalorder %s31, 0
      %p240 = por %p238, %p239
      %s241 = ssub.s32 %s32, %s44
      %p242 = scmp.eq.s32.totalorder %s241, 0
      %s244 = sadd.s32 %s243, 1
      %s245 = scalar_select %p242, %s243, %s244
      %p248 = pneg %p242
      %p249 = scmp.eq.s32.totalorder %s25, 1
      %p250 = por %p248, %p249
      %p251 = scmp.ne.s32.totalorder %s243, %s246
      %p252 = scmp.eq.s32.totalorder %s25, 0
      %p253 = por %p251, %p252
      %p254 = scmp.ne.s32.totalorder %s243, %s246
      %p255 = scmp.eq.s32.totalorder %s30, 1
      %p256 = por %p254, %p255
      %p257 = scmp.ne.s32.totalorder %s246, %s247
      %p258 = scmp.eq.s32.totalorder %s30, 0
      %p259 = por %p257, %p258
      %p260 = scmp.ne.s32.totalorder %s246, %s247
      %p261 = scmp.eq.s32.totalorder %s31, 1
      %p262 = por %p260, %p261
      %p264 = scmp.ne.s32.totalorder %s247, %s263
      %p265 = scmp.eq.s32.totalorder %s31, 0
      %p266 = por %p264, %p265
      %p267 = scmp.le.s32.totalorder 1, %s25
      %p268 = scmp.lt.s32.totalorder %s25, 3
      %p269 = pnand %p267, %p268
      %p270 = pneg %p269
      // Predicated region
      $region9: #{melanoma_classifier_forward.1} parent=5 // pred_check
        _
      $region10: #{melanoma_classifier_forward.1} parent=5 // pred_check_branch
        %272 = sbr.rel (%p269) target = $region12
      $region11: #{melanoma_classifier_forward.1} parent=5 // pred_region
        %s273 = ssub.s32 %s25, 1
        // Predicated region
        $region13: #{melanoma_classifier_forward.1} parent=11 // pred_check
          %p274 = pneg %p86
        $region14: #{melanoma_classifier_forward.1} parent=11 // pred_check_branch
          %276 = sbr.rel (%p274) target = $region16
        $region15: #{melanoma_classifier_forward.1} parent=11 // pred_region
          %s278 = ssub.s32 256, 256
          %279 = vsyncadd [#allocation7], %s278
          %s280 = sshll.u32 [#allocation6], 4
          %s281 = int_to_ptr.vmem [resolvable:$true] %s280
          %286 = dma.hbm_to_vmem [thread:$0]  %s1, 256, %s281, [#allocation7], 64, 64, 4
        $region16: #{melanoma_classifier_forward.1} parent=11 // pred_fallthru
          _
        // Predicated region
        $region17: #{melanoma_classifier_forward.1} parent=11 // pred_check
          %p287 = pneg %p107
        $region18: #{melanoma_classifier_forward.1} parent=11 // pred_check_branch
          %289 = sbr.rel (%p287) target = $region20
        $region19: #{melanoma_classifier_forward.1} parent=11 // pred_region
          %s291 = ssub.s32 16, 16
          %292 = vsyncadd [#allocation7], %s291
          %s294 = sshll.u32 [#allocation8], 4
          %s295 = int_to_ptr.vmem [resolvable:$true] %s294
          %297 = dma.hbm_to_vmem [thread:$0]  %s2, 16, %s295, [#allocation7]
        $region20: #{melanoma_classifier_forward.1} parent=11 // pred_fallthru
          _
        // Predicated region
        $region21: #{melanoma_classifier_forward.1} parent=11 // pred_check
          %p298 = pneg %p128
        $region22: #{melanoma_classifier_forward.1} parent=11 // pred_check_branch
          %300 = sbr.rel (%p298) target = $region24
        $region23: #{melanoma_classifier_forward.1} parent=11 // pred_region
          %s302 = ssub.s32 16, 16
          %303 = vsyncadd [#allocation10], %s302
          %s305 = sshll.u32 [#allocation9], 4
          %s306 = int_to_ptr.vmem [resolvable:$true] %s305
          %308 = dma.hbm_to_vmem [thread:$0]  %s3, 16, %s306, [#allocation10]
        $region24: #{melanoma_classifier_forward.1} parent=11 // pred_fallthru
          _
        // Predicated region
        $region25: #{melanoma_classifier_forward.1} parent=11 // pred_check
          %p309 = pneg %p149
        $region26: #{melanoma_classifier_forward.1} parent=11 // pred_check_branch
          %311 = sbr.rel (%p309) target = $region28
        $region27: #{melanoma_classifier_forward.1} parent=11 // pred_region
          %s313 = ssub.s32 14336, 14336
          %314 = vsyncadd [#allocation10], %s313
          %s315 = sshll.u32 [#allocation11], 4
          %s316 = int_to_ptr.vmem [resolvable:$true] %s315
          %321 = dma.hbm_to_vmem [thread:$0]  %s4, 14336, %s316, [#allocation10], 896, 896, 56
        $region28: #{melanoma_classifier_forward.1} parent=11 // pred_fallthru
          _
        // Predicated region
        $region29: #{melanoma_classifier_forward.1} parent=11 // pred_check
          %p322 = pneg %p170
        $region30: #{melanoma_classifier_forward.1} parent=11 // pred_check_branch
          %324 = sbr.rel (%p322) target = $region32
        $region31: #{melanoma_classifier_forward.1} parent=11 // pred_region
          %s326 = ssub.s32 224, 224
          %327 = vsyncadd [#allocation13], %s326
          %s329 = sshll.u32 [#allocation12], 4
          %s330 = int_to_ptr.vmem [resolvable:$true] %s329
          %332 = dma.hbm_to_vmem [thread:$0]  %s5, 224, %s330, [#allocation13]
        $region32: #{melanoma_classifier_forward.1} parent=11 // pred_fallthru
          _
        // Predicated region
        $region33: #{melanoma_classifier_forward.1} parent=11 // pred_check
          %p333 = pneg %p191
        $region34: #{melanoma_classifier_forward.1} parent=11 // pred_check_branch
          %335 = sbr.rel (%p333) target = $region36
        $region35: #{melanoma_classifier_forward.1} parent=11 // pred_region
          %s337 = ssub.s32 224, 224
          %338 = vsyncadd [#allocation13], %s337
          %s340 = sshll.u32 [#allocation14], 4
          %s341 = int_to_ptr.vmem [resolvable:$true] %s340
          %343 = dma.hbm_to_vmem [thread:$0]  %s6, 224, %s341, [#allocation13]
        $region36: #{melanoma_classifier_forward.1} parent=11 // pred_fallthru
          _
        // Predicated region
        $region37: #{melanoma_classifier_forward.1} parent=11 // pred_check
          %p344 = pneg %p212
        $region38: #{melanoma_classifier_forward.1} parent=11 // pred_check_branch
          %346 = sbr.rel (%p344) target = $region40
        $region39: #{melanoma_classifier_forward.1} parent=11 // pred_region
          %s348 = ssub.s32 14336, 14336
          %349 = vsyncadd [#allocation16], %s348
          %s350 = sshll.u32 [#allocation15], 4
          %s351 = int_to_ptr.vmem [resolvable:$true] %s350
          %356 = dma.hbm_to_vmem [thread:$0]  %s7, 14336, %s351, [#allocation16], 64, 64, 4
        $region40: #{melanoma_classifier_forward.1} parent=11 // pred_fallthru
          _
        // Predicated region
        $region41: #{melanoma_classifier_forward.1} parent=11 // pred_check
          %p357 = pneg %p233
        $region42: #{melanoma_classifier_forward.1} parent=11 // pred_check_branch
          %359 = sbr.rel (%p357) target = $region44
        $region43: #{melanoma_classifier_forward.1} parent=11 // pred_region
          %s361 = ssub.s32 16, 16
          %362 = vsyncadd [#allocation16], %s361
          %s364 = sshll.u32 [#allocation17], 4
          %s365 = int_to_ptr.vmem [resolvable:$true] %s364
          %367 = dma.hbm_to_vmem [thread:$0]  %s8, 16, %s365, [#allocation16]
        $region44: #{melanoma_classifier_forward.1} parent=11 // pred_fallthru
          _
      $region12: #{melanoma_classifier_forward.1} parent=5 // pred_fallthru
        _
      %p368 = scmp.lt.s32.totalorder %s25, 2
      // Predicated region
      $region45: #{melanoma_classifier_forward.1} parent=5 // pred_check
        %p369 = pneg %p368
      $region46: #{melanoma_classifier_forward.1} parent=5 // pred_check_branch
        %371 = sbr.rel (%p369) target = $region48
      $region47: #{melanoma_classifier_forward.1} parent=5 // pred_region
        // Predicated region
        $region49: #{melanoma_classifier_forward.1} parent=47 // pred_check
          %p372 = pneg %p59
        $region50: #{melanoma_classifier_forward.1} parent=47 // pred_check_branch
          %374 = sbr.rel (%p372) target = $region52
        $region51: #{melanoma_classifier_forward.1} parent=47 // pred_region
          %s375 = sand.u32 %s49, 1
          %s376 = scalar_lea.sflag [#allocation4], %s375
          %s377 = sand.u32 %s49, 1
          %s378 = smul.addr %s377, 128
          %s379 = scalar_lea.vmem [#allocation3], %s378
          %s380 = smul.u32 32, %s33
          %s382 = ssub.s32 2048, 2048
          %383 = vsyncadd %s376, %s382
          %s384 = smul.addr %s32, 32
          %s385 = sadd.s32 %s380, %s384
          %s386 = smul.addr %s385, 64
          %s387 = scalar_lea.hbm %s0, %s386
          %s388 = sshll.u32 %s379, 4
          %s389 = int_to_ptr.vmem [resolvable:$true] %s388
          %394 = dma.hbm_to_vmem [thread:$0]  %s387, 2048, %s389, %s376, 64, 64, 4
        $region52: #{melanoma_classifier_forward.1} parent=47 // pred_fallthru
          _
      $region48: #{melanoma_classifier_forward.1} parent=5 // pred_fallthru
        _
      %p395 = scmp.le.s32.totalorder 1, %s25
      %p396 = scmp.lt.s32.totalorder %s25, 3
      %p397 = pnand %p395, %p396
      %p398 = pneg %p397
      // Predicated region
      $region53: #{melanoma_classifier_forward.1} parent=5 // pred_check
        _
      $region54: #{melanoma_classifier_forward.1} parent=5 // pred_check_branch
        %400 = sbr.rel (%p397) target = $region56
      $region55: #{melanoma_classifier_forward.1} parent=5 // pred_region
        %s401 = ssub.s32 %s25, 1
        %s402 = sand.u32 %s52, 1
        %s403 = scalar_lea.sflag [#allocation4], %s402
        %s404 = sand.u32 %s52, 1
        %s405 = smul.addr %s404, 128
        %s406 = scalar_lea.vmem [#allocation3], %s405
        // Predicated region
        $region57: #{melanoma_classifier_forward.1} parent=55 // pred_check
          %p407 = pneg %p65
        $region58: #{melanoma_classifier_forward.1} parent=55 // pred_check_branch
          %409 = sbr.rel (%p407) target = $region60
        $region59: #{melanoma_classifier_forward.1} parent=55 // pred_region
          %410 = dma.done %s403, 2048
        $region60: #{melanoma_classifier_forward.1} parent=55 // pred_fallthru
          _
        // Predicated region
        $region61: #{melanoma_classifier_forward.1} parent=55 // pred_check
          %p411 = pneg %p86
        $region62: #{melanoma_classifier_forward.1} parent=55 // pred_check_branch
          %413 = sbr.rel (%p411) target = $region64
        $region63: #{melanoma_classifier_forward.1} parent=55 // pred_region
          %414 = dma.done [#allocation7], 256
        $region64: #{melanoma_classifier_forward.1} parent=55 // pred_fallthru
          _
        // Predicated region
        $region65: #{melanoma_classifier_forward.1} parent=55 // pred_check
          %p415 = pneg %p107
        $region66: #{melanoma_classifier_forward.1} parent=55 // pred_check_branch
          %417 = sbr.rel (%p415) target = $region68
        $region67: #{melanoma_classifier_forward.1} parent=55 // pred_region
          %418 = dma.done [#allocation7], 16
        $region68: #{melanoma_classifier_forward.1} parent=55 // pred_fallthru
          _
        // Predicated region
        $region69: #{melanoma_classifier_forward.1} parent=55 // pred_check
          %p419 = pneg %p128
        $region70: #{melanoma_classifier_forward.1} parent=55 // pred_check_branch
          %421 = sbr.rel (%p419) target = $region72
        $region71: #{melanoma_classifier_forward.1} parent=55 // pred_region
          %422 = dma.done [#allocation10], 16
        $region72: #{melanoma_classifier_forward.1} parent=55 // pred_fallthru
          _
        // Predicated region
        $region73: #{melanoma_classifier_forward.1} parent=55 // pred_check
          %p423 = pneg %p149
        $region74: #{melanoma_classifier_forward.1} parent=55 // pred_check_branch
          %425 = sbr.rel (%p423) target = $region76
        $region75: #{melanoma_classifier_forward.1} parent=55 // pred_region
          %426 = dma.done [#allocation10], 14336
        $region76: #{melanoma_classifier_forward.1} parent=55 // pred_fallthru
          _
        // Predicated region
        $region77: #{melanoma_classifier_forward.1} parent=55 // pred_check
          %p427 = pneg %p170
        $region78: #{melanoma_classifier_forward.1} parent=55 // pred_check_branch
          %429 = sbr.rel (%p427) target = $region80
        $region79: #{melanoma_classifier_forward.1} parent=55 // pred_region
          %430 = dma.done [#allocation13], 224
        $region80: #{melanoma_classifier_forward.1} parent=55 // pred_fallthru
          _
        // Predicated region
        $region81: #{melanoma_classifier_forward.1} parent=55 // pred_check
          %p431 = pneg %p191
        $region82: #{melanoma_classifier_forward.1} parent=55 // pred_check_branch
          %433 = sbr.rel (%p431) target = $region84
        $region83: #{melanoma_classifier_forward.1} parent=55 // pred_region
          %434 = dma.done [#allocation13], 224
        $region84: #{melanoma_classifier_forward.1} parent=55 // pred_fallthru
          _
        // Predicated region
        $region85: #{melanoma_classifier_forward.1} parent=55 // pred_check
          %p435 = pneg %p212
        $region86: #{melanoma_classifier_forward.1} parent=55 // pred_check_branch
          %437 = sbr.rel (%p435) target = $region88
        $region87: #{melanoma_classifier_forward.1} parent=55 // pred_region
          %438 = dma.done [#allocation16], 14336
        $region88: #{melanoma_classifier_forward.1} parent=55 // pred_fallthru
          _
        // Predicated region
        $region89: #{melanoma_classifier_forward.1} parent=55 // pred_check
          %p439 = pneg %p233
        $region90: #{melanoma_classifier_forward.1} parent=55 // pred_check_branch
          %441 = sbr.rel (%p439) target = $region92
        $region91: #{melanoma_classifier_forward.1} parent=55 // pred_region
          %442 = dma.done [#allocation16], 16
        $region92: #{melanoma_classifier_forward.1} parent=55 // pred_fallthru
          _
        %s443 = sand.u32 %s52, 1
        %s444 = scalar_lea.sflag [#allocation4], %s443
        %s445 = sand.u32 %s52, 1
        %s446 = smul.addr %s445, 128
        %s447 = scalar_lea.vmem [#allocation3], %s446
        %p448 = pneg %p65
        %p449 = pneg %p62
        %p450 = pneg %p86
        %p451 = pneg %p83
        %p452 = pneg %p107
        %p453 = pneg %p104
        %p454 = pneg %p128
        %p455 = pneg %p125
        %p456 = pneg %p149
        %p457 = pneg %p146
        %p458 = pneg %p170
        %p459 = pneg %p167
        %p460 = pneg %p191
        %p461 = pneg %p188
        %p462 = pneg %p212
        %p463 = pneg %p209
        %p464 = pneg %p233
        %p465 = pneg %p230
        %p466 = pneg %p259
        %p467 = pneg %p256
        %s468 = sand.u32 %s246, 1
        %s469 = scalar_lea.sflag [#allocation5], %s468
        %s470 = sand.u32 %s246, 1
        %s471 = scalar_lea.vmem [#allocation18], %s470
        %s472 = smul.u32 32, %s35
        %p474 = scmp.eq.s32.totalorder %s35, 0
        // Predicated region
        $region93: #{melanoma_classifier_forward.1} parent=55 // pred_check
          %p475 = pneg %p474
        $region94: #{melanoma_classifier_forward.1} parent=55 // pred_check_branch
          %477 = sbr.rel (%p475) target = $region96
        $region95: #{melanoma_classifier_forward.1} parent=55 // pred_region
          %478 = vst [vmem:[#allocation2] sm:$0xff] 0.0
          %v479 = vlaneseq
          %vm480 = vcmp.ge.s32.totalorder %v479, 0
          %vm481 = vcmp.lt.s32.totalorder %v479, 768
          %vm482 = vmand %vm480, %vm481
          %483 = vst.msk [vmem:[#allocation2 + $0x8] sm:$0x3f] %vm482, 0.0
        $region96: #{melanoma_classifier_forward.1} parent=55 // pred_fallthru
          _
        %v484 = vld [vmem:[%s406] sm:$0xf]
        %v485 = vld [vmem:[%s406 + $0x4] sm:$0xf]
        %v486 = vld [vmem:[%s406 + $0x8] sm:$0xf]
        %v487 = vld [vmem:[%s406 + $0xc] sm:$0xf]
        %v488 = vld [vmem:[%s406 + $0x10] sm:$0xf]
        %v489 = vld [vmem:[%s406 + $0x14] sm:$0xf]
        %v490 = vld [vmem:[%s406 + $0x18] sm:$0xf]
        %v491 = vld [vmem:[%s406 + $0x1c] sm:$0xf]
        %v492 = vld [vmem:[%s406 + $0x20] sm:$0xf]
        %v493 = vld [vmem:[%s406 + $0x24] sm:$0xf]
        %v494 = vld [vmem:[%s406 + $0x28] sm:$0xf]
        %v495 = vld [vmem:[%s406 + $0x2c] sm:$0xf]
        %v496 = vld [vmem:[%s406 + $0x30] sm:$0xf]
        %v497 = vld [vmem:[%s406 + $0x34] sm:$0xf]
        %v498 = vld [vmem:[%s406 + $0x38] sm:$0xf]
        %v499 = vld [vmem:[%s406 + $0x3c] sm:$0xf]
        %v500 = vld [vmem:[%s406 + $0x40] sm:$0xf]
        %v501 = vld [vmem:[%s406 + $0x44] sm:$0xf]
        %v502 = vld [vmem:[%s406 + $0x48] sm:$0xf]
        %v503 = vld [vmem:[%s406 + $0x4c] sm:$0xf]
        %v504 = vld [vmem:[%s406 + $0x50] sm:$0xf]
        %v505 = vld [vmem:[%s406 + $0x54] sm:$0xf]
        %v506 = vld [vmem:[%s406 + $0x58] sm:$0xf]
        %v507 = vld [vmem:[%s406 + $0x5c] sm:$0xf]
        %v508 = vld [vmem:[%s406 + $0x60] sm:$0xf]
        %v509 = vld [vmem:[%s406 + $0x64] sm:$0xf]
        %v510 = vld [vmem:[%s406 + $0x68] sm:$0xf]
        %v511 = vld [vmem:[%s406 + $0x6c] sm:$0xf]
        %v512 = vld [vmem:[%s406 + $0x70] sm:$0xf]
        %v513 = vld [vmem:[%s406 + $0x74] sm:$0xf]
        %v514 = vld [vmem:[%s406 + $0x78] sm:$0xf]
        %v515 = vld [vmem:[%s406 + $0x7c] sm:$0xf]
        %v516 = vld [vmem:[#allocation6] sm:$0xf]
        %v517 = vld [vmem:[#allocation6 + $0x4] sm:$0xf]
        %v518 = vld [vmem:[#allocation6 + $0x8] sm:$0xf]
        %v519 = vld [vmem:[#allocation6 + $0xc] sm:$0x3]
        %v552 = vunpack.c.l.b16 %v484
        %v553 = vunpack.c.l.b16 %v485
        %v554 = vunpack.c.l.b16 %v486
        %v555 = vunpack.c.l.b16 %v487
        %v556 = vunpack.c.l.b16 %v488
        %v557 = vunpack.c.l.b16 %v489
        %v558 = vunpack.c.l.b16 %v490
        %v559 = vunpack.c.l.b16 %v491
        %v560 = vunpack.c.l.b16 %v492
        %v561 = vunpack.c.l.b16 %v493
        %v562 = vunpack.c.l.b16 %v494
        %v563 = vunpack.c.l.b16 %v495
        %v564 = vunpack.c.l.b16 %v496
        %v565 = vunpack.c.l.b16 %v497
        %v566 = vunpack.c.l.b16 %v498
        %v567 = vunpack.c.l.b16 %v499
        %v568 = vunpack.c.l.b16 %v500
        %v569 = vunpack.c.l.b16 %v501
        %v570 = vunpack.c.l.b16 %v502
        %v571 = vunpack.c.l.b16 %v503
        %v572 = vunpack.c.l.b16 %v504
        %v573 = vunpack.c.l.b16 %v505
        %v574 = vunpack.c.l.b16 %v506
        %v575 = vunpack.c.l.b16 %v507
        %v576 = vunpack.c.l.b16 %v508
        %v577 = vunpack.c.l.b16 %v509
        %v578 = vunpack.c.l.b16 %v510
        %v579 = vunpack.c.l.b16 %v511
        %v580 = vunpack.c.l.b16 %v512
        %v581 = vunpack.c.l.b16 %v513
        %v582 = vunpack.c.l.b16 %v514
        %v583 = vunpack.c.l.b16 %v515
        %v584 = vpack.c.b16 %v553, %v552
        %v585 = vpack.c.b16 %v555, %v554
        %v586 = vpack.c.b16 %v557, %v556
        %v587 = vpack.c.b16 %v559, %v558
        %v588 = vpack.c.b16 %v561, %v560
        %v589 = vpack.c.b16 %v563, %v562
        %v590 = vpack.c.b16 %v565, %v564
        %v591 = vpack.c.b16 %v567, %v566
        %v592 = vpack.c.b16 %v569, %v568
        %v593 = vpack.c.b16 %v571, %v570
        %v594 = vpack.c.b16 %v573, %v572
        %v595 = vpack.c.b16 %v575, %v574
        %v596 = vpack.c.b16 %v577, %v576
        %v597 = vpack.c.b16 %v579, %v578
        %v598 = vpack.c.b16 %v581, %v580
        %v599 = vpack.c.b16 %v583, %v582
        %v604 = vunpack.c.l.b16 %v516
        %v605 = vunpack.c.l.b16 %v517
        %v606 = vunpack.c.l.b16 %v518
        %v607 = vunpack.c.l.b16 %v519
        %v608 = vpack.c.b16 %v605, %v604
        %v609 = vpack.c.b16 %v607, %v606
        %vm611 = vcmask 220160
        %v613 = vsel %vm611, %v584, 0
        %v616 = vsel %vm611, %v585, 0
        %v619 = vsel %vm611, %v586, 0
        %v622 = vsel %vm611, %v587, 0
        %v625 = vsel %vm611, %v588, 0
        %v628 = vsel %vm611, %v589, 0
        %v631 = vsel %vm611, %v590, 0
        %v634 = vsel %vm611, %v591, 0
        %v637 = vsel %vm611, %v592, 0
        %v640 = vsel %vm611, %v593, 0
        %v643 = vsel %vm611, %v594, 0
        %v646 = vsel %vm611, %v595, 0
        %v649 = vsel %vm611, %v596, 0
        %v652 = vsel %vm611, %v597, 0
        %v655 = vsel %vm611, %v598, 0
        %v658 = vsel %vm611, %v599, 0
        %vm660 = vcmask 1044480
        %vm661 = vcmask 1045504
        %v662 = vsel %vm660, 4294967295, 65535
        %v663 = vsel %vm661, %v662, 0
        %v665 = vand.u32 %v609, %v663
        %667 = vmatprep.subr.bf16.mxu0 0
        %668 = vmatpush1.bf16.msra.mxu0 %v608
        %669 = vmatprep.subr.bf16.mxu0 0
        %670 = vmatpush1.bf16.msra.mxu0 %v665
        %671 = vmatprep.subr.bf16.mxu0 0
        %672 = vmatpush1.bf16.msra.mxu0 0
        %673 = vmatprep.subr.bf16.mxu0 0
        %674 = vmatpush1.bf16.msra.mxu0 0
        %675 = vmatprep.subr.bf16.mxu0 0
        %676 = vmatpush1.bf16.msra.mxu0 0
        %677 = vmatprep.subr.bf16.mxu0 0
        %678 = vmatpush1.bf16.msra.mxu0 0
        %679 = vmatprep.subr.bf16.mxu0 0
        %680 = vmatpush1.bf16.msra.mxu0 0
        %681 = vmatprep.subr.bf16.mxu0 0
        %682 = vmatpush1.bf16.msra.mxu0 0
        %683 = vmatprep.subr.bf16.mxu0 0
        %684 = vmatpush1.bf16.msra.mxu0 0
        %685 = vmatprep.subr.bf16.mxu0 0
        %686 = vmatpush1.bf16.msra.mxu0 0
        %687 = vmatprep.subr.bf16.mxu0 0
        %688 = vmatpush1.bf16.msra.mxu0 0
        %689 = vmatprep.subr.bf16.mxu0 0
        %690 = vmatpush1.bf16.msra.mxu0 0
        %691 = vmatprep.subr.bf16.mxu0 0
        %692 = vmatpush1.bf16.msra.mxu0 0
        %693 = vmatprep.subr.bf16.mxu0 0
        %694 = vmatpush1.bf16.msra.mxu0 0
        %695 = vmatprep.subr.bf16.mxu0 0
        %696 = vmatpush1.bf16.msra.mxu0 0
        %697 = vmatprep.subr.bf16.mxu0 0
        %698 = vmatpush1.bf16.msra.mxu0 0
        %699 = vmatprep.mubr.bf16.mxu0 0
        %700 = vmatmul.mubr.bf16.gmra.mrb[0].mxu0 %v613
        %v701 = vpop.f32.mrb[0].mxu0
        %v702 = vadd.f32 0.0, %v701
        %v703 = vpop.f32.mrb[0].mxu0
        %v704 = vpop.f32.mrb[0].mxu0
        %v705 = vadd.f32 0.0, %v704
        %v706 = vpop.f32.mrb[0].mxu0
        %707 = vmatprep.mubr.bf16.mxu0 0
        %708 = vmatmul.mubr.bf16.gmra.mrb[0].mxu0 %v616
        %v709 = vpop.f32.mrb[0].mxu0
        %v710 = vadd.f32 0.0, %v709
        %v711 = vpop.f32.mrb[0].mxu0
        %v712 = vpop.f32.mrb[0].mxu0
        %v713 = vadd.f32 0.0, %v712
        %v714 = vpop.f32.mrb[0].mxu0
        %715 = vmatprep.mubr.bf16.mxu0 0
        %716 = vmatmul.mubr.bf16.gmra.mrb[0].mxu0 %v619
        %v717 = vpop.f32.mrb[0].mxu0
        %v718 = vadd.f32 0.0, %v717
        %v719 = vpop.f32.mrb[0].mxu0
        %v720 = vpop.f32.mrb[0].mxu0
        %v721 = vadd.f32 0.0, %v720
        %v722 = vpop.f32.mrb[0].mxu0
        %723 = vmatprep.mubr.bf16.mxu0 0
        %724 = vmatmul.mubr.bf16.gmra.mrb[0].mxu0 %v622
        %v725 = vpop.f32.mrb[0].mxu0
        %v726 = vadd.f32 0.0, %v725
        %v727 = vpop.f32.mrb[0].mxu0
        %v728 = vpop.f32.mrb[0].mxu0
        %v729 = vadd.f32 0.0, %v728
        %v730 = vpop.f32.mrb[0].mxu0
        %731 = vmatprep.mubr.bf16.mxu0 0
        %732 = vmatmul.mubr.bf16.gmra.mrb[0].mxu0 %v625
        %v733 = vpop.f32.mrb[0].mxu0
        %v734 = vadd.f32 0.0, %v733
        %v735 = vpop.f32.mrb[0].mxu0
        %v736 = vpop.f32.mrb[0].mxu0
        %v737 = vadd.f32 0.0, %v736
        %v738 = vpop.f32.mrb[0].mxu0
        %739 = vmatprep.mubr.bf16.mxu0 0
        %740 = vmatmul.mubr.bf16.gmra.mrb[0].mxu0 %v628
        %v741 = vpop.f32.mrb[0].mxu0
        %v742 = vadd.f32 0.0, %v741
        %v743 = vpop.f32.mrb[0].mxu0
        %v744 = vpop.f32.mrb[0].mxu0
        %v745 = vadd.f32 0.0, %v744
        %v746 = vpop.f32.mrb[0].mxu0
        %747 = vmatprep.mubr.bf16.mxu0 0
        %748 = vmatmul.mubr.bf16.gmra.mrb[0].mxu0 %v631
        %v749 = vpop.f32.mrb[0].mxu0
        %v750 = vadd.f32 0.0, %v749
        %v751 = vpop.f32.mrb[0].mxu0
        %v752 = vpop.f32.mrb[0].mxu0
        %v753 = vadd.f32 0.0, %v752
        %v754 = vpop.f32.mrb[0].mxu0
        %755 = vmatprep.mubr.bf16.mxu0 0
        %756 = vmatmul.mubr.bf16.gmra.mrb[0].mxu0 %v634
        %v757 = vpop.f32.mrb[0].mxu0
        %v758 = vadd.f32 0.0, %v757
        %v759 = vpop.f32.mrb[0].mxu0
        %v760 = vpop.f32.mrb[0].mxu0
        %v761 = vadd.f32 0.0, %v760
        %v762 = vpop.f32.mrb[0].mxu0
        %763 = vmatprep.mubr.bf16.mxu0 0
        %764 = vmatmul.mubr.bf16.gmra.mrb[0].mxu0 %v637
        %v765 = vpop.f32.mrb[0].mxu0
        %v766 = vadd.f32 0.0, %v765
        %v767 = vpop.f32.mrb[0].mxu0
        %v768 = vpop.f32.mrb[0].mxu0
        %v769 = vadd.f32 0.0, %v768
        %v770 = vpop.f32.mrb[0].mxu0
        %771 = vmatprep.mubr.bf16.mxu0 0
        %772 = vmatmul.mubr.bf16.gmra.mrb[0].mxu0 %v640
        %v773 = vpop.f32.mrb[0].mxu0
        %v774 = vadd.f32 0.0, %v773
        %v775 = vpop.f32.mrb[0].mxu0
        %v776 = vpop.f32.mrb[0].mxu0
        %v777 = vadd.f32 0.0, %v776
        %v778 = vpop.f32.mrb[0].mxu0
        %779 = vmatprep.mubr.bf16.mxu0 0
        %780 = vmatmul.mubr.bf16.gmra.mrb[0].mxu0 %v643
        %v781 = vpop.f32.mrb[0].mxu0
        %v782 = vadd.f32 0.0, %v781
        %v783 = vpop.f32.mrb[0].mxu0
        %v784 = vpop.f32.mrb[0].mxu0
        %v785 = vadd.f32 0.0, %v784
        %v786 = vpop.f32.mrb[0].mxu0
        %787 = vmatprep.mubr.bf16.mxu0 0
        %788 = vmatmul.mubr.bf16.gmra.mrb[0].mxu0 %v646
        %v789 = vpop.f32.mrb[0].mxu0
        %v790 = vadd.f32 0.0, %v789
        %v791 = vpop.f32.mrb[0].mxu0
        %v792 = vpop.f32.mrb[0].mxu0
        %v793 = vadd.f32 0.0, %v792
        %v794 = vpop.f32.mrb[0].mxu0
        %795 = vmatprep.mubr.bf16.mxu0 0
        %796 = vmatmul.mubr.bf16.gmra.mrb[0].mxu0 %v649
        %v797 = vpop.f32.mrb[0].mxu0
        %v798 = vadd.f32 0.0, %v797
        %v799 = vpop.f32.mrb[0].mxu0
        %v800 = vpop.f32.mrb[0].mxu0
        %v801 = vadd.f32 0.0, %v800
        %v802 = vpop.f32.mrb[0].mxu0
        %803 = vmatprep.mubr.bf16.mxu0 0
        %804 = vmatmul.mubr.bf16.gmra.mrb[0].mxu0 %v652
        %v805 = vpop.f32.mrb[0].mxu0
        %v806 = vadd.f32 0.0, %v805
        %v807 = vpop.f32.mrb[0].mxu0
        %v808 = vpop.f32.mrb[0].mxu0
        %v809 = vadd.f32 0.0, %v808
        %v810 = vpop.f32.mrb[0].mxu0
        %811 = vmatprep.mubr.bf16.mxu0 0
        %812 = vmatmul.mubr.bf16.gmra.mrb[0].mxu0 %v655
        %v813 = vpop.f32.mrb[0].mxu0
        %v814 = vadd.f32 0.0, %v813
        %v815 = vpop.f32.mrb[0].mxu0
        %v816 = vpop.f32.mrb[0].mxu0
        %v817 = vadd.f32 0.0, %v816
        %v818 = vpop.f32.mrb[0].mxu0
        %819 = vmatprep.mubr.bf16.mxu0 0
        %820 = vmatmul.mubr.bf16.gmra.mrb[0].mxu0 %v658
        %v821 = vpop.f32.mrb[0].mxu0
        %v822 = vadd.f32 0.0, %v821
        %v823 = vpop.f32.mrb[0].mxu0
        %v824 = vpop.f32.mrb[0].mxu0
        %v825 = vadd.f32 0.0, %v824
        %v826 = vpop.f32.mrb[0].mxu0
        %827 = vdwg.mxu0
        %v828 = vld [vmem:[#allocation8] sm:$0x1]
        %v830 = vlaneseq
        %v831 = vshrl.u32 %v830, 7
        %v832 = vsub.s32 0, %v831
        %v833 = vrot.slane %v828, %v832
        %v835 = vmul.f32 %v702, %v833
        %v836 = vmul.f32 %v705, %v833
        %v837 = vmul.f32 %v710, %v833
        %v838 = vmul.f32 %v713, %v833
        %v839 = vmul.f32 %v718, %v833
        %v840 = vmul.f32 %v721, %v833
        %v841 = vmul.f32 %v726, %v833
        %v842 = vmul.f32 %v729, %v833
        %v843 = vmul.f32 %v734, %v833
        %v844 = vmul.f32 %v737, %v833
        %v845 = vmul.f32 %v742, %v833
        %v846 = vmul.f32 %v745, %v833
        %v847 = vmul.f32 %v750, %v833
        %v848 = vmul.f32 %v753, %v833
        %v849 = vmul.f32 %v758, %v833
        %v850 = vmul.f32 %v761, %v833
        %v851 = vmul.f32 %v766, %v833
        %v852 = vmul.f32 %v769, %v833
        %v853 = vmul.f32 %v774, %v833
        %v854 = vmul.f32 %v777, %v833
        %v855 = vmul.f32 %v782, %v833
        %v856 = vmul.f32 %v785, %v833
        %v857 = vmul.f32 %v790, %v833
        %v858 = vmul.f32 %v793, %v833
        %v859 = vmul.f32 %v798, %v833
        %v860 = vmul.f32 %v801, %v833
        %v861 = vmul.f32 %v806, %v833
        %v862 = vmul.f32 %v809, %v833
        %v863 = vmul.f32 %v814, %v833
        %v864 = vmul.f32 %v817, %v833
        %v865 = vmul.f32 %v822, %v833
        %v866 = vmul.f32 %v825, %v833
        %v867 = vld [vmem:[#allocation9] sm:$0x1]
        %v869 = vlaneseq
        %v870 = vshrl.u32 %v869, 7
        %v871 = vsub.s32 0, %v870
        %v872 = vrot.slane %v867, %v871
        %v874 = vadd.f32 %v835, %v872
        %v875 = vadd.f32 %v836, %v872
        %v876 = vadd.f32 %v837, %v872
        %v877 = vadd.f32 %v838, %v872
        %v878 = vadd.f32 %v839, %v872
        %v879 = vadd.f32 %v840, %v872
        %v880 = vadd.f32 %v841, %v872
        %v881 = vadd.f32 %v842, %v872
        %v882 = vadd.f32 %v843, %v872
        %v883 = vadd.f32 %v844, %v872
        %v884 = vadd.f32 %v845, %v872
        %v885 = vadd.f32 %v846, %v872
        %v886 = vadd.f32 %v847, %v872
        %v887 = vadd.f32 %v848, %v872
        %v888 = vadd.f32 %v849, %v872
        %v889 = vadd.f32 %v850, %v872
        %v890 = vadd.f32 %v851, %v872
        %v891 = vadd.f32 %v852, %v872
        %v892 = vadd.f32 %v853, %v872
        %v893 = vadd.f32 %v854, %v872
        %v894 = vadd.f32 %v855, %v872
        %v895 = vadd.f32 %v856, %v872
        %v896 = vadd.f32 %v857, %v872
        %v897 = vadd.f32 %v858, %v872
        %v898 = vadd.f32 %v859, %v872
        %v899 = vadd.f32 %v860, %v872
        %v900 = vadd.f32 %v861, %v872
        %v901 = vadd.f32 %v862, %v872
        %v902 = vadd.f32 %v863, %v872
        %v903 = vadd.f32 %v864, %v872
        %v904 = vadd.f32 %v865, %v872
        %v905 = vadd.f32 %v866, %v872
        %v906 = vsub.f32 0.0, %v874
        %v907 = vsub.f32 0.0, %v875
        %v908 = vsub.f32 0.0, %v876
        %v909 = vsub.f32 0.0, %v877
        %v910 = vsub.f32 0.0, %v878
        %v911 = vsub.f32 0.0, %v879
        %v912 = vsub.f32 0.0, %v880
        %v913 = vsub.f32 0.0, %v881
        %v914 = vsub.f32 0.0, %v882
        %v915 = vsub.f32 0.0, %v883
        %v916 = vsub.f32 0.0, %v884
        %v917 = vsub.f32 0.0, %v885
        %v918 = vsub.f32 0.0, %v886
        %v919 = vsub.f32 0.0, %v887
        %v920 = vsub.f32 0.0, %v888
        %v921 = vsub.f32 0.0, %v889
        %v922 = vsub.f32 0.0, %v890
        %v923 = vsub.f32 0.0, %v891
        %v924 = vsub.f32 0.0, %v892
        %v925 = vsub.f32 0.0, %v893
        %v926 = vsub.f32 0.0, %v894
        %v927 = vsub.f32 0.0, %v895
        %v928 = vsub.f32 0.0, %v896
        %v929 = vsub.f32 0.0, %v897
        %v930 = vsub.f32 0.0, %v898
        %v931 = vsub.f32 0.0, %v899
        %v932 = vsub.f32 0.0, %v900
        %v933 = vsub.f32 0.0, %v901
        %v934 = vsub.f32 0.0, %v902
        %v935 = vsub.f32 0.0, %v903
        %v936 = vsub.f32 0.0, %v904
        %v937 = vsub.f32 0.0, %v905
        %v938 = vmul.f32 %v906, 1.442695
        %v939 = vpow.pop %v938
        %v940 = vmul.f32 %v907, 1.442695
        %v941 = vpow.pop %v940
        %v942 = vmul.f32 %v908, 1.442695
        %v943 = vpow.pop %v942
        %v944 = vmul.f32 %v909, 1.442695
        %v945 = vpow.pop %v944
        %v946 = vmul.f32 %v910, 1.442695
        %v947 = vpow.pop %v946
        %v948 = vmul.f32 %v911, 1.442695
        %v949 = vpow.pop %v948
        %v950 = vmul.f32 %v912, 1.442695
        %v951 = vpow.pop %v950
        %v952 = vmul.f32 %v913, 1.442695
        %v953 = vpow.pop %v952
        %v954 = vmul.f32 %v914, 1.442695
        %v955 = vpow.pop %v954
        %v956 = vmul.f32 %v915, 1.442695
        %v957 = vpow.pop %v956
        %v958 = vmul.f32 %v916, 1.442695
        %v959 = vpow.pop %v958
        %v960 = vmul.f32 %v917, 1.442695
        %v961 = vpow.pop %v960
        %v962 = vmul.f32 %v918, 1.442695
        %v963 = vpow.pop %v962
        %v964 = vmul.f32 %v919, 1.442695
        %v965 = vpow.pop %v964
        %v966 = vmul.f32 %v920, 1.442695
        %v967 = vpow.pop %v966
        %v968 = vmul.f32 %v921, 1.442695
        %v969 = vpow.pop %v968
        %v970 = vmul.f32 %v922, 1.442695
        %v971 = vpow.pop %v970
        %v972 = vmul.f32 %v923, 1.442695
        %v973 = vpow.pop %v972
        %v974 = vmul.f32 %v924, 1.442695
        %v975 = vpow.pop %v974
        %v976 = vmul.f32 %v925, 1.442695
        %v977 = vpow.pop %v976
        %v978 = vmul.f32 %v926, 1.442695
        %v979 = vpow.pop %v978
        %v980 = vmul.f32 %v927, 1.442695
        %v981 = vpow.pop %v980
        %v982 = vmul.f32 %v928, 1.442695
        %v983 = vpow.pop %v982
        %v984 = vmul.f32 %v929, 1.442695
        %v985 = vpow.pop %v984
        %v986 = vmul.f32 %v930, 1.442695
        %v987 = vpow.pop %v986
        %v988 = vmul.f32 %v931, 1.442695
        %v989 = vpow.pop %v988
        %v990 = vmul.f32 %v932, 1.442695
        %v991 = vpow.pop %v990
        %v992 = vmul.f32 %v933, 1.442695
        %v993 = vpow.pop %v992
        %v994 = vmul.f32 %v934, 1.442695
        %v995 = vpow.pop %v994
        %v996 = vmul.f32 %v935, 1.442695
        %v997 = vpow.pop %v996
        %v998 = vmul.f32 %v936, 1.442695
        %v999 = vpow.pop %v998
        %v1000 = vmul.f32 %v937, 1.442695
        %v1001 = vpow.pop %v1000
        %v1002 = vadd.f32 %v939, 1.0
        %v1003 = vadd.f32 %v941, 1.0
        %v1004 = vadd.f32 %v943, 1.0
        %v1005 = vadd.f32 %v945, 1.0
        %v1006 = vadd.f32 %v947, 1.0
        %v1007 = vadd.f32 %v949, 1.0
        %v1008 = vadd.f32 %v951, 1.0
        %v1009 = vadd.f32 %v953, 1.0
        %v1010 = vadd.f32 %v955, 1.0
        %v1011 = vadd.f32 %v957, 1.0
        %v1012 = vadd.f32 %v959, 1.0
        %v1013 = vadd.f32 %v961, 1.0
        %v1014 = vadd.f32 %v963, 1.0
        %v1015 = vadd.f32 %v965, 1.0
        %v1016 = vadd.f32 %v967, 1.0
        %v1017 = vadd.f32 %v969, 1.0
        %v1018 = vadd.f32 %v971, 1.0
        %v1019 = vadd.f32 %v973, 1.0
        %v1020 = vadd.f32 %v975, 1.0
        %v1021 = vadd.f32 %v977, 1.0
        %v1022 = vadd.f32 %v979, 1.0
        %v1023 = vadd.f32 %v981, 1.0
        %v1024 = vadd.f32 %v983, 1.0
        %v1025 = vadd.f32 %v985, 1.0
        %v1026 = vadd.f32 %v987, 1.0
        %v1027 = vadd.f32 %v989, 1.0
        %v1028 = vadd.f32 %v991, 1.0
        %v1029 = vadd.f32 %v993, 1.0
        %v1030 = vadd.f32 %v995, 1.0
        %v1031 = vadd.f32 %v997, 1.0
        %v1032 = vadd.f32 %v999, 1.0
        %v1033 = vadd.f32 %v1001, 1.0
        %v1034 = vrcp.pop %v1002
        %v1035 = vrcp.pop %v1003
        %v1036 = vrcp.pop %v1004
        %v1037 = vrcp.pop %v1005
        %v1038 = vrcp.pop %v1006
        %v1039 = vrcp.pop %v1007
        %v1040 = vrcp.pop %v1008
        %v1041 = vrcp.pop %v1009
        %v1042 = vrcp.pop %v1010
        %v1043 = vrcp.pop %v1011
        %v1044 = vrcp.pop %v1012
        %v1045 = vrcp.pop %v1013
        %v1046 = vrcp.pop %v1014
        %v1047 = vrcp.pop %v1015
        %v1048 = vrcp.pop %v1016
        %v1049 = vrcp.pop %v1017
        %v1050 = vrcp.pop %v1018
        %v1051 = vrcp.pop %v1019
        %v1052 = vrcp.pop %v1020
        %v1053 = vrcp.pop %v1021
        %v1054 = vrcp.pop %v1022
        %v1055 = vrcp.pop %v1023
        %v1056 = vrcp.pop %v1024
        %v1057 = vrcp.pop %v1025
        %v1058 = vrcp.pop %v1026
        %v1059 = vrcp.pop %v1027
        %v1060 = vrcp.pop %v1028
        %v1061 = vrcp.pop %v1029
        %v1062 = vrcp.pop %v1030
        %v1063 = vrcp.pop %v1031
        %v1064 = vrcp.pop %v1032
        %v1065 = vrcp.pop %v1033
        %v1066 = vmul.f32 %v874, %v1034
        %v1067 = vmul.f32 %v875, %v1035
        %v1068 = vmul.f32 %v876, %v1036
        %v1069 = vmul.f32 %v877, %v1037
        %v1070 = vmul.f32 %v878, %v1038
        %v1071 = vmul.f32 %v879, %v1039
        %v1072 = vmul.f32 %v880, %v1040
        %v1073 = vmul.f32 %v881, %v1041
        %v1074 = vmul.f32 %v882, %v1042
        %v1075 = vmul.f32 %v883, %v1043
        %v1076 = vmul.f32 %v884, %v1044
        %v1077 = vmul.f32 %v885, %v1045
        %v1078 = vmul.f32 %v886, %v1046
        %v1079 = vmul.f32 %v887, %v1047
        %v1080 = vmul.f32 %v888, %v1048
        %v1081 = vmul.f32 %v889, %v1049
        %v1082 = vmul.f32 %v890, %v1050
        %v1083 = vmul.f32 %v891, %v1051
        %v1084 = vmul.f32 %v892, %v1052
        %v1085 = vmul.f32 %v893, %v1053
        %v1086 = vmul.f32 %v894, %v1054
        %v1087 = vmul.f32 %v895, %v1055
        %v1088 = vmul.f32 %v896, %v1056
        %v1089 = vmul.f32 %v897, %v1057
        %v1090 = vmul.f32 %v898, %v1058
        %v1091 = vmul.f32 %v899, %v1059
        %v1092 = vmul.f32 %v900, %v1060
        %v1093 = vmul.f32 %v901, %v1061
        %v1094 = vmul.f32 %v902, %v1062
        %v1095 = vmul.f32 %v903, %v1063
        %v1096 = vmul.f32 %v904, %v1064
        %v1097 = vmul.f32 %v905, %v1065
        %v1098 = vpack.c.bf16 %v1067, %v1066
        %v1099 = vpack.c.bf16 %v1069, %v1068
        %v1100 = vpack.c.bf16 %v1071, %v1070
        %v1101 = vpack.c.bf16 %v1073, %v1072
        %v1102 = vpack.c.bf16 %v1075, %v1074
        %v1103 = vpack.c.bf16 %v1077, %v1076
        %v1104 = vpack.c.bf16 %v1079, %v1078
        %v1105 = vpack.c.bf16 %v1081, %v1080
        %v1106 = vpack.c.bf16 %v1083, %v1082
        %v1107 = vpack.c.bf16 %v1085, %v1084
        %v1108 = vpack.c.bf16 %v1087, %v1086
        %v1109 = vpack.c.bf16 %v1089, %v1088
        %v1110 = vpack.c.bf16 %v1091, %v1090
        %v1111 = vpack.c.bf16 %v1093, %v1092
        %v1112 = vpack.c.bf16 %v1095, %v1094
        %v1113 = vpack.c.bf16 %v1097, %v1096
        %v1114 = vld [vmem:[#allocation11] sm:$0xff]
        %v1115 = vld [vmem:[#allocation11 + $0x8] sm:$0xff]
        %v1116 = vld [vmem:[#allocation11 + $0x10] sm:$0xff]
        %v1117 = vld [vmem:[#allocation11 + $0x18] sm:$0xff]
        %v1118 = vld [vmem:[#allocation11 + $0x20] sm:$0xff]
        %v1119 = vld [vmem:[#allocation11 + $0x28] sm:$0xff]
        %v1120 = vld [vmem:[#allocation11 + $0x30] sm:$0xff]
        %v1121 = vld [vmem:[#allocation11 + $0x38] sm:$0xff]
        %v1122 = vld [vmem:[#allocation11 + $0x40] sm:$0xff]
        %v1123 = vld [vmem:[#allocation11 + $0x48] sm:$0xff]
        %v1124 = vld [vmem:[#allocation11 + $0x50] sm:$0xff]
        %v1125 = vld [vmem:[#allocation11 + $0x58] sm:$0xff]
        %v1126 = vld [vmem:[#allocation11 + $0x60] sm:$0xff]
        %v1127 = vld [vmem:[#allocation11 + $0x68] sm:$0xff]
        %v1128 = vld [vmem:[#allocation11 + $0x70] sm:$0xff]
        %v1129 = vld [vmem:[#allocation11 + $0x78] sm:$0xff]
        %v1130 = vld [vmem:[#allocation11 + $0x80] sm:$0xff]
        %v1131 = vld [vmem:[#allocation11 + $0x88] sm:$0xff]
        %v1132 = vld [vmem:[#allocation11 + $0x90] sm:$0xff]
        %v1133 = vld [vmem:[#allocation11 + $0x98] sm:$0xff]
        %v1134 = vld [vmem:[#allocation11 + $0xa0] sm:$0xff]
        %v1135 = vld [vmem:[#allocation11 + $0xa8] sm:$0xff]
        %v1136 = vld [vmem:[#allocation11 + $0xb0] sm:$0xff]
        %v1137 = vld [vmem:[#allocation11 + $0xb8] sm:$0xff]
        %v1138 = vld [vmem:[#allocation11 + $0xc0] sm:$0xff]
        %v1139 = vld [vmem:[#allocation11 + $0xc8] sm:$0xff]
        %v1140 = vld [vmem:[#allocation11 + $0xd0] sm:$0xff]
        %v1141 = vld [vmem:[#allocation11 + $0xd8] sm:$0xff]
        %v1142 = vld [vmem:[#allocation11 + $0xe0] sm:$0xff]
        %v1143 = vld [vmem:[#allocation11 + $0xe8] sm:$0xff]
        %v1144 = vld [vmem:[#allocation11 + $0xf0] sm:$0xff]
        %v1145 = vld [vmem:[#allocation11 + $0xf8] sm:$0xff]
        %v1146 = vld [vmem:[#allocation11 + $0x100] sm:$0xff]
        %v1147 = vld [vmem:[#allocation11 + $0x108] sm:$0xff]
        %v1148 = vld [vmem:[#allocation11 + $0x110] sm:$0xff]
        %v1149 = vld [vmem:[#allocation11 + $0x118] sm:$0xff]
        %v1150 = vld [vmem:[#allocation11 + $0x120] sm:$0xff]
        %v1151 = vld [vmem:[#allocation11 + $0x128] sm:$0xff]
        %v1152 = vld [vmem:[#allocation11 + $0x130] sm:$0xff]
        %v1153 = vld [vmem:[#allocation11 + $0x138] sm:$0xff]
        %v1154 = vld [vmem:[#allocation11 + $0x140] sm:$0xff]
        %v1155 = vld [vmem:[#allocation11 + $0x148] sm:$0xff]
        %v1156 = vld [vmem:[#allocation11 + $0x150] sm:$0xff]
        %v1157 = vld [vmem:[#allocation11 + $0x158] sm:$0xff]
        %v1158 = vld [vmem:[#allocation11 + $0x160] sm:$0xff]
        %v1159 = vld [vmem:[#allocation11 + $0x168] sm:$0xff]
        %v1160 = vld [vmem:[#allocation11 + $0x170] sm:$0xff]
        %v1161 = vld [vmem:[#allocation11 + $0x178] sm:$0xff]
        %v1162 = vld [vmem:[#allocation11 + $0x180] sm:$0xff]
        %v1163 = vld [vmem:[#allocation11 + $0x188] sm:$0xff]
        %v1164 = vld [vmem:[#allocation11 + $0x190] sm:$0xff]
        %v1165 = vld [vmem:[#allocation11 + $0x198] sm:$0xff]
        %v1166 = vld [vmem:[#allocation11 + $0x1a0] sm:$0xff]
        %v1167 = vld [vmem:[#allocation11 + $0x1a8] sm:$0xff]
        %v1168 = vld [vmem:[#allocation11 + $0x1b0] sm:$0xff]
        %v1169 = vld [vmem:[#allocation11 + $0x1b8] sm:$0xff]
        %v1170 = vld [vmem:[#allocation11 + $0x1c0] sm:$0xff]
        %v1171 = vld [vmem:[#allocation11 + $0x1c8] sm:$0xff]
        %v1172 = vld [vmem:[#allocation11 + $0x1d0] sm:$0xff]
        %v1173 = vld [vmem:[#allocation11 + $0x1d8] sm:$0xff]
        %v1174 = vld [vmem:[#allocation11 + $0x1e0] sm:$0xff]
        %v1175 = vld [vmem:[#allocation11 + $0x1e8] sm:$0xff]
        %v1176 = vld [vmem:[#allocation11 + $0x1f0] sm:$0xff]
        %v1177 = vld [vmem:[#allocation11 + $0x1f8] sm:$0xff]
        %v1178 = vld [vmem:[#allocation11 + $0x200] sm:$0xff]
        %v1179 = vld [vmem:[#allocation11 + $0x208] sm:$0xff]
        %v1180 = vld [vmem:[#allocation11 + $0x210] sm:$0xff]
        %v1181 = vld [vmem:[#allocation11 + $0x218] sm:$0xff]
        %v1182 = vld [vmem:[#allocation11 + $0x220] sm:$0xff]
        %v1183 = vld [vmem:[#allocation11 + $0x228] sm:$0xff]
        %v1184 = vld [vmem:[#allocation11 + $0x230] sm:$0xff]
        %v1185 = vld [vmem:[#allocation11 + $0x238] sm:$0xff]
        %v1186 = vld [vmem:[#allocation11 + $0x240] sm:$0xff]
        %v1187 = vld [vmem:[#allocation11 + $0x248] sm:$0xff]
        %v1188 = vld [vmem:[#allocation11 + $0x250] sm:$0xff]
        %v1189 = vld [vmem:[#allocation11 + $0x258] sm:$0xff]
        %v1190 = vld [vmem:[#allocation11 + $0x260] sm:$0xff]
        %v1191 = vld [vmem:[#allocation11 + $0x268] sm:$0xff]
        %v1192 = vld [vmem:[#allocation11 + $0x270] sm:$0xff]
        %v1193 = vld [vmem:[#allocation11 + $0x278] sm:$0xff]
        %v1194 = vld [vmem:[#allocation11 + $0x280] sm:$0xff]
        %v1195 = vld [vmem:[#allocation11 + $0x288] sm:$0xff]
        %v1196 = vld [vmem:[#allocation11 + $0x290] sm:$0xff]
        %v1197 = vld [vmem:[#allocation11 + $0x298] sm:$0xff]
        %v1198 = vld [vmem:[#allocation11 + $0x2a0] sm:$0xff]
        %v1199 = vld [vmem:[#allocation11 + $0x2a8] sm:$0xff]
        %v1200 = vld [vmem:[#allocation11 + $0x2b0] sm:$0xff]
        %v1201 = vld [vmem:[#allocation11 + $0x2b8] sm:$0xff]
        %v1202 = vld [vmem:[#allocation11 + $0x2c0] sm:$0xff]
        %v1203 = vld [vmem:[#allocation11 + $0x2c8] sm:$0xff]
        %v1204 = vld [vmem:[#allocation11 + $0x2d0] sm:$0xff]
        %v1205 = vld [vmem:[#allocation11 + $0x2d8] sm:$0xff]
        %v1206 = vld [vmem:[#allocation11 + $0x2e0] sm:$0xff]
        %v1207 = vld [vmem:[#allocation11 + $0x2e8] sm:$0xff]
        %v1208 = vld [vmem:[#allocation11 + $0x2f0] sm:$0xff]
        %v1209 = vld [vmem:[#allocation11 + $0x2f8] sm:$0xff]
        %v1210 = vld [vmem:[#allocation11 + $0x300] sm:$0xff]
        %v1211 = vld [vmem:[#allocation11 + $0x308] sm:$0xff]
        %v1212 = vld [vmem:[#allocation11 + $0x310] sm:$0xff]
        %v1213 = vld [vmem:[#allocation11 + $0x318] sm:$0xff]
        %v1214 = vld [vmem:[#allocation11 + $0x320] sm:$0xff]
        %v1215 = vld [vmem:[#allocation11 + $0x328] sm:$0xff]
        %v1216 = vld [vmem:[#allocation11 + $0x330] sm:$0xff]
        %v1217 = vld [vmem:[#allocation11 + $0x338] sm:$0xff]
        %v1218 = vld [vmem:[#allocation11 + $0x340] sm:$0xff]
        %v1219 = vld [vmem:[#allocation11 + $0x348] sm:$0xff]
        %v1220 = vld [vmem:[#allocation11 + $0x350] sm:$0xff]
        %v1221 = vld [vmem:[#allocation11 + $0x358] sm:$0xff]
        %v1222 = vld [vmem:[#allocation11 + $0x360] sm:$0xff]
        %v1223 = vld [vmem:[#allocation11 + $0x368] sm:$0xff]
        %v1224 = vld [vmem:[#allocation11 + $0x370] sm:$0xff]
        %v1225 = vld [vmem:[#allocation11 + $0x378] sm:$0xff]
        %v1338 = vunpack.c.l.b16 %v1114
        %v1339 = vunpack.c.h.b16 %v1114
        %v1340 = vunpack.c.l.b16 %v1115
        %v1341 = vunpack.c.h.b16 %v1115
        %v1342 = vunpack.c.l.b16 %v1116
        %v1343 = vunpack.c.h.b16 %v1116
        %v1344 = vunpack.c.l.b16 %v1117
        %v1345 = vunpack.c.h.b16 %v1117
        %v1346 = vunpack.c.l.b16 %v1118
        %v1347 = vunpack.c.h.b16 %v1118
        %v1348 = vunpack.c.l.b16 %v1119
        %v1349 = vunpack.c.h.b16 %v1119
        %v1350 = vunpack.c.l.b16 %v1120
        %v1351 = vunpack.c.h.b16 %v1120
        %v1352 = vunpack.c.l.b16 %v1121
        %v1353 = vunpack.c.h.b16 %v1121
        %v1354 = vunpack.c.l.b16 %v1122
        %v1355 = vunpack.c.h.b16 %v1122
        %v1356 = vunpack.c.l.b16 %v1123
        %v1357 = vunpack.c.h.b16 %v1123
        %v1358 = vunpack.c.l.b16 %v1124
        %v1359 = vunpack.c.h.b16 %v1124
        %v1360 = vunpack.c.l.b16 %v1125
        %v1361 = vunpack.c.h.b16 %v1125
        %v1362 = vunpack.c.l.b16 %v1126
        %v1363 = vunpack.c.h.b16 %v1126
        %v1364 = vunpack.c.l.b16 %v1127
        %v1365 = vunpack.c.h.b16 %v1127
        %v1366 = vunpack.c.l.b16 %v1128
        %v1367 = vunpack.c.h.b16 %v1128
        %v1368 = vunpack.c.l.b16 %v1129
        %v1369 = vunpack.c.h.b16 %v1129
        %v1370 = vunpack.c.l.b16 %v1130
        %v1371 = vunpack.c.h.b16 %v1130
        %v1372 = vunpack.c.l.b16 %v1131
        %v1373 = vunpack.c.h.b16 %v1131
        %v1374 = vunpack.c.l.b16 %v1132
        %v1375 = vunpack.c.h.b16 %v1132
        %v1376 = vunpack.c.l.b16 %v1133
        %v1377 = vunpack.c.h.b16 %v1133
        %v1378 = vunpack.c.l.b16 %v1134
        %v1379 = vunpack.c.h.b16 %v1134
        %v1380 = vunpack.c.l.b16 %v1135
        %v1381 = vunpack.c.h.b16 %v1135
        %v1382 = vunpack.c.l.b16 %v1136
        %v1383 = vunpack.c.h.b16 %v1136
        %v1384 = vunpack.c.l.b16 %v1137
        %v1385 = vunpack.c.h.b16 %v1137
        %v1386 = vunpack.c.l.b16 %v1138
        %v1387 = vunpack.c.h.b16 %v1138
        %v1388 = vunpack.c.l.b16 %v1139
        %v1389 = vunpack.c.h.b16 %v1139
        %v1390 = vunpack.c.l.b16 %v1140
        %v1391 = vunpack.c.h.b16 %v1140
        %v1392 = vunpack.c.l.b16 %v1141
        %v1393 = vunpack.c.h.b16 %v1141
        %v1394 = vunpack.c.l.b16 %v1142
        %v1395 = vunpack.c.h.b16 %v1142
        %v1396 = vunpack.c.l.b16 %v1143
        %v1397 = vunpack.c.h.b16 %v1143
        %v1398 = vunpack.c.l.b16 %v1144
        %v1399 = vunpack.c.h.b16 %v1144
        %v1400 = vunpack.c.l.b16 %v1145
        %v1401 = vunpack.c.h.b16 %v1145
        %v1402 = vunpack.c.l.b16 %v1146
        %v1403 = vunpack.c.h.b16 %v1146
        %v1404 = vunpack.c.l.b16 %v1147
        %v1405 = vunpack.c.h.b16 %v1147
        %v1406 = vunpack.c.l.b16 %v1148
        %v1407 = vunpack.c.h.b16 %v1148
        %v1408 = vunpack.c.l.b16 %v1149
        %v1409 = vunpack.c.h.b16 %v1149
        %v1410 = vunpack.c.l.b16 %v1150
        %v1411 = vunpack.c.h.b16 %v1150
        %v1412 = vunpack.c.l.b16 %v1151
        %v1413 = vunpack.c.h.b16 %v1151
        %v1414 = vunpack.c.l.b16 %v1152
        %v1415 = vunpack.c.h.b16 %v1152
        %v1416 = vunpack.c.l.b16 %v1153
        %v1417 = vunpack.c.h.b16 %v1153
        %v1418 = vunpack.c.l.b16 %v1154
        %v1419 = vunpack.c.h.b16 %v1154
        %v1420 = vunpack.c.l.b16 %v1155
        %v1421 = vunpack.c.h.b16 %v1155
        %v1422 = vunpack.c.l.b16 %v1156
        %v1423 = vunpack.c.h.b16 %v1156
        %v1424 = vunpack.c.l.b16 %v1157
        %v1425 = vunpack.c.h.b16 %v1157
        %v1426 = vunpack.c.l.b16 %v1158
        %v1427 = vunpack.c.h.b16 %v1158
        %v1428 = vunpack.c.l.b16 %v1159
        %v1429 = vunpack.c.h.b16 %v1159
        %v1430 = vunpack.c.l.b16 %v1160
        %v1431 = vunpack.c.h.b16 %v1160
        %v1432 = vunpack.c.l.b16 %v1161
        %v1433 = vunpack.c.h.b16 %v1161
        %v1434 = vunpack.c.l.b16 %v1162
        %v1435 = vunpack.c.h.b16 %v1162
        %v1436 = vunpack.c.l.b16 %v1163
        %v1437 = vunpack.c.h.b16 %v1163
        %v1438 = vunpack.c.l.b16 %v1164
        %v1439 = vunpack.c.h.b16 %v1164
        %v1440 = vunpack.c.l.b16 %v1165
        %v1441 = vunpack.c.h.b16 %v1165
        %v1442 = vunpack.c.l.b16 %v1166
        %v1443 = vunpack.c.h.b16 %v1166
        %v1444 = vunpack.c.l.b16 %v1167
        %v1445 = vunpack.c.h.b16 %v1167
        %v1446 = vunpack.c.l.b16 %v1168
        %v1447 = vunpack.c.h.b16 %v1168
        %v1448 = vunpack.c.l.b16 %v1169
        %v1449 = vunpack.c.h.b16 %v1169
        %v1450 = vunpack.c.l.b16 %v1170
        %v1451 = vunpack.c.h.b16 %v1170
        %v1452 = vunpack.c.l.b16 %v1171
        %v1453 = vunpack.c.h.b16 %v1171
        %v1454 = vunpack.c.l.b16 %v1172
        %v1455 = vunpack.c.h.b16 %v1172
        %v1456 = vunpack.c.l.b16 %v1173
        %v1457 = vunpack.c.h.b16 %v1173
        %v1458 = vunpack.c.l.b16 %v1174
        %v1459 = vunpack.c.h.b16 %v1174
        %v1460 = vunpack.c.l.b16 %v1175
        %v1461 = vunpack.c.h.b16 %v1175
        %v1462 = vunpack.c.l.b16 %v1176
        %v1463 = vunpack.c.h.b16 %v1176
        %v1464 = vunpack.c.l.b16 %v1177
        %v1465 = vunpack.c.h.b16 %v1177
        %v1466 = vunpack.c.l.b16 %v1178
        %v1467 = vunpack.c.h.b16 %v1178
        %v1468 = vunpack.c.l.b16 %v1179
        %v1469 = vunpack.c.h.b16 %v1179
        %v1470 = vunpack.c.l.b16 %v1180
        %v1471 = vunpack.c.h.b16 %v1180
        %v1472 = vunpack.c.l.b16 %v1181
        %v1473 = vunpack.c.h.b16 %v1181
        %v1474 = vunpack.c.l.b16 %v1182
        %v1475 = vunpack.c.h.b16 %v1182
        %v1476 = vunpack.c.l.b16 %v1183
        %v1477 = vunpack.c.h.b16 %v1183
        %v1478 = vunpack.c.l.b16 %v1184
        %v1479 = vunpack.c.h.b16 %v1184
        %v1480 = vunpack.c.l.b16 %v1185
        %v1481 = vunpack.c.h.b16 %v1185
        %v1482 = vunpack.c.l.b16 %v1186
        %v1483 = vunpack.c.h.b16 %v1186
        %v1484 = vunpack.c.l.b16 %v1187
        %v1485 = vunpack.c.h.b16 %v1187
        %v1486 = vunpack.c.l.b16 %v1188
        %v1487 = vunpack.c.h.b16 %v1188
        %v1488 = vunpack.c.l.b16 %v1189
        %v1489 = vunpack.c.h.b16 %v1189
        %v1490 = vunpack.c.l.b16 %v1190
        %v1491 = vunpack.c.h.b16 %v1190
        %v1492 = vunpack.c.l.b16 %v1191
        %v1493 = vunpack.c.h.b16 %v1191
        %v1494 = vunpack.c.l.b16 %v1192
        %v1495 = vunpack.c.h.b16 %v1192
        %v1496 = vunpack.c.l.b16 %v1193
        %v1497 = vunpack.c.h.b16 %v1193
        %v1498 = vunpack.c.l.b16 %v1194
        %v1499 = vunpack.c.h.b16 %v1194
        %v1500 = vunpack.c.l.b16 %v1195
        %v1501 = vunpack.c.h.b16 %v1195
        %v1502 = vunpack.c.l.b16 %v1196
        %v1503 = vunpack.c.h.b16 %v1196
        %v1504 = vunpack.c.l.b16 %v1197
        %v1505 = vunpack.c.h.b16 %v1197
        %v1506 = vunpack.c.l.b16 %v1198
        %v1507 = vunpack.c.h.b16 %v1198
        %v1508 = vunpack.c.l.b16 %v1199
        %v1509 = vunpack.c.h.b16 %v1199
        %v1510 = vunpack.c.l.b16 %v1200
        %v1511 = vunpack.c.h.b16 %v1200
        %v1512 = vunpack.c.l.b16 %v1201
        %v1513 = vunpack.c.h.b16 %v1201
        %v1514 = vunpack.c.l.b16 %v1202
        %v1515 = vunpack.c.h.b16 %v1202
        %v1516 = vunpack.c.l.b16 %v1203
        %v1517 = vunpack.c.h.b16 %v1203
        %v1518 = vunpack.c.l.b16 %v1204
        %v1519 = vunpack.c.h.b16 %v1204
        %v1520 = vunpack.c.l.b16 %v1205
        %v1521 = vunpack.c.h.b16 %v1205
        %v1522 = vunpack.c.l.b16 %v1206
        %v1523 = vunpack.c.h.b16 %v1206
        %v1524 = vunpack.c.l.b16 %v1207
        %v1525 = vunpack.c.h.b16 %v1207
        %v1526 = vunpack.c.l.b16 %v1208
        %v1527 = vunpack.c.h.b16 %v1208
        %v1528 = vunpack.c.l.b16 %v1209
        %v1529 = vunpack.c.h.b16 %v1209
        %v1530 = vunpack.c.l.b16 %v1210
        %v1531 = vunpack.c.h.b16 %v1210
        %v1532 = vunpack.c.l.b16 %v1211
        %v1533 = vunpack.c.h.b16 %v1211
        %v1534 = vunpack.c.l.b16 %v1212
        %v1535 = vunpack.c.h.b16 %v1212
        %v1536 = vunpack.c.l.b16 %v1213
        %v1537 = vunpack.c.h.b16 %v1213
        %v1538 = vunpack.c.l.b16 %v1214
        %v1539 = vunpack.c.h.b16 %v1214
        %v1540 = vunpack.c.l.b16 %v1215
        %v1541 = vunpack.c.h.b16 %v1215
        %v1542 = vunpack.c.l.b16 %v1216
        %v1543 = vunpack.c.h.b16 %v1216
        %v1544 = vunpack.c.l.b16 %v1217
        %v1545 = vunpack.c.h.b16 %v1217
        %v1546 = vunpack.c.l.b16 %v1218
        %v1547 = vunpack.c.h.b16 %v1218
        %v1548 = vunpack.c.l.b16 %v1219
        %v1549 = vunpack.c.h.b16 %v1219
        %v1550 = vunpack.c.l.b16 %v1220
        %v1551 = vunpack.c.h.b16 %v1220
        %v1552 = vunpack.c.l.b16 %v1221
        %v1553 = vunpack.c.h.b16 %v1221
        %v1554 = vunpack.c.l.b16 %v1222
        %v1555 = vunpack.c.h.b16 %v1222
        %v1556 = vunpack.c.l.b16 %v1223
        %v1557 = vunpack.c.h.b16 %v1223
        %v1558 = vunpack.c.l.b16 %v1224
        %v1559 = vunpack.c.h.b16 %v1224
        %v1560 = vunpack.c.l.b16 %v1225
        %v1561 = vunpack.c.h.b16 %v1225
        %v1562 = vpack.c.b16 %v1352, %v1338
        %v1563 = vpack.c.b16 %v1353, %v1339
        %v1564 = vpack.c.b16 %v1354, %v1340
        %v1565 = vpack.c.b16 %v1355, %v1341
        %v1566 = vpack.c.b16 %v1356, %v1342
        %v1567 = vpack.c.b16 %v1357, %v1343
        %v1568 = vpack.c.b16 %v1358, %v1344
        %v1569 = vpack.c.b16 %v1359, %v1345
        %v1570 = vpack.c.b16 %v1360, %v1346
        %v1571 = vpack.c.b16 %v1361, %v1347
        %v1572 = vpack.c.b16 %v1362, %v1348
        %v1573 = vpack.c.b16 %v1363, %v1349
        %v1574 = vpack.c.b16 %v1364, %v1350
        %v1575 = vpack.c.b16 %v1365, %v1351
        %v1576 = vpack.c.b16 %v1380, %v1366
        %v1577 = vpack.c.b16 %v1381, %v1367
        %v1578 = vpack.c.b16 %v1382, %v1368
        %v1579 = vpack.c.b16 %v1383, %v1369
        %v1580 = vpack.c.b16 %v1384, %v1370
        %v1581 = vpack.c.b16 %v1385, %v1371
        %v1582 = vpack.c.b16 %v1386, %v1372
        %v1583 = vpack.c.b16 %v1387, %v1373
        %v1584 = vpack.c.b16 %v1388, %v1374
        %v1585 = vpack.c.b16 %v1389, %v1375
        %v1586 = vpack.c.b16 %v1390, %v1376
        %v1587 = vpack.c.b16 %v1391, %v1377
        %v1588 = vpack.c.b16 %v1392, %v1378
        %v1589 = vpack.c.b16 %v1393, %v1379
        %v1590 = vpack.c.b16 %v1408, %v1394
        %v1591 = vpack.c.b16 %v1409, %v1395
        %v1592 = vpack.c.b16 %v1410, %v1396
        %v1593 = vpack.c.b16 %v1411, %v1397
        %v1594 = vpack.c.b16 %v1412, %v1398
        %v1595 = vpack.c.b16 %v1413, %v1399
        %v1596 = vpack.c.b16 %v1414, %v1400
        %v1597 = vpack.c.b16 %v1415, %v1401
        %v1598 = vpack.c.b16 %v1416, %v1402
        %v1599 = vpack.c.b16 %v1417, %v1403
        %v1600 = vpack.c.b16 %v1418, %v1404
        %v1601 = vpack.c.b16 %v1419, %v1405
        %v1602 = vpack.c.b16 %v1420, %v1406
        %v1603 = vpack.c.b16 %v1421, %v1407
        %v1604 = vpack.c.b16 %v1436, %v1422
        %v1605 = vpack.c.b16 %v1437, %v1423
        %v1606 = vpack.c.b16 %v1438, %v1424
        %v1607 = vpack.c.b16 %v1439, %v1425
        %v1608 = vpack.c.b16 %v1440, %v1426
        %v1609 = vpack.c.b16 %v1441, %v1427
        %v1610 = vpack.c.b16 %v1442, %v1428
        %v1611 = vpack.c.b16 %v1443, %v1429
        %v1612 = vpack.c.b16 %v1444, %v1430
        %v1613 = vpack.c.b16 %v1445, %v1431
        %v1614 = vpack.c.b16 %v1446, %v1432
        %v1615 = vpack.c.b16 %v1447, %v1433
        %v1616 = vpack.c.b16 %v1448, %v1434
        %v1617 = vpack.c.b16 %v1449, %v1435
        %v1618 = vpack.c.b16 %v1464, %v1450
        %v1619 = vpack.c.b16 %v1465, %v1451
        %v1620 = vpack.c.b16 %v1466, %v1452
        %v1621 = vpack.c.b16 %v1467, %v1453
        %v1622 = vpack.c.b16 %v1468, %v1454
        %v1623 = vpack.c.b16 %v1469, %v1455
        %v1624 = vpack.c.b16 %v1470, %v1456
        %v1625 = vpack.c.b16 %v1471, %v1457
        %v1626 = vpack.c.b16 %v1472, %v1458
        %v1627 = vpack.c.b16 %v1473, %v1459
        %v1628 = vpack.c.b16 %v1474, %v1460
        %v1629 = vpack.c.b16 %v1475, %v1461
        %v1630 = vpack.c.b16 %v1476, %v1462
        %v1631 = vpack.c.b16 %v1477, %v1463
        %v1632 = vpack.c.b16 %v1492, %v1478
        %v1633 = vpack.c.b16 %v1493, %v1479
        %v1634 = vpack.c.b16 %v1494, %v1480
        %v1635 = vpack.c.b16 %v1495, %v1481
        %v1636 = vpack.c.b16 %v1496, %v1482
        %v1637 = vpack.c.b16 %v1497, %v1483
        %v1638 = vpack.c.b16 %v1498, %v1484
        %v1639 = vpack.c.b16 %v1499, %v1485
        %v1640 = vpack.c.b16 %v1500, %v1486
        %v1641 = vpack.c.b16 %v1501, %v1487
        %v1642 = vpack.c.b16 %v1502, %v1488
        %v1643 = vpack.c.b16 %v1503, %v1489
        %v1644 = vpack.c.b16 %v1504, %v1490
        %v1645 = vpack.c.b16 %v1505, %v1491
        %v1646 = vpack.c.b16 %v1520, %v1506
        %v1647 = vpack.c.b16 %v1521, %v1507
        %v1648 = vpack.c.b16 %v1522, %v1508
        %v1649 = vpack.c.b16 %v1523, %v1509
        %v1650 = vpack.c.b16 %v1524, %v1510
        %v1651 = vpack.c.b16 %v1525, %v1511
        %v1652 = vpack.c.b16 %v1526, %v1512
        %v1653 = vpack.c.b16 %v1527, %v1513
        %v1654 = vpack.c.b16 %v1528, %v1514
        %v1655 = vpack.c.b16 %v1529, %v1515
        %v1656 = vpack.c.b16 %v1530, %v1516
        %v1657 = vpack.c.b16 %v1531, %v1517
        %v1658 = vpack.c.b16 %v1532, %v1518
        %v1659 = vpack.c.b16 %v1533, %v1519
        %v1660 = vpack.c.b16 %v1548, %v1534
        %v1661 = vpack.c.b16 %v1549, %v1535
        %v1662 = vpack.c.b16 %v1550, %v1536
        %v1663 = vpack.c.b16 %v1551, %v1537
        %v1664 = vpack.c.b16 %v1552, %v1538
        %v1665 = vpack.c.b16 %v1553, %v1539
        %v1666 = vpack.c.b16 %v1554, %v1540
        %v1667 = vpack.c.b16 %v1555, %v1541
        %v1668 = vpack.c.b16 %v1556, %v1542
        %v1669 = vpack.c.b16 %v1557, %v1543
        %v1670 = vpack.c.b16 %v1558, %v1544
        %v1671 = vpack.c.b16 %v1559, %v1545
        %v1672 = vpack.c.b16 %v1560, %v1546
        %v1673 = vpack.c.b16 %v1561, %v1547
        %1786 = vmatprep.subr.bf16.mxu0 %v1563
        %1787 = vmatpush1.bf16.msra.mxu0 %v1562
        %1788 = vmatprep.subr.bf16.mxu0 %v1577
        %1789 = vmatpush1.bf16.msra.mxu0 %v1576
        %1790 = vmatprep.subr.bf16.mxu0 %v1591
        %1791 = vmatpush1.bf16.msra.mxu0 %v1590
        %1792 = vmatprep.subr.bf16.mxu0 %v1605
        %1793 = vmatpush1.bf16.msra.mxu0 %v1604
        %1794 = vmatprep.subr.bf16.mxu0 %v1619
        %1795 = vmatpush1.bf16.msra.mxu0 %v1618
        %1796 = vmatprep.subr.bf16.mxu0 %v1633
        %1797 = vmatpush1.bf16.msra.mxu0 %v1632
        %1798 = vmatprep.subr.bf16.mxu0 %v1647
        %1799 = vmatpush1.bf16.msra.mxu0 %v1646
        %1800 = vmatprep.subr.bf16.mxu0 %v1661
        %1801 = vmatpush1.bf16.msra.mxu0 %v1660
        %1802 = vmatprep.subr.bf16.mxu0 0
        %1803 = vmatpush1.bf16.msra.mxu0 0
        %1804 = vmatprep.subr.bf16.mxu0 0
        %1805 = vmatpush1.bf16.msra.mxu0 0
        %1806 = vmatprep.subr.bf16.mxu0 0
        %1807 = vmatpush1.bf16.msra.mxu0 0
        %1808 = vmatprep.subr.bf16.mxu0 0
        %1809 = vmatpush1.bf16.msra.mxu0 0
        %1810 = vmatprep.subr.bf16.mxu0 0
        %1811 = vmatpush1.bf16.msra.mxu0 0
        %1812 = vmatprep.subr.bf16.mxu0 0
        %1813 = vmatpush1.bf16.msra.mxu0 0
        %1814 = vmatprep.subr.bf16.mxu0 0
        %1815 = vmatpush1.bf16.msra.mxu0 0
        %1816 = vmatprep.subr.bf16.mxu0 0
        %1817 = vmatpush1.bf16.msra.mxu0 0
        %1818 = vmatprep.mubr.bf16.mxu0 0
        %1819 = vmatmul.mubr.bf16.gmra.mrb[0].mxu0 %v1098
        %v1820 = vpop.f32.mrb[0].mxu0
        %v1821 = vadd.f32 0.0, %v1820
        %v1822 = vpop.f32.mrb[0].mxu0
        %v1823 = vadd.f32 0.0, %v1822
        %v1824 = vpop.f32.mrb[0].mxu0
        %v1825 = vadd.f32 0.0, %v1824
        %v1826 = vpop.f32.mrb[0].mxu0
        %v1827 = vadd.f32 0.0, %v1826
        %1828 = vmatprep.mubr.bf16.mxu0 0
        %1829 = vmatmul.mubr.bf16.gmra.mrb[0].mxu0 %v1099
        %v1830 = vpop.f32.mrb[0].mxu0
        %v1831 = vadd.f32 0.0, %v1830
        %v1832 = vpop.f32.mrb[0].mxu0
        %v1833 = vadd.f32 0.0, %v1832
        %v1834 = vpop.f32.mrb[0].mxu0
        %v1835 = vadd.f32 0.0, %v1834
        %v1836 = vpop.f32.mrb[0].mxu0
        %v1837 = vadd.f32 0.0, %v1836
        %1838 = vmatprep.mubr.bf16.mxu0 0
        %1839 = vmatmul.mubr.bf16.gmra.mrb[0].mxu0 %v1100
        %v1840 = vpop.f32.mrb[0].mxu0
        %v1841 = vadd.f32 0.0, %v1840
        %v1842 = vpop.f32.mrb[0].mxu0
        %v1843 = vadd.f32 0.0, %v1842
        %v1844 = vpop.f32.mrb[0].mxu0
        %v1845 = vadd.f32 0.0, %v1844
        %v1846 = vpop.f32.mrb[0].mxu0
        %v1847 = vadd.f32 0.0, %v1846
        %1848 = vmatprep.mubr.bf16.mxu0 0
        %1849 = vmatmul.mubr.bf16.gmra.mrb[0].mxu0 %v1101
        %v1850 = vpop.f32.mrb[0].mxu0
        %v1851 = vadd.f32 0.0, %v1850
        %v1852 = vpop.f32.mrb[0].mxu0
        %v1853 = vadd.f32 0.0, %v1852
        %v1854 = vpop.f32.mrb[0].mxu0
        %v1855 = vadd.f32 0.0, %v1854
        %v1856 = vpop.f32.mrb[0].mxu0
        %v1857 = vadd.f32 0.0, %v1856
        %1858 = vmatprep.mubr.bf16.mxu0 0
        %1859 = vmatmul.mubr.bf16.gmra.mrb[0].mxu0 %v1102
        %v1860 = vpop.f32.mrb[0].mxu0
        %v1861 = vadd.f32 0.0, %v1860
        %v1862 = vpop.f32.mrb[0].mxu0
        %v1863 = vadd.f32 0.0, %v1862
        %v1864 = vpop.f32.mrb[0].mxu0
        %v1865 = vadd.f32 0.0, %v1864
        %v1866 = vpop.f32.mrb[0].mxu0
        %v1867 = vadd.f32 0.0, %v1866
        %1868 = vmatprep.mubr.bf16.mxu0 0
        %1869 = vmatmul.mubr.bf16.gmra.mrb[0].mxu0 %v1103
        %v1870 = vpop.f32.mrb[0].mxu0
        %v1871 = vadd.f32 0.0, %v1870
        %v1872 = vpop.f32.mrb[0].mxu0
        %v1873 = vadd.f32 0.0, %v1872
        %v1874 = vpop.f32.mrb[0].mxu0
        %v1875 = vadd.f32 0.0, %v1874
        %v1876 = vpop.f32.mrb[0].mxu0
        %v1877 = vadd.f32 0.0, %v1876
        %1878 = vmatprep.mubr.bf16.mxu0 0
        %1879 = vmatmul.mubr.bf16.gmra.mrb[0].mxu0 %v1104
        %v1880 = vpop.f32.mrb[0].mxu0
        %v1881 = vadd.f32 0.0, %v1880
        %v1882 = vpop.f32.mrb[0].mxu0
        %v1883 = vadd.f32 0.0, %v1882
        %v1884 = vpop.f32.mrb[0].mxu0
        %v1885 = vadd.f32 0.0, %v1884
        %v1886 = vpop.f32.mrb[0].mxu0
        %v1887 = vadd.f32 0.0, %v1886
        %1888 = vmatprep.mubr.bf16.mxu0 0
        %1889 = vmatmul.mubr.bf16.gmra.mrb[0].mxu0 %v1105
        %v1890 = vpop.f32.mrb[0].mxu0
        %v1891 = vadd.f32 0.0, %v1890
        %v1892 = vpop.f32.mrb[0].mxu0
        %v1893 = vadd.f32 0.0, %v1892
        %v1894 = vpop.f32.mrb[0].mxu0
        %v1895 = vadd.f32 0.0, %v1894
        %v1896 = vpop.f32.mrb[0].mxu0
        %v1897 = vadd.f32 0.0, %v1896
        %1898 = vmatprep.mubr.bf16.mxu0 0
        %1899 = vmatmul.mubr.bf16.gmra.mrb[0].mxu0 %v1106
        %v1900 = vpop.f32.mrb[0].mxu0
        %v1901 = vadd.f32 0.0, %v1900
        %v1902 = vpop.f32.mrb[0].mxu0
        %v1903 = vadd.f32 0.0, %v1902
        %v1904 = vpop.f32.mrb[0].mxu0
        %v1905 = vadd.f32 0.0, %v1904
        %v1906 = vpop.f32.mrb[0].mxu0
        %v1907 = vadd.f32 0.0, %v1906
        %1908 = vmatprep.mubr.bf16.mxu0 0
        %1909 = vmatmul.mubr.bf16.gmra.mrb[0].mxu0 %v1107
        %v1910 = vpop.f32.mrb[0].mxu0
        %v1911 = vadd.f32 0.0, %v1910
        %v1912 = vpop.f32.mrb[0].mxu0
        %v1913 = vadd.f32 0.0, %v1912
        %v1914 = vpop.f32.mrb[0].mxu0
        %v1915 = vadd.f32 0.0, %v1914
        %v1916 = vpop.f32.mrb[0].mxu0
        %v1917 = vadd.f32 0.0, %v1916
        %1918 = vmatprep.mubr.bf16.mxu0 0
        %1919 = vmatmul.mubr.bf16.gmra.mrb[0].mxu0 %v1108
        %v1920 = vpop.f32.mrb[0].mxu0
        %v1921 = vadd.f32 0.0, %v1920
        %v1922 = vpop.f32.mrb[0].mxu0
        %v1923 = vadd.f32 0.0, %v1922
        %v1924 = vpop.f32.mrb[0].mxu0
        %v1925 = vadd.f32 0.0, %v1924
        %v1926 = vpop.f32.mrb[0].mxu0
        %v1927 = vadd.f32 0.0, %v1926
        %1928 = vmatprep.mubr.bf16.mxu0 0
        %1929 = vmatmul.mubr.bf16.gmra.mrb[0].mxu0 %v1109
        %v1930 = vpop.f32.mrb[0].mxu0
        %v1931 = vadd.f32 0.0, %v1930
        %v1932 = vpop.f32.mrb[0].mxu0
        %v1933 = vadd.f32 0.0, %v1932
        %v1934 = vpop.f32.mrb[0].mxu0
        %v1935 = vadd.f32 0.0, %v1934
        %v1936 = vpop.f32.mrb[0].mxu0
        %v1937 = vadd.f32 0.0, %v1936
        %1938 = vmatprep.mubr.bf16.mxu0 0
        %1939 = vmatmul.mubr.bf16.gmra.mrb[0].mxu0 %v1110
        %v1940 = vpop.f32.mrb[0].mxu0
        %v1941 = vadd.f32 0.0, %v1940
        %v1942 = vpop.f32.mrb[0].mxu0
        %v1943 = vadd.f32 0.0, %v1942
        %v1944 = vpop.f32.mrb[0].mxu0
        %v1945 = vadd.f32 0.0, %v1944
        %v1946 = vpop.f32.mrb[0].mxu0
        %v1947 = vadd.f32 0.0, %v1946
        %1948 = vmatprep.mubr.bf16.mxu0 0
        %1949 = vmatmul.mubr.bf16.gmra.mrb[0].mxu0 %v1111
        %v1950 = vpop.f32.mrb[0].mxu0
        %v1951 = vadd.f32 0.0, %v1950
        %v1952 = vpop.f32.mrb[0].mxu0
        %v1953 = vadd.f32 0.0, %v1952
        %v1954 = vpop.f32.mrb[0].mxu0
        %v1955 = vadd.f32 0.0, %v1954
        %v1956 = vpop.f32.mrb[0].mxu0
        %v1957 = vadd.f32 0.0, %v1956
        %1958 = vmatprep.mubr.bf16.mxu0 0
        %1959 = vmatmul.mubr.bf16.gmra.mrb[0].mxu0 %v1112
        %v1960 = vpop.f32.mrb[0].mxu0
        %v1961 = vadd.f32 0.0, %v1960
        %v1962 = vpop.f32.mrb[0].mxu0
        %v1963 = vadd.f32 0.0, %v1962
        %v1964 = vpop.f32.mrb[0].mxu0
        %v1965 = vadd.f32 0.0, %v1964
        %v1966 = vpop.f32.mrb[0].mxu0
        %v1967 = vadd.f32 0.0, %v1966
        %1968 = vmatprep.mubr.bf16.mxu0 0
        %1969 = vmatmul.mubr.bf16.gmra.mrb[0].mxu0 %v1113
        %v1970 = vpop.f32.mrb[0].mxu0
        %v1971 = vadd.f32 0.0, %v1970
        %v1972 = vpop.f32.mrb[0].mxu0
        %v1973 = vadd.f32 0.0, %v1972
        %v1974 = vpop.f32.mrb[0].mxu0
        %v1975 = vadd.f32 0.0, %v1974
        %v1976 = vpop.f32.mrb[0].mxu0
        %v1977 = vadd.f32 0.0, %v1976
        %1978 = vdwg.mxu0
        %1979 = vmatprep.subr.bf16.mxu0 %v1565
        %1980 = vmatpush1.bf16.msra.mxu0 %v1564
        %1981 = vmatprep.subr.bf16.mxu0 %v1579
        %1982 = vmatpush1.bf16.msra.mxu0 %v1578
        %1983 = vmatprep.subr.bf16.mxu0 %v1593
        %1984 = vmatpush1.bf16.msra.mxu0 %v1592
        %1985 = vmatprep.subr.bf16.mxu0 %v1607
        %1986 = vmatpush1.bf16.msra.mxu0 %v1606
        %1987 = vmatprep.subr.bf16.mxu0 %v1621
        %1988 = vmatpush1.bf16.msra.mxu0 %v1620
        %1989 = vmatprep.subr.bf16.mxu0 %v1635
        %1990 = vmatpush1.bf16.msra.mxu0 %v1634
        %1991 = vmatprep.subr.bf16.mxu0 %v1649
        %1992 = vmatpush1.bf16.msra.mxu0 %v1648
        %1993 = vmatprep.subr.bf16.mxu0 %v1663
        %1994 = vmatpush1.bf16.msra.mxu0 %v1662
        %1995 = vmatprep.subr.bf16.mxu0 0
        %1996 = vmatpush1.bf16.msra.mxu0 0
        %1997 = vmatprep.subr.bf16.mxu0 0
        %1998 = vmatpush1.bf16.msra.mxu0 0
        %1999 = vmatprep.subr.bf16.mxu0 0
        %2000 = vmatpush1.bf16.msra.mxu0 0
        %2001 = vmatprep.subr.bf16.mxu0 0
        %2002 = vmatpush1.bf16.msra.mxu0 0
        %2003 = vmatprep.subr.bf16.mxu0 0
        %2004 = vmatpush1.bf16.msra.mxu0 0
        %2005 = vmatprep.subr.bf16.mxu0 0
        %2006 = vmatpush1.bf16.msra.mxu0 0
        %2007 = vmatprep.subr.bf16.mxu0 0
        %2008 = vmatpush1.bf16.msra.mxu0 0
        %2009 = vmatprep.subr.bf16.mxu0 0
        %2010 = vmatpush1.bf16.msra.mxu0 0
        %2011 = vmatprep.mubr.bf16.mxu0 0
        %2012 = vmatmul.mubr.bf16.gmra.mrb[0].mxu0 %v1098
        %v2013 = vpop.f32.mrb[0].mxu0
        %v2014 = vadd.f32 0.0, %v2013
        %v2015 = vpop.f32.mrb[0].mxu0
        %v2016 = vadd.f32 0.0, %v2015
        %v2017 = vpop.f32.mrb[0].mxu0
        %v2018 = vadd.f32 0.0, %v2017
        %v2019 = vpop.f32.mrb[0].mxu0
        %v2020 = vadd.f32 0.0, %v2019
        %2021 = vmatprep.mubr.bf16.mxu0 0
        %2022 = vmatmul.mubr.bf16.gmra.mrb[0].mxu0 %v1099
        %v2023 = vpop.f32.mrb[0].mxu0
        %v2024 = vadd.f32 0.0, %v2023
        %v2025 = vpop.f32.mrb[0].mxu0
        %v2026 = vadd.f32 0.0, %v2025
        %v2027 = vpop.f32.mrb[0].mxu0
        %v2028 = vadd.f32 0.0, %v2027
        %v2029 = vpop.f32.mrb[0].mxu0
        %v2030 = vadd.f32 0.0, %v2029
        %2031 = vmatprep.mubr.bf16.mxu0 0
        %2032 = vmatmul.mubr.bf16.gmra.mrb[0].mxu0 %v1100
        %v2033 = vpop.f32.mrb[0].mxu0
        %v2034 = vadd.f32 0.0, %v2033
        %v2035 = vpop.f32.mrb[0].mxu0
        %v2036 = vadd.f32 0.0, %v2035
        %v2037 = vpop.f32.mrb[0].mxu0
        %v2038 = vadd.f32 0.0, %v2037
        %v2039 = vpop.f32.mrb[0].mxu0
        %v2040 = vadd.f32 0.0, %v2039
        %2041 = vmatprep.mubr.bf16.mxu0 0
        %2042 = vmatmul.mubr.bf16.gmra.mrb[0].mxu0 %v1101
        %v2043 = vpop.f32.mrb[0].mxu0
        %v2044 = vadd.f32 0.0, %v2043
        %v2045 = vpop.f32.mrb[0].mxu0
        %v2046 = vadd.f32 0.0, %v2045
        %v2047 = vpop.f32.mrb[0].mxu0
        %v2048 = vadd.f32 0.0, %v2047
        %v2049 = vpop.f32.mrb[0].mxu0
        %v2050 = vadd.f32 0.0, %v2049
        %2051 = vmatprep.mubr.bf16.mxu0 0
        %2052 = vmatmul.mubr.bf16.gmra.mrb[0].mxu0 %v1102
        %v2053 = vpop.f32.mrb[0].mxu0
        %v2054 = vadd.f32 0.0, %v2053
        %v2055 = vpop.f32.mrb[0].mxu0
        %v2056 = vadd.f32 0.0, %v2055
        %v2057 = vpop.f32.mrb[0].mxu0
        %v2058 = vadd.f32 0.0, %v2057
        %v2059 = vpop.f32.mrb[0].mxu0
        %v2060 = vadd.f32 0.0, %v2059
        %2061 = vmatprep.mubr.bf16.mxu0 0
        %2062 = vmatmul.mubr.bf16.gmra.mrb[0].mxu0 %v1103
        %v2063 = vpop.f32.mrb[0].mxu0
        %v2064 = vadd.f32 0.0, %v2063
        %v2065 = vpop.f32.mrb[0].mxu0
        %v2066 = vadd.f32 0.0, %v2065
        %v2067 = vpop.f32.mrb[0].mxu0
        %v2068 = vadd.f32 0.0, %v2067
        %v2069 = vpop.f32.mrb[0].mxu0
        %v2070 = vadd.f32 0.0, %v2069
        %2071 = vmatprep.mubr.bf16.mxu0 0
        %2072 = vmatmul.mubr.bf16.gmra.mrb[0].mxu0 %v1104
        %v2073 = vpop.f32.mrb[0].mxu0
        %v2074 = vadd.f32 0.0, %v2073
        %v2075 = vpop.f32.mrb[0].mxu0
        %v2076 = vadd.f32 0.0, %v2075
        %v2077 = vpop.f32.mrb[0].mxu0
        %v2078 = vadd.f32 0.0, %v2077
        %v2079 = vpop.f32.mrb[0].mxu0
        %v2080 = vadd.f32 0.0, %v2079
        %2081 = vmatprep.mubr.bf16.mxu0 0
        %2082 = vmatmul.mubr.bf16.gmra.mrb[0].mxu0 %v1105
        %v2083 = vpop.f32.mrb[0].mxu0
        %v2084 = vadd.f32 0.0, %v2083
        %v2085 = vpop.f32.mrb[0].mxu0
        %v2086 = vadd.f32 0.0, %v2085
        %v2087 = vpop.f32.mrb[0].mxu0
        %v2088 = vadd.f32 0.0, %v2087
        %v2089 = vpop.f32.mrb[0].mxu0
        %v2090 = vadd.f32 0.0, %v2089
        %2091 = vmatprep.mubr.bf16.mxu0 0
        %2092 = vmatmul.mubr.bf16.gmra.mrb[0].mxu0 %v1106
        %v2093 = vpop.f32.mrb[0].mxu0
        %v2094 = vadd.f32 0.0, %v2093
        %v2095 = vpop.f32.mrb[0].mxu0
        %v2096 = vadd.f32 0.0, %v2095
        %v2097 = vpop.f32.mrb[0].mxu0
        %v2098 = vadd.f32 0.0, %v2097
        %v2099 = vpop.f32.mrb[0].mxu0
        %v2100 = vadd.f32 0.0, %v2099
        %2101 = vmatprep.mubr.bf16.mxu0 0
        %2102 = vmatmul.mubr.bf16.gmra.mrb[0].mxu0 %v1107
        %v2103 = vpop.f32.mrb[0].mxu0
        %v2104 = vadd.f32 0.0, %v2103
        %v2105 = vpop.f32.mrb[0].mxu0
        %v2106 = vadd.f32 0.0, %v2105
        %v2107 = vpop.f32.mrb[0].mxu0
        %v2108 = vadd.f32 0.0, %v2107
        %v2109 = vpop.f32.mrb[0].mxu0
        %v2110 = vadd.f32 0.0, %v2109
        %2111 = vmatprep.mubr.bf16.mxu0 0
        %2112 = vmatmul.mubr.bf16.gmra.mrb[0].mxu0 %v1108
        %v2113 = vpop.f32.mrb[0].mxu0
        %v2114 = vadd.f32 0.0, %v2113
        %v2115 = vpop.f32.mrb[0].mxu0
        %v2116 = vadd.f32 0.0, %v2115
        %v2117 = vpop.f32.mrb[0].mxu0
        %v2118 = vadd.f32 0.0, %v2117
        %v2119 = vpop.f32.mrb[0].mxu0
        %v2120 = vadd.f32 0.0, %v2119
        %2121 = vmatprep.mubr.bf16.mxu0 0
        %2122 = vmatmul.mubr.bf16.gmra.mrb[0].mxu0 %v1109
        %v2123 = vpop.f32.mrb[0].mxu0
        %v2124 = vadd.f32 0.0, %v2123
        %v2125 = vpop.f32.mrb[0].mxu0
        %v2126 = vadd.f32 0.0, %v2125
        %v2127 = vpop.f32.mrb[0].mxu0
        %v2128 = vadd.f32 0.0, %v2127
        %v2129 = vpop.f32.mrb[0].mxu0
        %v2130 = vadd.f32 0.0, %v2129
        %2131 = vmatprep.mubr.bf16.mxu0 0
        %2132 = vmatmul.mubr.bf16.gmra.mrb[0].mxu0 %v1110
        %v2133 = vpop.f32.mrb[0].mxu0
        %v2134 = vadd.f32 0.0, %v2133
        %v2135 = vpop.f32.mrb[0].mxu0
        %v2136 = vadd.f32 0.0, %v2135
        %v2137 = vpop.f32.mrb[0].mxu0
        %v2138 = vadd.f32 0.0, %v2137
        %v2139 = vpop.f32.mrb[0].mxu0
        %v2140 = vadd.f32 0.0, %v2139
        %2141 = vmatprep.mubr.bf16.mxu0 0
        %2142 = vmatmul.mubr.bf16.gmra.mrb[0].mxu0 %v1111
        %v2143 = vpop.f32.mrb[0].mxu0
        %v2144 = vadd.f32 0.0, %v2143
        %v2145 = vpop.f32.mrb[0].mxu0
        %v2146 = vadd.f32 0.0, %v2145
        %v2147 = vpop.f32.mrb[0].mxu0
        %v2148 = vadd.f32 0.0, %v2147
        %v2149 = vpop.f32.mrb[0].mxu0
        %v2150 = vadd.f32 0.0, %v2149
        %2151 = vmatprep.mubr.bf16.mxu0 0
        %2152 = vmatmul.mubr.bf16.gmra.mrb[0].mxu0 %v1112
        %v2153 = vpop.f32.mrb[0].mxu0
        %v2154 = vadd.f32 0.0, %v2153
        %v2155 = vpop.f32.mrb[0].mxu0
        %v2156 = vadd.f32 0.0, %v2155
        %v2157 = vpop.f32.mrb[0].mxu0
        %v2158 = vadd.f32 0.0, %v2157
        %v2159 = vpop.f32.mrb[0].mxu0
        %v2160 = vadd.f32 0.0, %v2159
        %2161 = vmatprep.mubr.bf16.mxu0 0
        %2162 = vmatmul.mubr.bf16.gmra.mrb[0].mxu0 %v1113
        %v2163 = vpop.f32.mrb[0].mxu0
        %v2164 = vadd.f32 0.0, %v2163
        %v2165 = vpop.f32.mrb[0].mxu0
        %v2166 = vadd.f32 0.0, %v2165
        %v2167 = vpop.f32.mrb[0].mxu0
        %v2168 = vadd.f32 0.0, %v2167
        %v2169 = vpop.f32.mrb[0].mxu0
        %v2170 = vadd.f32 0.0, %v2169
        %2171 = vdwg.mxu0
        %2172 = vmatprep.subr.bf16.mxu0 %v1567
        %2173 = vmatpush1.bf16.msra.mxu0 %v1566
        %2174 = vmatprep.subr.bf16.mxu0 %v1581
        %2175 = vmatpush1.bf16.msra.mxu0 %v1580
        %2176 = vmatprep.subr.bf16.mxu0 %v1595
        %2177 = vmatpush1.bf16.msra.mxu0 %v1594
        %2178 = vmatprep.subr.bf16.mxu0 %v1609
        %2179 = vmatpush1.bf16.msra.mxu0 %v1608
        %2180 = vmatprep.subr.bf16.mxu0 %v1623
        %2181 = vmatpush1.bf16.msra.mxu0 %v1622
        %2182 = vmatprep.subr.bf16.mxu0 %v1637
        %2183 = vmatpush1.bf16.msra.mxu0 %v1636
        %2184 = vmatprep.subr.bf16.mxu0 %v1651
        %2185 = vmatpush1.bf16.msra.mxu0 %v1650
        %2186 = vmatprep.subr.bf16.mxu0 %v1665
        %2187 = vmatpush1.bf16.msra.mxu0 %v1664
        %2188 = vmatprep.subr.bf16.mxu0 0
        %2189 = vmatpush1.bf16.msra.mxu0 0
        %2190 = vmatprep.subr.bf16.mxu0 0
        %2191 = vmatpush1.bf16.msra.mxu0 0
        %2192 = vmatprep.subr.bf16.mxu0 0
        %2193 = vmatpush1.bf16.msra.mxu0 0
        %2194 = vmatprep.subr.bf16.mxu0 0
        %2195 = vmatpush1.bf16.msra.mxu0 0
        %2196 = vmatprep.subr.bf16.mxu0 0
        %2197 = vmatpush1.bf16.msra.mxu0 0
        %2198 = vmatprep.subr.bf16.mxu0 0
        %2199 = vmatpush1.bf16.msra.mxu0 0
        %2200 = vmatprep.subr.bf16.mxu0 0
        %2201 = vmatpush1.bf16.msra.mxu0 0
        %2202 = vmatprep.subr.bf16.mxu0 0
        %2203 = vmatpush1.bf16.msra.mxu0 0
        %2204 = vmatprep.mubr.bf16.mxu0 0
        %2205 = vmatmul.mubr.bf16.gmra.mrb[0].mxu0 %v1098
        %v2206 = vpop.f32.mrb[0].mxu0
        %v2207 = vadd.f32 0.0, %v2206
        %v2208 = vpop.f32.mrb[0].mxu0
        %v2209 = vadd.f32 0.0, %v2208
        %v2210 = vpop.f32.mrb[0].mxu0
        %v2211 = vadd.f32 0.0, %v2210
        %v2212 = vpop.f32.mrb[0].mxu0
        %v2213 = vadd.f32 0.0, %v2212
        %2214 = vmatprep.mubr.bf16.mxu0 0
        %2215 = vmatmul.mubr.bf16.gmra.mrb[0].mxu0 %v1099
        %v2216 = vpop.f32.mrb[0].mxu0
        %v2217 = vadd.f32 0.0, %v2216
        %v2218 = vpop.f32.mrb[0].mxu0
        %v2219 = vadd.f32 0.0, %v2218
        %v2220 = vpop.f32.mrb[0].mxu0
        %v2221 = vadd.f32 0.0, %v2220
        %v2222 = vpop.f32.mrb[0].mxu0
        %v2223 = vadd.f32 0.0, %v2222
        %2224 = vmatprep.mubr.bf16.mxu0 0
        %2225 = vmatmul.mubr.bf16.gmra.mrb[0].mxu0 %v1100
        %v2226 = vpop.f32.mrb[0].mxu0
        %v2227 = vadd.f32 0.0, %v2226
        %v2228 = vpop.f32.mrb[0].mxu0
        %v2229 = vadd.f32 0.0, %v2228
        %v2230 = vpop.f32.mrb[0].mxu0
        %v2231 = vadd.f32 0.0, %v2230
        %v2232 = vpop.f32.mrb[0].mxu0
        %v2233 = vadd.f32 0.0, %v2232
        %2234 = vmatprep.mubr.bf16.mxu0 0
        %2235 = vmatmul.mubr.bf16.gmra.mrb[0].mxu0 %v1101
        %v2236 = vpop.f32.mrb[0].mxu0
        %v2237 = vadd.f32 0.0, %v2236
        %v2238 = vpop.f32.mrb[0].mxu0
        %v2239 = vadd.f32 0.0, %v2238
        %v2240 = vpop.f32.mrb[0].mxu0
        %v2241 = vadd.f32 0.0, %v2240
        %v2242 = vpop.f32.mrb[0].mxu0
        %v2243 = vadd.f32 0.0, %v2242
        %2244 = vmatprep.mubr.bf16.mxu0 0
        %2245 = vmatmul.mubr.bf16.gmra.mrb[0].mxu0 %v1102
        %v2246 = vpop.f32.mrb[0].mxu0
        %v2247 = vadd.f32 0.0, %v2246
        %v2248 = vpop.f32.mrb[0].mxu0
        %v2249 = vadd.f32 0.0, %v2248
        %v2250 = vpop.f32.mrb[0].mxu0
        %v2251 = vadd.f32 0.0, %v2250
        %v2252 = vpop.f32.mrb[0].mxu0
        %v2253 = vadd.f32 0.0, %v2252
        %2254 = vmatprep.mubr.bf16.mxu0 0
        %2255 = vmatmul.mubr.bf16.gmra.mrb[0].mxu0 %v1103
        %v2256 = vpop.f32.mrb[0].mxu0
        %v2257 = vadd.f32 0.0, %v2256
        %v2258 = vpop.f32.mrb[0].mxu0
        %v2259 = vadd.f32 0.0, %v2258
        %v2260 = vpop.f32.mrb[0].mxu0
        %v2261 = vadd.f32 0.0, %v2260
        %v2262 = vpop.f32.mrb[0].mxu0
        %v2263 = vadd.f32 0.0, %v2262
        %2264 = vmatprep.mubr.bf16.mxu0 0
        %2265 = vmatmul.mubr.bf16.gmra.mrb[0].mxu0 %v1104
        %v2266 = vpop.f32.mrb[0].mxu0
        %v2267 = vadd.f32 0.0, %v2266
        %v2268 = vpop.f32.mrb[0].mxu0
        %v2269 = vadd.f32 0.0, %v2268
        %v2270 = vpop.f32.mrb[0].mxu0
        %v2271 = vadd.f32 0.0, %v2270
        %v2272 = vpop.f32.mrb[0].mxu0
        %v2273 = vadd.f32 0.0, %v2272
        %2274 = vmatprep.mubr.bf16.mxu0 0
        %2275 = vmatmul.mubr.bf16.gmra.mrb[0].mxu0 %v1105
        %v2276 = vpop.f32.mrb[0].mxu0
        %v2277 = vadd.f32 0.0, %v2276
        %v2278 = vpop.f32.mrb[0].mxu0
        %v2279 = vadd.f32 0.0, %v2278
        %v2280 = vpop.f32.mrb[0].mxu0
        %v2281 = vadd.f32 0.0, %v2280
        %v2282 = vpop.f32.mrb[0].mxu0
        %v2283 = vadd.f32 0.0, %v2282
        %2284 = vmatprep.mubr.bf16.mxu0 0
        %2285 = vmatmul.mubr.bf16.gmra.mrb[0].mxu0 %v1106
        %v2286 = vpop.f32.mrb[0].mxu0
        %v2287 = vadd.f32 0.0, %v2286
        %v2288 = vpop.f32.mrb[0].mxu0
        %v2289 = vadd.f32 0.0, %v2288
        %v2290 = vpop.f32.mrb[0].mxu0
        %v2291 = vadd.f32 0.0, %v2290
        %v2292 = vpop.f32.mrb[0].mxu0
        %v2293 = vadd.f32 0.0, %v2292
        %2294 = vmatprep.mubr.bf16.mxu0 0
        %2295 = vmatmul.mubr.bf16.gmra.mrb[0].mxu0 %v1107
        %v2296 = vpop.f32.mrb[0].mxu0
        %v2297 = vadd.f32 0.0, %v2296
        %v2298 = vpop.f32.mrb[0].mxu0
        %v2299 = vadd.f32 0.0, %v2298
        %v2300 = vpop.f32.mrb[0].mxu0
        %v2301 = vadd.f32 0.0, %v2300
        %v2302 = vpop.f32.mrb[0].mxu0
        %v2303 = vadd.f32 0.0, %v2302
        %2304 = vmatprep.mubr.bf16.mxu0 0
        %2305 = vmatmul.mubr.bf16.gmra.mrb[0].mxu0 %v1108
        %v2306 = vpop.f32.mrb[0].mxu0
        %v2307 = vadd.f32 0.0, %v2306
        %v2308 = vpop.f32.mrb[0].mxu0
        %v2309 = vadd.f32 0.0, %v2308
        %v2310 = vpop.f32.mrb[0].mxu0
        %v2311 = vadd.f32 0.0, %v2310
        %v2312 = vpop.f32.mrb[0].mxu0
        %v2313 = vadd.f32 0.0, %v2312
        %2314 = vmatprep.mubr.bf16.mxu0 0
        %2315 = vmatmul.mubr.bf16.gmra.mrb[0].mxu0 %v1109
        %v2316 = vpop.f32.mrb[0].mxu0
        %v2317 = vadd.f32 0.0, %v2316
        %v2318 = vpop.f32.mrb[0].mxu0
        %v2319 = vadd.f32 0.0, %v2318
        %v2320 = vpop.f32.mrb[0].mxu0
        %v2321 = vadd.f32 0.0, %v2320
        %v2322 = vpop.f32.mrb[0].mxu0
        %v2323 = vadd.f32 0.0, %v2322
        %2324 = vmatprep.mubr.bf16.mxu0 0
        %2325 = vmatmul.mubr.bf16.gmra.mrb[0].mxu0 %v1110
        %v2326 = vpop.f32.mrb[0].mxu0
        %v2327 = vadd.f32 0.0, %v2326
        %v2328 = vpop.f32.mrb[0].mxu0
        %v2329 = vadd.f32 0.0, %v2328
        %v2330 = vpop.f32.mrb[0].mxu0
        %v2331 = vadd.f32 0.0, %v2330
        %v2332 = vpop.f32.mrb[0].mxu0
        %v2333 = vadd.f32 0.0, %v2332
        %2334 = vmatprep.mubr.bf16.mxu0 0
        %2335 = vmatmul.mubr.bf16.gmra.mrb[0].mxu0 %v1111
        %v2336 = vpop.f32.mrb[0].mxu0
        %v2337 = vadd.f32 0.0, %v2336
        %v2338 = vpop.f32.mrb[0].mxu0
        %v2339 = vadd.f32 0.0, %v2338
        %v2340 = vpop.f32.mrb[0].mxu0
        %v2341 = vadd.f32 0.0, %v2340
        %v2342 = vpop.f32.mrb[0].mxu0
        %v2343 = vadd.f32 0.0, %v2342
        %2344 = vmatprep.mubr.bf16.mxu0 0
        %2345 = vmatmul.mubr.bf16.gmra.mrb[0].mxu0 %v1112
        %v2346 = vpop.f32.mrb[0].mxu0
        %v2347 = vadd.f32 0.0, %v2346
        %v2348 = vpop.f32.mrb[0].mxu0
        %v2349 = vadd.f32 0.0, %v2348
        %v2350 = vpop.f32.mrb[0].mxu0
        %v2351 = vadd.f32 0.0, %v2350
        %v2352 = vpop.f32.mrb[0].mxu0
        %v2353 = vadd.f32 0.0, %v2352
        %2354 = vmatprep.mubr.bf16.mxu0 0
        %2355 = vmatmul.mubr.bf16.gmra.mrb[0].mxu0 %v1113
        %v2356 = vpop.f32.mrb[0].mxu0
        %v2357 = vadd.f32 0.0, %v2356
        %v2358 = vpop.f32.mrb[0].mxu0
        %v2359 = vadd.f32 0.0, %v2358
        %v2360 = vpop.f32.mrb[0].mxu0
        %v2361 = vadd.f32 0.0, %v2360
        %v2362 = vpop.f32.mrb[0].mxu0
        %v2363 = vadd.f32 0.0, %v2362
        %2364 = vdwg.mxu0
        %2365 = vmatprep.subr.bf16.mxu0 %v1569
        %2366 = vmatpush1.bf16.msra.mxu0 %v1568
        %2367 = vmatprep.subr.bf16.mxu0 %v1583
        %2368 = vmatpush1.bf16.msra.mxu0 %v1582
        %2369 = vmatprep.subr.bf16.mxu0 %v1597
        %2370 = vmatpush1.bf16.msra.mxu0 %v1596
        %2371 = vmatprep.subr.bf16.mxu0 %v1611
        %2372 = vmatpush1.bf16.msra.mxu0 %v1610
        %2373 = vmatprep.subr.bf16.mxu0 %v1625
        %2374 = vmatpush1.bf16.msra.mxu0 %v1624
        %2375 = vmatprep.subr.bf16.mxu0 %v1639
        %2376 = vmatpush1.bf16.msra.mxu0 %v1638
        %2377 = vmatprep.subr.bf16.mxu0 %v1653
        %2378 = vmatpush1.bf16.msra.mxu0 %v1652
        %2379 = vmatprep.subr.bf16.mxu0 %v1667
        %2380 = vmatpush1.bf16.msra.mxu0 %v1666
        %2381 = vmatprep.subr.bf16.mxu0 0
        %2382 = vmatpush1.bf16.msra.mxu0 0
        %2383 = vmatprep.subr.bf16.mxu0 0
        %2384 = vmatpush1.bf16.msra.mxu0 0
        %2385 = vmatprep.subr.bf16.mxu0 0
        %2386 = vmatpush1.bf16.msra.mxu0 0
        %2387 = vmatprep.subr.bf16.mxu0 0
        %2388 = vmatpush1.bf16.msra.mxu0 0
        %2389 = vmatprep.subr.bf16.mxu0 0
        %2390 = vmatpush1.bf16.msra.mxu0 0
        %2391 = vmatprep.subr.bf16.mxu0 0
        %2392 = vmatpush1.bf16.msra.mxu0 0
        %2393 = vmatprep.subr.bf16.mxu0 0
        %2394 = vmatpush1.bf16.msra.mxu0 0
        %2395 = vmatprep.subr.bf16.mxu0 0
        %2396 = vmatpush1.bf16.msra.mxu0 0
        %2397 = vmatprep.mubr.bf16.mxu0 0
        %2398 = vmatmul.mubr.bf16.gmra.mrb[0].mxu0 %v1098
        %v2399 = vpop.f32.mrb[0].mxu0
        %v2400 = vadd.f32 0.0, %v2399
        %v2401 = vpop.f32.mrb[0].mxu0
        %v2402 = vadd.f32 0.0, %v2401
        %v2403 = vpop.f32.mrb[0].mxu0
        %v2404 = vadd.f32 0.0, %v2403
        %v2405 = vpop.f32.mrb[0].mxu0
        %v2406 = vadd.f32 0.0, %v2405
        %2407 = vmatprep.mubr.bf16.mxu0 0
        %2408 = vmatmul.mubr.bf16.gmra.mrb[0].mxu0 %v1099
        %v2409 = vpop.f32.mrb[0].mxu0
        %v2410 = vadd.f32 0.0, %v2409
        %v2411 = vpop.f32.mrb[0].mxu0
        %v2412 = vadd.f32 0.0, %v2411
        %v2413 = vpop.f32.mrb[0].mxu0
        %v2414 = vadd.f32 0.0, %v2413
        %v2415 = vpop.f32.mrb[0].mxu0
        %v2416 = vadd.f32 0.0, %v2415
        %2417 = vmatprep.mubr.bf16.mxu0 0
        %2418 = vmatmul.mubr.bf16.gmra.mrb[0].mxu0 %v1100
        %v2419 = vpop.f32.mrb[0].mxu0
        %v2420 = vadd.f32 0.0, %v2419
        %v2421 = vpop.f32.mrb[0].mxu0
        %v2422 = vadd.f32 0.0, %v2421
        %v2423 = vpop.f32.mrb[0].mxu0
        %v2424 = vadd.f32 0.0, %v2423
        %v2425 = vpop.f32.mrb[0].mxu0
        %v2426 = vadd.f32 0.0, %v2425
        %2427 = vmatprep.mubr.bf16.mxu0 0
        %2428 = vmatmul.mubr.bf16.gmra.mrb[0].mxu0 %v1101
        %v2429 = vpop.f32.mrb[0].mxu0
        %v2430 = vadd.f32 0.0, %v2429
        %v2431 = vpop.f32.mrb[0].mxu0
        %v2432 = vadd.f32 0.0, %v2431
        %v2433 = vpop.f32.mrb[0].mxu0
        %v2434 = vadd.f32 0.0, %v2433
        %v2435 = vpop.f32.mrb[0].mxu0
        %v2436 = vadd.f32 0.0, %v2435
        %2437 = vmatprep.mubr.bf16.mxu0 0
        %2438 = vmatmul.mubr.bf16.gmra.mrb[0].mxu0 %v1102
        %v2439 = vpop.f32.mrb[0].mxu0
        %v2440 = vadd.f32 0.0, %v2439
        %v2441 = vpop.f32.mrb[0].mxu0
        %v2442 = vadd.f32 0.0, %v2441
        %v2443 = vpop.f32.mrb[0].mxu0
        %v2444 = vadd.f32 0.0, %v2443
        %v2445 = vpop.f32.mrb[0].mxu0
        %v2446 = vadd.f32 0.0, %v2445
        %2447 = vmatprep.mubr.bf16.mxu0 0
        %2448 = vmatmul.mubr.bf16.gmra.mrb[0].mxu0 %v1103
        %v2449 = vpop.f32.mrb[0].mxu0
        %v2450 = vadd.f32 0.0, %v2449
        %v2451 = vpop.f32.mrb[0].mxu0
        %v2452 = vadd.f32 0.0, %v2451
        %v2453 = vpop.f32.mrb[0].mxu0
        %v2454 = vadd.f32 0.0, %v2453
        %v2455 = vpop.f32.mrb[0].mxu0
        %v2456 = vadd.f32 0.0, %v2455
        %2457 = vmatprep.mubr.bf16.mxu0 0
        %2458 = vmatmul.mubr.bf16.gmra.mrb[0].mxu0 %v1104
        %v2459 = vpop.f32.mrb[0].mxu0
        %v2460 = vadd.f32 0.0, %v2459
        %v2461 = vpop.f32.mrb[0].mxu0
        %v2462 = vadd.f32 0.0, %v2461
        %v2463 = vpop.f32.mrb[0].mxu0
        %v2464 = vadd.f32 0.0, %v2463
        %v2465 = vpop.f32.mrb[0].mxu0
        %v2466 = vadd.f32 0.0, %v2465
        %2467 = vmatprep.mubr.bf16.mxu0 0
        %2468 = vmatmul.mubr.bf16.gmra.mrb[0].mxu0 %v1105
        %v2469 = vpop.f32.mrb[0].mxu0
        %v2470 = vadd.f32 0.0, %v2469
        %v2471 = vpop.f32.mrb[0].mxu0
        %v2472 = vadd.f32 0.0, %v2471
        %v2473 = vpop.f32.mrb[0].mxu0
        %v2474 = vadd.f32 0.0, %v2473
        %v2475 = vpop.f32.mrb[0].mxu0
        %v2476 = vadd.f32 0.0, %v2475
        %2477 = vmatprep.mubr.bf16.mxu0 0
        %2478 = vmatmul.mubr.bf16.gmra.mrb[0].mxu0 %v1106
        %v2479 = vpop.f32.mrb[0].mxu0
        %v2480 = vadd.f32 0.0, %v2479
        %v2481 = vpop.f32.mrb[0].mxu0
        %v2482 = vadd.f32 0.0, %v2481
        %v2483 = vpop.f32.mrb[0].mxu0
        %v2484 = vadd.f32 0.0, %v2483
        %v2485 = vpop.f32.mrb[0].mxu0
        %v2486 = vadd.f32 0.0, %v2485
        %2487 = vmatprep.mubr.bf16.mxu0 0
        %2488 = vmatmul.mubr.bf16.gmra.mrb[0].mxu0 %v1107
        %v2489 = vpop.f32.mrb[0].mxu0
        %v2490 = vadd.f32 0.0, %v2489
        %v2491 = vpop.f32.mrb[0].mxu0
        %v2492 = vadd.f32 0.0, %v2491
        %v2493 = vpop.f32.mrb[0].mxu0
        %v2494 = vadd.f32 0.0, %v2493
        %v2495 = vpop.f32.mrb[0].mxu0
        %v2496 = vadd.f32 0.0, %v2495
        %2497 = vmatprep.mubr.bf16.mxu0 0
        %2498 = vmatmul.mubr.bf16.gmra.mrb[0].mxu0 %v1108
        %v2499 = vpop.f32.mrb[0].mxu0
        %v2500 = vadd.f32 0.0, %v2499
        %v2501 = vpop.f32.mrb[0].mxu0
        %v2502 = vadd.f32 0.0, %v2501
        %v2503 = vpop.f32.mrb[0].mxu0
        %v2504 = vadd.f32 0.0, %v2503
        %v2505 = vpop.f32.mrb[0].mxu0
        %v2506 = vadd.f32 0.0, %v2505
        %2507 = vmatprep.mubr.bf16.mxu0 0
        %2508 = vmatmul.mubr.bf16.gmra.mrb[0].mxu0 %v1109
        %v2509 = vpop.f32.mrb[0].mxu0
        %v2510 = vadd.f32 0.0, %v2509
        %v2511 = vpop.f32.mrb[0].mxu0
        %v2512 = vadd.f32 0.0, %v2511
        %v2513 = vpop.f32.mrb[0].mxu0
        %v2514 = vadd.f32 0.0, %v2513
        %v2515 = vpop.f32.mrb[0].mxu0
        %v2516 = vadd.f32 0.0, %v2515
        %2517 = vmatprep.mubr.bf16.mxu0 0
        %2518 = vmatmul.mubr.bf16.gmra.mrb[0].mxu0 %v1110
        %v2519 = vpop.f32.mrb[0].mxu0
        %v2520 = vadd.f32 0.0, %v2519
        %v2521 = vpop.f32.mrb[0].mxu0
        %v2522 = vadd.f32 0.0, %v2521
        %v2523 = vpop.f32.mrb[0].mxu0
        %v2524 = vadd.f32 0.0, %v2523
        %v2525 = vpop.f32.mrb[0].mxu0
        %v2526 = vadd.f32 0.0, %v2525
        %2527 = vmatprep.mubr.bf16.mxu0 0
        %2528 = vmatmul.mubr.bf16.gmra.mrb[0].mxu0 %v1111
        %v2529 = vpop.f32.mrb[0].mxu0
        %v2530 = vadd.f32 0.0, %v2529
        %v2531 = vpop.f32.mrb[0].mxu0
        %v2532 = vadd.f32 0.0, %v2531
        %v2533 = vpop.f32.mrb[0].mxu0
        %v2534 = vadd.f32 0.0, %v2533
        %v2535 = vpop.f32.mrb[0].mxu0
        %v2536 = vadd.f32 0.0, %v2535
        %2537 = vmatprep.mubr.bf16.mxu0 0
        %2538 = vmatmul.mubr.bf16.gmra.mrb[0].mxu0 %v1112
        %v2539 = vpop.f32.mrb[0].mxu0
        %v2540 = vadd.f32 0.0, %v2539
        %v2541 = vpop.f32.mrb[0].mxu0
        %v2542 = vadd.f32 0.0, %v2541
        %v2543 = vpop.f32.mrb[0].mxu0
        %v2544 = vadd.f32 0.0, %v2543
        %v2545 = vpop.f32.mrb[0].mxu0
        %v2546 = vadd.f32 0.0, %v2545
        %2547 = vmatprep.mubr.bf16.mxu0 0
        %2548 = vmatmul.mubr.bf16.gmra.mrb[0].mxu0 %v1113
        %v2549 = vpop.f32.mrb[0].mxu0
        %v2550 = vadd.f32 0.0, %v2549
        %v2551 = vpop.f32.mrb[0].mxu0
        %v2552 = vadd.f32 0.0, %v2551
        %v2553 = vpop.f32.mrb[0].mxu0
        %v2554 = vadd.f32 0.0, %v2553
        %v2555 = vpop.f32.mrb[0].mxu0
        %v2556 = vadd.f32 0.0, %v2555
        %2557 = vdwg.mxu0
        %2558 = vmatprep.subr.bf16.mxu0 %v1571
        %2559 = vmatpush1.bf16.msra.mxu0 %v1570
        %2560 = vmatprep.subr.bf16.mxu0 %v1585
        %2561 = vmatpush1.bf16.msra.mxu0 %v1584
        %2562 = vmatprep.subr.bf16.mxu0 %v1599
        %2563 = vmatpush1.bf16.msra.mxu0 %v1598
        %2564 = vmatprep.subr.bf16.mxu0 %v1613
        %2565 = vmatpush1.bf16.msra.mxu0 %v1612
        %2566 = vmatprep.subr.bf16.mxu0 %v1627
        %2567 = vmatpush1.bf16.msra.mxu0 %v1626
        %2568 = vmatprep.subr.bf16.mxu0 %v1641
        %2569 = vmatpush1.bf16.msra.mxu0 %v1640
        %2570 = vmatprep.subr.bf16.mxu0 %v1655
        %2571 = vmatpush1.bf16.msra.mxu0 %v1654
        %2572 = vmatprep.subr.bf16.mxu0 %v1669
        %2573 = vmatpush1.bf16.msra.mxu0 %v1668
        %2574 = vmatprep.subr.bf16.mxu0 0
        %2575 = vmatpush1.bf16.msra.mxu0 0
        %2576 = vmatprep.subr.bf16.mxu0 0
        %2577 = vmatpush1.bf16.msra.mxu0 0
        %2578 = vmatprep.subr.bf16.mxu0 0
        %2579 = vmatpush1.bf16.msra.mxu0 0
        %2580 = vmatprep.subr.bf16.mxu0 0
        %2581 = vmatpush1.bf16.msra.mxu0 0
        %2582 = vmatprep.subr.bf16.mxu0 0
        %2583 = vmatpush1.bf16.msra.mxu0 0
        %2584 = vmatprep.subr.bf16.mxu0 0
        %2585 = vmatpush1.bf16.msra.mxu0 0
        %2586 = vmatprep.subr.bf16.mxu0 0
        %2587 = vmatpush1.bf16.msra.mxu0 0
        %2588 = vmatprep.subr.bf16.mxu0 0
        %2589 = vmatpush1.bf16.msra.mxu0 0
        %2590 = vmatprep.mubr.bf16.mxu0 0
        %2591 = vmatmul.mubr.bf16.gmra.mrb[0].mxu0 %v1098
        %v2592 = vpop.f32.mrb[0].mxu0
        %v2593 = vadd.f32 0.0, %v2592
        %v2594 = vpop.f32.mrb[0].mxu0
        %v2595 = vadd.f32 0.0, %v2594
        %v2596 = vpop.f32.mrb[0].mxu0
        %v2597 = vadd.f32 0.0, %v2596
        %v2598 = vpop.f32.mrb[0].mxu0
        %v2599 = vadd.f32 0.0, %v2598
        %2600 = vmatprep.mubr.bf16.mxu0 0
        %2601 = vmatmul.mubr.bf16.gmra.mrb[0].mxu0 %v1099
        %v2602 = vpop.f32.mrb[0].mxu0
        %v2603 = vadd.f32 0.0, %v2602
        %v2604 = vpop.f32.mrb[0].mxu0
        %v2605 = vadd.f32 0.0, %v2604
        %v2606 = vpop.f32.mrb[0].mxu0
        %v2607 = vadd.f32 0.0, %v2606
        %v2608 = vpop.f32.mrb[0].mxu0
        %v2609 = vadd.f32 0.0, %v2608
        %2610 = vmatprep.mubr.bf16.mxu0 0
        %2611 = vmatmul.mubr.bf16.gmra.mrb[0].mxu0 %v1100
        %v2612 = vpop.f32.mrb[0].mxu0
        %v2613 = vadd.f32 0.0, %v2612
        %v2614 = vpop.f32.mrb[0].mxu0
        %v2615 = vadd.f32 0.0, %v2614
        %v2616 = vpop.f32.mrb[0].mxu0
        %v2617 = vadd.f32 0.0, %v2616
        %v2618 = vpop.f32.mrb[0].mxu0
        %v2619 = vadd.f32 0.0, %v2618
        %2620 = vmatprep.mubr.bf16.mxu0 0
        %2621 = vmatmul.mubr.bf16.gmra.mrb[0].mxu0 %v1101
        %v2622 = vpop.f32.mrb[0].mxu0
        %v2623 = vadd.f32 0.0, %v2622
        %v2624 = vpop.f32.mrb[0].mxu0
        %v2625 = vadd.f32 0.0, %v2624
        %v2626 = vpop.f32.mrb[0].mxu0
        %v2627 = vadd.f32 0.0, %v2626
        %v2628 = vpop.f32.mrb[0].mxu0
        %v2629 = vadd.f32 0.0, %v2628
        %2630 = vmatprep.mubr.bf16.mxu0 0
        %2631 = vmatmul.mubr.bf16.gmra.mrb[0].mxu0 %v1102
        %v2632 = vpop.f32.mrb[0].mxu0
        %v2633 = vadd.f32 0.0, %v2632
        %v2634 = vpop.f32.mrb[0].mxu0
        %v2635 = vadd.f32 0.0, %v2634
        %v2636 = vpop.f32.mrb[0].mxu0
        %v2637 = vadd.f32 0.0, %v2636
        %v2638 = vpop.f32.mrb[0].mxu0
        %v2639 = vadd.f32 0.0, %v2638
        %2640 = vmatprep.mubr.bf16.mxu0 0
        %2641 = vmatmul.mubr.bf16.gmra.mrb[0].mxu0 %v1103
        %v2642 = vpop.f32.mrb[0].mxu0
        %v2643 = vadd.f32 0.0, %v2642
        %v2644 = vpop.f32.mrb[0].mxu0
        %v2645 = vadd.f32 0.0, %v2644
        %v2646 = vpop.f32.mrb[0].mxu0
        %v2647 = vadd.f32 0.0, %v2646
        %v2648 = vpop.f32.mrb[0].mxu0
        %v2649 = vadd.f32 0.0, %v2648
        %2650 = vmatprep.mubr.bf16.mxu0 0
        %2651 = vmatmul.mubr.bf16.gmra.mrb[0].mxu0 %v1104
        %v2652 = vpop.f32.mrb[0].mxu0
        %v2653 = vadd.f32 0.0, %v2652
        %v2654 = vpop.f32.mrb[0].mxu0
        %v2655 = vadd.f32 0.0, %v2654
        %v2656 = vpop.f32.mrb[0].mxu0
        %v2657 = vadd.f32 0.0, %v2656
        %v2658 = vpop.f32.mrb[0].mxu0
        %v2659 = vadd.f32 0.0, %v2658
        %2660 = vmatprep.mubr.bf16.mxu0 0
        %2661 = vmatmul.mubr.bf16.gmra.mrb[0].mxu0 %v1105
        %v2662 = vpop.f32.mrb[0].mxu0
        %v2663 = vadd.f32 0.0, %v2662
        %v2664 = vpop.f32.mrb[0].mxu0
        %v2665 = vadd.f32 0.0, %v2664
        %v2666 = vpop.f32.mrb[0].mxu0
        %v2667 = vadd.f32 0.0, %v2666
        %v2668 = vpop.f32.mrb[0].mxu0
        %v2669 = vadd.f32 0.0, %v2668
        %2670 = vmatprep.mubr.bf16.mxu0 0
        %2671 = vmatmul.mubr.bf16.gmra.mrb[0].mxu0 %v1106
        %v2672 = vpop.f32.mrb[0].mxu0
        %v2673 = vadd.f32 0.0, %v2672
        %v2674 = vpop.f32.mrb[0].mxu0
        %v2675 = vadd.f32 0.0, %v2674
        %v2676 = vpop.f32.mrb[0].mxu0
        %v2677 = vadd.f32 0.0, %v2676
        %v2678 = vpop.f32.mrb[0].mxu0
        %v2679 = vadd.f32 0.0, %v2678
        %2680 = vmatprep.mubr.bf16.mxu0 0
        %2681 = vmatmul.mubr.bf16.gmra.mrb[0].mxu0 %v1107
        %v2682 = vpop.f32.mrb[0].mxu0
        %v2683 = vadd.f32 0.0, %v2682
        %v2684 = vpop.f32.mrb[0].mxu0
        %v2685 = vadd.f32 0.0, %v2684
        %v2686 = vpop.f32.mrb[0].mxu0
        %v2687 = vadd.f32 0.0, %v2686
        %v2688 = vpop.f32.mrb[0].mxu0
        %v2689 = vadd.f32 0.0, %v2688
        %2690 = vmatprep.mubr.bf16.mxu0 0
        %2691 = vmatmul.mubr.bf16.gmra.mrb[0].mxu0 %v1108
        %v2692 = vpop.f32.mrb[0].mxu0
        %v2693 = vadd.f32 0.0, %v2692
        %v2694 = vpop.f32.mrb[0].mxu0
        %v2695 = vadd.f32 0.0, %v2694
        %v2696 = vpop.f32.mrb[0].mxu0
        %v2697 = vadd.f32 0.0, %v2696
        %v2698 = vpop.f32.mrb[0].mxu0
        %v2699 = vadd.f32 0.0, %v2698
        %2700 = vmatprep.mubr.bf16.mxu0 0
        %2701 = vmatmul.mubr.bf16.gmra.mrb[0].mxu0 %v1109
        %v2702 = vpop.f32.mrb[0].mxu0
        %v2703 = vadd.f32 0.0, %v2702
        %v2704 = vpop.f32.mrb[0].mxu0
        %v2705 = vadd.f32 0.0, %v2704
        %v2706 = vpop.f32.mrb[0].mxu0
        %v2707 = vadd.f32 0.0, %v2706
        %v2708 = vpop.f32.mrb[0].mxu0
        %v2709 = vadd.f32 0.0, %v2708
        %2710 = vmatprep.mubr.bf16.mxu0 0
        %2711 = vmatmul.mubr.bf16.gmra.mrb[0].mxu0 %v1110
        %v2712 = vpop.f32.mrb[0].mxu0
        %v2713 = vadd.f32 0.0, %v2712
        %v2714 = vpop.f32.mrb[0].mxu0
        %v2715 = vadd.f32 0.0, %v2714
        %v2716 = vpop.f32.mrb[0].mxu0
        %v2717 = vadd.f32 0.0, %v2716
        %v2718 = vpop.f32.mrb[0].mxu0
        %v2719 = vadd.f32 0.0, %v2718
        %2720 = vmatprep.mubr.bf16.mxu0 0
        %2721 = vmatmul.mubr.bf16.gmra.mrb[0].mxu0 %v1111
        %v2722 = vpop.f32.mrb[0].mxu0
        %v2723 = vadd.f32 0.0, %v2722
        %v2724 = vpop.f32.mrb[0].mxu0
        %v2725 = vadd.f32 0.0, %v2724
        %v2726 = vpop.f32.mrb[0].mxu0
        %v2727 = vadd.f32 0.0, %v2726
        %v2728 = vpop.f32.mrb[0].mxu0
        %v2729 = vadd.f32 0.0, %v2728
        %2730 = vmatprep.mubr.bf16.mxu0 0
        %2731 = vmatmul.mubr.bf16.gmra.mrb[0].mxu0 %v1112
        %v2732 = vpop.f32.mrb[0].mxu0
        %v2733 = vadd.f32 0.0, %v2732
        %v2734 = vpop.f32.mrb[0].mxu0
        %v2735 = vadd.f32 0.0, %v2734
        %v2736 = vpop.f32.mrb[0].mxu0
        %v2737 = vadd.f32 0.0, %v2736
        %v2738 = vpop.f32.mrb[0].mxu0
        %v2739 = vadd.f32 0.0, %v2738
        %2740 = vmatprep.mubr.bf16.mxu0 0
        %2741 = vmatmul.mubr.bf16.gmra.mrb[0].mxu0 %v1113
        %v2742 = vpop.f32.mrb[0].mxu0
        %v2743 = vadd.f32 0.0, %v2742
        %v2744 = vpop.f32.mrb[0].mxu0
        %v2745 = vadd.f32 0.0, %v2744
        %v2746 = vpop.f32.mrb[0].mxu0
        %v2747 = vadd.f32 0.0, %v2746
        %v2748 = vpop.f32.mrb[0].mxu0
        %v2749 = vadd.f32 0.0, %v2748
        %2750 = vdwg.mxu0
        %2751 = vmatprep.subr.bf16.mxu0 %v1573
        %2752 = vmatpush1.bf16.msra.mxu0 %v1572
        %2753 = vmatprep.subr.bf16.mxu0 %v1587
        %2754 = vmatpush1.bf16.msra.mxu0 %v1586
        %2755 = vmatprep.subr.bf16.mxu0 %v1601
        %2756 = vmatpush1.bf16.msra.mxu0 %v1600
        %2757 = vmatprep.subr.bf16.mxu0 %v1615
        %2758 = vmatpush1.bf16.msra.mxu0 %v1614
        %2759 = vmatprep.subr.bf16.mxu0 %v1629
        %2760 = vmatpush1.bf16.msra.mxu0 %v1628
        %2761 = vmatprep.subr.bf16.mxu0 %v1643
        %2762 = vmatpush1.bf16.msra.mxu0 %v1642
        %2763 = vmatprep.subr.bf16.mxu0 %v1657
        %2764 = vmatpush1.bf16.msra.mxu0 %v1656
        %2765 = vmatprep.subr.bf16.mxu0 %v1671
        %2766 = vmatpush1.bf16.msra.mxu0 %v1670
        %2767 = vmatprep.subr.bf16.mxu0 0
        %2768 = vmatpush1.bf16.msra.mxu0 0
        %2769 = vmatprep.subr.bf16.mxu0 0
        %2770 = vmatpush1.bf16.msra.mxu0 0
        %2771 = vmatprep.subr.bf16.mxu0 0
        %2772 = vmatpush1.bf16.msra.mxu0 0
        %2773 = vmatprep.subr.bf16.mxu0 0
        %2774 = vmatpush1.bf16.msra.mxu0 0
        %2775 = vmatprep.subr.bf16.mxu0 0
        %2776 = vmatpush1.bf16.msra.mxu0 0
        %2777 = vmatprep.subr.bf16.mxu0 0
        %2778 = vmatpush1.bf16.msra.mxu0 0
        %2779 = vmatprep.subr.bf16.mxu0 0
        %2780 = vmatpush1.bf16.msra.mxu0 0
        %2781 = vmatprep.subr.bf16.mxu0 0
        %2782 = vmatpush1.bf16.msra.mxu0 0
        %2783 = vmatprep.mubr.bf16.mxu0 0
        %2784 = vmatmul.mubr.bf16.gmra.mrb[0].mxu0 %v1098
        %v2785 = vpop.f32.mrb[0].mxu0
        %v2786 = vadd.f32 0.0, %v2785
        %v2787 = vpop.f32.mrb[0].mxu0
        %v2788 = vadd.f32 0.0, %v2787
        %v2789 = vpop.f32.mrb[0].mxu0
        %v2790 = vadd.f32 0.0, %v2789
        %v2791 = vpop.f32.mrb[0].mxu0
        %v2792 = vadd.f32 0.0, %v2791
        %2793 = vmatprep.mubr.bf16.mxu0 0
        %2794 = vmatmul.mubr.bf16.gmra.mrb[0].mxu0 %v1099
        %v2795 = vpop.f32.mrb[0].mxu0
        %v2796 = vadd.f32 0.0, %v2795
        %v2797 = vpop.f32.mrb[0].mxu0
        %v2798 = vadd.f32 0.0, %v2797
        %v2799 = vpop.f32.mrb[0].mxu0
        %v2800 = vadd.f32 0.0, %v2799
        %v2801 = vpop.f32.mrb[0].mxu0
        %v2802 = vadd.f32 0.0, %v2801
        %2803 = vmatprep.mubr.bf16.mxu0 0
        %2804 = vmatmul.mubr.bf16.gmra.mrb[0].mxu0 %v1100
        %v2805 = vpop.f32.mrb[0].mxu0
        %v2806 = vadd.f32 0.0, %v2805
        %v2807 = vpop.f32.mrb[0].mxu0
        %v2808 = vadd.f32 0.0, %v2807
        %v2809 = vpop.f32.mrb[0].mxu0
        %v2810 = vadd.f32 0.0, %v2809
        %v2811 = vpop.f32.mrb[0].mxu0
        %v2812 = vadd.f32 0.0, %v2811
        %2813 = vmatprep.mubr.bf16.mxu0 0
        %2814 = vmatmul.mubr.bf16.gmra.mrb[0].mxu0 %v1101
        %v2815 = vpop.f32.mrb[0].mxu0
        %v2816 = vadd.f32 0.0, %v2815
        %v2817 = vpop.f32.mrb[0].mxu0
        %v2818 = vadd.f32 0.0, %v2817
        %v2819 = vpop.f32.mrb[0].mxu0
        %v2820 = vadd.f32 0.0, %v2819
        %v2821 = vpop.f32.mrb[0].mxu0
        %v2822 = vadd.f32 0.0, %v2821
        %2823 = vmatprep.mubr.bf16.mxu0 0
        %2824 = vmatmul.mubr.bf16.gmra.mrb[0].mxu0 %v1102
        %v2825 = vpop.f32.mrb[0].mxu0
        %v2826 = vadd.f32 0.0, %v2825
        %v2827 = vpop.f32.mrb[0].mxu0
        %v2828 = vadd.f32 0.0, %v2827
        %v2829 = vpop.f32.mrb[0].mxu0
        %v2830 = vadd.f32 0.0, %v2829
        %v2831 = vpop.f32.mrb[0].mxu0
        %v2832 = vadd.f32 0.0, %v2831
        %2833 = vmatprep.mubr.bf16.mxu0 0
        %2834 = vmatmul.mubr.bf16.gmra.mrb[0].mxu0 %v1103
        %v2835 = vpop.f32.mrb[0].mxu0
        %v2836 = vadd.f32 0.0, %v2835
        %v2837 = vpop.f32.mrb[0].mxu0
        %v2838 = vadd.f32 0.0, %v2837
        %v2839 = vpop.f32.mrb[0].mxu0
        %v2840 = vadd.f32 0.0, %v2839
        %v2841 = vpop.f32.mrb[0].mxu0
        %v2842 = vadd.f32 0.0, %v2841
        %2843 = vmatprep.mubr.bf16.mxu0 0
        %2844 = vmatmul.mubr.bf16.gmra.mrb[0].mxu0 %v1104
        %v2845 = vpop.f32.mrb[0].mxu0
        %v2846 = vadd.f32 0.0, %v2845
        %v2847 = vpop.f32.mrb[0].mxu0
        %v2848 = vadd.f32 0.0, %v2847
        %v2849 = vpop.f32.mrb[0].mxu0
        %v2850 = vadd.f32 0.0, %v2849
        %v2851 = vpop.f32.mrb[0].mxu0
        %v2852 = vadd.f32 0.0, %v2851
        %2853 = vmatprep.mubr.bf16.mxu0 0
        %2854 = vmatmul.mubr.bf16.gmra.mrb[0].mxu0 %v1105
        %v2855 = vpop.f32.mrb[0].mxu0
        %v2856 = vadd.f32 0.0, %v2855
        %v2857 = vpop.f32.mrb[0].mxu0
        %v2858 = vadd.f32 0.0, %v2857
        %v2859 = vpop.f32.mrb[0].mxu0
        %v2860 = vadd.f32 0.0, %v2859
        %v2861 = vpop.f32.mrb[0].mxu0
        %v2862 = vadd.f32 0.0, %v2861
        %2863 = vmatprep.mubr.bf16.mxu0 0
        %2864 = vmatmul.mubr.bf16.gmra.mrb[0].mxu0 %v1106
        %v2865 = vpop.f32.mrb[0].mxu0
        %v2866 = vadd.f32 0.0, %v2865
        %v2867 = vpop.f32.mrb[0].mxu0
        %v2868 = vadd.f32 0.0, %v2867
        %v2869 = vpop.f32.mrb[0].mxu0
        %v2870 = vadd.f32 0.0, %v2869
        %v2871 = vpop.f32.mrb[0].mxu0
        %v2872 = vadd.f32 0.0, %v2871
        %2873 = vmatprep.mubr.bf16.mxu0 0
        %2874 = vmatmul.mubr.bf16.gmra.mrb[0].mxu0 %v1107
        %v2875 = vpop.f32.mrb[0].mxu0
        %v2876 = vadd.f32 0.0, %v2875
        %v2877 = vpop.f32.mrb[0].mxu0
        %v2878 = vadd.f32 0.0, %v2877
        %v2879 = vpop.f32.mrb[0].mxu0
        %v2880 = vadd.f32 0.0, %v2879
        %v2881 = vpop.f32.mrb[0].mxu0
        %v2882 = vadd.f32 0.0, %v2881
        %2883 = vmatprep.mubr.bf16.mxu0 0
        %2884 = vmatmul.mubr.bf16.gmra.mrb[0].mxu0 %v1108
        %v2885 = vpop.f32.mrb[0].mxu0
        %v2886 = vadd.f32 0.0, %v2885
        %v2887 = vpop.f32.mrb[0].mxu0
        %v2888 = vadd.f32 0.0, %v2887
        %v2889 = vpop.f32.mrb[0].mxu0
        %v2890 = vadd.f32 0.0, %v2889
        %v2891 = vpop.f32.mrb[0].mxu0
        %v2892 = vadd.f32 0.0, %v2891
        %2893 = vmatprep.mubr.bf16.mxu0 0
        %2894 = vmatmul.mubr.bf16.gmra.mrb[0].mxu0 %v1109
        %v2895 = vpop.f32.mrb[0].mxu0
        %v2896 = vadd.f32 0.0, %v2895
        %v2897 = vpop.f32.mrb[0].mxu0
        %v2898 = vadd.f32 0.0, %v2897
        %v2899 = vpop.f32.mrb[0].mxu0
        %v2900 = vadd.f32 0.0, %v2899
        %v2901 = vpop.f32.mrb[0].mxu0
        %v2902 = vadd.f32 0.0, %v2901
        %2903 = vmatprep.mubr.bf16.mxu0 0
        %2904 = vmatmul.mubr.bf16.gmra.mrb[0].mxu0 %v1110
        %v2905 = vpop.f32.mrb[0].mxu0
        %v2906 = vadd.f32 0.0, %v2905
        %v2907 = vpop.f32.mrb[0].mxu0
        %v2908 = vadd.f32 0.0, %v2907
        %v2909 = vpop.f32.mrb[0].mxu0
        %v2910 = vadd.f32 0.0, %v2909
        %v2911 = vpop.f32.mrb[0].mxu0
        %v2912 = vadd.f32 0.0, %v2911
        %2913 = vmatprep.mubr.bf16.mxu0 0
        %2914 = vmatmul.mubr.bf16.gmra.mrb[0].mxu0 %v1111
        %v2915 = vpop.f32.mrb[0].mxu0
        %v2916 = vadd.f32 0.0, %v2915
        %v2917 = vpop.f32.mrb[0].mxu0
        %v2918 = vadd.f32 0.0, %v2917
        %v2919 = vpop.f32.mrb[0].mxu0
        %v2920 = vadd.f32 0.0, %v2919
        %v2921 = vpop.f32.mrb[0].mxu0
        %v2922 = vadd.f32 0.0, %v2921
        %2923 = vmatprep.mubr.bf16.mxu0 0
        %2924 = vmatmul.mubr.bf16.gmra.mrb[0].mxu0 %v1112
        %v2925 = vpop.f32.mrb[0].mxu0
        %v2926 = vadd.f32 0.0, %v2925
        %v2927 = vpop.f32.mrb[0].mxu0
        %v2928 = vadd.f32 0.0, %v2927
        %v2929 = vpop.f32.mrb[0].mxu0
        %v2930 = vadd.f32 0.0, %v2929
        %v2931 = vpop.f32.mrb[0].mxu0
        %v2932 = vadd.f32 0.0, %v2931
        %2933 = vmatprep.mubr.bf16.mxu0 0
        %2934 = vmatmul.mubr.bf16.gmra.mrb[0].mxu0 %v1113
        %v2935 = vpop.f32.mrb[0].mxu0
        %v2936 = vadd.f32 0.0, %v2935
        %v2937 = vpop.f32.mrb[0].mxu0
        %v2938 = vadd.f32 0.0, %v2937
        %v2939 = vpop.f32.mrb[0].mxu0
        %v2940 = vadd.f32 0.0, %v2939
        %v2941 = vpop.f32.mrb[0].mxu0
        %v2942 = vadd.f32 0.0, %v2941
        %2943 = vdwg.mxu0
        %2944 = vmatprep.subr.bf16.mxu0 %v1575
        %2945 = vmatpush1.bf16.msra.mxu0 %v1574
        %2946 = vmatprep.subr.bf16.mxu0 %v1589
        %2947 = vmatpush1.bf16.msra.mxu0 %v1588
        %2948 = vmatprep.subr.bf16.mxu0 %v1603
        %2949 = vmatpush1.bf16.msra.mxu0 %v1602
        %2950 = vmatprep.subr.bf16.mxu0 %v1617
        %2951 = vmatpush1.bf16.msra.mxu0 %v1616
        %2952 = vmatprep.subr.bf16.mxu0 %v1631
        %2953 = vmatpush1.bf16.msra.mxu0 %v1630
        %2954 = vmatprep.subr.bf16.mxu0 %v1645
        %2955 = vmatpush1.bf16.msra.mxu0 %v1644
        %2956 = vmatprep.subr.bf16.mxu0 %v1659
        %2957 = vmatpush1.bf16.msra.mxu0 %v1658
        %2958 = vmatprep.subr.bf16.mxu0 %v1673
        %2959 = vmatpush1.bf16.msra.mxu0 %v1672
        %2960 = vmatprep.subr.bf16.mxu0 0
        %2961 = vmatpush1.bf16.msra.mxu0 0
        %2962 = vmatprep.subr.bf16.mxu0 0
        %2963 = vmatpush1.bf16.msra.mxu0 0
        %2964 = vmatprep.subr.bf16.mxu0 0
        %2965 = vmatpush1.bf16.msra.mxu0 0
        %2966 = vmatprep.subr.bf16.mxu0 0
        %2967 = vmatpush1.bf16.msra.mxu0 0
        %2968 = vmatprep.subr.bf16.mxu0 0
        %2969 = vmatpush1.bf16.msra.mxu0 0
        %2970 = vmatprep.subr.bf16.mxu0 0
        %2971 = vmatpush1.bf16.msra.mxu0 0
        %2972 = vmatprep.subr.bf16.mxu0 0
        %2973 = vmatpush1.bf16.msra.mxu0 0
        %2974 = vmatprep.subr.bf16.mxu0 0
        %2975 = vmatpush1.bf16.msra.mxu0 0
        %2976 = vmatprep.mubr.bf16.mxu0 0
        %2977 = vmatmul.mubr.bf16.gmra.mrb[0].mxu0 %v1098
        %v2978 = vpop.f32.mrb[0].mxu0
        %v2979 = vadd.f32 0.0, %v2978
        %v2980 = vpop.f32.mrb[0].mxu0
        %v2981 = vadd.f32 0.0, %v2980
        %v2982 = vpop.f32.mrb[0].mxu0
        %v2983 = vadd.f32 0.0, %v2982
        %v2984 = vpop.f32.mrb[0].mxu0
        %v2985 = vadd.f32 0.0, %v2984
        %2986 = vmatprep.mubr.bf16.mxu0 0
        %2987 = vmatmul.mubr.bf16.gmra.mrb[0].mxu0 %v1099
        %v2988 = vpop.f32.mrb[0].mxu0
        %v2989 = vadd.f32 0.0, %v2988
        %v2990 = vpop.f32.mrb[0].mxu0
        %v2991 = vadd.f32 0.0, %v2990
        %v2992 = vpop.f32.mrb[0].mxu0
        %v2993 = vadd.f32 0.0, %v2992
        %v2994 = vpop.f32.mrb[0].mxu0
        %v2995 = vadd.f32 0.0, %v2994
        %2996 = vmatprep.mubr.bf16.mxu0 0
        %2997 = vmatmul.mubr.bf16.gmra.mrb[0].mxu0 %v1100
        %v2998 = vpop.f32.mrb[0].mxu0
        %v2999 = vadd.f32 0.0, %v2998
        %v3000 = vpop.f32.mrb[0].mxu0
        %v3001 = vadd.f32 0.0, %v3000
        %v3002 = vpop.f32.mrb[0].mxu0
        %v3003 = vadd.f32 0.0, %v3002
        %v3004 = vpop.f32.mrb[0].mxu0
        %v3005 = vadd.f32 0.0, %v3004
        %3006 = vmatprep.mubr.bf16.mxu0 0
        %3007 = vmatmul.mubr.bf16.gmra.mrb[0].mxu0 %v1101
        %v3008 = vpop.f32.mrb[0].mxu0
        %v3009 = vadd.f32 0.0, %v3008
        %v3010 = vpop.f32.mrb[0].mxu0
        %v3011 = vadd.f32 0.0, %v3010
        %v3012 = vpop.f32.mrb[0].mxu0
        %v3013 = vadd.f32 0.0, %v3012
        %v3014 = vpop.f32.mrb[0].mxu0
        %v3015 = vadd.f32 0.0, %v3014
        %3016 = vmatprep.mubr.bf16.mxu0 0
        %3017 = vmatmul.mubr.bf16.gmra.mrb[0].mxu0 %v1102
        %v3018 = vpop.f32.mrb[0].mxu0
        %v3019 = vadd.f32 0.0, %v3018
        %v3020 = vpop.f32.mrb[0].mxu0
        %v3021 = vadd.f32 0.0, %v3020
        %v3022 = vpop.f32.mrb[0].mxu0
        %v3023 = vadd.f32 0.0, %v3022
        %v3024 = vpop.f32.mrb[0].mxu0
        %v3025 = vadd.f32 0.0, %v3024
        %3026 = vmatprep.mubr.bf16.mxu0 0
        %3027 = vmatmul.mubr.bf16.gmra.mrb[0].mxu0 %v1103
        %v3028 = vpop.f32.mrb[0].mxu0
        %v3029 = vadd.f32 0.0, %v3028
        %v3030 = vpop.f32.mrb[0].mxu0
        %v3031 = vadd.f32 0.0, %v3030
        %v3032 = vpop.f32.mrb[0].mxu0
        %v3033 = vadd.f32 0.0, %v3032
        %v3034 = vpop.f32.mrb[0].mxu0
        %v3035 = vadd.f32 0.0, %v3034
        %3036 = vmatprep.mubr.bf16.mxu0 0
        %3037 = vmatmul.mubr.bf16.gmra.mrb[0].mxu0 %v1104
        %v3038 = vpop.f32.mrb[0].mxu0
        %v3039 = vadd.f32 0.0, %v3038
        %v3040 = vpop.f32.mrb[0].mxu0
        %v3041 = vadd.f32 0.0, %v3040
        %v3042 = vpop.f32.mrb[0].mxu0
        %v3043 = vadd.f32 0.0, %v3042
        %v3044 = vpop.f32.mrb[0].mxu0
        %v3045 = vadd.f32 0.0, %v3044
        %3046 = vmatprep.mubr.bf16.mxu0 0
        %3047 = vmatmul.mubr.bf16.gmra.mrb[0].mxu0 %v1105
        %v3048 = vpop.f32.mrb[0].mxu0
        %v3049 = vadd.f32 0.0, %v3048
        %v3050 = vpop.f32.mrb[0].mxu0
        %v3051 = vadd.f32 0.0, %v3050
        %v3052 = vpop.f32.mrb[0].mxu0
        %v3053 = vadd.f32 0.0, %v3052
        %v3054 = vpop.f32.mrb[0].mxu0
        %v3055 = vadd.f32 0.0, %v3054
        %3056 = vmatprep.mubr.bf16.mxu0 0
        %3057 = vmatmul.mubr.bf16.gmra.mrb[0].mxu0 %v1106
        %v3058 = vpop.f32.mrb[0].mxu0
        %v3059 = vadd.f32 0.0, %v3058
        %v3060 = vpop.f32.mrb[0].mxu0
        %v3061 = vadd.f32 0.0, %v3060
        %v3062 = vpop.f32.mrb[0].mxu0
        %v3063 = vadd.f32 0.0, %v3062
        %v3064 = vpop.f32.mrb[0].mxu0
        %v3065 = vadd.f32 0.0, %v3064
        %3066 = vmatprep.mubr.bf16.mxu0 0
        %3067 = vmatmul.mubr.bf16.gmra.mrb[0].mxu0 %v1107
        %v3068 = vpop.f32.mrb[0].mxu0
        %v3069 = vadd.f32 0.0, %v3068
        %v3070 = vpop.f32.mrb[0].mxu0
        %v3071 = vadd.f32 0.0, %v3070
        %v3072 = vpop.f32.mrb[0].mxu0
        %v3073 = vadd.f32 0.0, %v3072
        %v3074 = vpop.f32.mrb[0].mxu0
        %v3075 = vadd.f32 0.0, %v3074
        %3076 = vmatprep.mubr.bf16.mxu0 0
        %3077 = vmatmul.mubr.bf16.gmra.mrb[0].mxu0 %v1108
        %v3078 = vpop.f32.mrb[0].mxu0
        %v3079 = vadd.f32 0.0, %v3078
        %v3080 = vpop.f32.mrb[0].mxu0
        %v3081 = vadd.f32 0.0, %v3080
        %v3082 = vpop.f32.mrb[0].mxu0
        %v3083 = vadd.f32 0.0, %v3082
        %v3084 = vpop.f32.mrb[0].mxu0
        %v3085 = vadd.f32 0.0, %v3084
        %3086 = vmatprep.mubr.bf16.mxu0 0
        %3087 = vmatmul.mubr.bf16.gmra.mrb[0].mxu0 %v1109
        %v3088 = vpop.f32.mrb[0].mxu0
        %v3089 = vadd.f32 0.0, %v3088
        %v3090 = vpop.f32.mrb[0].mxu0
        %v3091 = vadd.f32 0.0, %v3090
        %v3092 = vpop.f32.mrb[0].mxu0
        %v3093 = vadd.f32 0.0, %v3092
        %v3094 = vpop.f32.mrb[0].mxu0
        %v3095 = vadd.f32 0.0, %v3094
        %3096 = vmatprep.mubr.bf16.mxu0 0
        %3097 = vmatmul.mubr.bf16.gmra.mrb[0].mxu0 %v1110
        %v3098 = vpop.f32.mrb[0].mxu0
        %v3099 = vadd.f32 0.0, %v3098
        %v3100 = vpop.f32.mrb[0].mxu0
        %v3101 = vadd.f32 0.0, %v3100
        %v3102 = vpop.f32.mrb[0].mxu0
        %v3103 = vadd.f32 0.0, %v3102
        %v3104 = vpop.f32.mrb[0].mxu0
        %v3105 = vadd.f32 0.0, %v3104
        %3106 = vmatprep.mubr.bf16.mxu0 0
        %3107 = vmatmul.mubr.bf16.gmra.mrb[0].mxu0 %v1111
        %v3108 = vpop.f32.mrb[0].mxu0
        %v3109 = vadd.f32 0.0, %v3108
        %v3110 = vpop.f32.mrb[0].mxu0
        %v3111 = vadd.f32 0.0, %v3110
        %v3112 = vpop.f32.mrb[0].mxu0
        %v3113 = vadd.f32 0.0, %v3112
        %v3114 = vpop.f32.mrb[0].mxu0
        %v3115 = vadd.f32 0.0, %v3114
        %3116 = vmatprep.mubr.bf16.mxu0 0
        %3117 = vmatmul.mubr.bf16.gmra.mrb[0].mxu0 %v1112
        %v3118 = vpop.f32.mrb[0].mxu0
        %v3119 = vadd.f32 0.0, %v3118
        %v3120 = vpop.f32.mrb[0].mxu0
        %v3121 = vadd.f32 0.0, %v3120
        %v3122 = vpop.f32.mrb[0].mxu0
        %v3123 = vadd.f32 0.0, %v3122
        %v3124 = vpop.f32.mrb[0].mxu0
        %v3125 = vadd.f32 0.0, %v3124
        %3126 = vmatprep.mubr.bf16.mxu0 0
        %3127 = vmatmul.mubr.bf16.gmra.mrb[0].mxu0 %v1113
        %v3128 = vpop.f32.mrb[0].mxu0
        %v3129 = vadd.f32 0.0, %v3128
        %v3130 = vpop.f32.mrb[0].mxu0
        %v3131 = vadd.f32 0.0, %v3130
        %v3132 = vpop.f32.mrb[0].mxu0
        %v3133 = vadd.f32 0.0, %v3132
        %v3134 = vpop.f32.mrb[0].mxu0
        %v3135 = vadd.f32 0.0, %v3134
        %3136 = vdwg.mxu0
        %v3137 = vld [vmem:[#allocation12] sm:$0xff]
        %v3138 = vld [vmem:[#allocation12 + $0x8] sm:$0x3f]
        %v3141 = vlaneseq
        %v3142 = vshrl.u32 %v3141, 7
        %v3143 = vsub.s32 0, %v3142
        %v3144 = vrot.slane %v3137, %v3143
        %v3145 = vlaneseq
        %v3146 = vshrl.u32 %v3145, 7
        %v3147 = vsub.s32 1, %v3146
        %v3148 = vrot.slane %v3137, %v3147
        %v3149 = vlaneseq
        %v3150 = vshrl.u32 %v3149, 7
        %v3151 = vsub.s32 2, %v3150
        %v3152 = vrot.slane %v3137, %v3151
        %v3153 = vlaneseq
        %v3154 = vshrl.u32 %v3153, 7
        %v3155 = vsub.s32 3, %v3154
        %v3156 = vrot.slane %v3137, %v3155
        %v3157 = vlaneseq
        %v3158 = vshrl.u32 %v3157, 7
        %v3159 = vsub.s32 4, %v3158
        %v3160 = vrot.slane %v3137, %v3159
        %v3161 = vlaneseq
        %v3162 = vshrl.u32 %v3161, 7
        %v3163 = vsub.s32 5, %v3162
        %v3164 = vrot.slane %v3137, %v3163
        %v3165 = vlaneseq
        %v3166 = vshrl.u32 %v3165, 7
        %v3167 = vsub.s32 6, %v3166
        %v3168 = vrot.slane %v3137, %v3167
        %v3169 = vlaneseq
        %v3170 = vshrl.u32 %v3169, 7
        %v3171 = vsub.s32 7, %v3170
        %v3172 = vrot.slane %v3137, %v3171
        %v3173 = vlaneseq
        %v3174 = vshrl.u32 %v3173, 7
        %v3175 = vsub.s32 0, %v3174
        %v3176 = vrot.slane %v3138, %v3175
        %v3177 = vlaneseq
        %v3178 = vshrl.u32 %v3177, 7
        %v3179 = vsub.s32 1, %v3178
        %v3180 = vrot.slane %v3138, %v3179
        %v3181 = vlaneseq
        %v3182 = vshrl.u32 %v3181, 7
        %v3183 = vsub.s32 2, %v3182
        %v3184 = vrot.slane %v3138, %v3183
        %v3185 = vlaneseq
        %v3186 = vshrl.u32 %v3185, 7
        %v3187 = vsub.s32 3, %v3186
        %v3188 = vrot.slane %v3138, %v3187
        %v3189 = vlaneseq
        %v3190 = vshrl.u32 %v3189, 7
        %v3191 = vsub.s32 4, %v3190
        %v3192 = vrot.slane %v3138, %v3191
        %v3193 = vlaneseq
        %v3194 = vshrl.u32 %v3193, 7
        %v3195 = vsub.s32 5, %v3194
        %v3196 = vrot.slane %v3138, %v3195
        %v3211 = vmul.f32 %v1821, %v3144
        %v3212 = vmul.f32 %v1823, %v3148
        %v3213 = vmul.f32 %v2014, %v3152
        %v3214 = vmul.f32 %v2016, %v3156
        %v3215 = vmul.f32 %v2207, %v3160
        %v3216 = vmul.f32 %v2209, %v3164
        %v3217 = vmul.f32 %v2400, %v3168
        %v3218 = vmul.f32 %v2402, %v3172
        %v3219 = vmul.f32 %v2593, %v3176
        %v3220 = vmul.f32 %v2595, %v3180
        %v3221 = vmul.f32 %v2786, %v3184
        %v3222 = vmul.f32 %v2788, %v3188
        %v3223 = vmul.f32 %v2979, %v3192
        %v3224 = vmul.f32 %v2981, %v3196
        %v3225 = vmul.f32 %v1825, %v3144
        %v3226 = vmul.f32 %v1827, %v3148
        %v3227 = vmul.f32 %v2018, %v3152
        %v3228 = vmul.f32 %v2020, %v3156
        %v3229 = vmul.f32 %v2211, %v3160
        %v3230 = vmul.f32 %v2213, %v3164
        %v3231 = vmul.f32 %v2404, %v3168
        %v3232 = vmul.f32 %v2406, %v3172
        %v3233 = vmul.f32 %v2597, %v3176
        %v3234 = vmul.f32 %v2599, %v3180
        %v3235 = vmul.f32 %v2790, %v3184
        %v3236 = vmul.f32 %v2792, %v3188
        %v3237 = vmul.f32 %v2983, %v3192
        %v3238 = vmul.f32 %v2985, %v3196
        %v3239 = vmul.f32 %v1831, %v3144
        %v3240 = vmul.f32 %v1833, %v3148
        %v3241 = vmul.f32 %v2024, %v3152
        %v3242 = vmul.f32 %v2026, %v3156
        %v3243 = vmul.f32 %v2217, %v3160
        %v3244 = vmul.f32 %v2219, %v3164
        %v3245 = vmul.f32 %v2410, %v3168
        %v3246 = vmul.f32 %v2412, %v3172
        %v3247 = vmul.f32 %v2603, %v3176
        %v3248 = vmul.f32 %v2605, %v3180
        %v3249 = vmul.f32 %v2796, %v3184
        %v3250 = vmul.f32 %v2798, %v3188
        %v3251 = vmul.f32 %v2989, %v3192
        %v3252 = vmul.f32 %v2991, %v3196
        %v3253 = vmul.f32 %v1835, %v3144
        %v3254 = vmul.f32 %v1837, %v3148
        %v3255 = vmul.f32 %v2028, %v3152
        %v3256 = vmul.f32 %v2030, %v3156
        %v3257 = vmul.f32 %v2221, %v3160
        %v3258 = vmul.f32 %v2223, %v3164
        %v3259 = vmul.f32 %v2414, %v3168
        %v3260 = vmul.f32 %v2416, %v3172
        %v3261 = vmul.f32 %v2607, %v3176
        %v3262 = vmul.f32 %v2609, %v3180
        %v3263 = vmul.f32 %v2800, %v3184
        %v3264 = vmul.f32 %v2802, %v3188
        %v3265 = vmul.f32 %v2993, %v3192
        %v3266 = vmul.f32 %v2995, %v3196
        %v3267 = vmul.f32 %v1841, %v3144
        %v3268 = vmul.f32 %v1843, %v3148
        %v3269 = vmul.f32 %v2034, %v3152
        %v3270 = vmul.f32 %v2036, %v3156
        %v3271 = vmul.f32 %v2227, %v3160
        %v3272 = vmul.f32 %v2229, %v3164
        %v3273 = vmul.f32 %v2420, %v3168
        %v3274 = vmul.f32 %v2422, %v3172
        %v3275 = vmul.f32 %v2613, %v3176
        %v3276 = vmul.f32 %v2615, %v3180
        %v3277 = vmul.f32 %v2806, %v3184
        %v3278 = vmul.f32 %v2808, %v3188
        %v3279 = vmul.f32 %v2999, %v3192
        %v3280 = vmul.f32 %v3001, %v3196
        %v3281 = vmul.f32 %v1845, %v3144
        %v3282 = vmul.f32 %v1847, %v3148
        %v3283 = vmul.f32 %v2038, %v3152
        %v3284 = vmul.f32 %v2040, %v3156
        %v3285 = vmul.f32 %v2231, %v3160
        %v3286 = vmul.f32 %v2233, %v3164
        %v3287 = vmul.f32 %v2424, %v3168
        %v3288 = vmul.f32 %v2426, %v3172
        %v3289 = vmul.f32 %v2617, %v3176
        %v3290 = vmul.f32 %v2619, %v3180
        %v3291 = vmul.f32 %v2810, %v3184
        %v3292 = vmul.f32 %v2812, %v3188
        %v3293 = vmul.f32 %v3003, %v3192
        %v3294 = vmul.f32 %v3005, %v3196
        %v3295 = vmul.f32 %v1851, %v3144
        %v3296 = vmul.f32 %v1853, %v3148
        %v3297 = vmul.f32 %v2044, %v3152
        %v3298 = vmul.f32 %v2046, %v3156
        %v3299 = vmul.f32 %v2237, %v3160
        %v3300 = vmul.f32 %v2239, %v3164
        %v3301 = vmul.f32 %v2430, %v3168
        %v3302 = vmul.f32 %v2432, %v3172
        %v3303 = vmul.f32 %v2623, %v3176
        %v3304 = vmul.f32 %v2625, %v3180
        %v3305 = vmul.f32 %v2816, %v3184
        %v3306 = vmul.f32 %v2818, %v3188
        %v3307 = vmul.f32 %v3009, %v3192
        %v3308 = vmul.f32 %v3011, %v3196
        %v3309 = vmul.f32 %v1855, %v3144
        %v3310 = vmul.f32 %v1857, %v3148
        %v3311 = vmul.f32 %v2048, %v3152
        %v3312 = vmul.f32 %v2050, %v3156
        %v3313 = vmul.f32 %v2241, %v3160
        %v3314 = vmul.f32 %v2243, %v3164
        %v3315 = vmul.f32 %v2434, %v3168
        %v3316 = vmul.f32 %v2436, %v3172
        %v3317 = vmul.f32 %v2627, %v3176
        %v3318 = vmul.f32 %v2629, %v3180
        %v3319 = vmul.f32 %v2820, %v3184
        %v3320 = vmul.f32 %v2822, %v3188
        %v3321 = vmul.f32 %v3013, %v3192
        %v3322 = vmul.f32 %v3015, %v3196
        %v3323 = vmul.f32 %v1861, %v3144
        %v3324 = vmul.f32 %v1863, %v3148
        %v3325 = vmul.f32 %v2054, %v3152
        %v3326 = vmul.f32 %v2056, %v3156
        %v3327 = vmul.f32 %v2247, %v3160
        %v3328 = vmul.f32 %v2249, %v3164
        %v3329 = vmul.f32 %v2440, %v3168
        %v3330 = vmul.f32 %v2442, %v3172
        %v3331 = vmul.f32 %v2633, %v3176
        %v3332 = vmul.f32 %v2635, %v3180
        %v3333 = vmul.f32 %v2826, %v3184
        %v3334 = vmul.f32 %v2828, %v3188
        %v3335 = vmul.f32 %v3019, %v3192
        %v3336 = vmul.f32 %v3021, %v3196
        %v3337 = vmul.f32 %v1865, %v3144
        %v3338 = vmul.f32 %v1867, %v3148
        %v3339 = vmul.f32 %v2058, %v3152
        %v3340 = vmul.f32 %v2060, %v3156
        %v3341 = vmul.f32 %v2251, %v3160
        %v3342 = vmul.f32 %v2253, %v3164
        %v3343 = vmul.f32 %v2444, %v3168
        %v3344 = vmul.f32 %v2446, %v3172
        %v3345 = vmul.f32 %v2637, %v3176
        %v3346 = vmul.f32 %v2639, %v3180
        %v3347 = vmul.f32 %v2830, %v3184
        %v3348 = vmul.f32 %v2832, %v3188
        %v3349 = vmul.f32 %v3023, %v3192
        %v3350 = vmul.f32 %v3025, %v3196
        %v3351 = vmul.f32 %v1871, %v3144
        %v3352 = vmul.f32 %v1873, %v3148
        %v3353 = vmul.f32 %v2064, %v3152
        %v3354 = vmul.f32 %v2066, %v3156
        %v3355 = vmul.f32 %v2257, %v3160
        %v3356 = vmul.f32 %v2259, %v3164
        %v3357 = vmul.f32 %v2450, %v3168
        %v3358 = vmul.f32 %v2452, %v3172
        %v3359 = vmul.f32 %v2643, %v3176
        %v3360 = vmul.f32 %v2645, %v3180
        %v3361 = vmul.f32 %v2836, %v3184
        %v3362 = vmul.f32 %v2838, %v3188
        %v3363 = vmul.f32 %v3029, %v3192
        %v3364 = vmul.f32 %v3031, %v3196
        %v3365 = vmul.f32 %v1875, %v3144
        %v3366 = vmul.f32 %v1877, %v3148
        %v3367 = vmul.f32 %v2068, %v3152
        %v3368 = vmul.f32 %v2070, %v3156
        %v3369 = vmul.f32 %v2261, %v3160
        %v3370 = vmul.f32 %v2263, %v3164
        %v3371 = vmul.f32 %v2454, %v3168
        %v3372 = vmul.f32 %v2456, %v3172
        %v3373 = vmul.f32 %v2647, %v3176
        %v3374 = vmul.f32 %v2649, %v3180
        %v3375 = vmul.f32 %v2840, %v3184
        %v3376 = vmul.f32 %v2842, %v3188
        %v3377 = vmul.f32 %v3033, %v3192
        %v3378 = vmul.f32 %v3035, %v3196
        %v3379 = vmul.f32 %v1881, %v3144
        %v3380 = vmul.f32 %v1883, %v3148
        %v3381 = vmul.f32 %v2074, %v3152
        %v3382 = vmul.f32 %v2076, %v3156
        %v3383 = vmul.f32 %v2267, %v3160
        %v3384 = vmul.f32 %v2269, %v3164
        %v3385 = vmul.f32 %v2460, %v3168
        %v3386 = vmul.f32 %v2462, %v3172
        %v3387 = vmul.f32 %v2653, %v3176
        %v3388 = vmul.f32 %v2655, %v3180
        %v3389 = vmul.f32 %v2846, %v3184
        %v3390 = vmul.f32 %v2848, %v3188
        %v3391 = vmul.f32 %v3039, %v3192
        %v3392 = vmul.f32 %v3041, %v3196
        %v3393 = vmul.f32 %v1885, %v3144
        %v3394 = vmul.f32 %v1887, %v3148
        %v3395 = vmul.f32 %v2078, %v3152
        %v3396 = vmul.f32 %v2080, %v3156
        %v3397 = vmul.f32 %v2271, %v3160
        %v3398 = vmul.f32 %v2273, %v3164
        %v3399 = vmul.f32 %v2464, %v3168
        %v3400 = vmul.f32 %v2466, %v3172
        %v3401 = vmul.f32 %v2657, %v3176
        %v3402 = vmul.f32 %v2659, %v3180
        %v3403 = vmul.f32 %v2850, %v3184
        %v3404 = vmul.f32 %v2852, %v3188
        %v3405 = vmul.f32 %v3043, %v3192
        %v3406 = vmul.f32 %v3045, %v3196
        %v3407 = vmul.f32 %v1891, %v3144
        %v3408 = vmul.f32 %v1893, %v3148
        %v3409 = vmul.f32 %v2084, %v3152
        %v3410 = vmul.f32 %v2086, %v3156
        %v3411 = vmul.f32 %v2277, %v3160
        %v3412 = vmul.f32 %v2279, %v3164
        %v3413 = vmul.f32 %v2470, %v3168
        %v3414 = vmul.f32 %v2472, %v3172
        %v3415 = vmul.f32 %v2663, %v3176
        %v3416 = vmul.f32 %v2665, %v3180
        %v3417 = vmul.f32 %v2856, %v3184
        %v3418 = vmul.f32 %v2858, %v3188
        %v3419 = vmul.f32 %v3049, %v3192
        %v3420 = vmul.f32 %v3051, %v3196
        %v3421 = vmul.f32 %v1895, %v3144
        %v3422 = vmul.f32 %v1897, %v3148
        %v3423 = vmul.f32 %v2088, %v3152
        %v3424 = vmul.f32 %v2090, %v3156
        %v3425 = vmul.f32 %v2281, %v3160
        %v3426 = vmul.f32 %v2283, %v3164
        %v3427 = vmul.f32 %v2474, %v3168
        %v3428 = vmul.f32 %v2476, %v3172
        %v3429 = vmul.f32 %v2667, %v3176
        %v3430 = vmul.f32 %v2669, %v3180
        %v3431 = vmul.f32 %v2860, %v3184
        %v3432 = vmul.f32 %v2862, %v3188
        %v3433 = vmul.f32 %v3053, %v3192
        %v3434 = vmul.f32 %v3055, %v3196
        %v3435 = vmul.f32 %v1901, %v3144
        %v3436 = vmul.f32 %v1903, %v3148
        %v3437 = vmul.f32 %v2094, %v3152
        %v3438 = vmul.f32 %v2096, %v3156
        %v3439 = vmul.f32 %v2287, %v3160
        %v3440 = vmul.f32 %v2289, %v3164
        %v3441 = vmul.f32 %v2480, %v3168
        %v3442 = vmul.f32 %v2482, %v3172
        %v3443 = vmul.f32 %v2673, %v3176
        %v3444 = vmul.f32 %v2675, %v3180
        %v3445 = vmul.f32 %v2866, %v3184
        %v3446 = vmul.f32 %v2868, %v3188
        %v3447 = vmul.f32 %v3059, %v3192
        %v3448 = vmul.f32 %v3061, %v3196
        %v3449 = vmul.f32 %v1905, %v3144
        %v3450 = vmul.f32 %v1907, %v3148
        %v3451 = vmul.f32 %v2098, %v3152
        %v3452 = vmul.f32 %v2100, %v3156
        %v3453 = vmul.f32 %v2291, %v3160
        %v3454 = vmul.f32 %v2293, %v3164
        %v3455 = vmul.f32 %v2484, %v3168
        %v3456 = vmul.f32 %v2486, %v3172
        %v3457 = vmul.f32 %v2677, %v3176
        %v3458 = vmul.f32 %v2679, %v3180
        %v3459 = vmul.f32 %v2870, %v3184
        %v3460 = vmul.f32 %v2872, %v3188
        %v3461 = vmul.f32 %v3063, %v3192
        %v3462 = vmul.f32 %v3065, %v3196
        %v3463 = vmul.f32 %v1911, %v3144
        %v3464 = vmul.f32 %v1913, %v3148
        %v3465 = vmul.f32 %v2104, %v3152
        %v3466 = vmul.f32 %v2106, %v3156
        %v3467 = vmul.f32 %v2297, %v3160
        %v3468 = vmul.f32 %v2299, %v3164
        %v3469 = vmul.f32 %v2490, %v3168
        %v3470 = vmul.f32 %v2492, %v3172
        %v3471 = vmul.f32 %v2683, %v3176
        %v3472 = vmul.f32 %v2685, %v3180
        %v3473 = vmul.f32 %v2876, %v3184
        %v3474 = vmul.f32 %v2878, %v3188
        %v3475 = vmul.f32 %v3069, %v3192
        %v3476 = vmul.f32 %v3071, %v3196
        %v3477 = vmul.f32 %v1915, %v3144
        %v3478 = vmul.f32 %v1917, %v3148
        %v3479 = vmul.f32 %v2108, %v3152
        %v3480 = vmul.f32 %v2110, %v3156
        %v3481 = vmul.f32 %v2301, %v3160
        %v3482 = vmul.f32 %v2303, %v3164
        %v3483 = vmul.f32 %v2494, %v3168
        %v3484 = vmul.f32 %v2496, %v3172
        %v3485 = vmul.f32 %v2687, %v3176
        %v3486 = vmul.f32 %v2689, %v3180
        %v3487 = vmul.f32 %v2880, %v3184
        %v3488 = vmul.f32 %v2882, %v3188
        %v3489 = vmul.f32 %v3073, %v3192
        %v3490 = vmul.f32 %v3075, %v3196
        %v3491 = vmul.f32 %v1921, %v3144
        %v3492 = vmul.f32 %v1923, %v3148
        %v3493 = vmul.f32 %v2114, %v3152
        %v3494 = vmul.f32 %v2116, %v3156
        %v3495 = vmul.f32 %v2307, %v3160
        %v3496 = vmul.f32 %v2309, %v3164
        %v3497 = vmul.f32 %v2500, %v3168
        %v3498 = vmul.f32 %v2502, %v3172
        %v3499 = vmul.f32 %v2693, %v3176
        %v3500 = vmul.f32 %v2695, %v3180
        %v3501 = vmul.f32 %v2886, %v3184
        %v3502 = vmul.f32 %v2888, %v3188
        %v3503 = vmul.f32 %v3079, %v3192
        %v3504 = vmul.f32 %v3081, %v3196
        %v3505 = vmul.f32 %v1925, %v3144
        %v3506 = vmul.f32 %v1927, %v3148
        %v3507 = vmul.f32 %v2118, %v3152
        %v3508 = vmul.f32 %v2120, %v3156
        %v3509 = vmul.f32 %v2311, %v3160
        %v3510 = vmul.f32 %v2313, %v3164
        %v3511 = vmul.f32 %v2504, %v3168
        %v3512 = vmul.f32 %v2506, %v3172
        %v3513 = vmul.f32 %v2697, %v3176
        %v3514 = vmul.f32 %v2699, %v3180
        %v3515 = vmul.f32 %v2890, %v3184
        %v3516 = vmul.f32 %v2892, %v3188
        %v3517 = vmul.f32 %v3083, %v3192
        %v3518 = vmul.f32 %v3085, %v3196
        %v3519 = vmul.f32 %v1931, %v3144
        %v3520 = vmul.f32 %v1933, %v3148
        %v3521 = vmul.f32 %v2124, %v3152
        %v3522 = vmul.f32 %v2126, %v3156
        %v3523 = vmul.f32 %v2317, %v3160
        %v3524 = vmul.f32 %v2319, %v3164
        %v3525 = vmul.f32 %v2510, %v3168
        %v3526 = vmul.f32 %v2512, %v3172
        %v3527 = vmul.f32 %v2703, %v3176
        %v3528 = vmul.f32 %v2705, %v3180
        %v3529 = vmul.f32 %v2896, %v3184
        %v3530 = vmul.f32 %v2898, %v3188
        %v3531 = vmul.f32 %v3089, %v3192
        %v3532 = vmul.f32 %v3091, %v3196
        %v3533 = vmul.f32 %v1935, %v3144
        %v3534 = vmul.f32 %v1937, %v3148
        %v3535 = vmul.f32 %v2128, %v3152
        %v3536 = vmul.f32 %v2130, %v3156
        %v3537 = vmul.f32 %v2321, %v3160
        %v3538 = vmul.f32 %v2323, %v3164
        %v3539 = vmul.f32 %v2514, %v3168
        %v3540 = vmul.f32 %v2516, %v3172
        %v3541 = vmul.f32 %v2707, %v3176
        %v3542 = vmul.f32 %v2709, %v3180
        %v3543 = vmul.f32 %v2900, %v3184
        %v3544 = vmul.f32 %v2902, %v3188
        %v3545 = vmul.f32 %v3093, %v3192
        %v3546 = vmul.f32 %v3095, %v3196
        %v3547 = vmul.f32 %v1941, %v3144
        %v3548 = vmul.f32 %v1943, %v3148
        %v3549 = vmul.f32 %v2134, %v3152
        %v3550 = vmul.f32 %v2136, %v3156
        %v3551 = vmul.f32 %v2327, %v3160
        %v3552 = vmul.f32 %v2329, %v3164
        %v3553 = vmul.f32 %v2520, %v3168
        %v3554 = vmul.f32 %v2522, %v3172
        %v3555 = vmul.f32 %v2713, %v3176
        %v3556 = vmul.f32 %v2715, %v3180
        %v3557 = vmul.f32 %v2906, %v3184
        %v3558 = vmul.f32 %v2908, %v3188
        %v3559 = vmul.f32 %v3099, %v3192
        %v3560 = vmul.f32 %v3101, %v3196
        %v3561 = vmul.f32 %v1945, %v3144
        %v3562 = vmul.f32 %v1947, %v3148
        %v3563 = vmul.f32 %v2138, %v3152
        %v3564 = vmul.f32 %v2140, %v3156
        %v3565 = vmul.f32 %v2331, %v3160
        %v3566 = vmul.f32 %v2333, %v3164
        %v3567 = vmul.f32 %v2524, %v3168
        %v3568 = vmul.f32 %v2526, %v3172
        %v3569 = vmul.f32 %v2717, %v3176
        %v3570 = vmul.f32 %v2719, %v3180
        %v3571 = vmul.f32 %v2910, %v3184
        %v3572 = vmul.f32 %v2912, %v3188
        %v3573 = vmul.f32 %v3103, %v3192
        %v3574 = vmul.f32 %v3105, %v3196
        %v3575 = vmul.f32 %v1951, %v3144
        %v3576 = vmul.f32 %v1953, %v3148
        %v3577 = vmul.f32 %v2144, %v3152
        %v3578 = vmul.f32 %v2146, %v3156
        %v3579 = vmul.f32 %v2337, %v3160
        %v3580 = vmul.f32 %v2339, %v3164
        %v3581 = vmul.f32 %v2530, %v3168
        %v3582 = vmul.f32 %v2532, %v3172
        %v3583 = vmul.f32 %v2723, %v3176
        %v3584 = vmul.f32 %v2725, %v3180
        %v3585 = vmul.f32 %v2916, %v3184
        %v3586 = vmul.f32 %v2918, %v3188
        %v3587 = vmul.f32 %v3109, %v3192
        %v3588 = vmul.f32 %v3111, %v3196
        %v3589 = vmul.f32 %v1955, %v3144
        %v3590 = vmul.f32 %v1957, %v3148
        %v3591 = vmul.f32 %v2148, %v3152
        %v3592 = vmul.f32 %v2150, %v3156
        %v3593 = vmul.f32 %v2341, %v3160
        %v3594 = vmul.f32 %v2343, %v3164
        %v3595 = vmul.f32 %v2534, %v3168
        %v3596 = vmul.f32 %v2536, %v3172
        %v3597 = vmul.f32 %v2727, %v3176
        %v3598 = vmul.f32 %v2729, %v3180
        %v3599 = vmul.f32 %v2920, %v3184
        %v3600 = vmul.f32 %v2922, %v3188
        %v3601 = vmul.f32 %v3113, %v3192
        %v3602 = vmul.f32 %v3115, %v3196
        %v3603 = vmul.f32 %v1961, %v3144
        %v3604 = vmul.f32 %v1963, %v3148
        %v3605 = vmul.f32 %v2154, %v3152
        %v3606 = vmul.f32 %v2156, %v3156
        %v3607 = vmul.f32 %v2347, %v3160
        %v3608 = vmul.f32 %v2349, %v3164
        %v3609 = vmul.f32 %v2540, %v3168
        %v3610 = vmul.f32 %v2542, %v3172
        %v3611 = vmul.f32 %v2733, %v3176
        %v3612 = vmul.f32 %v2735, %v3180
        %v3613 = vmul.f32 %v2926, %v3184
        %v3614 = vmul.f32 %v2928, %v3188
        %v3615 = vmul.f32 %v3119, %v3192
        %v3616 = vmul.f32 %v3121, %v3196
        %v3617 = vmul.f32 %v1965, %v3144
        %v3618 = vmul.f32 %v1967, %v3148
        %v3619 = vmul.f32 %v2158, %v3152
        %v3620 = vmul.f32 %v2160, %v3156
        %v3621 = vmul.f32 %v2351, %v3160
        %v3622 = vmul.f32 %v2353, %v3164
        %v3623 = vmul.f32 %v2544, %v3168
        %v3624 = vmul.f32 %v2546, %v3172
        %v3625 = vmul.f32 %v2737, %v3176
        %v3626 = vmul.f32 %v2739, %v3180
        %v3627 = vmul.f32 %v2930, %v3184
        %v3628 = vmul.f32 %v2932, %v3188
        %v3629 = vmul.f32 %v3123, %v3192
        %v3630 = vmul.f32 %v3125, %v3196
        %v3631 = vmul.f32 %v1971, %v3144
        %v3632 = vmul.f32 %v1973, %v3148
        %v3633 = vmul.f32 %v2164, %v3152
        %v3634 = vmul.f32 %v2166, %v3156
        %v3635 = vmul.f32 %v2357, %v3160
        %v3636 = vmul.f32 %v2359, %v3164
        %v3637 = vmul.f32 %v2550, %v3168
        %v3638 = vmul.f32 %v2552, %v3172
        %v3639 = vmul.f32 %v2743, %v3176
        %v3640 = vmul.f32 %v2745, %v3180
        %v3641 = vmul.f32 %v2936, %v3184
        %v3642 = vmul.f32 %v2938, %v3188
        %v3643 = vmul.f32 %v3129, %v3192
        %v3644 = vmul.f32 %v3131, %v3196
        %v3645 = vmul.f32 %v1975, %v3144
        %v3646 = vmul.f32 %v1977, %v3148
        %v3647 = vmul.f32 %v2168, %v3152
        %v3648 = vmul.f32 %v2170, %v3156
        %v3649 = vmul.f32 %v2361, %v3160
        %v3650 = vmul.f32 %v2363, %v3164
        %v3651 = vmul.f32 %v2554, %v3168
        %v3652 = vmul.f32 %v2556, %v3172
        %v3653 = vmul.f32 %v2747, %v3176
        %v3654 = vmul.f32 %v2749, %v3180
        %v3655 = vmul.f32 %v2940, %v3184
        %v3656 = vmul.f32 %v2942, %v3188
        %v3657 = vmul.f32 %v3133, %v3192
        %v3658 = vmul.f32 %v3135, %v3196
        %v3659 = vld [vmem:[#allocation14] sm:$0xff]
        %v3660 = vld [vmem:[#allocation14 + $0x8] sm:$0x3f]
        %v3663 = vlaneseq
        %v3664 = vshrl.u32 %v3663, 7
        %v3665 = vsub.s32 0, %v3664
        %v3666 = vrot.slane %v3659, %v3665
        %v3667 = vlaneseq
        %v3668 = vshrl.u32 %v3667, 7
        %v3669 = vsub.s32 1, %v3668
        %v3670 = vrot.slane %v3659, %v3669
        %v3671 = vlaneseq
        %v3672 = vshrl.u32 %v3671, 7
        %v3673 = vsub.s32 2, %v3672
        %v3674 = vrot.slane %v3659, %v3673
        %v3675 = vlaneseq
        %v3676 = vshrl.u32 %v3675, 7
        %v3677 = vsub.s32 3, %v3676
        %v3678 = vrot.slane %v3659, %v3677
        %v3679 = vlaneseq
        %v3680 = vshrl.u32 %v3679, 7
        %v3681 = vsub.s32 4, %v3680
        %v3682 = vrot.slane %v3659, %v3681
        %v3683 = vlaneseq
        %v3684 = vshrl.u32 %v3683, 7
        %v3685 = vsub.s32 5, %v3684
        %v3686 = vrot.slane %v3659, %v3685
        %v3687 = vlaneseq
        %v3688 = vshrl.u32 %v3687, 7
        %v3689 = vsub.s32 6, %v3688
        %v3690 = vrot.slane %v3659, %v3689
        %v3691 = vlaneseq
        %v3692 = vshrl.u32 %v3691, 7
        %v3693 = vsub.s32 7, %v3692
        %v3694 = vrot.slane %v3659, %v3693
        %v3695 = vlaneseq
        %v3696 = vshrl.u32 %v3695, 7
        %v3697 = vsub.s32 0, %v3696
        %v3698 = vrot.slane %v3660, %v3697
        %v3699 = vlaneseq
        %v3700 = vshrl.u32 %v3699, 7
        %v3701 = vsub.s32 1, %v3700
        %v3702 = vrot.slane %v3660, %v3701
        %v3703 = vlaneseq
        %v3704 = vshrl.u32 %v3703, 7
        %v3705 = vsub.s32 2, %v3704
        %v3706 = vrot.slane %v3660, %v3705
        %v3707 = vlaneseq
        %v3708 = vshrl.u32 %v3707, 7
        %v3709 = vsub.s32 3, %v3708
        %v3710 = vrot.slane %v3660, %v3709
        %v3711 = vlaneseq
        %v3712 = vshrl.u32 %v3711, 7
        %v3713 = vsub.s32 4, %v3712
        %v3714 = vrot.slane %v3660, %v3713
        %v3715 = vlaneseq
        %v3716 = vshrl.u32 %v3715, 7
        %v3717 = vsub.s32 5, %v3716
        %v3718 = vrot.slane %v3660, %v3717
        %v3733 = vadd.f32 %v3211, %v3666
        %v3734 = vadd.f32 %v3212, %v3670
        %v3735 = vadd.f32 %v3213, %v3674
        %v3736 = vadd.f32 %v3214, %v3678
        %v3737 = vadd.f32 %v3215, %v3682
        %v3738 = vadd.f32 %v3216, %v3686
        %v3739 = vadd.f32 %v3217, %v3690
        %v3740 = vadd.f32 %v3218, %v3694
        %v3741 = vadd.f32 %v3219, %v3698
        %v3742 = vadd.f32 %v3220, %v3702
        %v3743 = vadd.f32 %v3221, %v3706
        %v3744 = vadd.f32 %v3222, %v3710
        %v3745 = vadd.f32 %v3223, %v3714
        %v3746 = vadd.f32 %v3224, %v3718
        %v3747 = vadd.f32 %v3225, %v3666
        %v3748 = vadd.f32 %v3226, %v3670
        %v3749 = vadd.f32 %v3227, %v3674
        %v3750 = vadd.f32 %v3228, %v3678
        %v3751 = vadd.f32 %v3229, %v3682
        %v3752 = vadd.f32 %v3230, %v3686
        %v3753 = vadd.f32 %v3231, %v3690
        %v3754 = vadd.f32 %v3232, %v3694
        %v3755 = vadd.f32 %v3233, %v3698
        %v3756 = vadd.f32 %v3234, %v3702
        %v3757 = vadd.f32 %v3235, %v3706
        %v3758 = vadd.f32 %v3236, %v3710
        %v3759 = vadd.f32 %v3237, %v3714
        %v3760 = vadd.f32 %v3238, %v3718
        %v3761 = vadd.f32 %v3239, %v3666
        %v3762 = vadd.f32 %v3240, %v3670
        %v3763 = vadd.f32 %v3241, %v3674
        %v3764 = vadd.f32 %v3242, %v3678
        %v3765 = vadd.f32 %v3243, %v3682
        %v3766 = vadd.f32 %v3244, %v3686
        %v3767 = vadd.f32 %v3245, %v3690
        %v3768 = vadd.f32 %v3246, %v3694
        %v3769 = vadd.f32 %v3247, %v3698
        %v3770 = vadd.f32 %v3248, %v3702
        %v3771 = vadd.f32 %v3249, %v3706
        %v3772 = vadd.f32 %v3250, %v3710
        %v3773 = vadd.f32 %v3251, %v3714
        %v3774 = vadd.f32 %v3252, %v3718
        %v3775 = vadd.f32 %v3253, %v3666
        %v3776 = vadd.f32 %v3254, %v3670
        %v3777 = vadd.f32 %v3255, %v3674
        %v3778 = vadd.f32 %v3256, %v3678
        %v3779 = vadd.f32 %v3257, %v3682
        %v3780 = vadd.f32 %v3258, %v3686
        %v3781 = vadd.f32 %v3259, %v3690
        %v3782 = vadd.f32 %v3260, %v3694
        %v3783 = vadd.f32 %v3261, %v3698
        %v3784 = vadd.f32 %v3262, %v3702
        %v3785 = vadd.f32 %v3263, %v3706
        %v3786 = vadd.f32 %v3264, %v3710
        %v3787 = vadd.f32 %v3265, %v3714
        %v3788 = vadd.f32 %v3266, %v3718
        %v3789 = vadd.f32 %v3267, %v3666
        %v3790 = vadd.f32 %v3268, %v3670
        %v3791 = vadd.f32 %v3269, %v3674
        %v3792 = vadd.f32 %v3270, %v3678
        %v3793 = vadd.f32 %v3271, %v3682
        %v3794 = vadd.f32 %v3272, %v3686
        %v3795 = vadd.f32 %v3273, %v3690
        %v3796 = vadd.f32 %v3274, %v3694
        %v3797 = vadd.f32 %v3275, %v3698
        %v3798 = vadd.f32 %v3276, %v3702
        %v3799 = vadd.f32 %v3277, %v3706
        %v3800 = vadd.f32 %v3278, %v3710
        %v3801 = vadd.f32 %v3279, %v3714
        %v3802 = vadd.f32 %v3280, %v3718
        %v3803 = vadd.f32 %v3281, %v3666
        %v3804 = vadd.f32 %v3282, %v3670
        %v3805 = vadd.f32 %v3283, %v3674
        %v3806 = vadd.f32 %v3284, %v3678
        %v3807 = vadd.f32 %v3285, %v3682
        %v3808 = vadd.f32 %v3286, %v3686
        %v3809 = vadd.f32 %v3287, %v3690
        %v3810 = vadd.f32 %v3288, %v3694
        %v3811 = vadd.f32 %v3289, %v3698
        %v3812 = vadd.f32 %v3290, %v3702
        %v3813 = vadd.f32 %v3291, %v3706
        %v3814 = vadd.f32 %v3292, %v3710
        %v3815 = vadd.f32 %v3293, %v3714
        %v3816 = vadd.f32 %v3294, %v3718
        %v3817 = vadd.f32 %v3295, %v3666
        %v3818 = vadd.f32 %v3296, %v3670
        %v3819 = vadd.f32 %v3297, %v3674
        %v3820 = vadd.f32 %v3298, %v3678
        %v3821 = vadd.f32 %v3299, %v3682
        %v3822 = vadd.f32 %v3300, %v3686
        %v3823 = vadd.f32 %v3301, %v3690
        %v3824 = vadd.f32 %v3302, %v3694
        %v3825 = vadd.f32 %v3303, %v3698
        %v3826 = vadd.f32 %v3304, %v3702
        %v3827 = vadd.f32 %v3305, %v3706
        %v3828 = vadd.f32 %v3306, %v3710
        %v3829 = vadd.f32 %v3307, %v3714
        %v3830 = vadd.f32 %v3308, %v3718
        %v3831 = vadd.f32 %v3309, %v3666
        %v3832 = vadd.f32 %v3310, %v3670
        %v3833 = vadd.f32 %v3311, %v3674
        %v3834 = vadd.f32 %v3312, %v3678
        %v3835 = vadd.f32 %v3313, %v3682
        %v3836 = vadd.f32 %v3314, %v3686
        %v3837 = vadd.f32 %v3315, %v3690
        %v3838 = vadd.f32 %v3316, %v3694
        %v3839 = vadd.f32 %v3317, %v3698
        %v3840 = vadd.f32 %v3318, %v3702
        %v3841 = vadd.f32 %v3319, %v3706
        %v3842 = vadd.f32 %v3320, %v3710
        %v3843 = vadd.f32 %v3321, %v3714
        %v3844 = vadd.f32 %v3322, %v3718
        %v3845 = vadd.f32 %v3323, %v3666
        %v3846 = vadd.f32 %v3324, %v3670
        %v3847 = vadd.f32 %v3325, %v3674
        %v3848 = vadd.f32 %v3326, %v3678
        %v3849 = vadd.f32 %v3327, %v3682
        %v3850 = vadd.f32 %v3328, %v3686
        %v3851 = vadd.f32 %v3329, %v3690
        %v3852 = vadd.f32 %v3330, %v3694
        %v3853 = vadd.f32 %v3331, %v3698
        %v3854 = vadd.f32 %v3332, %v3702
        %v3855 = vadd.f32 %v3333, %v3706
        %v3856 = vadd.f32 %v3334, %v3710
        %v3857 = vadd.f32 %v3335, %v3714
        %v3858 = vadd.f32 %v3336, %v3718
        %v3859 = vadd.f32 %v3337, %v3666
        %v3860 = vadd.f32 %v3338, %v3670
        %v3861 = vadd.f32 %v3339, %v3674
        %v3862 = vadd.f32 %v3340, %v3678
        %v3863 = vadd.f32 %v3341, %v3682
        %v3864 = vadd.f32 %v3342, %v3686
        %v3865 = vadd.f32 %v3343, %v3690
        %v3866 = vadd.f32 %v3344, %v3694
        %v3867 = vadd.f32 %v3345, %v3698
        %v3868 = vadd.f32 %v3346, %v3702
        %v3869 = vadd.f32 %v3347, %v3706
        %v3870 = vadd.f32 %v3348, %v3710
        %v3871 = vadd.f32 %v3349, %v3714
        %v3872 = vadd.f32 %v3350, %v3718
        %v3873 = vadd.f32 %v3351, %v3666
        %v3874 = vadd.f32 %v3352, %v3670
        %v3875 = vadd.f32 %v3353, %v3674
        %v3876 = vadd.f32 %v3354, %v3678
        %v3877 = vadd.f32 %v3355, %v3682
        %v3878 = vadd.f32 %v3356, %v3686
        %v3879 = vadd.f32 %v3357, %v3690
        %v3880 = vadd.f32 %v3358, %v3694
        %v3881 = vadd.f32 %v3359, %v3698
        %v3882 = vadd.f32 %v3360, %v3702
        %v3883 = vadd.f32 %v3361, %v3706
        %v3884 = vadd.f32 %v3362, %v3710
        %v3885 = vadd.f32 %v3363, %v3714
        %v3886 = vadd.f32 %v3364, %v3718
        %v3887 = vadd.f32 %v3365, %v3666
        %v3888 = vadd.f32 %v3366, %v3670
        %v3889 = vadd.f32 %v3367, %v3674
        %v3890 = vadd.f32 %v3368, %v3678
        %v3891 = vadd.f32 %v3369, %v3682
        %v3892 = vadd.f32 %v3370, %v3686
        %v3893 = vadd.f32 %v3371, %v3690
        %v3894 = vadd.f32 %v3372, %v3694
        %v3895 = vadd.f32 %v3373, %v3698
        %v3896 = vadd.f32 %v3374, %v3702
        %v3897 = vadd.f32 %v3375, %v3706
        %v3898 = vadd.f32 %v3376, %v3710
        %v3899 = vadd.f32 %v3377, %v3714
        %v3900 = vadd.f32 %v3378, %v3718
        %v3901 = vadd.f32 %v3379, %v3666
        %v3902 = vadd.f32 %v3380, %v3670
        %v3903 = vadd.f32 %v3381, %v3674
        %v3904 = vadd.f32 %v3382, %v3678
        %v3905 = vadd.f32 %v3383, %v3682
        %v3906 = vadd.f32 %v3384, %v3686
        %v3907 = vadd.f32 %v3385, %v3690
        %v3908 = vadd.f32 %v3386, %v3694
        %v3909 = vadd.f32 %v3387, %v3698
        %v3910 = vadd.f32 %v3388, %v3702
        %v3911 = vadd.f32 %v3389, %v3706
        %v3912 = vadd.f32 %v3390, %v3710
        %v3913 = vadd.f32 %v3391, %v3714
        %v3914 = vadd.f32 %v3392, %v3718
        %v3915 = vadd.f32 %v3393, %v3666
        %v3916 = vadd.f32 %v3394, %v3670
        %v3917 = vadd.f32 %v3395, %v3674
        %v3918 = vadd.f32 %v3396, %v3678
        %v3919 = vadd.f32 %v3397, %v3682
        %v3920 = vadd.f32 %v3398, %v3686
        %v3921 = vadd.f32 %v3399, %v3690
        %v3922 = vadd.f32 %v3400, %v3694
        %v3923 = vadd.f32 %v3401, %v3698
        %v3924 = vadd.f32 %v3402, %v3702
        %v3925 = vadd.f32 %v3403, %v3706
        %v3926 = vadd.f32 %v3404, %v3710
        %v3927 = vadd.f32 %v3405, %v3714
        %v3928 = vadd.f32 %v3406, %v3718
        %v3929 = vadd.f32 %v3407, %v3666
        %v3930 = vadd.f32 %v3408, %v3670
        %v3931 = vadd.f32 %v3409, %v3674
        %v3932 = vadd.f32 %v3410, %v3678
        %v3933 = vadd.f32 %v3411, %v3682
        %v3934 = vadd.f32 %v3412, %v3686
        %v3935 = vadd.f32 %v3413, %v3690
        %v3936 = vadd.f32 %v3414, %v3694
        %v3937 = vadd.f32 %v3415, %v3698
        %v3938 = vadd.f32 %v3416, %v3702
        %v3939 = vadd.f32 %v3417, %v3706
        %v3940 = vadd.f32 %v3418, %v3710
        %v3941 = vadd.f32 %v3419, %v3714
        %v3942 = vadd.f32 %v3420, %v3718
        %v3943 = vadd.f32 %v3421, %v3666
        %v3944 = vadd.f32 %v3422, %v3670
        %v3945 = vadd.f32 %v3423, %v3674
        %v3946 = vadd.f32 %v3424, %v3678
        %v3947 = vadd.f32 %v3425, %v3682
        %v3948 = vadd.f32 %v3426, %v3686
        %v3949 = vadd.f32 %v3427, %v3690
        %v3950 = vadd.f32 %v3428, %v3694
        %v3951 = vadd.f32 %v3429, %v3698
        %v3952 = vadd.f32 %v3430, %v3702
        %v3953 = vadd.f32 %v3431, %v3706
        %v3954 = vadd.f32 %v3432, %v3710
        %v3955 = vadd.f32 %v3433, %v3714
        %v3956 = vadd.f32 %v3434, %v3718
        %v3957 = vadd.f32 %v3435, %v3666
        %v3958 = vadd.f32 %v3436, %v3670
        %v3959 = vadd.f32 %v3437, %v3674
        %v3960 = vadd.f32 %v3438, %v3678
        %v3961 = vadd.f32 %v3439, %v3682
        %v3962 = vadd.f32 %v3440, %v3686
        %v3963 = vadd.f32 %v3441, %v3690
        %v3964 = vadd.f32 %v3442, %v3694
        %v3965 = vadd.f32 %v3443, %v3698
        %v3966 = vadd.f32 %v3444, %v3702
        %v3967 = vadd.f32 %v3445, %v3706
        %v3968 = vadd.f32 %v3446, %v3710
        %v3969 = vadd.f32 %v3447, %v3714
        %v3970 = vadd.f32 %v3448, %v3718
        %v3971 = vadd.f32 %v3449, %v3666
        %v3972 = vadd.f32 %v3450, %v3670
        %v3973 = vadd.f32 %v3451, %v3674
        %v3974 = vadd.f32 %v3452, %v3678
        %v3975 = vadd.f32 %v3453, %v3682
        %v3976 = vadd.f32 %v3454, %v3686
        %v3977 = vadd.f32 %v3455, %v3690
        %v3978 = vadd.f32 %v3456, %v3694
        %v3979 = vadd.f32 %v3457, %v3698
        %v3980 = vadd.f32 %v3458, %v3702
        %v3981 = vadd.f32 %v3459, %v3706
        %v3982 = vadd.f32 %v3460, %v3710
        %v3983 = vadd.f32 %v3461, %v3714
        %v3984 = vadd.f32 %v3462, %v3718
        %v3985 = vadd.f32 %v3463, %v3666
        %v3986 = vadd.f32 %v3464, %v3670
        %v3987 = vadd.f32 %v3465, %v3674
        %v3988 = vadd.f32 %v3466, %v3678
        %v3989 = vadd.f32 %v3467, %v3682
        %v3990 = vadd.f32 %v3468, %v3686
        %v3991 = vadd.f32 %v3469, %v3690
        %v3992 = vadd.f32 %v3470, %v3694
        %v3993 = vadd.f32 %v3471, %v3698
        %v3994 = vadd.f32 %v3472, %v3702
        %v3995 = vadd.f32 %v3473, %v3706
        %v3996 = vadd.f32 %v3474, %v3710
        %v3997 = vadd.f32 %v3475, %v3714
        %v3998 = vadd.f32 %v3476, %v3718
        %v3999 = vadd.f32 %v3477, %v3666
        %v4000 = vadd.f32 %v3478, %v3670
        %v4001 = vadd.f32 %v3479, %v3674
        %v4002 = vadd.f32 %v3480, %v3678
        %v4003 = vadd.f32 %v3481, %v3682
        %v4004 = vadd.f32 %v3482, %v3686
        %v4005 = vadd.f32 %v3483, %v3690
        %v4006 = vadd.f32 %v3484, %v3694
        %v4007 = vadd.f32 %v3485, %v3698
        %v4008 = vadd.f32 %v3486, %v3702
        %v4009 = vadd.f32 %v3487, %v3706
        %v4010 = vadd.f32 %v3488, %v3710
        %v4011 = vadd.f32 %v3489, %v3714
        %v4012 = vadd.f32 %v3490, %v3718
        %v4013 = vadd.f32 %v3491, %v3666
        %v4014 = vadd.f32 %v3492, %v3670
        %v4015 = vadd.f32 %v3493, %v3674
        %v4016 = vadd.f32 %v3494, %v3678
        %v4017 = vadd.f32 %v3495, %v3682
        %v4018 = vadd.f32 %v3496, %v3686
        %v4019 = vadd.f32 %v3497, %v3690
        %v4020 = vadd.f32 %v3498, %v3694
        %v4021 = vadd.f32 %v3499, %v3698
        %v4022 = vadd.f32 %v3500, %v3702
        %v4023 = vadd.f32 %v3501, %v3706
        %v4024 = vadd.f32 %v3502, %v3710
        %v4025 = vadd.f32 %v3503, %v3714
        %v4026 = vadd.f32 %v3504, %v3718
        %v4027 = vadd.f32 %v3505, %v3666
        %v4028 = vadd.f32 %v3506, %v3670
        %v4029 = vadd.f32 %v3507, %v3674
        %v4030 = vadd.f32 %v3508, %v3678
        %v4031 = vadd.f32 %v3509, %v3682
        %v4032 = vadd.f32 %v3510, %v3686
        %v4033 = vadd.f32 %v3511, %v3690
        %v4034 = vadd.f32 %v3512, %v3694
        %v4035 = vadd.f32 %v3513, %v3698
        %v4036 = vadd.f32 %v3514, %v3702
        %v4037 = vadd.f32 %v3515, %v3706
        %v4038 = vadd.f32 %v3516, %v3710
        %v4039 = vadd.f32 %v3517, %v3714
        %v4040 = vadd.f32 %v3518, %v3718
        %v4041 = vadd.f32 %v3519, %v3666
        %v4042 = vadd.f32 %v3520, %v3670
        %v4043 = vadd.f32 %v3521, %v3674
        %v4044 = vadd.f32 %v3522, %v3678
        %v4045 = vadd.f32 %v3523, %v3682
        %v4046 = vadd.f32 %v3524, %v3686
        %v4047 = vadd.f32 %v3525, %v3690
        %v4048 = vadd.f32 %v3526, %v3694
        %v4049 = vadd.f32 %v3527, %v3698
        %v4050 = vadd.f32 %v3528, %v3702
        %v4051 = vadd.f32 %v3529, %v3706
        %v4052 = vadd.f32 %v3530, %v3710
        %v4053 = vadd.f32 %v3531, %v3714
        %v4054 = vadd.f32 %v3532, %v3718
        %v4055 = vadd.f32 %v3533, %v3666
        %v4056 = vadd.f32 %v3534, %v3670
        %v4057 = vadd.f32 %v3535, %v3674
        %v4058 = vadd.f32 %v3536, %v3678
        %v4059 = vadd.f32 %v3537, %v3682
        %v4060 = vadd.f32 %v3538, %v3686
        %v4061 = vadd.f32 %v3539, %v3690
        %v4062 = vadd.f32 %v3540, %v3694
        %v4063 = vadd.f32 %v3541, %v3698
        %v4064 = vadd.f32 %v3542, %v3702
        %v4065 = vadd.f32 %v3543, %v3706
        %v4066 = vadd.f32 %v3544, %v3710
        %v4067 = vadd.f32 %v3545, %v3714
        %v4068 = vadd.f32 %v3546, %v3718
        %v4069 = vadd.f32 %v3547, %v3666
        %v4070 = vadd.f32 %v3548, %v3670
        %v4071 = vadd.f32 %v3549, %v3674
        %v4072 = vadd.f32 %v3550, %v3678
        %v4073 = vadd.f32 %v3551, %v3682
        %v4074 = vadd.f32 %v3552, %v3686
        %v4075 = vadd.f32 %v3553, %v3690
        %v4076 = vadd.f32 %v3554, %v3694
        %v4077 = vadd.f32 %v3555, %v3698
        %v4078 = vadd.f32 %v3556, %v3702
        %v4079 = vadd.f32 %v3557, %v3706
        %v4080 = vadd.f32 %v3558, %v3710
        %v4081 = vadd.f32 %v3559, %v3714
        %v4082 = vadd.f32 %v3560, %v3718
        %v4083 = vadd.f32 %v3561, %v3666
        %v4084 = vadd.f32 %v3562, %v3670
        %v4085 = vadd.f32 %v3563, %v3674
        %v4086 = vadd.f32 %v3564, %v3678
        %v4087 = vadd.f32 %v3565, %v3682
        %v4088 = vadd.f32 %v3566, %v3686
        %v4089 = vadd.f32 %v3567, %v3690
        %v4090 = vadd.f32 %v3568, %v3694
        %v4091 = vadd.f32 %v3569, %v3698
        %v4092 = vadd.f32 %v3570, %v3702
        %v4093 = vadd.f32 %v3571, %v3706
        %v4094 = vadd.f32 %v3572, %v3710
        %v4095 = vadd.f32 %v3573, %v3714
        %v4096 = vadd.f32 %v3574, %v3718
        %v4097 = vadd.f32 %v3575, %v3666
        %v4098 = vadd.f32 %v3576, %v3670
        %v4099 = vadd.f32 %v3577, %v3674
        %v4100 = vadd.f32 %v3578, %v3678
        %v4101 = vadd.f32 %v3579, %v3682
        %v4102 = vadd.f32 %v3580, %v3686
        %v4103 = vadd.f32 %v3581, %v3690
        %v4104 = vadd.f32 %v3582, %v3694
        %v4105 = vadd.f32 %v3583, %v3698
        %v4106 = vadd.f32 %v3584, %v3702
        %v4107 = vadd.f32 %v3585, %v3706
        %v4108 = vadd.f32 %v3586, %v3710
        %v4109 = vadd.f32 %v3587, %v3714
        %v4110 = vadd.f32 %v3588, %v3718
        %v4111 = vadd.f32 %v3589, %v3666
        %v4112 = vadd.f32 %v3590, %v3670
        %v4113 = vadd.f32 %v3591, %v3674
        %v4114 = vadd.f32 %v3592, %v3678
        %v4115 = vadd.f32 %v3593, %v3682
        %v4116 = vadd.f32 %v3594, %v3686
        %v4117 = vadd.f32 %v3595, %v3690
        %v4118 = vadd.f32 %v3596, %v3694
        %v4119 = vadd.f32 %v3597, %v3698
        %v4120 = vadd.f32 %v3598, %v3702
        %v4121 = vadd.f32 %v3599, %v3706
        %v4122 = vadd.f32 %v3600, %v3710
        %v4123 = vadd.f32 %v3601, %v3714
        %v4124 = vadd.f32 %v3602, %v3718
        %v4125 = vadd.f32 %v3603, %v3666
        %v4126 = vadd.f32 %v3604, %v3670
        %v4127 = vadd.f32 %v3605, %v3674
        %v4128 = vadd.f32 %v3606, %v3678
        %v4129 = vadd.f32 %v3607, %v3682
        %v4130 = vadd.f32 %v3608, %v3686
        %v4131 = vadd.f32 %v3609, %v3690
        %v4132 = vadd.f32 %v3610, %v3694
        %v4133 = vadd.f32 %v3611, %v3698
        %v4134 = vadd.f32 %v3612, %v3702
        %v4135 = vadd.f32 %v3613, %v3706
        %v4136 = vadd.f32 %v3614, %v3710
        %v4137 = vadd.f32 %v3615, %v3714
        %v4138 = vadd.f32 %v3616, %v3718
        %v4139 = vadd.f32 %v3617, %v3666
        %v4140 = vadd.f32 %v3618, %v3670
        %v4141 = vadd.f32 %v3619, %v3674
        %v4142 = vadd.f32 %v3620, %v3678
        %v4143 = vadd.f32 %v3621, %v3682
        %v4144 = vadd.f32 %v3622, %v3686
        %v4145 = vadd.f32 %v3623, %v3690
        %v4146 = vadd.f32 %v3624, %v3694
        %v4147 = vadd.f32 %v3625, %v3698
        %v4148 = vadd.f32 %v3626, %v3702
        %v4149 = vadd.f32 %v3627, %v3706
        %v4150 = vadd.f32 %v3628, %v3710
        %v4151 = vadd.f32 %v3629, %v3714
        %v4152 = vadd.f32 %v3630, %v3718
        %v4153 = vadd.f32 %v3631, %v3666
        %v4154 = vadd.f32 %v3632, %v3670
        %v4155 = vadd.f32 %v3633, %v3674
        %v4156 = vadd.f32 %v3634, %v3678
        %v4157 = vadd.f32 %v3635, %v3682
        %v4158 = vadd.f32 %v3636, %v3686
        %v4159 = vadd.f32 %v3637, %v3690
        %v4160 = vadd.f32 %v3638, %v3694
        %v4161 = vadd.f32 %v3639, %v3698
        %v4162 = vadd.f32 %v3640, %v3702
        %v4163 = vadd.f32 %v3641, %v3706
        %v4164 = vadd.f32 %v3642, %v3710
        %v4165 = vadd.f32 %v3643, %v3714
        %v4166 = vadd.f32 %v3644, %v3718
        %v4167 = vadd.f32 %v3645, %v3666
        %v4168 = vadd.f32 %v3646, %v3670
        %v4169 = vadd.f32 %v3647, %v3674
        %v4170 = vadd.f32 %v3648, %v3678
        %v4171 = vadd.f32 %v3649, %v3682
        %v4172 = vadd.f32 %v3650, %v3686
        %v4173 = vadd.f32 %v3651, %v3690
        %v4174 = vadd.f32 %v3652, %v3694
        %v4175 = vadd.f32 %v3653, %v3698
        %v4176 = vadd.f32 %v3654, %v3702
        %v4177 = vadd.f32 %v3655, %v3706
        %v4178 = vadd.f32 %v3656, %v3710
        %v4179 = vadd.f32 %v3657, %v3714
        %v4180 = vadd.f32 %v3658, %v3718
        %v4181 = vsub.f32 0.0, %v3733
        %v4182 = vsub.f32 0.0, %v3734
        %v4183 = vsub.f32 0.0, %v3735
        %v4184 = vsub.f32 0.0, %v3736
        %v4185 = vsub.f32 0.0, %v3737
        %v4186 = vsub.f32 0.0, %v3738
        %v4187 = vsub.f32 0.0, %v3739
        %v4188 = vsub.f32 0.0, %v3740
        %v4189 = vsub.f32 0.0, %v3741
        %v4190 = vsub.f32 0.0, %v3742
        %v4191 = vsub.f32 0.0, %v3743
        %v4192 = vsub.f32 0.0, %v3744
        %v4193 = vsub.f32 0.0, %v3745
        %v4194 = vsub.f32 0.0, %v3746
        %v4195 = vsub.f32 0.0, %v3747
        %v4196 = vsub.f32 0.0, %v3748
        %v4197 = vsub.f32 0.0, %v3749
        %v4198 = vsub.f32 0.0, %v3750
        %v4199 = vsub.f32 0.0, %v3751
        %v4200 = vsub.f32 0.0, %v3752
        %v4201 = vsub.f32 0.0, %v3753
        %v4202 = vsub.f32 0.0, %v3754
        %v4203 = vsub.f32 0.0, %v3755
        %v4204 = vsub.f32 0.0, %v3756
        %v4205 = vsub.f32 0.0, %v3757
        %v4206 = vsub.f32 0.0, %v3758
        %v4207 = vsub.f32 0.0, %v3759
        %v4208 = vsub.f32 0.0, %v3760
        %v4209 = vsub.f32 0.0, %v3761
        %v4210 = vsub.f32 0.0, %v3762
        %v4211 = vsub.f32 0.0, %v3763
        %v4212 = vsub.f32 0.0, %v3764
        %v4213 = vsub.f32 0.0, %v3765
        %v4214 = vsub.f32 0.0, %v3766
        %v4215 = vsub.f32 0.0, %v3767
        %v4216 = vsub.f32 0.0, %v3768
        %v4217 = vsub.f32 0.0, %v3769
        %v4218 = vsub.f32 0.0, %v3770
        %v4219 = vsub.f32 0.0, %v3771
        %v4220 = vsub.f32 0.0, %v3772
        %v4221 = vsub.f32 0.0, %v3773
        %v4222 = vsub.f32 0.0, %v3774
        %v4223 = vsub.f32 0.0, %v3775
        %v4224 = vsub.f32 0.0, %v3776
        %v4225 = vsub.f32 0.0, %v3777
        %v4226 = vsub.f32 0.0, %v3778
        %v4227 = vsub.f32 0.0, %v3779
        %v4228 = vsub.f32 0.0, %v3780
        %v4229 = vsub.f32 0.0, %v3781
        %v4230 = vsub.f32 0.0, %v3782
        %v4231 = vsub.f32 0.0, %v3783
        %v4232 = vsub.f32 0.0, %v3784
        %v4233 = vsub.f32 0.0, %v3785
        %v4234 = vsub.f32 0.0, %v3786
        %v4235 = vsub.f32 0.0, %v3787
        %v4236 = vsub.f32 0.0, %v3788
        %v4237 = vsub.f32 0.0, %v3789
        %v4238 = vsub.f32 0.0, %v3790
        %v4239 = vsub.f32 0.0, %v3791
        %v4240 = vsub.f32 0.0, %v3792
        %v4241 = vsub.f32 0.0, %v3793
        %v4242 = vsub.f32 0.0, %v3794
        %v4243 = vsub.f32 0.0, %v3795
        %v4244 = vsub.f32 0.0, %v3796
        %v4245 = vsub.f32 0.0, %v3797
        %v4246 = vsub.f32 0.0, %v3798
        %v4247 = vsub.f32 0.0, %v3799
        %v4248 = vsub.f32 0.0, %v3800
        %v4249 = vsub.f32 0.0, %v3801
        %v4250 = vsub.f32 0.0, %v3802
        %v4251 = vsub.f32 0.0, %v3803
        %v4252 = vsub.f32 0.0, %v3804
        %v4253 = vsub.f32 0.0, %v3805
        %v4254 = vsub.f32 0.0, %v3806
        %v4255 = vsub.f32 0.0, %v3807
        %v4256 = vsub.f32 0.0, %v3808
        %v4257 = vsub.f32 0.0, %v3809
        %v4258 = vsub.f32 0.0, %v3810
        %v4259 = vsub.f32 0.0, %v3811
        %v4260 = vsub.f32 0.0, %v3812
        %v4261 = vsub.f32 0.0, %v3813
        %v4262 = vsub.f32 0.0, %v3814
        %v4263 = vsub.f32 0.0, %v3815
        %v4264 = vsub.f32 0.0, %v3816
        %v4265 = vsub.f32 0.0, %v3817
        %v4266 = vsub.f32 0.0, %v3818
        %v4267 = vsub.f32 0.0, %v3819
        %v4268 = vsub.f32 0.0, %v3820
        %v4269 = vsub.f32 0.0, %v3821
        %v4270 = vsub.f32 0.0, %v3822
        %v4271 = vsub.f32 0.0, %v3823
        %v4272 = vsub.f32 0.0, %v3824
        %v4273 = vsub.f32 0.0, %v3825
        %v4274 = vsub.f32 0.0, %v3826
        %v4275 = vsub.f32 0.0, %v3827
        %v4276 = vsub.f32 0.0, %v3828
        %v4277 = vsub.f32 0.0, %v3829
        %v4278 = vsub.f32 0.0, %v3830
        %v4279 = vsub.f32 0.0, %v3831
        %v4280 = vsub.f32 0.0, %v3832
        %v4281 = vsub.f32 0.0, %v3833
        %v4282 = vsub.f32 0.0, %v3834
        %v4283 = vsub.f32 0.0, %v3835
        %v4284 = vsub.f32 0.0, %v3836
        %v4285 = vsub.f32 0.0, %v3837
        %v4286 = vsub.f32 0.0, %v3838
        %v4287 = vsub.f32 0.0, %v3839
        %v4288 = vsub.f32 0.0, %v3840
        %v4289 = vsub.f32 0.0, %v3841
        %v4290 = vsub.f32 0.0, %v3842
        %v4291 = vsub.f32 0.0, %v3843
        %v4292 = vsub.f32 0.0, %v3844
        %v4293 = vsub.f32 0.0, %v3845
        %v4294 = vsub.f32 0.0, %v3846
        %v4295 = vsub.f32 0.0, %v3847
        %v4296 = vsub.f32 0.0, %v3848
        %v4297 = vsub.f32 0.0, %v3849
        %v4298 = vsub.f32 0.0, %v3850
        %v4299 = vsub.f32 0.0, %v3851
        %v4300 = vsub.f32 0.0, %v3852
        %v4301 = vsub.f32 0.0, %v3853
        %v4302 = vsub.f32 0.0, %v3854
        %v4303 = vsub.f32 0.0, %v3855
        %v4304 = vsub.f32 0.0, %v3856
        %v4305 = vsub.f32 0.0, %v3857
        %v4306 = vsub.f32 0.0, %v3858
        %v4307 = vsub.f32 0.0, %v3859
        %v4308 = vsub.f32 0.0, %v3860
        %v4309 = vsub.f32 0.0, %v3861
        %v4310 = vsub.f32 0.0, %v3862
        %v4311 = vsub.f32 0.0, %v3863
        %v4312 = vsub.f32 0.0, %v3864
        %v4313 = vsub.f32 0.0, %v3865
        %v4314 = vsub.f32 0.0, %v3866
        %v4315 = vsub.f32 0.0, %v3867
        %v4316 = vsub.f32 0.0, %v3868
        %v4317 = vsub.f32 0.0, %v3869
        %v4318 = vsub.f32 0.0, %v3870
        %v4319 = vsub.f32 0.0, %v3871
        %v4320 = vsub.f32 0.0, %v3872
        %v4321 = vsub.f32 0.0, %v3873
        %v4322 = vsub.f32 0.0, %v3874
        %v4323 = vsub.f32 0.0, %v3875
        %v4324 = vsub.f32 0.0, %v3876
        %v4325 = vsub.f32 0.0, %v3877
        %v4326 = vsub.f32 0.0, %v3878
        %v4327 = vsub.f32 0.0, %v3879
        %v4328 = vsub.f32 0.0, %v3880
        %v4329 = vsub.f32 0.0, %v3881
        %v4330 = vsub.f32 0.0, %v3882
        %v4331 = vsub.f32 0.0, %v3883
        %v4332 = vsub.f32 0.0, %v3884
        %v4333 = vsub.f32 0.0, %v3885
        %v4334 = vsub.f32 0.0, %v3886
        %v4335 = vsub.f32 0.0, %v3887
        %v4336 = vsub.f32 0.0, %v3888
        %v4337 = vsub.f32 0.0, %v3889
        %v4338 = vsub.f32 0.0, %v3890
        %v4339 = vsub.f32 0.0, %v3891
        %v4340 = vsub.f32 0.0, %v3892
        %v4341 = vsub.f32 0.0, %v3893
        %v4342 = vsub.f32 0.0, %v3894
        %v4343 = vsub.f32 0.0, %v3895
        %v4344 = vsub.f32 0.0, %v3896
        %v4345 = vsub.f32 0.0, %v3897
        %v4346 = vsub.f32 0.0, %v3898
        %v4347 = vsub.f32 0.0, %v3899
        %v4348 = vsub.f32 0.0, %v3900
        %v4349 = vsub.f32 0.0, %v3901
        %v4350 = vsub.f32 0.0, %v3902
        %v4351 = vsub.f32 0.0, %v3903
        %v4352 = vsub.f32 0.0, %v3904
        %v4353 = vsub.f32 0.0, %v3905
        %v4354 = vsub.f32 0.0, %v3906
        %v4355 = vsub.f32 0.0, %v3907
        %v4356 = vsub.f32 0.0, %v3908
        %v4357 = vsub.f32 0.0, %v3909
        %v4358 = vsub.f32 0.0, %v3910
        %v4359 = vsub.f32 0.0, %v3911
        %v4360 = vsub.f32 0.0, %v3912
        %v4361 = vsub.f32 0.0, %v3913
        %v4362 = vsub.f32 0.0, %v3914
        %v4363 = vsub.f32 0.0, %v3915
        %v4364 = vsub.f32 0.0, %v3916
        %v4365 = vsub.f32 0.0, %v3917
        %v4366 = vsub.f32 0.0, %v3918
        %v4367 = vsub.f32 0.0, %v3919
        %v4368 = vsub.f32 0.0, %v3920
        %v4369 = vsub.f32 0.0, %v3921
        %v4370 = vsub.f32 0.0, %v3922
        %v4371 = vsub.f32 0.0, %v3923
        %v4372 = vsub.f32 0.0, %v3924
        %v4373 = vsub.f32 0.0, %v3925
        %v4374 = vsub.f32 0.0, %v3926
        %v4375 = vsub.f32 0.0, %v3927
        %v4376 = vsub.f32 0.0, %v3928
        %v4377 = vsub.f32 0.0, %v3929
        %v4378 = vsub.f32 0.0, %v3930
        %v4379 = vsub.f32 0.0, %v3931
        %v4380 = vsub.f32 0.0, %v3932
        %v4381 = vsub.f32 0.0, %v3933
        %v4382 = vsub.f32 0.0, %v3934
        %v4383 = vsub.f32 0.0, %v3935
        %v4384 = vsub.f32 0.0, %v3936
        %v4385 = vsub.f32 0.0, %v3937
        %v4386 = vsub.f32 0.0, %v3938
        %v4387 = vsub.f32 0.0, %v3939
        %v4388 = vsub.f32 0.0, %v3940
        %v4389 = vsub.f32 0.0, %v3941
        %v4390 = vsub.f32 0.0, %v3942
        %v4391 = vsub.f32 0.0, %v3943
        %v4392 = vsub.f32 0.0, %v3944
        %v4393 = vsub.f32 0.0, %v3945
        %v4394 = vsub.f32 0.0, %v3946
        %v4395 = vsub.f32 0.0, %v3947
        %v4396 = vsub.f32 0.0, %v3948
        %v4397 = vsub.f32 0.0, %v3949
        %v4398 = vsub.f32 0.0, %v3950
        %v4399 = vsub.f32 0.0, %v3951
        %v4400 = vsub.f32 0.0, %v3952
        %v4401 = vsub.f32 0.0, %v3953
        %v4402 = vsub.f32 0.0, %v3954
        %v4403 = vsub.f32 0.0, %v3955
        %v4404 = vsub.f32 0.0, %v3956
        %v4405 = vsub.f32 0.0, %v3957
        %v4406 = vsub.f32 0.0, %v3958
        %v4407 = vsub.f32 0.0, %v3959
        %v4408 = vsub.f32 0.0, %v3960
        %v4409 = vsub.f32 0.0, %v3961
        %v4410 = vsub.f32 0.0, %v3962
        %v4411 = vsub.f32 0.0, %v3963
        %v4412 = vsub.f32 0.0, %v3964
        %v4413 = vsub.f32 0.0, %v3965
        %v4414 = vsub.f32 0.0, %v3966
        %v4415 = vsub.f32 0.0, %v3967
        %v4416 = vsub.f32 0.0, %v3968
        %v4417 = vsub.f32 0.0, %v3969
        %v4418 = vsub.f32 0.0, %v3970
        %v4419 = vsub.f32 0.0, %v3971
        %v4420 = vsub.f32 0.0, %v3972
        %v4421 = vsub.f32 0.0, %v3973
        %v4422 = vsub.f32 0.0, %v3974
        %v4423 = vsub.f32 0.0, %v3975
        %v4424 = vsub.f32 0.0, %v3976
        %v4425 = vsub.f32 0.0, %v3977
        %v4426 = vsub.f32 0.0, %v3978
        %v4427 = vsub.f32 0.0, %v3979
        %v4428 = vsub.f32 0.0, %v3980
        %v4429 = vsub.f32 0.0, %v3981
        %v4430 = vsub.f32 0.0, %v3982
        %v4431 = vsub.f32 0.0, %v3983
        %v4432 = vsub.f32 0.0, %v3984
        %v4433 = vsub.f32 0.0, %v3985
        %v4434 = vsub.f32 0.0, %v3986
        %v4435 = vsub.f32 0.0, %v3987
        %v4436 = vsub.f32 0.0, %v3988
        %v4437 = vsub.f32 0.0, %v3989
        %v4438 = vsub.f32 0.0, %v3990
        %v4439 = vsub.f32 0.0, %v3991
        %v4440 = vsub.f32 0.0, %v3992
        %v4441 = vsub.f32 0.0, %v3993
        %v4442 = vsub.f32 0.0, %v3994
        %v4443 = vsub.f32 0.0, %v3995
        %v4444 = vsub.f32 0.0, %v3996
        %v4445 = vsub.f32 0.0, %v3997
        %v4446 = vsub.f32 0.0, %v3998
        %v4447 = vsub.f32 0.0, %v3999
        %v4448 = vsub.f32 0.0, %v4000
        %v4449 = vsub.f32 0.0, %v4001
        %v4450 = vsub.f32 0.0, %v4002
        %v4451 = vsub.f32 0.0, %v4003
        %v4452 = vsub.f32 0.0, %v4004
        %v4453 = vsub.f32 0.0, %v4005
        %v4454 = vsub.f32 0.0, %v4006
        %v4455 = vsub.f32 0.0, %v4007
        %v4456 = vsub.f32 0.0, %v4008
        %v4457 = vsub.f32 0.0, %v4009
        %v4458 = vsub.f32 0.0, %v4010
        %v4459 = vsub.f32 0.0, %v4011
        %v4460 = vsub.f32 0.0, %v4012
        %v4461 = vsub.f32 0.0, %v4013
        %v4462 = vsub.f32 0.0, %v4014
        %v4463 = vsub.f32 0.0, %v4015
        %v4464 = vsub.f32 0.0, %v4016
        %v4465 = vsub.f32 0.0, %v4017
        %v4466 = vsub.f32 0.0, %v4018
        %v4467 = vsub.f32 0.0, %v4019
        %v4468 = vsub.f32 0.0, %v4020
        %v4469 = vsub.f32 0.0, %v4021
        %v4470 = vsub.f32 0.0, %v4022
        %v4471 = vsub.f32 0.0, %v4023
        %v4472 = vsub.f32 0.0, %v4024
        %v4473 = vsub.f32 0.0, %v4025
        %v4474 = vsub.f32 0.0, %v4026
        %v4475 = vsub.f32 0.0, %v4027
        %v4476 = vsub.f32 0.0, %v4028
        %v4477 = vsub.f32 0.0, %v4029
        %v4478 = vsub.f32 0.0, %v4030
        %v4479 = vsub.f32 0.0, %v4031
        %v4480 = vsub.f32 0.0, %v4032
        %v4481 = vsub.f32 0.0, %v4033
        %v4482 = vsub.f32 0.0, %v4034
        %v4483 = vsub.f32 0.0, %v4035
        %v4484 = vsub.f32 0.0, %v4036
        %v4485 = vsub.f32 0.0, %v4037
        %v4486 = vsub.f32 0.0, %v4038
        %v4487 = vsub.f32 0.0, %v4039
        %v4488 = vsub.f32 0.0, %v4040
        %v4489 = vsub.f32 0.0, %v4041
        %v4490 = vsub.f32 0.0, %v4042
        %v4491 = vsub.f32 0.0, %v4043
        %v4492 = vsub.f32 0.0, %v4044
        %v4493 = vsub.f32 0.0, %v4045
        %v4494 = vsub.f32 0.0, %v4046
        %v4495 = vsub.f32 0.0, %v4047
        %v4496 = vsub.f32 0.0, %v4048
        %v4497 = vsub.f32 0.0, %v4049
        %v4498 = vsub.f32 0.0, %v4050
        %v4499 = vsub.f32 0.0, %v4051
        %v4500 = vsub.f32 0.0, %v4052
        %v4501 = vsub.f32 0.0, %v4053
        %v4502 = vsub.f32 0.0, %v4054
        %v4503 = vsub.f32 0.0, %v4055
        %v4504 = vsub.f32 0.0, %v4056
        %v4505 = vsub.f32 0.0, %v4057
        %v4506 = vsub.f32 0.0, %v4058
        %v4507 = vsub.f32 0.0, %v4059
        %v4508 = vsub.f32 0.0, %v4060
        %v4509 = vsub.f32 0.0, %v4061
        %v4510 = vsub.f32 0.0, %v4062
        %v4511 = vsub.f32 0.0, %v4063
        %v4512 = vsub.f32 0.0, %v4064
        %v4513 = vsub.f32 0.0, %v4065
        %v4514 = vsub.f32 0.0, %v4066
        %v4515 = vsub.f32 0.0, %v4067
        %v4516 = vsub.f32 0.0, %v4068
        %v4517 = vsub.f32 0.0, %v4069
        %v4518 = vsub.f32 0.0, %v4070
        %v4519 = vsub.f32 0.0, %v4071
        %v4520 = vsub.f32 0.0, %v4072
        %v4521 = vsub.f32 0.0, %v4073
        %v4522 = vsub.f32 0.0, %v4074
        %v4523 = vsub.f32 0.0, %v4075
        %v4524 = vsub.f32 0.0, %v4076
        %v4525 = vsub.f32 0.0, %v4077
        %v4526 = vsub.f32 0.0, %v4078
        %v4527 = vsub.f32 0.0, %v4079
        %v4528 = vsub.f32 0.0, %v4080
        %v4529 = vsub.f32 0.0, %v4081
        %v4530 = vsub.f32 0.0, %v4082
        %v4531 = vsub.f32 0.0, %v4083
        %v4532 = vsub.f32 0.0, %v4084
        %v4533 = vsub.f32 0.0, %v4085
        %v4534 = vsub.f32 0.0, %v4086
        %v4535 = vsub.f32 0.0, %v4087
        %v4536 = vsub.f32 0.0, %v4088
        %v4537 = vsub.f32 0.0, %v4089
        %v4538 = vsub.f32 0.0, %v4090
        %v4539 = vsub.f32 0.0, %v4091
        %v4540 = vsub.f32 0.0, %v4092
        %v4541 = vsub.f32 0.0, %v4093
        %v4542 = vsub.f32 0.0, %v4094
        %v4543 = vsub.f32 0.0, %v4095
        %v4544 = vsub.f32 0.0, %v4096
        %v4545 = vsub.f32 0.0, %v4097
        %v4546 = vsub.f32 0.0, %v4098
        %v4547 = vsub.f32 0.0, %v4099
        %v4548 = vsub.f32 0.0, %v4100
        %v4549 = vsub.f32 0.0, %v4101
        %v4550 = vsub.f32 0.0, %v4102
        %v4551 = vsub.f32 0.0, %v4103
        %v4552 = vsub.f32 0.0, %v4104
        %v4553 = vsub.f32 0.0, %v4105
        %v4554 = vsub.f32 0.0, %v4106
        %v4555 = vsub.f32 0.0, %v4107
        %v4556 = vsub.f32 0.0, %v4108
        %v4557 = vsub.f32 0.0, %v4109
        %v4558 = vsub.f32 0.0, %v4110
        %v4559 = vsub.f32 0.0, %v4111
        %v4560 = vsub.f32 0.0, %v4112
        %v4561 = vsub.f32 0.0, %v4113
        %v4562 = vsub.f32 0.0, %v4114
        %v4563 = vsub.f32 0.0, %v4115
        %v4564 = vsub.f32 0.0, %v4116
        %v4565 = vsub.f32 0.0, %v4117
        %v4566 = vsub.f32 0.0, %v4118
        %v4567 = vsub.f32 0.0, %v4119
        %v4568 = vsub.f32 0.0, %v4120
        %v4569 = vsub.f32 0.0, %v4121
        %v4570 = vsub.f32 0.0, %v4122
        %v4571 = vsub.f32 0.0, %v4123
        %v4572 = vsub.f32 0.0, %v4124
        %v4573 = vsub.f32 0.0, %v4125
        %v4574 = vsub.f32 0.0, %v4126
        %v4575 = vsub.f32 0.0, %v4127
        %v4576 = vsub.f32 0.0, %v4128
        %v4577 = vsub.f32 0.0, %v4129
        %v4578 = vsub.f32 0.0, %v4130
        %v4579 = vsub.f32 0.0, %v4131
        %v4580 = vsub.f32 0.0, %v4132
        %v4581 = vsub.f32 0.0, %v4133
        %v4582 = vsub.f32 0.0, %v4134
        %v4583 = vsub.f32 0.0, %v4135
        %v4584 = vsub.f32 0.0, %v4136
        %v4585 = vsub.f32 0.0, %v4137
        %v4586 = vsub.f32 0.0, %v4138
        %v4587 = vsub.f32 0.0, %v4139
        %v4588 = vsub.f32 0.0, %v4140
        %v4589 = vsub.f32 0.0, %v4141
        %v4590 = vsub.f32 0.0, %v4142
        %v4591 = vsub.f32 0.0, %v4143
        %v4592 = vsub.f32 0.0, %v4144
        %v4593 = vsub.f32 0.0, %v4145
        %v4594 = vsub.f32 0.0, %v4146
        %v4595 = vsub.f32 0.0, %v4147
        %v4596 = vsub.f32 0.0, %v4148
        %v4597 = vsub.f32 0.0, %v4149
        %v4598 = vsub.f32 0.0, %v4150
        %v4599 = vsub.f32 0.0, %v4151
        %v4600 = vsub.f32 0.0, %v4152
        %v4601 = vsub.f32 0.0, %v4153
        %v4602 = vsub.f32 0.0, %v4154
        %v4603 = vsub.f32 0.0, %v4155
        %v4604 = vsub.f32 0.0, %v4156
        %v4605 = vsub.f32 0.0, %v4157
        %v4606 = vsub.f32 0.0, %v4158
        %v4607 = vsub.f32 0.0, %v4159
        %v4608 = vsub.f32 0.0, %v4160
        %v4609 = vsub.f32 0.0, %v4161
        %v4610 = vsub.f32 0.0, %v4162
        %v4611 = vsub.f32 0.0, %v4163
        %v4612 = vsub.f32 0.0, %v4164
        %v4613 = vsub.f32 0.0, %v4165
        %v4614 = vsub.f32 0.0, %v4166
        %v4615 = vsub.f32 0.0, %v4167
        %v4616 = vsub.f32 0.0, %v4168
        %v4617 = vsub.f32 0.0, %v4169
        %v4618 = vsub.f32 0.0, %v4170
        %v4619 = vsub.f32 0.0, %v4171
        %v4620 = vsub.f32 0.0, %v4172
        %v4621 = vsub.f32 0.0, %v4173
        %v4622 = vsub.f32 0.0, %v4174
        %v4623 = vsub.f32 0.0, %v4175
        %v4624 = vsub.f32 0.0, %v4176
        %v4625 = vsub.f32 0.0, %v4177
        %v4626 = vsub.f32 0.0, %v4178
        %v4627 = vsub.f32 0.0, %v4179
        %v4628 = vsub.f32 0.0, %v4180
        %v4629 = vmul.f32 %v4181, 1.442695
        %v4630 = vpow.pop %v4629
        %v4631 = vmul.f32 %v4182, 1.442695
        %v4632 = vpow.pop %v4631
        %v4633 = vmul.f32 %v4183, 1.442695
        %v4634 = vpow.pop %v4633
        %v4635 = vmul.f32 %v4184, 1.442695
        %v4636 = vpow.pop %v4635
        %v4637 = vmul.f32 %v4185, 1.442695
        %v4638 = vpow.pop %v4637
        %v4639 = vmul.f32 %v4186, 1.442695
        %v4640 = vpow.pop %v4639
        %v4641 = vmul.f32 %v4187, 1.442695
        %v4642 = vpow.pop %v4641
        %v4643 = vmul.f32 %v4188, 1.442695
        %v4644 = vpow.pop %v4643
        %v4645 = vmul.f32 %v4189, 1.442695
        %v4646 = vpow.pop %v4645
        %v4647 = vmul.f32 %v4190, 1.442695
        %v4648 = vpow.pop %v4647
        %v4649 = vmul.f32 %v4191, 1.442695
        %v4650 = vpow.pop %v4649
        %v4651 = vmul.f32 %v4192, 1.442695
        %v4652 = vpow.pop %v4651
        %v4653 = vmul.f32 %v4193, 1.442695
        %v4654 = vpow.pop %v4653
        %v4655 = vmul.f32 %v4194, 1.442695
        %v4656 = vpow.pop %v4655
        %v4657 = vmul.f32 %v4195, 1.442695
        %v4658 = vpow.pop %v4657
        %v4659 = vmul.f32 %v4196, 1.442695
        %v4660 = vpow.pop %v4659
        %v4661 = vmul.f32 %v4197, 1.442695
        %v4662 = vpow.pop %v4661
        %v4663 = vmul.f32 %v4198, 1.442695
        %v4664 = vpow.pop %v4663
        %v4665 = vmul.f32 %v4199, 1.442695
        %v4666 = vpow.pop %v4665
        %v4667 = vmul.f32 %v4200, 1.442695
        %v4668 = vpow.pop %v4667
        %v4669 = vmul.f32 %v4201, 1.442695
        %v4670 = vpow.pop %v4669
        %v4671 = vmul.f32 %v4202, 1.442695
        %v4672 = vpow.pop %v4671
        %v4673 = vmul.f32 %v4203, 1.442695
        %v4674 = vpow.pop %v4673
        %v4675 = vmul.f32 %v4204, 1.442695
        %v4676 = vpow.pop %v4675
        %v4677 = vmul.f32 %v4205, 1.442695
        %v4678 = vpow.pop %v4677
        %v4679 = vmul.f32 %v4206, 1.442695
        %v4680 = vpow.pop %v4679
        %v4681 = vmul.f32 %v4207, 1.442695
        %v4682 = vpow.pop %v4681
        %v4683 = vmul.f32 %v4208, 1.442695
        %v4684 = vpow.pop %v4683
        %v4685 = vmul.f32 %v4209, 1.442695
        %v4686 = vpow.pop %v4685
        %v4687 = vmul.f32 %v4210, 1.442695
        %v4688 = vpow.pop %v4687
        %v4689 = vmul.f32 %v4211, 1.442695
        %v4690 = vpow.pop %v4689
        %v4691 = vmul.f32 %v4212, 1.442695
        %v4692 = vpow.pop %v4691
        %v4693 = vmul.f32 %v4213, 1.442695
        %v4694 = vpow.pop %v4693
        %v4695 = vmul.f32 %v4214, 1.442695
        %v4696 = vpow.pop %v4695
        %v4697 = vmul.f32 %v4215, 1.442695
        %v4698 = vpow.pop %v4697
        %v4699 = vmul.f32 %v4216, 1.442695
        %v4700 = vpow.pop %v4699
        %v4701 = vmul.f32 %v4217, 1.442695
        %v4702 = vpow.pop %v4701
        %v4703 = vmul.f32 %v4218, 1.442695
        %v4704 = vpow.pop %v4703
        %v4705 = vmul.f32 %v4219, 1.442695
        %v4706 = vpow.pop %v4705
        %v4707 = vmul.f32 %v4220, 1.442695
        %v4708 = vpow.pop %v4707
        %v4709 = vmul.f32 %v4221, 1.442695
        %v4710 = vpow.pop %v4709
        %v4711 = vmul.f32 %v4222, 1.442695
        %v4712 = vpow.pop %v4711
        %v4713 = vmul.f32 %v4223, 1.442695
        %v4714 = vpow.pop %v4713
        %v4715 = vmul.f32 %v4224, 1.442695
        %v4716 = vpow.pop %v4715
        %v4717 = vmul.f32 %v4225, 1.442695
        %v4718 = vpow.pop %v4717
        %v4719 = vmul.f32 %v4226, 1.442695
        %v4720 = vpow.pop %v4719
        %v4721 = vmul.f32 %v4227, 1.442695
        %v4722 = vpow.pop %v4721
        %v4723 = vmul.f32 %v4228, 1.442695
        %v4724 = vpow.pop %v4723
        %v4725 = vmul.f32 %v4229, 1.442695
        %v4726 = vpow.pop %v4725
        %v4727 = vmul.f32 %v4230, 1.442695
        %v4728 = vpow.pop %v4727
        %v4729 = vmul.f32 %v4231, 1.442695
        %v4730 = vpow.pop %v4729
        %v4731 = vmul.f32 %v4232, 1.442695
        %v4732 = vpow.pop %v4731
        %v4733 = vmul.f32 %v4233, 1.442695
        %v4734 = vpow.pop %v4733
        %v4735 = vmul.f32 %v4234, 1.442695
        %v4736 = vpow.pop %v4735
        %v4737 = vmul.f32 %v4235, 1.442695
        %v4738 = vpow.pop %v4737
        %v4739 = vmul.f32 %v4236, 1.442695
        %v4740 = vpow.pop %v4739
        %v4741 = vmul.f32 %v4237, 1.442695
        %v4742 = vpow.pop %v4741
        %v4743 = vmul.f32 %v4238, 1.442695
        %v4744 = vpow.pop %v4743
        %v4745 = vmul.f32 %v4239, 1.442695
        %v4746 = vpow.pop %v4745
        %v4747 = vmul.f32 %v4240, 1.442695
        %v4748 = vpow.pop %v4747
        %v4749 = vmul.f32 %v4241, 1.442695
        %v4750 = vpow.pop %v4749
        %v4751 = vmul.f32 %v4242, 1.442695
        %v4752 = vpow.pop %v4751
        %v4753 = vmul.f32 %v4243, 1.442695
        %v4754 = vpow.pop %v4753
        %v4755 = vmul.f32 %v4244, 1.442695
        %v4756 = vpow.pop %v4755
        %v4757 = vmul.f32 %v4245, 1.442695
        %v4758 = vpow.pop %v4757
        %v4759 = vmul.f32 %v4246, 1.442695
        %v4760 = vpow.pop %v4759
        %v4761 = vmul.f32 %v4247, 1.442695
        %v4762 = vpow.pop %v4761
        %v4763 = vmul.f32 %v4248, 1.442695
        %v4764 = vpow.pop %v4763
        %v4765 = vmul.f32 %v4249, 1.442695
        %v4766 = vpow.pop %v4765
        %v4767 = vmul.f32 %v4250, 1.442695
        %v4768 = vpow.pop %v4767
        %v4769 = vmul.f32 %v4251, 1.442695
        %v4770 = vpow.pop %v4769
        %v4771 = vmul.f32 %v4252, 1.442695
        %v4772 = vpow.pop %v4771
        %v4773 = vmul.f32 %v4253, 1.442695
        %v4774 = vpow.pop %v4773
        %v4775 = vmul.f32 %v4254, 1.442695
        %v4776 = vpow.pop %v4775
        %v4777 = vmul.f32 %v4255, 1.442695
        %v4778 = vpow.pop %v4777
        %v4779 = vmul.f32 %v4256, 1.442695
        %v4780 = vpow.pop %v4779
        %v4781 = vmul.f32 %v4257, 1.442695
        %v4782 = vpow.pop %v4781
        %v4783 = vmul.f32 %v4258, 1.442695
        %v4784 = vpow.pop %v4783
        %v4785 = vmul.f32 %v4259, 1.442695
        %v4786 = vpow.pop %v4785
        %v4787 = vmul.f32 %v4260, 1.442695
        %v4788 = vpow.pop %v4787
        %v4789 = vmul.f32 %v4261, 1.442695
        %v4790 = vpow.pop %v4789
        %v4791 = vmul.f32 %v4262, 1.442695
        %v4792 = vpow.pop %v4791
        %v4793 = vmul.f32 %v4263, 1.442695
        %v4794 = vpow.pop %v4793
        %v4795 = vmul.f32 %v4264, 1.442695
        %v4796 = vpow.pop %v4795
        %v4797 = vmul.f32 %v4265, 1.442695
        %v4798 = vpow.pop %v4797
        %v4799 = vmul.f32 %v4266, 1.442695
        %v4800 = vpow.pop %v4799
        %v4801 = vmul.f32 %v4267, 1.442695
        %v4802 = vpow.pop %v4801
        %v4803 = vmul.f32 %v4268, 1.442695
        %v4804 = vpow.pop %v4803
        %v4805 = vmul.f32 %v4269, 1.442695
        %v4806 = vpow.pop %v4805
        %v4807 = vmul.f32 %v4270, 1.442695
        %v4808 = vpow.pop %v4807
        %v4809 = vmul.f32 %v4271, 1.442695
        %v4810 = vpow.pop %v4809
        %v4811 = vmul.f32 %v4272, 1.442695
        %v4812 = vpow.pop %v4811
        %v4813 = vmul.f32 %v4273, 1.442695
        %v4814 = vpow.pop %v4813
        %v4815 = vmul.f32 %v4274, 1.442695
        %v4816 = vpow.pop %v4815
        %v4817 = vmul.f32 %v4275, 1.442695
        %v4818 = vpow.pop %v4817
        %v4819 = vmul.f32 %v4276, 1.442695
        %v4820 = vpow.pop %v4819
        %v4821 = vmul.f32 %v4277, 1.442695
        %v4822 = vpow.pop %v4821
        %v4823 = vmul.f32 %v4278, 1.442695
        %v4824 = vpow.pop %v4823
        %v4825 = vmul.f32 %v4279, 1.442695
        %v4826 = vpow.pop %v4825
        %v4827 = vmul.f32 %v4280, 1.442695
        %v4828 = vpow.pop %v4827
        %v4829 = vmul.f32 %v4281, 1.442695
        %v4830 = vpow.pop %v4829
        %v4831 = vmul.f32 %v4282, 1.442695
        %v4832 = vpow.pop %v4831
        %v4833 = vmul.f32 %v4283, 1.442695
        %v4834 = vpow.pop %v4833
        %v4835 = vmul.f32 %v4284, 1.442695
        %v4836 = vpow.pop %v4835
        %v4837 = vmul.f32 %v4285, 1.442695
        %v4838 = vpow.pop %v4837
        %v4839 = vmul.f32 %v4286, 1.442695
        %v4840 = vpow.pop %v4839
        %v4841 = vmul.f32 %v4287, 1.442695
        %v4842 = vpow.pop %v4841
        %v4843 = vmul.f32 %v4288, 1.442695
        %v4844 = vpow.pop %v4843
        %v4845 = vmul.f32 %v4289, 1.442695
        %v4846 = vpow.pop %v4845
        %v4847 = vmul.f32 %v4290, 1.442695
        %v4848 = vpow.pop %v4847
        %v4849 = vmul.f32 %v4291, 1.442695
        %v4850 = vpow.pop %v4849
        %v4851 = vmul.f32 %v4292, 1.442695
        %v4852 = vpow.pop %v4851
        %v4853 = vmul.f32 %v4293, 1.442695
        %v4854 = vpow.pop %v4853
        %v4855 = vmul.f32 %v4294, 1.442695
        %v4856 = vpow.pop %v4855
        %v4857 = vmul.f32 %v4295, 1.442695
        %v4858 = vpow.pop %v4857
        %v4859 = vmul.f32 %v4296, 1.442695
        %v4860 = vpow.pop %v4859
        %v4861 = vmul.f32 %v4297, 1.442695
        %v4862 = vpow.pop %v4861
        %v4863 = vmul.f32 %v4298, 1.442695
        %v4864 = vpow.pop %v4863
        %v4865 = vmul.f32 %v4299, 1.442695
        %v4866 = vpow.pop %v4865
        %v4867 = vmul.f32 %v4300, 1.442695
        %v4868 = vpow.pop %v4867
        %v4869 = vmul.f32 %v4301, 1.442695
        %v4870 = vpow.pop %v4869
        %v4871 = vmul.f32 %v4302, 1.442695
        %v4872 = vpow.pop %v4871
        %v4873 = vmul.f32 %v4303, 1.442695
        %v4874 = vpow.pop %v4873
        %v4875 = vmul.f32 %v4304, 1.442695
        %v4876 = vpow.pop %v4875
        %v4877 = vmul.f32 %v4305, 1.442695
        %v4878 = vpow.pop %v4877
        %v4879 = vmul.f32 %v4306, 1.442695
        %v4880 = vpow.pop %v4879
        %v4881 = vmul.f32 %v4307, 1.442695
        %v4882 = vpow.pop %v4881
        %v4883 = vmul.f32 %v4308, 1.442695
        %v4884 = vpow.pop %v4883
        %v4885 = vmul.f32 %v4309, 1.442695
        %v4886 = vpow.pop %v4885
        %v4887 = vmul.f32 %v4310, 1.442695
        %v4888 = vpow.pop %v4887
        %v4889 = vmul.f32 %v4311, 1.442695
        %v4890 = vpow.pop %v4889
        %v4891 = vmul.f32 %v4312, 1.442695
        %v4892 = vpow.pop %v4891
        %v4893 = vmul.f32 %v4313, 1.442695
        %v4894 = vpow.pop %v4893
        %v4895 = vmul.f32 %v4314, 1.442695
        %v4896 = vpow.pop %v4895
        %v4897 = vmul.f32 %v4315, 1.442695
        %v4898 = vpow.pop %v4897
        %v4899 = vmul.f32 %v4316, 1.442695
        %v4900 = vpow.pop %v4899
        %v4901 = vmul.f32 %v4317, 1.442695
        %v4902 = vpow.pop %v4901
        %v4903 = vmul.f32 %v4318, 1.442695
        %v4904 = vpow.pop %v4903
        %v4905 = vmul.f32 %v4319, 1.442695
        %v4906 = vpow.pop %v4905
        %v4907 = vmul.f32 %v4320, 1.442695
        %v4908 = vpow.pop %v4907
        %v4909 = vmul.f32 %v4321, 1.442695
        %v4910 = vpow.pop %v4909
        %v4911 = vmul.f32 %v4322, 1.442695
        %v4912 = vpow.pop %v4911
        %v4913 = vmul.f32 %v4323, 1.442695
        %v4914 = vpow.pop %v4913
        %v4915 = vmul.f32 %v4324, 1.442695
        %v4916 = vpow.pop %v4915
        %v4917 = vmul.f32 %v4325, 1.442695
        %v4918 = vpow.pop %v4917
        %v4919 = vmul.f32 %v4326, 1.442695
        %v4920 = vpow.pop %v4919
        %v4921 = vmul.f32 %v4327, 1.442695
        %v4922 = vpow.pop %v4921
        %v4923 = vmul.f32 %v4328, 1.442695
        %v4924 = vpow.pop %v4923
        %v4925 = vmul.f32 %v4329, 1.442695
        %v4926 = vpow.pop %v4925
        %v4927 = vmul.f32 %v4330, 1.442695
        %v4928 = vpow.pop %v4927
        %v4929 = vmul.f32 %v4331, 1.442695
        %v4930 = vpow.pop %v4929
        %v4931 = vmul.f32 %v4332, 1.442695
        %v4932 = vpow.pop %v4931
        %v4933 = vmul.f32 %v4333, 1.442695
        %v4934 = vpow.pop %v4933
        %v4935 = vmul.f32 %v4334, 1.442695
        %v4936 = vpow.pop %v4935
        %v4937 = vmul.f32 %v4335, 1.442695
        %v4938 = vpow.pop %v4937
        %v4939 = vmul.f32 %v4336, 1.442695
        %v4940 = vpow.pop %v4939
        %v4941 = vmul.f32 %v4337, 1.442695
        %v4942 = vpow.pop %v4941
        %v4943 = vmul.f32 %v4338, 1.442695
        %v4944 = vpow.pop %v4943
        %v4945 = vmul.f32 %v4339, 1.442695
        %v4946 = vpow.pop %v4945
        %v4947 = vmul.f32 %v4340, 1.442695
        %v4948 = vpow.pop %v4947
        %v4949 = vmul.f32 %v4341, 1.442695
        %v4950 = vpow.pop %v4949
        %v4951 = vmul.f32 %v4342, 1.442695
        %v4952 = vpow.pop %v4951
        %v4953 = vmul.f32 %v4343, 1.442695
        %v4954 = vpow.pop %v4953
        %v4955 = vmul.f32 %v4344, 1.442695
        %v4956 = vpow.pop %v4955
        %v4957 = vmul.f32 %v4345, 1.442695
        %v4958 = vpow.pop %v4957
        %v4959 = vmul.f32 %v4346, 1.442695
        %v4960 = vpow.pop %v4959
        %v4961 = vmul.f32 %v4347, 1.442695
        %v4962 = vpow.pop %v4961
        %v4963 = vmul.f32 %v4348, 1.442695
        %v4964 = vpow.pop %v4963
        %v4965 = vmul.f32 %v4349, 1.442695
        %v4966 = vpow.pop %v4965
        %v4967 = vmul.f32 %v4350, 1.442695
        %v4968 = vpow.pop %v4967
        %v4969 = vmul.f32 %v4351, 1.442695
        %v4970 = vpow.pop %v4969
        %v4971 = vmul.f32 %v4352, 1.442695
        %v4972 = vpow.pop %v4971
        %v4973 = vmul.f32 %v4353, 1.442695
        %v4974 = vpow.pop %v4973
        %v4975 = vmul.f32 %v4354, 1.442695
        %v4976 = vpow.pop %v4975
        %v4977 = vmul.f32 %v4355, 1.442695
        %v4978 = vpow.pop %v4977
        %v4979 = vmul.f32 %v4356, 1.442695
        %v4980 = vpow.pop %v4979
        %v4981 = vmul.f32 %v4357, 1.442695
        %v4982 = vpow.pop %v4981
        %v4983 = vmul.f32 %v4358, 1.442695
        %v4984 = vpow.pop %v4983
        %v4985 = vmul.f32 %v4359, 1.442695
        %v4986 = vpow.pop %v4985
        %v4987 = vmul.f32 %v4360, 1.442695
        %v4988 = vpow.pop %v4987
        %v4989 = vmul.f32 %v4361, 1.442695
        %v4990 = vpow.pop %v4989
        %v4991 = vmul.f32 %v4362, 1.442695
        %v4992 = vpow.pop %v4991
        %v4993 = vmul.f32 %v4363, 1.442695
        %v4994 = vpow.pop %v4993
        %v4995 = vmul.f32 %v4364, 1.442695
        %v4996 = vpow.pop %v4995
        %v4997 = vmul.f32 %v4365, 1.442695
        %v4998 = vpow.pop %v4997
        %v4999 = vmul.f32 %v4366, 1.442695
        %v5000 = vpow.pop %v4999
        %v5001 = vmul.f32 %v4367, 1.442695
        %v5002 = vpow.pop %v5001
        %v5003 = vmul.f32 %v4368, 1.442695
        %v5004 = vpow.pop %v5003
        %v5005 = vmul.f32 %v4369, 1.442695
        %v5006 = vpow.pop %v5005
        %v5007 = vmul.f32 %v4370, 1.442695
        %v5008 = vpow.pop %v5007
        %v5009 = vmul.f32 %v4371, 1.442695
        %v5010 = vpow.pop %v5009
        %v5011 = vmul.f32 %v4372, 1.442695
        %v5012 = vpow.pop %v5011
        %v5013 = vmul.f32 %v4373, 1.442695
        %v5014 = vpow.pop %v5013
        %v5015 = vmul.f32 %v4374, 1.442695
        %v5016 = vpow.pop %v5015
        %v5017 = vmul.f32 %v4375, 1.442695
        %v5018 = vpow.pop %v5017
        %v5019 = vmul.f32 %v4376, 1.442695
        %v5020 = vpow.pop %v5019
        %v5021 = vmul.f32 %v4377, 1.442695
        %v5022 = vpow.pop %v5021
        %v5023 = vmul.f32 %v4378, 1.442695
        %v5024 = vpow.pop %v5023
        %v5025 = vmul.f32 %v4379, 1.442695
        %v5026 = vpow.pop %v5025
        %v5027 = vmul.f32 %v4380, 1.442695
        %v5028 = vpow.pop %v5027
        %v5029 = vmul.f32 %v4381, 1.442695
        %v5030 = vpow.pop %v5029
        %v5031 = vmul.f32 %v4382, 1.442695
        %v5032 = vpow.pop %v5031
        %v5033 = vmul.f32 %v4383, 1.442695
        %v5034 = vpow.pop %v5033
        %v5035 = vmul.f32 %v4384, 1.442695
        %v5036 = vpow.pop %v5035
        %v5037 = vmul.f32 %v4385, 1.442695
        %v5038 = vpow.pop %v5037
        %v5039 = vmul.f32 %v4386, 1.442695
        %v5040 = vpow.pop %v5039
        %v5041 = vmul.f32 %v4387, 1.442695
        %v5042 = vpow.pop %v5041
        %v5043 = vmul.f32 %v4388, 1.442695
        %v5044 = vpow.pop %v5043
        %v5045 = vmul.f32 %v4389, 1.442695
        %v5046 = vpow.pop %v5045
        %v5047 = vmul.f32 %v4390, 1.442695
        %v5048 = vpow.pop %v5047
        %v5049 = vmul.f32 %v4391, 1.442695
        %v5050 = vpow.pop %v5049
        %v5051 = vmul.f32 %v4392, 1.442695
        %v5052 = vpow.pop %v5051
        %v5053 = vmul.f32 %v4393, 1.442695
        %v5054 = vpow.pop %v5053
        %v5055 = vmul.f32 %v4394, 1.442695
        %v5056 = vpow.pop %v5055
        %v5057 = vmul.f32 %v4395, 1.442695
        %v5058 = vpow.pop %v5057
        %v5059 = vmul.f32 %v4396, 1.442695
        %v5060 = vpow.pop %v5059
        %v5061 = vmul.f32 %v4397, 1.442695
        %v5062 = vpow.pop %v5061
        %v5063 = vmul.f32 %v4398, 1.442695
        %v5064 = vpow.pop %v5063
        %v5065 = vmul.f32 %v4399, 1.442695
        %v5066 = vpow.pop %v5065
        %v5067 = vmul.f32 %v4400, 1.442695
        %v5068 = vpow.pop %v5067
        %v5069 = vmul.f32 %v4401, 1.442695
        %v5070 = vpow.pop %v5069
        %v5071 = vmul.f32 %v4402, 1.442695
        %v5072 = vpow.pop %v5071
        %v5073 = vmul.f32 %v4403, 1.442695
        %v5074 = vpow.pop %v5073
        %v5075 = vmul.f32 %v4404, 1.442695
        %v5076 = vpow.pop %v5075
        %v5077 = vmul.f32 %v4405, 1.442695
        %v5078 = vpow.pop %v5077
        %v5079 = vmul.f32 %v4406, 1.442695
        %v5080 = vpow.pop %v5079
        %v5081 = vmul.f32 %v4407, 1.442695
        %v5082 = vpow.pop %v5081
        %v5083 = vmul.f32 %v4408, 1.442695
        %v5084 = vpow.pop %v5083
        %v5085 = vmul.f32 %v4409, 1.442695
        %v5086 = vpow.pop %v5085
        %v5087 = vmul.f32 %v4410, 1.442695
        %v5088 = vpow.pop %v5087
        %v5089 = vmul.f32 %v4411, 1.442695
        %v5090 = vpow.pop %v5089
        %v5091 = vmul.f32 %v4412, 1.442695
        %v5092 = vpow.pop %v5091
        %v5093 = vmul.f32 %v4413, 1.442695
        %v5094 = vpow.pop %v5093
        %v5095 = vmul.f32 %v4414, 1.442695
        %v5096 = vpow.pop %v5095
        %v5097 = vmul.f32 %v4415, 1.442695
        %v5098 = vpow.pop %v5097
        %v5099 = vmul.f32 %v4416, 1.442695
        %v5100 = vpow.pop %v5099
        %v5101 = vmul.f32 %v4417, 1.442695
        %v5102 = vpow.pop %v5101
        %v5103 = vmul.f32 %v4418, 1.442695
        %v5104 = vpow.pop %v5103
        %v5105 = vmul.f32 %v4419, 1.442695
        %v5106 = vpow.pop %v5105
        %v5107 = vmul.f32 %v4420, 1.442695
        %v5108 = vpow.pop %v5107
        %v5109 = vmul.f32 %v4421, 1.442695
        %v5110 = vpow.pop %v5109
        %v5111 = vmul.f32 %v4422, 1.442695
        %v5112 = vpow.pop %v5111
        %v5113 = vmul.f32 %v4423, 1.442695
        %v5114 = vpow.pop %v5113
        %v5115 = vmul.f32 %v4424, 1.442695
        %v5116 = vpow.pop %v5115
        %v5117 = vmul.f32 %v4425, 1.442695
        %v5118 = vpow.pop %v5117
        %v5119 = vmul.f32 %v4426, 1.442695
        %v5120 = vpow.pop %v5119
        %v5121 = vmul.f32 %v4427, 1.442695
        %v5122 = vpow.pop %v5121
        %v5123 = vmul.f32 %v4428, 1.442695
        %v5124 = vpow.pop %v5123
        %v5125 = vmul.f32 %v4429, 1.442695
        %v5126 = vpow.pop %v5125
        %v5127 = vmul.f32 %v4430, 1.442695
        %v5128 = vpow.pop %v5127
        %v5129 = vmul.f32 %v4431, 1.442695
        %v5130 = vpow.pop %v5129
        %v5131 = vmul.f32 %v4432, 1.442695
        %v5132 = vpow.pop %v5131
        %v5133 = vmul.f32 %v4433, 1.442695
        %v5134 = vpow.pop %v5133
        %v5135 = vmul.f32 %v4434, 1.442695
        %v5136 = vpow.pop %v5135
        %v5137 = vmul.f32 %v4435, 1.442695
        %v5138 = vpow.pop %v5137
        %v5139 = vmul.f32 %v4436, 1.442695
        %v5140 = vpow.pop %v5139
        %v5141 = vmul.f32 %v4437, 1.442695
        %v5142 = vpow.pop %v5141
        %v5143 = vmul.f32 %v4438, 1.442695
        %v5144 = vpow.pop %v5143
        %v5145 = vmul.f32 %v4439, 1.442695
        %v5146 = vpow.pop %v5145
        %v5147 = vmul.f32 %v4440, 1.442695
        %v5148 = vpow.pop %v5147
        %v5149 = vmul.f32 %v4441, 1.442695
        %v5150 = vpow.pop %v5149
        %v5151 = vmul.f32 %v4442, 1.442695
        %v5152 = vpow.pop %v5151
        %v5153 = vmul.f32 %v4443, 1.442695
        %v5154 = vpow.pop %v5153
        %v5155 = vmul.f32 %v4444, 1.442695
        %v5156 = vpow.pop %v5155
        %v5157 = vmul.f32 %v4445, 1.442695
        %v5158 = vpow.pop %v5157
        %v5159 = vmul.f32 %v4446, 1.442695
        %v5160 = vpow.pop %v5159
        %v5161 = vmul.f32 %v4447, 1.442695
        %v5162 = vpow.pop %v5161
        %v5163 = vmul.f32 %v4448, 1.442695
        %v5164 = vpow.pop %v5163
        %v5165 = vmul.f32 %v4449, 1.442695
        %v5166 = vpow.pop %v5165
        %v5167 = vmul.f32 %v4450, 1.442695
        %v5168 = vpow.pop %v5167
        %v5169 = vmul.f32 %v4451, 1.442695
        %v5170 = vpow.pop %v5169
        %v5171 = vmul.f32 %v4452, 1.442695
        %v5172 = vpow.pop %v5171
        %v5173 = vmul.f32 %v4453, 1.442695
        %v5174 = vpow.pop %v5173
        %v5175 = vmul.f32 %v4454, 1.442695
        %v5176 = vpow.pop %v5175
        %v5177 = vmul.f32 %v4455, 1.442695
        %v5178 = vpow.pop %v5177
        %v5179 = vmul.f32 %v4456, 1.442695
        %v5180 = vpow.pop %v5179
        %v5181 = vmul.f32 %v4457, 1.442695
        %v5182 = vpow.pop %v5181
        %v5183 = vmul.f32 %v4458, 1.442695
        %v5184 = vpow.pop %v5183
        %v5185 = vmul.f32 %v4459, 1.442695
        %v5186 = vpow.pop %v5185
        %v5187 = vmul.f32 %v4460, 1.442695
        %v5188 = vpow.pop %v5187
        %v5189 = vmul.f32 %v4461, 1.442695
        %v5190 = vpow.pop %v5189
        %v5191 = vmul.f32 %v4462, 1.442695
        %v5192 = vpow.pop %v5191
        %v5193 = vmul.f32 %v4463, 1.442695
        %v5194 = vpow.pop %v5193
        %v5195 = vmul.f32 %v4464, 1.442695
        %v5196 = vpow.pop %v5195
        %v5197 = vmul.f32 %v4465, 1.442695
        %v5198 = vpow.pop %v5197
        %v5199 = vmul.f32 %v4466, 1.442695
        %v5200 = vpow.pop %v5199
        %v5201 = vmul.f32 %v4467, 1.442695
        %v5202 = vpow.pop %v5201
        %v5203 = vmul.f32 %v4468, 1.442695
        %v5204 = vpow.pop %v5203
        %v5205 = vmul.f32 %v4469, 1.442695
        %v5206 = vpow.pop %v5205
        %v5207 = vmul.f32 %v4470, 1.442695
        %v5208 = vpow.pop %v5207
        %v5209 = vmul.f32 %v4471, 1.442695
        %v5210 = vpow.pop %v5209
        %v5211 = vmul.f32 %v4472, 1.442695
        %v5212 = vpow.pop %v5211
        %v5213 = vmul.f32 %v4473, 1.442695
        %v5214 = vpow.pop %v5213
        %v5215 = vmul.f32 %v4474, 1.442695
        %v5216 = vpow.pop %v5215
        %v5217 = vmul.f32 %v4475, 1.442695
        %v5218 = vpow.pop %v5217
        %v5219 = vmul.f32 %v4476, 1.442695
        %v5220 = vpow.pop %v5219
        %v5221 = vmul.f32 %v4477, 1.442695
        %v5222 = vpow.pop %v5221
        %v5223 = vmul.f32 %v4478, 1.442695
        %v5224 = vpow.pop %v5223
        %v5225 = vmul.f32 %v4479, 1.442695
        %v5226 = vpow.pop %v5225
        %v5227 = vmul.f32 %v4480, 1.442695
        %v5228 = vpow.pop %v5227
        %v5229 = vmul.f32 %v4481, 1.442695
        %v5230 = vpow.pop %v5229
        %v5231 = vmul.f32 %v4482, 1.442695
        %v5232 = vpow.pop %v5231
        %v5233 = vmul.f32 %v4483, 1.442695
        %v5234 = vpow.pop %v5233
        %v5235 = vmul.f32 %v4484, 1.442695
        %v5236 = vpow.pop %v5235
        %v5237 = vmul.f32 %v4485, 1.442695
        %v5238 = vpow.pop %v5237
        %v5239 = vmul.f32 %v4486, 1.442695
        %v5240 = vpow.pop %v5239
        %v5241 = vmul.f32 %v4487, 1.442695
        %v5242 = vpow.pop %v5241
        %v5243 = vmul.f32 %v4488, 1.442695
        %v5244 = vpow.pop %v5243
        %v5245 = vmul.f32 %v4489, 1.442695
        %v5246 = vpow.pop %v5245
        %v5247 = vmul.f32 %v4490, 1.442695
        %v5248 = vpow.pop %v5247
        %v5249 = vmul.f32 %v4491, 1.442695
        %v5250 = vpow.pop %v5249
        %v5251 = vmul.f32 %v4492, 1.442695
        %v5252 = vpow.pop %v5251
        %v5253 = vmul.f32 %v4493, 1.442695
        %v5254 = vpow.pop %v5253
        %v5255 = vmul.f32 %v4494, 1.442695
        %v5256 = vpow.pop %v5255
        %v5257 = vmul.f32 %v4495, 1.442695
        %v5258 = vpow.pop %v5257
        %v5259 = vmul.f32 %v4496, 1.442695
        %v5260 = vpow.pop %v5259
        %v5261 = vmul.f32 %v4497, 1.442695
        %v5262 = vpow.pop %v5261
        %v5263 = vmul.f32 %v4498, 1.442695
        %v5264 = vpow.pop %v5263
        %v5265 = vmul.f32 %v4499, 1.442695
        %v5266 = vpow.pop %v5265
        %v5267 = vmul.f32 %v4500, 1.442695
        %v5268 = vpow.pop %v5267
        %v5269 = vmul.f32 %v4501, 1.442695
        %v5270 = vpow.pop %v5269
        %v5271 = vmul.f32 %v4502, 1.442695
        %v5272 = vpow.pop %v5271
        %v5273 = vmul.f32 %v4503, 1.442695
        %v5274 = vpow.pop %v5273
        %v5275 = vmul.f32 %v4504, 1.442695
        %v5276 = vpow.pop %v5275
        %v5277 = vmul.f32 %v4505, 1.442695
        %v5278 = vpow.pop %v5277
        %v5279 = vmul.f32 %v4506, 1.442695
        %v5280 = vpow.pop %v5279
        %v5281 = vmul.f32 %v4507, 1.442695
        %v5282 = vpow.pop %v5281
        %v5283 = vmul.f32 %v4508, 1.442695
        %v5284 = vpow.pop %v5283
        %v5285 = vmul.f32 %v4509, 1.442695
        %v5286 = vpow.pop %v5285
        %v5287 = vmul.f32 %v4510, 1.442695
        %v5288 = vpow.pop %v5287
        %v5289 = vmul.f32 %v4511, 1.442695
        %v5290 = vpow.pop %v5289
        %v5291 = vmul.f32 %v4512, 1.442695
        %v5292 = vpow.pop %v5291
        %v5293 = vmul.f32 %v4513, 1.442695
        %v5294 = vpow.pop %v5293
        %v5295 = vmul.f32 %v4514, 1.442695
        %v5296 = vpow.pop %v5295
        %v5297 = vmul.f32 %v4515, 1.442695
        %v5298 = vpow.pop %v5297
        %v5299 = vmul.f32 %v4516, 1.442695
        %v5300 = vpow.pop %v5299
        %v5301 = vmul.f32 %v4517, 1.442695
        %v5302 = vpow.pop %v5301
        %v5303 = vmul.f32 %v4518, 1.442695
        %v5304 = vpow.pop %v5303
        %v5305 = vmul.f32 %v4519, 1.442695
        %v5306 = vpow.pop %v5305
        %v5307 = vmul.f32 %v4520, 1.442695
        %v5308 = vpow.pop %v5307
        %v5309 = vmul.f32 %v4521, 1.442695
        %v5310 = vpow.pop %v5309
        %v5311 = vmul.f32 %v4522, 1.442695
        %v5312 = vpow.pop %v5311
        %v5313 = vmul.f32 %v4523, 1.442695
        %v5314 = vpow.pop %v5313
        %v5315 = vmul.f32 %v4524, 1.442695
        %v5316 = vpow.pop %v5315
        %v5317 = vmul.f32 %v4525, 1.442695
        %v5318 = vpow.pop %v5317
        %v5319 = vmul.f32 %v4526, 1.442695
        %v5320 = vpow.pop %v5319
        %v5321 = vmul.f32 %v4527, 1.442695
        %v5322 = vpow.pop %v5321
        %v5323 = vmul.f32 %v4528, 1.442695
        %v5324 = vpow.pop %v5323
        %v5325 = vmul.f32 %v4529, 1.442695
        %v5326 = vpow.pop %v5325
        %v5327 = vmul.f32 %v4530, 1.442695
        %v5328 = vpow.pop %v5327
        %v5329 = vmul.f32 %v4531, 1.442695
        %v5330 = vpow.pop %v5329
        %v5331 = vmul.f32 %v4532, 1.442695
        %v5332 = vpow.pop %v5331
        %v5333 = vmul.f32 %v4533, 1.442695
        %v5334 = vpow.pop %v5333
        %v5335 = vmul.f32 %v4534, 1.442695
        %v5336 = vpow.pop %v5335
        %v5337 = vmul.f32 %v4535, 1.442695
        %v5338 = vpow.pop %v5337
        %v5339 = vmul.f32 %v4536, 1.442695
        %v5340 = vpow.pop %v5339
        %v5341 = vmul.f32 %v4537, 1.442695
        %v5342 = vpow.pop %v5341
        %v5343 = vmul.f32 %v4538, 1.442695
        %v5344 = vpow.pop %v5343
        %v5345 = vmul.f32 %v4539, 1.442695
        %v5346 = vpow.pop %v5345
        %v5347 = vmul.f32 %v4540, 1.442695
        %v5348 = vpow.pop %v5347
        %v5349 = vmul.f32 %v4541, 1.442695
        %v5350 = vpow.pop %v5349
        %v5351 = vmul.f32 %v4542, 1.442695
        %v5352 = vpow.pop %v5351
        %v5353 = vmul.f32 %v4543, 1.442695
        %v5354 = vpow.pop %v5353
        %v5355 = vmul.f32 %v4544, 1.442695
        %v5356 = vpow.pop %v5355
        %v5357 = vmul.f32 %v4545, 1.442695
        %v5358 = vpow.pop %v5357
        %v5359 = vmul.f32 %v4546, 1.442695
        %v5360 = vpow.pop %v5359
        %v5361 = vmul.f32 %v4547, 1.442695
        %v5362 = vpow.pop %v5361
        %v5363 = vmul.f32 %v4548, 1.442695
        %v5364 = vpow.pop %v5363
        %v5365 = vmul.f32 %v4549, 1.442695
        %v5366 = vpow.pop %v5365
        %v5367 = vmul.f32 %v4550, 1.442695
        %v5368 = vpow.pop %v5367
        %v5369 = vmul.f32 %v4551, 1.442695
        %v5370 = vpow.pop %v5369
        %v5371 = vmul.f32 %v4552, 1.442695
        %v5372 = vpow.pop %v5371
        %v5373 = vmul.f32 %v4553, 1.442695
        %v5374 = vpow.pop %v5373
        %v5375 = vmul.f32 %v4554, 1.442695
        %v5376 = vpow.pop %v5375
        %v5377 = vmul.f32 %v4555, 1.442695
        %v5378 = vpow.pop %v5377
        %v5379 = vmul.f32 %v4556, 1.442695
        %v5380 = vpow.pop %v5379
        %v5381 = vmul.f32 %v4557, 1.442695
        %v5382 = vpow.pop %v5381
        %v5383 = vmul.f32 %v4558, 1.442695
        %v5384 = vpow.pop %v5383
        %v5385 = vmul.f32 %v4559, 1.442695
        %v5386 = vpow.pop %v5385
        %v5387 = vmul.f32 %v4560, 1.442695
        %v5388 = vpow.pop %v5387
        %v5389 = vmul.f32 %v4561, 1.442695
        %v5390 = vpow.pop %v5389
        %v5391 = vmul.f32 %v4562, 1.442695
        %v5392 = vpow.pop %v5391
        %v5393 = vmul.f32 %v4563, 1.442695
        %v5394 = vpow.pop %v5393
        %v5395 = vmul.f32 %v4564, 1.442695
        %v5396 = vpow.pop %v5395
        %v5397 = vmul.f32 %v4565, 1.442695
        %v5398 = vpow.pop %v5397
        %v5399 = vmul.f32 %v4566, 1.442695
        %v5400 = vpow.pop %v5399
        %v5401 = vmul.f32 %v4567, 1.442695
        %v5402 = vpow.pop %v5401
        %v5403 = vmul.f32 %v4568, 1.442695
        %v5404 = vpow.pop %v5403
        %v5405 = vmul.f32 %v4569, 1.442695
        %v5406 = vpow.pop %v5405
        %v5407 = vmul.f32 %v4570, 1.442695
        %v5408 = vpow.pop %v5407
        %v5409 = vmul.f32 %v4571, 1.442695
        %v5410 = vpow.pop %v5409
        %v5411 = vmul.f32 %v4572, 1.442695
        %v5412 = vpow.pop %v5411
        %v5413 = vmul.f32 %v4573, 1.442695
        %v5414 = vpow.pop %v5413
        %v5415 = vmul.f32 %v4574, 1.442695
        %v5416 = vpow.pop %v5415
        %v5417 = vmul.f32 %v4575, 1.442695
        %v5418 = vpow.pop %v5417
        %v5419 = vmul.f32 %v4576, 1.442695
        %v5420 = vpow.pop %v5419
        %v5421 = vmul.f32 %v4577, 1.442695
        %v5422 = vpow.pop %v5421
        %v5423 = vmul.f32 %v4578, 1.442695
        %v5424 = vpow.pop %v5423
        %v5425 = vmul.f32 %v4579, 1.442695
        %v5426 = vpow.pop %v5425
        %v5427 = vmul.f32 %v4580, 1.442695
        %v5428 = vpow.pop %v5427
        %v5429 = vmul.f32 %v4581, 1.442695
        %v5430 = vpow.pop %v5429
        %v5431 = vmul.f32 %v4582, 1.442695
        %v5432 = vpow.pop %v5431
        %v5433 = vmul.f32 %v4583, 1.442695
        %v5434 = vpow.pop %v5433
        %v5435 = vmul.f32 %v4584, 1.442695
        %v5436 = vpow.pop %v5435
        %v5437 = vmul.f32 %v4585, 1.442695
        %v5438 = vpow.pop %v5437
        %v5439 = vmul.f32 %v4586, 1.442695
        %v5440 = vpow.pop %v5439
        %v5441 = vmul.f32 %v4587, 1.442695
        %v5442 = vpow.pop %v5441
        %v5443 = vmul.f32 %v4588, 1.442695
        %v5444 = vpow.pop %v5443
        %v5445 = vmul.f32 %v4589, 1.442695
        %v5446 = vpow.pop %v5445
        %v5447 = vmul.f32 %v4590, 1.442695
        %v5448 = vpow.pop %v5447
        %v5449 = vmul.f32 %v4591, 1.442695
        %v5450 = vpow.pop %v5449
        %v5451 = vmul.f32 %v4592, 1.442695
        %v5452 = vpow.pop %v5451
        %v5453 = vmul.f32 %v4593, 1.442695
        %v5454 = vpow.pop %v5453
        %v5455 = vmul.f32 %v4594, 1.442695
        %v5456 = vpow.pop %v5455
        %v5457 = vmul.f32 %v4595, 1.442695
        %v5458 = vpow.pop %v5457
        %v5459 = vmul.f32 %v4596, 1.442695
        %v5460 = vpow.pop %v5459
        %v5461 = vmul.f32 %v4597, 1.442695
        %v5462 = vpow.pop %v5461
        %v5463 = vmul.f32 %v4598, 1.442695
        %v5464 = vpow.pop %v5463
        %v5465 = vmul.f32 %v4599, 1.442695
        %v5466 = vpow.pop %v5465
        %v5467 = vmul.f32 %v4600, 1.442695
        %v5468 = vpow.pop %v5467
        %v5469 = vmul.f32 %v4601, 1.442695
        %v5470 = vpow.pop %v5469
        %v5471 = vmul.f32 %v4602, 1.442695
        %v5472 = vpow.pop %v5471
        %v5473 = vmul.f32 %v4603, 1.442695
        %v5474 = vpow.pop %v5473
        %v5475 = vmul.f32 %v4604, 1.442695
        %v5476 = vpow.pop %v5475
        %v5477 = vmul.f32 %v4605, 1.442695
        %v5478 = vpow.pop %v5477
        %v5479 = vmul.f32 %v4606, 1.442695
        %v5480 = vpow.pop %v5479
        %v5481 = vmul.f32 %v4607, 1.442695
        %v5482 = vpow.pop %v5481
        %v5483 = vmul.f32 %v4608, 1.442695
        %v5484 = vpow.pop %v5483
        %v5485 = vmul.f32 %v4609, 1.442695
        %v5486 = vpow.pop %v5485
        %v5487 = vmul.f32 %v4610, 1.442695
        %v5488 = vpow.pop %v5487
        %v5489 = vmul.f32 %v4611, 1.442695
        %v5490 = vpow.pop %v5489
        %v5491 = vmul.f32 %v4612, 1.442695
        %v5492 = vpow.pop %v5491
        %v5493 = vmul.f32 %v4613, 1.442695
        %v5494 = vpow.pop %v5493
        %v5495 = vmul.f32 %v4614, 1.442695
        %v5496 = vpow.pop %v5495
        %v5497 = vmul.f32 %v4615, 1.442695
        %v5498 = vpow.pop %v5497
        %v5499 = vmul.f32 %v4616, 1.442695
        %v5500 = vpow.pop %v5499
        %v5501 = vmul.f32 %v4617, 1.442695
        %v5502 = vpow.pop %v5501
        %v5503 = vmul.f32 %v4618, 1.442695
        %v5504 = vpow.pop %v5503
        %v5505 = vmul.f32 %v4619, 1.442695
        %v5506 = vpow.pop %v5505
        %v5507 = vmul.f32 %v4620, 1.442695
        %v5508 = vpow.pop %v5507
        %v5509 = vmul.f32 %v4621, 1.442695
        %v5510 = vpow.pop %v5509
        %v5511 = vmul.f32 %v4622, 1.442695
        %v5512 = vpow.pop %v5511
        %v5513 = vmul.f32 %v4623, 1.442695
        %v5514 = vpow.pop %v5513
        %v5515 = vmul.f32 %v4624, 1.442695
        %v5516 = vpow.pop %v5515
        %v5517 = vmul.f32 %v4625, 1.442695
        %v5518 = vpow.pop %v5517
        %v5519 = vmul.f32 %v4626, 1.442695
        %v5520 = vpow.pop %v5519
        %v5521 = vmul.f32 %v4627, 1.442695
        %v5522 = vpow.pop %v5521
        %v5523 = vmul.f32 %v4628, 1.442695
        %v5524 = vpow.pop %v5523
        %v5525 = vadd.f32 %v4630, 1.0
        %v5526 = vadd.f32 %v4632, 1.0
        %v5527 = vadd.f32 %v4634, 1.0
        %v5528 = vadd.f32 %v4636, 1.0
        %v5529 = vadd.f32 %v4638, 1.0
        %v5530 = vadd.f32 %v4640, 1.0
        %v5531 = vadd.f32 %v4642, 1.0
        %v5532 = vadd.f32 %v4644, 1.0
        %v5533 = vadd.f32 %v4646, 1.0
        %v5534 = vadd.f32 %v4648, 1.0
        %v5535 = vadd.f32 %v4650, 1.0
        %v5536 = vadd.f32 %v4652, 1.0
        %v5537 = vadd.f32 %v4654, 1.0
        %v5538 = vadd.f32 %v4656, 1.0
        %v5539 = vadd.f32 %v4658, 1.0
        %v5540 = vadd.f32 %v4660, 1.0
        %v5541 = vadd.f32 %v4662, 1.0
        %v5542 = vadd.f32 %v4664, 1.0
        %v5543 = vadd.f32 %v4666, 1.0
        %v5544 = vadd.f32 %v4668, 1.0
        %v5545 = vadd.f32 %v4670, 1.0
        %v5546 = vadd.f32 %v4672, 1.0
        %v5547 = vadd.f32 %v4674, 1.0
        %v5548 = vadd.f32 %v4676, 1.0
        %v5549 = vadd.f32 %v4678, 1.0
        %v5550 = vadd.f32 %v4680, 1.0
        %v5551 = vadd.f32 %v4682, 1.0
        %v5552 = vadd.f32 %v4684, 1.0
        %v5553 = vadd.f32 %v4686, 1.0
        %v5554 = vadd.f32 %v4688, 1.0
        %v5555 = vadd.f32 %v4690, 1.0
        %v5556 = vadd.f32 %v4692, 1.0
        %v5557 = vadd.f32 %v4694, 1.0
        %v5558 = vadd.f32 %v4696, 1.0
        %v5559 = vadd.f32 %v4698, 1.0
        %v5560 = vadd.f32 %v4700, 1.0
        %v5561 = vadd.f32 %v4702, 1.0
        %v5562 = vadd.f32 %v4704, 1.0
        %v5563 = vadd.f32 %v4706, 1.0
        %v5564 = vadd.f32 %v4708, 1.0
        %v5565 = vadd.f32 %v4710, 1.0
        %v5566 = vadd.f32 %v4712, 1.0
        %v5567 = vadd.f32 %v4714, 1.0
        %v5568 = vadd.f32 %v4716, 1.0
        %v5569 = vadd.f32 %v4718, 1.0
        %v5570 = vadd.f32 %v4720, 1.0
        %v5571 = vadd.f32 %v4722, 1.0
        %v5572 = vadd.f32 %v4724, 1.0
        %v5573 = vadd.f32 %v4726, 1.0
        %v5574 = vadd.f32 %v4728, 1.0
        %v5575 = vadd.f32 %v4730, 1.0
        %v5576 = vadd.f32 %v4732, 1.0
        %v5577 = vadd.f32 %v4734, 1.0
        %v5578 = vadd.f32 %v4736, 1.0
        %v5579 = vadd.f32 %v4738, 1.0
        %v5580 = vadd.f32 %v4740, 1.0
        %v5581 = vadd.f32 %v4742, 1.0
        %v5582 = vadd.f32 %v4744, 1.0
        %v5583 = vadd.f32 %v4746, 1.0
        %v5584 = vadd.f32 %v4748, 1.0
        %v5585 = vadd.f32 %v4750, 1.0
        %v5586 = vadd.f32 %v4752, 1.0
        %v5587 = vadd.f32 %v4754, 1.0
        %v5588 = vadd.f32 %v4756, 1.0
        %v5589 = vadd.f32 %v4758, 1.0
        %v5590 = vadd.f32 %v4760, 1.0
        %v5591 = vadd.f32 %v4762, 1.0
        %v5592 = vadd.f32 %v4764, 1.0
        %v5593 = vadd.f32 %v4766, 1.0
        %v5594 = vadd.f32 %v4768, 1.0
        %v5595 = vadd.f32 %v4770, 1.0
        %v5596 = vadd.f32 %v4772, 1.0
        %v5597 = vadd.f32 %v4774, 1.0
        %v5598 = vadd.f32 %v4776, 1.0
        %v5599 = vadd.f32 %v4778, 1.0
        %v5600 = vadd.f32 %v4780, 1.0
        %v5601 = vadd.f32 %v4782, 1.0
        %v5602 = vadd.f32 %v4784, 1.0
        %v5603 = vadd.f32 %v4786, 1.0
        %v5604 = vadd.f32 %v4788, 1.0
        %v5605 = vadd.f32 %v4790, 1.0
        %v5606 = vadd.f32 %v4792, 1.0
        %v5607 = vadd.f32 %v4794, 1.0
        %v5608 = vadd.f32 %v4796, 1.0
        %v5609 = vadd.f32 %v4798, 1.0
        %v5610 = vadd.f32 %v4800, 1.0
        %v5611 = vadd.f32 %v4802, 1.0
        %v5612 = vadd.f32 %v4804, 1.0
        %v5613 = vadd.f32 %v4806, 1.0
        %v5614 = vadd.f32 %v4808, 1.0
        %v5615 = vadd.f32 %v4810, 1.0
        %v5616 = vadd.f32 %v4812, 1.0
        %v5617 = vadd.f32 %v4814, 1.0
        %v5618 = vadd.f32 %v4816, 1.0
        %v5619 = vadd.f32 %v4818, 1.0
        %v5620 = vadd.f32 %v4820, 1.0
        %v5621 = vadd.f32 %v4822, 1.0
        %v5622 = vadd.f32 %v4824, 1.0
        %v5623 = vadd.f32 %v4826, 1.0
        %v5624 = vadd.f32 %v4828, 1.0
        %v5625 = vadd.f32 %v4830, 1.0
        %v5626 = vadd.f32 %v4832, 1.0
        %v5627 = vadd.f32 %v4834, 1.0
        %v5628 = vadd.f32 %v4836, 1.0
        %v5629 = vadd.f32 %v4838, 1.0
        %v5630 = vadd.f32 %v4840, 1.0
        %v5631 = vadd.f32 %v4842, 1.0
        %v5632 = vadd.f32 %v4844, 1.0
        %v5633 = vadd.f32 %v4846, 1.0
        %v5634 = vadd.f32 %v4848, 1.0
        %v5635 = vadd.f32 %v4850, 1.0
        %v5636 = vadd.f32 %v4852, 1.0
        %v5637 = vadd.f32 %v4854, 1.0
        %v5638 = vadd.f32 %v4856, 1.0
        %v5639 = vadd.f32 %v4858, 1.0
        %v5640 = vadd.f32 %v4860, 1.0
        %v5641 = vadd.f32 %v4862, 1.0
        %v5642 = vadd.f32 %v4864, 1.0
        %v5643 = vadd.f32 %v4866, 1.0
        %v5644 = vadd.f32 %v4868, 1.0
        %v5645 = vadd.f32 %v4870, 1.0
        %v5646 = vadd.f32 %v4872, 1.0
        %v5647 = vadd.f32 %v4874, 1.0
        %v5648 = vadd.f32 %v4876, 1.0
        %v5649 = vadd.f32 %v4878, 1.0
        %v5650 = vadd.f32 %v4880, 1.0
        %v5651 = vadd.f32 %v4882, 1.0
        %v5652 = vadd.f32 %v4884, 1.0
        %v5653 = vadd.f32 %v4886, 1.0
        %v5654 = vadd.f32 %v4888, 1.0
        %v5655 = vadd.f32 %v4890, 1.0
        %v5656 = vadd.f32 %v4892, 1.0
        %v5657 = vadd.f32 %v4894, 1.0
        %v5658 = vadd.f32 %v4896, 1.0
        %v5659 = vadd.f32 %v4898, 1.0
        %v5660 = vadd.f32 %v4900, 1.0
        %v5661 = vadd.f32 %v4902, 1.0
        %v5662 = vadd.f32 %v4904, 1.0
        %v5663 = vadd.f32 %v4906, 1.0
        %v5664 = vadd.f32 %v4908, 1.0
        %v5665 = vadd.f32 %v4910, 1.0
        %v5666 = vadd.f32 %v4912, 1.0
        %v5667 = vadd.f32 %v4914, 1.0
        %v5668 = vadd.f32 %v4916, 1.0
        %v5669 = vadd.f32 %v4918, 1.0
        %v5670 = vadd.f32 %v4920, 1.0
        %v5671 = vadd.f32 %v4922, 1.0
        %v5672 = vadd.f32 %v4924, 1.0
        %v5673 = vadd.f32 %v4926, 1.0
        %v5674 = vadd.f32 %v4928, 1.0
        %v5675 = vadd.f32 %v4930, 1.0
        %v5676 = vadd.f32 %v4932, 1.0
        %v5677 = vadd.f32 %v4934, 1.0
        %v5678 = vadd.f32 %v4936, 1.0
        %v5679 = vadd.f32 %v4938, 1.0
        %v5680 = vadd.f32 %v4940, 1.0
        %v5681 = vadd.f32 %v4942, 1.0
        %v5682 = vadd.f32 %v4944, 1.0
        %v5683 = vadd.f32 %v4946, 1.0
        %v5684 = vadd.f32 %v4948, 1.0
        %v5685 = vadd.f32 %v4950, 1.0
        %v5686 = vadd.f32 %v4952, 1.0
        %v5687 = vadd.f32 %v4954, 1.0
        %v5688 = vadd.f32 %v4956, 1.0
        %v5689 = vadd.f32 %v4958, 1.0
        %v5690 = vadd.f32 %v4960, 1.0
        %v5691 = vadd.f32 %v4962, 1.0
        %v5692 = vadd.f32 %v4964, 1.0
        %v5693 = vadd.f32 %v4966, 1.0
        %v5694 = vadd.f32 %v4968, 1.0
        %v5695 = vadd.f32 %v4970, 1.0
        %v5696 = vadd.f32 %v4972, 1.0
        %v5697 = vadd.f32 %v4974, 1.0
        %v5698 = vadd.f32 %v4976, 1.0
        %v5699 = vadd.f32 %v4978, 1.0
        %v5700 = vadd.f32 %v4980, 1.0
        %v5701 = vadd.f32 %v4982, 1.0
        %v5702 = vadd.f32 %v4984, 1.0
        %v5703 = vadd.f32 %v4986, 1.0
        %v5704 = vadd.f32 %v4988, 1.0
        %v5705 = vadd.f32 %v4990, 1.0
        %v5706 = vadd.f32 %v4992, 1.0
        %v5707 = vadd.f32 %v4994, 1.0
        %v5708 = vadd.f32 %v4996, 1.0
        %v5709 = vadd.f32 %v4998, 1.0
        %v5710 = vadd.f32 %v5000, 1.0
        %v5711 = vadd.f32 %v5002, 1.0
        %v5712 = vadd.f32 %v5004, 1.0
        %v5713 = vadd.f32 %v5006, 1.0
        %v5714 = vadd.f32 %v5008, 1.0
        %v5715 = vadd.f32 %v5010, 1.0
        %v5716 = vadd.f32 %v5012, 1.0
        %v5717 = vadd.f32 %v5014, 1.0
        %v5718 = vadd.f32 %v5016, 1.0
        %v5719 = vadd.f32 %v5018, 1.0
        %v5720 = vadd.f32 %v5020, 1.0
        %v5721 = vadd.f32 %v5022, 1.0
        %v5722 = vadd.f32 %v5024, 1.0
        %v5723 = vadd.f32 %v5026, 1.0
        %v5724 = vadd.f32 %v5028, 1.0
        %v5725 = vadd.f32 %v5030, 1.0
        %v5726 = vadd.f32 %v5032, 1.0
        %v5727 = vadd.f32 %v5034, 1.0
        %v5728 = vadd.f32 %v5036, 1.0
        %v5729 = vadd.f32 %v5038, 1.0
        %v5730 = vadd.f32 %v5040, 1.0
        %v5731 = vadd.f32 %v5042, 1.0
        %v5732 = vadd.f32 %v5044, 1.0
        %v5733 = vadd.f32 %v5046, 1.0
        %v5734 = vadd.f32 %v5048, 1.0
        %v5735 = vadd.f32 %v5050, 1.0
        %v5736 = vadd.f32 %v5052, 1.0
        %v5737 = vadd.f32 %v5054, 1.0
        %v5738 = vadd.f32 %v5056, 1.0
        %v5739 = vadd.f32 %v5058, 1.0
        %v5740 = vadd.f32 %v5060, 1.0
        %v5741 = vadd.f32 %v5062, 1.0
        %v5742 = vadd.f32 %v5064, 1.0
        %v5743 = vadd.f32 %v5066, 1.0
        %v5744 = vadd.f32 %v5068, 1.0
        %v5745 = vadd.f32 %v5070, 1.0
        %v5746 = vadd.f32 %v5072, 1.0
        %v5747 = vadd.f32 %v5074, 1.0
        %v5748 = vadd.f32 %v5076, 1.0
        %v5749 = vadd.f32 %v5078, 1.0
        %v5750 = vadd.f32 %v5080, 1.0
        %v5751 = vadd.f32 %v5082, 1.0
        %v5752 = vadd.f32 %v5084, 1.0
        %v5753 = vadd.f32 %v5086, 1.0
        %v5754 = vadd.f32 %v5088, 1.0
        %v5755 = vadd.f32 %v5090, 1.0
        %v5756 = vadd.f32 %v5092, 1.0
        %v5757 = vadd.f32 %v5094, 1.0
        %v5758 = vadd.f32 %v5096, 1.0
        %v5759 = vadd.f32 %v5098, 1.0
        %v5760 = vadd.f32 %v5100, 1.0
        %v5761 = vadd.f32 %v5102, 1.0
        %v5762 = vadd.f32 %v5104, 1.0
        %v5763 = vadd.f32 %v5106, 1.0
        %v5764 = vadd.f32 %v5108, 1.0
        %v5765 = vadd.f32 %v5110, 1.0
        %v5766 = vadd.f32 %v5112, 1.0
        %v5767 = vadd.f32 %v5114, 1.0
        %v5768 = vadd.f32 %v5116, 1.0
        %v5769 = vadd.f32 %v5118, 1.0
        %v5770 = vadd.f32 %v5120, 1.0
        %v5771 = vadd.f32 %v5122, 1.0
        %v5772 = vadd.f32 %v5124, 1.0
        %v5773 = vadd.f32 %v5126, 1.0
        %v5774 = vadd.f32 %v5128, 1.0
        %v5775 = vadd.f32 %v5130, 1.0
        %v5776 = vadd.f32 %v5132, 1.0
        %v5777 = vadd.f32 %v5134, 1.0
        %v5778 = vadd.f32 %v5136, 1.0
        %v5779 = vadd.f32 %v5138, 1.0
        %v5780 = vadd.f32 %v5140, 1.0
        %v5781 = vadd.f32 %v5142, 1.0
        %v5782 = vadd.f32 %v5144, 1.0
        %v5783 = vadd.f32 %v5146, 1.0
        %v5784 = vadd.f32 %v5148, 1.0
        %v5785 = vadd.f32 %v5150, 1.0
        %v5786 = vadd.f32 %v5152, 1.0
        %v5787 = vadd.f32 %v5154, 1.0
        %v5788 = vadd.f32 %v5156, 1.0
        %v5789 = vadd.f32 %v5158, 1.0
        %v5790 = vadd.f32 %v5160, 1.0
        %v5791 = vadd.f32 %v5162, 1.0
        %v5792 = vadd.f32 %v5164, 1.0
        %v5793 = vadd.f32 %v5166, 1.0
        %v5794 = vadd.f32 %v5168, 1.0
        %v5795 = vadd.f32 %v5170, 1.0
        %v5796 = vadd.f32 %v5172, 1.0
        %v5797 = vadd.f32 %v5174, 1.0
        %v5798 = vadd.f32 %v5176, 1.0
        %v5799 = vadd.f32 %v5178, 1.0
        %v5800 = vadd.f32 %v5180, 1.0
        %v5801 = vadd.f32 %v5182, 1.0
        %v5802 = vadd.f32 %v5184, 1.0
        %v5803 = vadd.f32 %v5186, 1.0
        %v5804 = vadd.f32 %v5188, 1.0
        %v5805 = vadd.f32 %v5190, 1.0
        %v5806 = vadd.f32 %v5192, 1.0
        %v5807 = vadd.f32 %v5194, 1.0
        %v5808 = vadd.f32 %v5196, 1.0
        %v5809 = vadd.f32 %v5198, 1.0
        %v5810 = vadd.f32 %v5200, 1.0
        %v5811 = vadd.f32 %v5202, 1.0
        %v5812 = vadd.f32 %v5204, 1.0
        %v5813 = vadd.f32 %v5206, 1.0
        %v5814 = vadd.f32 %v5208, 1.0
        %v5815 = vadd.f32 %v5210, 1.0
        %v5816 = vadd.f32 %v5212, 1.0
        %v5817 = vadd.f32 %v5214, 1.0
        %v5818 = vadd.f32 %v5216, 1.0
        %v5819 = vadd.f32 %v5218, 1.0
        %v5820 = vadd.f32 %v5220, 1.0
        %v5821 = vadd.f32 %v5222, 1.0
        %v5822 = vadd.f32 %v5224, 1.0
        %v5823 = vadd.f32 %v5226, 1.0
        %v5824 = vadd.f32 %v5228, 1.0
        %v5825 = vadd.f32 %v5230, 1.0
        %v5826 = vadd.f32 %v5232, 1.0
        %v5827 = vadd.f32 %v5234, 1.0
        %v5828 = vadd.f32 %v5236, 1.0
        %v5829 = vadd.f32 %v5238, 1.0
        %v5830 = vadd.f32 %v5240, 1.0
        %v5831 = vadd.f32 %v5242, 1.0
        %v5832 = vadd.f32 %v5244, 1.0
        %v5833 = vadd.f32 %v5246, 1.0
        %v5834 = vadd.f32 %v5248, 1.0
        %v5835 = vadd.f32 %v5250, 1.0
        %v5836 = vadd.f32 %v5252, 1.0
        %v5837 = vadd.f32 %v5254, 1.0
        %v5838 = vadd.f32 %v5256, 1.0
        %v5839 = vadd.f32 %v5258, 1.0
        %v5840 = vadd.f32 %v5260, 1.0
        %v5841 = vadd.f32 %v5262, 1.0
        %v5842 = vadd.f32 %v5264, 1.0
        %v5843 = vadd.f32 %v5266, 1.0
        %v5844 = vadd.f32 %v5268, 1.0
        %v5845 = vadd.f32 %v5270, 1.0
        %v5846 = vadd.f32 %v5272, 1.0
        %v5847 = vadd.f32 %v5274, 1.0
        %v5848 = vadd.f32 %v5276, 1.0
        %v5849 = vadd.f32 %v5278, 1.0
        %v5850 = vadd.f32 %v5280, 1.0
        %v5851 = vadd.f32 %v5282, 1.0
        %v5852 = vadd.f32 %v5284, 1.0
        %v5853 = vadd.f32 %v5286, 1.0
        %v5854 = vadd.f32 %v5288, 1.0
        %v5855 = vadd.f32 %v5290, 1.0
        %v5856 = vadd.f32 %v5292, 1.0
        %v5857 = vadd.f32 %v5294, 1.0
        %v5858 = vadd.f32 %v5296, 1.0
        %v5859 = vadd.f32 %v5298, 1.0
        %v5860 = vadd.f32 %v5300, 1.0
        %v5861 = vadd.f32 %v5302, 1.0
        %v5862 = vadd.f32 %v5304, 1.0
        %v5863 = vadd.f32 %v5306, 1.0
        %v5864 = vadd.f32 %v5308, 1.0
        %v5865 = vadd.f32 %v5310, 1.0
        %v5866 = vadd.f32 %v5312, 1.0
        %v5867 = vadd.f32 %v5314, 1.0
        %v5868 = vadd.f32 %v5316, 1.0
        %v5869 = vadd.f32 %v5318, 1.0
        %v5870 = vadd.f32 %v5320, 1.0
        %v5871 = vadd.f32 %v5322, 1.0
        %v5872 = vadd.f32 %v5324, 1.0
        %v5873 = vadd.f32 %v5326, 1.0
        %v5874 = vadd.f32 %v5328, 1.0
        %v5875 = vadd.f32 %v5330, 1.0
        %v5876 = vadd.f32 %v5332, 1.0
        %v5877 = vadd.f32 %v5334, 1.0
        %v5878 = vadd.f32 %v5336, 1.0
        %v5879 = vadd.f32 %v5338, 1.0
        %v5880 = vadd.f32 %v5340, 1.0
        %v5881 = vadd.f32 %v5342, 1.0
        %v5882 = vadd.f32 %v5344, 1.0
        %v5883 = vadd.f32 %v5346, 1.0
        %v5884 = vadd.f32 %v5348, 1.0
        %v5885 = vadd.f32 %v5350, 1.0
        %v5886 = vadd.f32 %v5352, 1.0
        %v5887 = vadd.f32 %v5354, 1.0
        %v5888 = vadd.f32 %v5356, 1.0
        %v5889 = vadd.f32 %v5358, 1.0
        %v5890 = vadd.f32 %v5360, 1.0
        %v5891 = vadd.f32 %v5362, 1.0
        %v5892 = vadd.f32 %v5364, 1.0
        %v5893 = vadd.f32 %v5366, 1.0
        %v5894 = vadd.f32 %v5368, 1.0
        %v5895 = vadd.f32 %v5370, 1.0
        %v5896 = vadd.f32 %v5372, 1.0
        %v5897 = vadd.f32 %v5374, 1.0
        %v5898 = vadd.f32 %v5376, 1.0
        %v5899 = vadd.f32 %v5378, 1.0
        %v5900 = vadd.f32 %v5380, 1.0
        %v5901 = vadd.f32 %v5382, 1.0
        %v5902 = vadd.f32 %v5384, 1.0
        %v5903 = vadd.f32 %v5386, 1.0
        %v5904 = vadd.f32 %v5388, 1.0
        %v5905 = vadd.f32 %v5390, 1.0
        %v5906 = vadd.f32 %v5392, 1.0
        %v5907 = vadd.f32 %v5394, 1.0
        %v5908 = vadd.f32 %v5396, 1.0
        %v5909 = vadd.f32 %v5398, 1.0
        %v5910 = vadd.f32 %v5400, 1.0
        %v5911 = vadd.f32 %v5402, 1.0
        %v5912 = vadd.f32 %v5404, 1.0
        %v5913 = vadd.f32 %v5406, 1.0
        %v5914 = vadd.f32 %v5408, 1.0
        %v5915 = vadd.f32 %v5410, 1.0
        %v5916 = vadd.f32 %v5412, 1.0
        %v5917 = vadd.f32 %v5414, 1.0
        %v5918 = vadd.f32 %v5416, 1.0
        %v5919 = vadd.f32 %v5418, 1.0
        %v5920 = vadd.f32 %v5420, 1.0
        %v5921 = vadd.f32 %v5422, 1.0
        %v5922 = vadd.f32 %v5424, 1.0
        %v5923 = vadd.f32 %v5426, 1.0
        %v5924 = vadd.f32 %v5428, 1.0
        %v5925 = vadd.f32 %v5430, 1.0
        %v5926 = vadd.f32 %v5432, 1.0
        %v5927 = vadd.f32 %v5434, 1.0
        %v5928 = vadd.f32 %v5436, 1.0
        %v5929 = vadd.f32 %v5438, 1.0
        %v5930 = vadd.f32 %v5440, 1.0
        %v5931 = vadd.f32 %v5442, 1.0
        %v5932 = vadd.f32 %v5444, 1.0
        %v5933 = vadd.f32 %v5446, 1.0
        %v5934 = vadd.f32 %v5448, 1.0
        %v5935 = vadd.f32 %v5450, 1.0
        %v5936 = vadd.f32 %v5452, 1.0
        %v5937 = vadd.f32 %v5454, 1.0
        %v5938 = vadd.f32 %v5456, 1.0
        %v5939 = vadd.f32 %v5458, 1.0
        %v5940 = vadd.f32 %v5460, 1.0
        %v5941 = vadd.f32 %v5462, 1.0
        %v5942 = vadd.f32 %v5464, 1.0
        %v5943 = vadd.f32 %v5466, 1.0
        %v5944 = vadd.f32 %v5468, 1.0
        %v5945 = vadd.f32 %v5470, 1.0
        %v5946 = vadd.f32 %v5472, 1.0
        %v5947 = vadd.f32 %v5474, 1.0
        %v5948 = vadd.f32 %v5476, 1.0
        %v5949 = vadd.f32 %v5478, 1.0
        %v5950 = vadd.f32 %v5480, 1.0
        %v5951 = vadd.f32 %v5482, 1.0
        %v5952 = vadd.f32 %v5484, 1.0
        %v5953 = vadd.f32 %v5486, 1.0
        %v5954 = vadd.f32 %v5488, 1.0
        %v5955 = vadd.f32 %v5490, 1.0
        %v5956 = vadd.f32 %v5492, 1.0
        %v5957 = vadd.f32 %v5494, 1.0
        %v5958 = vadd.f32 %v5496, 1.0
        %v5959 = vadd.f32 %v5498, 1.0
        %v5960 = vadd.f32 %v5500, 1.0
        %v5961 = vadd.f32 %v5502, 1.0
        %v5962 = vadd.f32 %v5504, 1.0
        %v5963 = vadd.f32 %v5506, 1.0
        %v5964 = vadd.f32 %v5508, 1.0
        %v5965 = vadd.f32 %v5510, 1.0
        %v5966 = vadd.f32 %v5512, 1.0
        %v5967 = vadd.f32 %v5514, 1.0
        %v5968 = vadd.f32 %v5516, 1.0
        %v5969 = vadd.f32 %v5518, 1.0
        %v5970 = vadd.f32 %v5520, 1.0
        %v5971 = vadd.f32 %v5522, 1.0
        %v5972 = vadd.f32 %v5524, 1.0
        %v5973 = vrcp.pop %v5525
        %v5974 = vrcp.pop %v5526
        %v5975 = vrcp.pop %v5527
        %v5976 = vrcp.pop %v5528
        %v5977 = vrcp.pop %v5529
        %v5978 = vrcp.pop %v5530
        %v5979 = vrcp.pop %v5531
        %v5980 = vrcp.pop %v5532
        %v5981 = vrcp.pop %v5533
        %v5982 = vrcp.pop %v5534
        %v5983 = vrcp.pop %v5535
        %v5984 = vrcp.pop %v5536
        %v5985 = vrcp.pop %v5537
        %v5986 = vrcp.pop %v5538
        %v5987 = vrcp.pop %v5539
        %v5988 = vrcp.pop %v5540
        %v5989 = vrcp.pop %v5541
        %v5990 = vrcp.pop %v5542
        %v5991 = vrcp.pop %v5543
        %v5992 = vrcp.pop %v5544
        %v5993 = vrcp.pop %v5545
        %v5994 = vrcp.pop %v5546
        %v5995 = vrcp.pop %v5547
        %v5996 = vrcp.pop %v5548
        %v5997 = vrcp.pop %v5549
        %v5998 = vrcp.pop %v5550
        %v5999 = vrcp.pop %v5551
        %v6000 = vrcp.pop %v5552
        %v6001 = vrcp.pop %v5553
        %v6002 = vrcp.pop %v5554
        %v6003 = vrcp.pop %v5555
        %v6004 = vrcp.pop %v5556
        %v6005 = vrcp.pop %v5557
        %v6006 = vrcp.pop %v5558
        %v6007 = vrcp.pop %v5559
        %v6008 = vrcp.pop %v5560
        %v6009 = vrcp.pop %v5561
        %v6010 = vrcp.pop %v5562
        %v6011 = vrcp.pop %v5563
        %v6012 = vrcp.pop %v5564
        %v6013 = vrcp.pop %v5565
        %v6014 = vrcp.pop %v5566
        %v6015 = vrcp.pop %v5567
        %v6016 = vrcp.pop %v5568
        %v6017 = vrcp.pop %v5569
        %v6018 = vrcp.pop %v5570
        %v6019 = vrcp.pop %v5571
        %v6020 = vrcp.pop %v5572
        %v6021 = vrcp.pop %v5573
        %v6022 = vrcp.pop %v5574
        %v6023 = vrcp.pop %v5575
        %v6024 = vrcp.pop %v5576
        %v6025 = vrcp.pop %v5577
        %v6026 = vrcp.pop %v5578
        %v6027 = vrcp.pop %v5579
        %v6028 = vrcp.pop %v5580
        %v6029 = vrcp.pop %v5581
        %v6030 = vrcp.pop %v5582
        %v6031 = vrcp.pop %v5583
        %v6032 = vrcp.pop %v5584
        %v6033 = vrcp.pop %v5585
        %v6034 = vrcp.pop %v5586
        %v6035 = vrcp.pop %v5587
        %v6036 = vrcp.pop %v5588
        %v6037 = vrcp.pop %v5589
        %v6038 = vrcp.pop %v5590
        %v6039 = vrcp.pop %v5591
        %v6040 = vrcp.pop %v5592
        %v6041 = vrcp.pop %v5593
        %v6042 = vrcp.pop %v5594
        %v6043 = vrcp.pop %v5595
        %v6044 = vrcp.pop %v5596
        %v6045 = vrcp.pop %v5597
        %v6046 = vrcp.pop %v5598
        %v6047 = vrcp.pop %v5599
        %v6048 = vrcp.pop %v5600
        %v6049 = vrcp.pop %v5601
        %v6050 = vrcp.pop %v5602
        %v6051 = vrcp.pop %v5603
        %v6052 = vrcp.pop %v5604
        %v6053 = vrcp.pop %v5605
        %v6054 = vrcp.pop %v5606
        %v6055 = vrcp.pop %v5607
        %v6056 = vrcp.pop %v5608
        %v6057 = vrcp.pop %v5609
        %v6058 = vrcp.pop %v5610
        %v6059 = vrcp.pop %v5611
        %v6060 = vrcp.pop %v5612
        %v6061 = vrcp.pop %v5613
        %v6062 = vrcp.pop %v5614
        %v6063 = vrcp.pop %v5615
        %v6064 = vrcp.pop %v5616
        %v6065 = vrcp.pop %v5617
        %v6066 = vrcp.pop %v5618
        %v6067 = vrcp.pop %v5619
        %v6068 = vrcp.pop %v5620
        %v6069 = vrcp.pop %v5621
        %v6070 = vrcp.pop %v5622
        %v6071 = vrcp.pop %v5623
        %v6072 = vrcp.pop %v5624
        %v6073 = vrcp.pop %v5625
        %v6074 = vrcp.pop %v5626
        %v6075 = vrcp.pop %v5627
        %v6076 = vrcp.pop %v5628
        %v6077 = vrcp.pop %v5629
        %v6078 = vrcp.pop %v5630
        %v6079 = vrcp.pop %v5631
        %v6080 = vrcp.pop %v5632
        %v6081 = vrcp.pop %v5633
        %v6082 = vrcp.pop %v5634
        %v6083 = vrcp.pop %v5635
        %v6084 = vrcp.pop %v5636
        %v6085 = vrcp.pop %v5637
        %v6086 = vrcp.pop %v5638
        %v6087 = vrcp.pop %v5639
        %v6088 = vrcp.pop %v5640
        %v6089 = vrcp.pop %v5641
        %v6090 = vrcp.pop %v5642
        %v6091 = vrcp.pop %v5643
        %v6092 = vrcp.pop %v5644
        %v6093 = vrcp.pop %v5645
        %v6094 = vrcp.pop %v5646
        %v6095 = vrcp.pop %v5647
        %v6096 = vrcp.pop %v5648
        %v6097 = vrcp.pop %v5649
        %v6098 = vrcp.pop %v5650
        %v6099 = vrcp.pop %v5651
        %v6100 = vrcp.pop %v5652
        %v6101 = vrcp.pop %v5653
        %v6102 = vrcp.pop %v5654
        %v6103 = vrcp.pop %v5655
        %v6104 = vrcp.pop %v5656
        %v6105 = vrcp.pop %v5657
        %v6106 = vrcp.pop %v5658
        %v6107 = vrcp.pop %v5659
        %v6108 = vrcp.pop %v5660
        %v6109 = vrcp.pop %v5661
        %v6110 = vrcp.pop %v5662
        %v6111 = vrcp.pop %v5663
        %v6112 = vrcp.pop %v5664
        %v6113 = vrcp.pop %v5665
        %v6114 = vrcp.pop %v5666
        %v6115 = vrcp.pop %v5667
        %v6116 = vrcp.pop %v5668
        %v6117 = vrcp.pop %v5669
        %v6118 = vrcp.pop %v5670
        %v6119 = vrcp.pop %v5671
        %v6120 = vrcp.pop %v5672
        %v6121 = vrcp.pop %v5673
        %v6122 = vrcp.pop %v5674
        %v6123 = vrcp.pop %v5675
        %v6124 = vrcp.pop %v5676
        %v6125 = vrcp.pop %v5677
        %v6126 = vrcp.pop %v5678
        %v6127 = vrcp.pop %v5679
        %v6128 = vrcp.pop %v5680
        %v6129 = vrcp.pop %v5681
        %v6130 = vrcp.pop %v5682
        %v6131 = vrcp.pop %v5683
        %v6132 = vrcp.pop %v5684
        %v6133 = vrcp.pop %v5685
        %v6134 = vrcp.pop %v5686
        %v6135 = vrcp.pop %v5687
        %v6136 = vrcp.pop %v5688
        %v6137 = vrcp.pop %v5689
        %v6138 = vrcp.pop %v5690
        %v6139 = vrcp.pop %v5691
        %v6140 = vrcp.pop %v5692
        %v6141 = vrcp.pop %v5693
        %v6142 = vrcp.pop %v5694
        %v6143 = vrcp.pop %v5695
        %v6144 = vrcp.pop %v5696
        %v6145 = vrcp.pop %v5697
        %v6146 = vrcp.pop %v5698
        %v6147 = vrcp.pop %v5699
        %v6148 = vrcp.pop %v5700
        %v6149 = vrcp.pop %v5701
        %v6150 = vrcp.pop %v5702
        %v6151 = vrcp.pop %v5703
        %v6152 = vrcp.pop %v5704
        %v6153 = vrcp.pop %v5705
        %v6154 = vrcp.pop %v5706
        %v6155 = vrcp.pop %v5707
        %v6156 = vrcp.pop %v5708
        %v6157 = vrcp.pop %v5709
        %v6158 = vrcp.pop %v5710
        %v6159 = vrcp.pop %v5711
        %v6160 = vrcp.pop %v5712
        %v6161 = vrcp.pop %v5713
        %v6162 = vrcp.pop %v5714
        %v6163 = vrcp.pop %v5715
        %v6164 = vrcp.pop %v5716
        %v6165 = vrcp.pop %v5717
        %v6166 = vrcp.pop %v5718
        %v6167 = vrcp.pop %v5719
        %v6168 = vrcp.pop %v5720
        %v6169 = vrcp.pop %v5721
        %v6170 = vrcp.pop %v5722
        %v6171 = vrcp.pop %v5723
        %v6172 = vrcp.pop %v5724
        %v6173 = vrcp.pop %v5725
        %v6174 = vrcp.pop %v5726
        %v6175 = vrcp.pop %v5727
        %v6176 = vrcp.pop %v5728
        %v6177 = vrcp.pop %v5729
        %v6178 = vrcp.pop %v5730
        %v6179 = vrcp.pop %v5731
        %v6180 = vrcp.pop %v5732
        %v6181 = vrcp.pop %v5733
        %v6182 = vrcp.pop %v5734
        %v6183 = vrcp.pop %v5735
        %v6184 = vrcp.pop %v5736
        %v6185 = vrcp.pop %v5737
        %v6186 = vrcp.pop %v5738
        %v6187 = vrcp.pop %v5739
        %v6188 = vrcp.pop %v5740
        %v6189 = vrcp.pop %v5741
        %v6190 = vrcp.pop %v5742
        %v6191 = vrcp.pop %v5743
        %v6192 = vrcp.pop %v5744
        %v6193 = vrcp.pop %v5745
        %v6194 = vrcp.pop %v5746
        %v6195 = vrcp.pop %v5747
        %v6196 = vrcp.pop %v5748
        %v6197 = vrcp.pop %v5749
        %v6198 = vrcp.pop %v5750
        %v6199 = vrcp.pop %v5751
        %v6200 = vrcp.pop %v5752
        %v6201 = vrcp.pop %v5753
        %v6202 = vrcp.pop %v5754
        %v6203 = vrcp.pop %v5755
        %v6204 = vrcp.pop %v5756
        %v6205 = vrcp.pop %v5757
        %v6206 = vrcp.pop %v5758
        %v6207 = vrcp.pop %v5759
        %v6208 = vrcp.pop %v5760
        %v6209 = vrcp.pop %v5761
        %v6210 = vrcp.pop %v5762
        %v6211 = vrcp.pop %v5763
        %v6212 = vrcp.pop %v5764
        %v6213 = vrcp.pop %v5765
        %v6214 = vrcp.pop %v5766
        %v6215 = vrcp.pop %v5767
        %v6216 = vrcp.pop %v5768
        %v6217 = vrcp.pop %v5769
        %v6218 = vrcp.pop %v5770
        %v6219 = vrcp.pop %v5771
        %v6220 = vrcp.pop %v5772
        %v6221 = vrcp.pop %v5773
        %v6222 = vrcp.pop %v5774
        %v6223 = vrcp.pop %v5775
        %v6224 = vrcp.pop %v5776
        %v6225 = vrcp.pop %v5777
        %v6226 = vrcp.pop %v5778
        %v6227 = vrcp.pop %v5779
        %v6228 = vrcp.pop %v5780
        %v6229 = vrcp.pop %v5781
        %v6230 = vrcp.pop %v5782
        %v6231 = vrcp.pop %v5783
        %v6232 = vrcp.pop %v5784
        %v6233 = vrcp.pop %v5785
        %v6234 = vrcp.pop %v5786
        %v6235 = vrcp.pop %v5787
        %v6236 = vrcp.pop %v5788
        %v6237 = vrcp.pop %v5789
        %v6238 = vrcp.pop %v5790
        %v6239 = vrcp.pop %v5791
        %v6240 = vrcp.pop %v5792
        %v6241 = vrcp.pop %v5793
        %v6242 = vrcp.pop %v5794
        %v6243 = vrcp.pop %v5795
        %v6244 = vrcp.pop %v5796
        %v6245 = vrcp.pop %v5797
        %v6246 = vrcp.pop %v5798
        %v6247 = vrcp.pop %v5799
        %v6248 = vrcp.pop %v5800
        %v6249 = vrcp.pop %v5801
        %v6250 = vrcp.pop %v5802
        %v6251 = vrcp.pop %v5803
        %v6252 = vrcp.pop %v5804
        %v6253 = vrcp.pop %v5805
        %v6254 = vrcp.pop %v5806
        %v6255 = vrcp.pop %v5807
        %v6256 = vrcp.pop %v5808
        %v6257 = vrcp.pop %v5809
        %v6258 = vrcp.pop %v5810
        %v6259 = vrcp.pop %v5811
        %v6260 = vrcp.pop %v5812
        %v6261 = vrcp.pop %v5813
        %v6262 = vrcp.pop %v5814
        %v6263 = vrcp.pop %v5815
        %v6264 = vrcp.pop %v5816
        %v6265 = vrcp.pop %v5817
        %v6266 = vrcp.pop %v5818
        %v6267 = vrcp.pop %v5819
        %v6268 = vrcp.pop %v5820
        %v6269 = vrcp.pop %v5821
        %v6270 = vrcp.pop %v5822
        %v6271 = vrcp.pop %v5823
        %v6272 = vrcp.pop %v5824
        %v6273 = vrcp.pop %v5825
        %v6274 = vrcp.pop %v5826
        %v6275 = vrcp.pop %v5827
        %v6276 = vrcp.pop %v5828
        %v6277 = vrcp.pop %v5829
        %v6278 = vrcp.pop %v5830
        %v6279 = vrcp.pop %v5831
        %v6280 = vrcp.pop %v5832
        %v6281 = vrcp.pop %v5833
        %v6282 = vrcp.pop %v5834
        %v6283 = vrcp.pop %v5835
        %v6284 = vrcp.pop %v5836
        %v6285 = vrcp.pop %v5837
        %v6286 = vrcp.pop %v5838
        %v6287 = vrcp.pop %v5839
        %v6288 = vrcp.pop %v5840
        %v6289 = vrcp.pop %v5841
        %v6290 = vrcp.pop %v5842
        %v6291 = vrcp.pop %v5843
        %v6292 = vrcp.pop %v5844
        %v6293 = vrcp.pop %v5845
        %v6294 = vrcp.pop %v5846
        %v6295 = vrcp.pop %v5847
        %v6296 = vrcp.pop %v5848
        %v6297 = vrcp.pop %v5849
        %v6298 = vrcp.pop %v5850
        %v6299 = vrcp.pop %v5851
        %v6300 = vrcp.pop %v5852
        %v6301 = vrcp.pop %v5853
        %v6302 = vrcp.pop %v5854
        %v6303 = vrcp.pop %v5855
        %v6304 = vrcp.pop %v5856
        %v6305 = vrcp.pop %v5857
        %v6306 = vrcp.pop %v5858
        %v6307 = vrcp.pop %v5859
        %v6308 = vrcp.pop %v5860
        %v6309 = vrcp.pop %v5861
        %v6310 = vrcp.pop %v5862
        %v6311 = vrcp.pop %v5863
        %v6312 = vrcp.pop %v5864
        %v6313 = vrcp.pop %v5865
        %v6314 = vrcp.pop %v5866
        %v6315 = vrcp.pop %v5867
        %v6316 = vrcp.pop %v5868
        %v6317 = vrcp.pop %v5869
        %v6318 = vrcp.pop %v5870
        %v6319 = vrcp.pop %v5871
        %v6320 = vrcp.pop %v5872
        %v6321 = vrcp.pop %v5873
        %v6322 = vrcp.pop %v5874
        %v6323 = vrcp.pop %v5875
        %v6324 = vrcp.pop %v5876
        %v6325 = vrcp.pop %v5877
        %v6326 = vrcp.pop %v5878
        %v6327 = vrcp.pop %v5879
        %v6328 = vrcp.pop %v5880
        %v6329 = vrcp.pop %v5881
        %v6330 = vrcp.pop %v5882
        %v6331 = vrcp.pop %v5883
        %v6332 = vrcp.pop %v5884
        %v6333 = vrcp.pop %v5885
        %v6334 = vrcp.pop %v5886
        %v6335 = vrcp.pop %v5887
        %v6336 = vrcp.pop %v5888
        %v6337 = vrcp.pop %v5889
        %v6338 = vrcp.pop %v5890
        %v6339 = vrcp.pop %v5891
        %v6340 = vrcp.pop %v5892
        %v6341 = vrcp.pop %v5893
        %v6342 = vrcp.pop %v5894
        %v6343 = vrcp.pop %v5895
        %v6344 = vrcp.pop %v5896
        %v6345 = vrcp.pop %v5897
        %v6346 = vrcp.pop %v5898
        %v6347 = vrcp.pop %v5899
        %v6348 = vrcp.pop %v5900
        %v6349 = vrcp.pop %v5901
        %v6350 = vrcp.pop %v5902
        %v6351 = vrcp.pop %v5903
        %v6352 = vrcp.pop %v5904
        %v6353 = vrcp.pop %v5905
        %v6354 = vrcp.pop %v5906
        %v6355 = vrcp.pop %v5907
        %v6356 = vrcp.pop %v5908
        %v6357 = vrcp.pop %v5909
        %v6358 = vrcp.pop %v5910
        %v6359 = vrcp.pop %v5911
        %v6360 = vrcp.pop %v5912
        %v6361 = vrcp.pop %v5913
        %v6362 = vrcp.pop %v5914
        %v6363 = vrcp.pop %v5915
        %v6364 = vrcp.pop %v5916
        %v6365 = vrcp.pop %v5917
        %v6366 = vrcp.pop %v5918
        %v6367 = vrcp.pop %v5919
        %v6368 = vrcp.pop %v5920
        %v6369 = vrcp.pop %v5921
        %v6370 = vrcp.pop %v5922
        %v6371 = vrcp.pop %v5923
        %v6372 = vrcp.pop %v5924
        %v6373 = vrcp.pop %v5925
        %v6374 = vrcp.pop %v5926
        %v6375 = vrcp.pop %v5927
        %v6376 = vrcp.pop %v5928
        %v6377 = vrcp.pop %v5929
        %v6378 = vrcp.pop %v5930
        %v6379 = vrcp.pop %v5931
        %v6380 = vrcp.pop %v5932
        %v6381 = vrcp.pop %v5933
        %v6382 = vrcp.pop %v5934
        %v6383 = vrcp.pop %v5935
        %v6384 = vrcp.pop %v5936
        %v6385 = vrcp.pop %v5937
        %v6386 = vrcp.pop %v5938
        %v6387 = vrcp.pop %v5939
        %v6388 = vrcp.pop %v5940
        %v6389 = vrcp.pop %v5941
        %v6390 = vrcp.pop %v5942
        %v6391 = vrcp.pop %v5943
        %v6392 = vrcp.pop %v5944
        %v6393 = vrcp.pop %v5945
        %v6394 = vrcp.pop %v5946
        %v6395 = vrcp.pop %v5947
        %v6396 = vrcp.pop %v5948
        %v6397 = vrcp.pop %v5949
        %v6398 = vrcp.pop %v5950
        %v6399 = vrcp.pop %v5951
        %v6400 = vrcp.pop %v5952
        %v6401 = vrcp.pop %v5953
        %v6402 = vrcp.pop %v5954
        %v6403 = vrcp.pop %v5955
        %v6404 = vrcp.pop %v5956
        %v6405 = vrcp.pop %v5957
        %v6406 = vrcp.pop %v5958
        %v6407 = vrcp.pop %v5959
        %v6408 = vrcp.pop %v5960
        %v6409 = vrcp.pop %v5961
        %v6410 = vrcp.pop %v5962
        %v6411 = vrcp.pop %v5963
        %v6412 = vrcp.pop %v5964
        %v6413 = vrcp.pop %v5965
        %v6414 = vrcp.pop %v5966
        %v6415 = vrcp.pop %v5967
        %v6416 = vrcp.pop %v5968
        %v6417 = vrcp.pop %v5969
        %v6418 = vrcp.pop %v5970
        %v6419 = vrcp.pop %v5971
        %v6420 = vrcp.pop %v5972
        %v6421 = vmul.f32 %v3733, %v5973
        %v6422 = vmul.f32 %v3734, %v5974
        %v6423 = vmul.f32 %v3735, %v5975
        %v6424 = vmul.f32 %v3736, %v5976
        %v6425 = vmul.f32 %v3737, %v5977
        %v6426 = vmul.f32 %v3738, %v5978
        %v6427 = vmul.f32 %v3739, %v5979
        %v6428 = vmul.f32 %v3740, %v5980
        %v6429 = vmul.f32 %v3741, %v5981
        %v6430 = vmul.f32 %v3742, %v5982
        %v6431 = vmul.f32 %v3743, %v5983
        %v6432 = vmul.f32 %v3744, %v5984
        %v6433 = vmul.f32 %v3745, %v5985
        %v6434 = vmul.f32 %v3746, %v5986
        %v6435 = vmul.f32 %v3747, %v5987
        %v6436 = vmul.f32 %v3748, %v5988
        %v6437 = vmul.f32 %v3749, %v5989
        %v6438 = vmul.f32 %v3750, %v5990
        %v6439 = vmul.f32 %v3751, %v5991
        %v6440 = vmul.f32 %v3752, %v5992
        %v6441 = vmul.f32 %v3753, %v5993
        %v6442 = vmul.f32 %v3754, %v5994
        %v6443 = vmul.f32 %v3755, %v5995
        %v6444 = vmul.f32 %v3756, %v5996
        %v6445 = vmul.f32 %v3757, %v5997
        %v6446 = vmul.f32 %v3758, %v5998
        %v6447 = vmul.f32 %v3759, %v5999
        %v6448 = vmul.f32 %v3760, %v6000
        %v6449 = vmul.f32 %v3761, %v6001
        %v6450 = vmul.f32 %v3762, %v6002
        %v6451 = vmul.f32 %v3763, %v6003
        %v6452 = vmul.f32 %v3764, %v6004
        %v6453 = vmul.f32 %v3765, %v6005
        %v6454 = vmul.f32 %v3766, %v6006
        %v6455 = vmul.f32 %v3767, %v6007
        %v6456 = vmul.f32 %v3768, %v6008
        %v6457 = vmul.f32 %v3769, %v6009
        %v6458 = vmul.f32 %v3770, %v6010
        %v6459 = vmul.f32 %v3771, %v6011
        %v6460 = vmul.f32 %v3772, %v6012
        %v6461 = vmul.f32 %v3773, %v6013
        %v6462 = vmul.f32 %v3774, %v6014
        %v6463 = vmul.f32 %v3775, %v6015
        %v6464 = vmul.f32 %v3776, %v6016
        %v6465 = vmul.f32 %v3777, %v6017
        %v6466 = vmul.f32 %v3778, %v6018
        %v6467 = vmul.f32 %v3779, %v6019
        %v6468 = vmul.f32 %v3780, %v6020
        %v6469 = vmul.f32 %v3781, %v6021
        %v6470 = vmul.f32 %v3782, %v6022
        %v6471 = vmul.f32 %v3783, %v6023
        %v6472 = vmul.f32 %v3784, %v6024
        %v6473 = vmul.f32 %v3785, %v6025
        %v6474 = vmul.f32 %v3786, %v6026
        %v6475 = vmul.f32 %v3787, %v6027
        %v6476 = vmul.f32 %v3788, %v6028
        %v6477 = vmul.f32 %v3789, %v6029
        %v6478 = vmul.f32 %v3790, %v6030
        %v6479 = vmul.f32 %v3791, %v6031
        %v6480 = vmul.f32 %v3792, %v6032
        %v6481 = vmul.f32 %v3793, %v6033
        %v6482 = vmul.f32 %v3794, %v6034
        %v6483 = vmul.f32 %v3795, %v6035
        %v6484 = vmul.f32 %v3796, %v6036
        %v6485 = vmul.f32 %v3797, %v6037
        %v6486 = vmul.f32 %v3798, %v6038
        %v6487 = vmul.f32 %v3799, %v6039
        %v6488 = vmul.f32 %v3800, %v6040
        %v6489 = vmul.f32 %v3801, %v6041
        %v6490 = vmul.f32 %v3802, %v6042
        %v6491 = vmul.f32 %v3803, %v6043
        %v6492 = vmul.f32 %v3804, %v6044
        %v6493 = vmul.f32 %v3805, %v6045
        %v6494 = vmul.f32 %v3806, %v6046
        %v6495 = vmul.f32 %v3807, %v6047
        %v6496 = vmul.f32 %v3808, %v6048
        %v6497 = vmul.f32 %v3809, %v6049
        %v6498 = vmul.f32 %v3810, %v6050
        %v6499 = vmul.f32 %v3811, %v6051
        %v6500 = vmul.f32 %v3812, %v6052
        %v6501 = vmul.f32 %v3813, %v6053
        %v6502 = vmul.f32 %v3814, %v6054
        %v6503 = vmul.f32 %v3815, %v6055
        %v6504 = vmul.f32 %v3816, %v6056
        %v6505 = vmul.f32 %v3817, %v6057
        %v6506 = vmul.f32 %v3818, %v6058
        %v6507 = vmul.f32 %v3819, %v6059
        %v6508 = vmul.f32 %v3820, %v6060
        %v6509 = vmul.f32 %v3821, %v6061
        %v6510 = vmul.f32 %v3822, %v6062
        %v6511 = vmul.f32 %v3823, %v6063
        %v6512 = vmul.f32 %v3824, %v6064
        %v6513 = vmul.f32 %v3825, %v6065
        %v6514 = vmul.f32 %v3826, %v6066
        %v6515 = vmul.f32 %v3827, %v6067
        %v6516 = vmul.f32 %v3828, %v6068
        %v6517 = vmul.f32 %v3829, %v6069
        %v6518 = vmul.f32 %v3830, %v6070
        %v6519 = vmul.f32 %v3831, %v6071
        %v6520 = vmul.f32 %v3832, %v6072
        %v6521 = vmul.f32 %v3833, %v6073
        %v6522 = vmul.f32 %v3834, %v6074
        %v6523 = vmul.f32 %v3835, %v6075
        %v6524 = vmul.f32 %v3836, %v6076
        %v6525 = vmul.f32 %v3837, %v6077
        %v6526 = vmul.f32 %v3838, %v6078
        %v6527 = vmul.f32 %v3839, %v6079
        %v6528 = vmul.f32 %v3840, %v6080
        %v6529 = vmul.f32 %v3841, %v6081
        %v6530 = vmul.f32 %v3842, %v6082
        %v6531 = vmul.f32 %v3843, %v6083
        %v6532 = vmul.f32 %v3844, %v6084
        %v6533 = vmul.f32 %v3845, %v6085
        %v6534 = vmul.f32 %v3846, %v6086
        %v6535 = vmul.f32 %v3847, %v6087
        %v6536 = vmul.f32 %v3848, %v6088
        %v6537 = vmul.f32 %v3849, %v6089
        %v6538 = vmul.f32 %v3850, %v6090
        %v6539 = vmul.f32 %v3851, %v6091
        %v6540 = vmul.f32 %v3852, %v6092
        %v6541 = vmul.f32 %v3853, %v6093
        %v6542 = vmul.f32 %v3854, %v6094
        %v6543 = vmul.f32 %v3855, %v6095
        %v6544 = vmul.f32 %v3856, %v6096
        %v6545 = vmul.f32 %v3857, %v6097
        %v6546 = vmul.f32 %v3858, %v6098
        %v6547 = vmul.f32 %v3859, %v6099
        %v6548 = vmul.f32 %v3860, %v6100
        %v6549 = vmul.f32 %v3861, %v6101
        %v6550 = vmul.f32 %v3862, %v6102
        %v6551 = vmul.f32 %v3863, %v6103
        %v6552 = vmul.f32 %v3864, %v6104
        %v6553 = vmul.f32 %v3865, %v6105
        %v6554 = vmul.f32 %v3866, %v6106
        %v6555 = vmul.f32 %v3867, %v6107
        %v6556 = vmul.f32 %v3868, %v6108
        %v6557 = vmul.f32 %v3869, %v6109
        %v6558 = vmul.f32 %v3870, %v6110
        %v6559 = vmul.f32 %v3871, %v6111
        %v6560 = vmul.f32 %v3872, %v6112
        %v6561 = vmul.f32 %v3873, %v6113
        %v6562 = vmul.f32 %v3874, %v6114
        %v6563 = vmul.f32 %v3875, %v6115
        %v6564 = vmul.f32 %v3876, %v6116
        %v6565 = vmul.f32 %v3877, %v6117
        %v6566 = vmul.f32 %v3878, %v6118
        %v6567 = vmul.f32 %v3879, %v6119
        %v6568 = vmul.f32 %v3880, %v6120
        %v6569 = vmul.f32 %v3881, %v6121
        %v6570 = vmul.f32 %v3882, %v6122
        %v6571 = vmul.f32 %v3883, %v6123
        %v6572 = vmul.f32 %v3884, %v6124
        %v6573 = vmul.f32 %v3885, %v6125
        %v6574 = vmul.f32 %v3886, %v6126
        %v6575 = vmul.f32 %v3887, %v6127
        %v6576 = vmul.f32 %v3888, %v6128
        %v6577 = vmul.f32 %v3889, %v6129
        %v6578 = vmul.f32 %v3890, %v6130
        %v6579 = vmul.f32 %v3891, %v6131
        %v6580 = vmul.f32 %v3892, %v6132
        %v6581 = vmul.f32 %v3893, %v6133
        %v6582 = vmul.f32 %v3894, %v6134
        %v6583 = vmul.f32 %v3895, %v6135
        %v6584 = vmul.f32 %v3896, %v6136
        %v6585 = vmul.f32 %v3897, %v6137
        %v6586 = vmul.f32 %v3898, %v6138
        %v6587 = vmul.f32 %v3899, %v6139
        %v6588 = vmul.f32 %v3900, %v6140
        %v6589 = vmul.f32 %v3901, %v6141
        %v6590 = vmul.f32 %v3902, %v6142
        %v6591 = vmul.f32 %v3903, %v6143
        %v6592 = vmul.f32 %v3904, %v6144
        %v6593 = vmul.f32 %v3905, %v6145
        %v6594 = vmul.f32 %v3906, %v6146
        %v6595 = vmul.f32 %v3907, %v6147
        %v6596 = vmul.f32 %v3908, %v6148
        %v6597 = vmul.f32 %v3909, %v6149
        %v6598 = vmul.f32 %v3910, %v6150
        %v6599 = vmul.f32 %v3911, %v6151
        %v6600 = vmul.f32 %v3912, %v6152
        %v6601 = vmul.f32 %v3913, %v6153
        %v6602 = vmul.f32 %v3914, %v6154
        %v6603 = vmul.f32 %v3915, %v6155
        %v6604 = vmul.f32 %v3916, %v6156
        %v6605 = vmul.f32 %v3917, %v6157
        %v6606 = vmul.f32 %v3918, %v6158
        %v6607 = vmul.f32 %v3919, %v6159
        %v6608 = vmul.f32 %v3920, %v6160
        %v6609 = vmul.f32 %v3921, %v6161
        %v6610 = vmul.f32 %v3922, %v6162
        %v6611 = vmul.f32 %v3923, %v6163
        %v6612 = vmul.f32 %v3924, %v6164
        %v6613 = vmul.f32 %v3925, %v6165
        %v6614 = vmul.f32 %v3926, %v6166
        %v6615 = vmul.f32 %v3927, %v6167
        %v6616 = vmul.f32 %v3928, %v6168
        %v6617 = vmul.f32 %v3929, %v6169
        %v6618 = vmul.f32 %v3930, %v6170
        %v6619 = vmul.f32 %v3931, %v6171
        %v6620 = vmul.f32 %v3932, %v6172
        %v6621 = vmul.f32 %v3933, %v6173
        %v6622 = vmul.f32 %v3934, %v6174
        %v6623 = vmul.f32 %v3935, %v6175
        %v6624 = vmul.f32 %v3936, %v6176
        %v6625 = vmul.f32 %v3937, %v6177
        %v6626 = vmul.f32 %v3938, %v6178
        %v6627 = vmul.f32 %v3939, %v6179
        %v6628 = vmul.f32 %v3940, %v6180
        %v6629 = vmul.f32 %v3941, %v6181
        %v6630 = vmul.f32 %v3942, %v6182
        %v6631 = vmul.f32 %v3943, %v6183
        %v6632 = vmul.f32 %v3944, %v6184
        %v6633 = vmul.f32 %v3945, %v6185
        %v6634 = vmul.f32 %v3946, %v6186
        %v6635 = vmul.f32 %v3947, %v6187
        %v6636 = vmul.f32 %v3948, %v6188
        %v6637 = vmul.f32 %v3949, %v6189
        %v6638 = vmul.f32 %v3950, %v6190
        %v6639 = vmul.f32 %v3951, %v6191
        %v6640 = vmul.f32 %v3952, %v6192
        %v6641 = vmul.f32 %v3953, %v6193
        %v6642 = vmul.f32 %v3954, %v6194
        %v6643 = vmul.f32 %v3955, %v6195
        %v6644 = vmul.f32 %v3956, %v6196
        %v6645 = vmul.f32 %v3957, %v6197
        %v6646 = vmul.f32 %v3958, %v6198
        %v6647 = vmul.f32 %v3959, %v6199
        %v6648 = vmul.f32 %v3960, %v6200
        %v6649 = vmul.f32 %v3961, %v6201
        %v6650 = vmul.f32 %v3962, %v6202
        %v6651 = vmul.f32 %v3963, %v6203
        %v6652 = vmul.f32 %v3964, %v6204
        %v6653 = vmul.f32 %v3965, %v6205
        %v6654 = vmul.f32 %v3966, %v6206
        %v6655 = vmul.f32 %v3967, %v6207
        %v6656 = vmul.f32 %v3968, %v6208
        %v6657 = vmul.f32 %v3969, %v6209
        %v6658 = vmul.f32 %v3970, %v6210
        %v6659 = vmul.f32 %v3971, %v6211
        %v6660 = vmul.f32 %v3972, %v6212
        %v6661 = vmul.f32 %v3973, %v6213
        %v6662 = vmul.f32 %v3974, %v6214
        %v6663 = vmul.f32 %v3975, %v6215
        %v6664 = vmul.f32 %v3976, %v6216
        %v6665 = vmul.f32 %v3977, %v6217
        %v6666 = vmul.f32 %v3978, %v6218
        %v6667 = vmul.f32 %v3979, %v6219
        %v6668 = vmul.f32 %v3980, %v6220
        %v6669 = vmul.f32 %v3981, %v6221
        %v6670 = vmul.f32 %v3982, %v6222
        %v6671 = vmul.f32 %v3983, %v6223
        %v6672 = vmul.f32 %v3984, %v6224
        %v6673 = vmul.f32 %v3985, %v6225
        %v6674 = vmul.f32 %v3986, %v6226
        %v6675 = vmul.f32 %v3987, %v6227
        %v6676 = vmul.f32 %v3988, %v6228
        %v6677 = vmul.f32 %v3989, %v6229
        %v6678 = vmul.f32 %v3990, %v6230
        %v6679 = vmul.f32 %v3991, %v6231
        %v6680 = vmul.f32 %v3992, %v6232
        %v6681 = vmul.f32 %v3993, %v6233
        %v6682 = vmul.f32 %v3994, %v6234
        %v6683 = vmul.f32 %v3995, %v6235
        %v6684 = vmul.f32 %v3996, %v6236
        %v6685 = vmul.f32 %v3997, %v6237
        %v6686 = vmul.f32 %v3998, %v6238
        %v6687 = vmul.f32 %v3999, %v6239
        %v6688 = vmul.f32 %v4000, %v6240
        %v6689 = vmul.f32 %v4001, %v6241
        %v6690 = vmul.f32 %v4002, %v6242
        %v6691 = vmul.f32 %v4003, %v6243
        %v6692 = vmul.f32 %v4004, %v6244
        %v6693 = vmul.f32 %v4005, %v6245
        %v6694 = vmul.f32 %v4006, %v6246
        %v6695 = vmul.f32 %v4007, %v6247
        %v6696 = vmul.f32 %v4008, %v6248
        %v6697 = vmul.f32 %v4009, %v6249
        %v6698 = vmul.f32 %v4010, %v6250
        %v6699 = vmul.f32 %v4011, %v6251
        %v6700 = vmul.f32 %v4012, %v6252
        %v6701 = vmul.f32 %v4013, %v6253
        %v6702 = vmul.f32 %v4014, %v6254
        %v6703 = vmul.f32 %v4015, %v6255
        %v6704 = vmul.f32 %v4016, %v6256
        %v6705 = vmul.f32 %v4017, %v6257
        %v6706 = vmul.f32 %v4018, %v6258
        %v6707 = vmul.f32 %v4019, %v6259
        %v6708 = vmul.f32 %v4020, %v6260
        %v6709 = vmul.f32 %v4021, %v6261
        %v6710 = vmul.f32 %v4022, %v6262
        %v6711 = vmul.f32 %v4023, %v6263
        %v6712 = vmul.f32 %v4024, %v6264
        %v6713 = vmul.f32 %v4025, %v6265
        %v6714 = vmul.f32 %v4026, %v6266
        %v6715 = vmul.f32 %v4027, %v6267
        %v6716 = vmul.f32 %v4028, %v6268
        %v6717 = vmul.f32 %v4029, %v6269
        %v6718 = vmul.f32 %v4030, %v6270
        %v6719 = vmul.f32 %v4031, %v6271
        %v6720 = vmul.f32 %v4032, %v6272
        %v6721 = vmul.f32 %v4033, %v6273
        %v6722 = vmul.f32 %v4034, %v6274
        %v6723 = vmul.f32 %v4035, %v6275
        %v6724 = vmul.f32 %v4036, %v6276
        %v6725 = vmul.f32 %v4037, %v6277
        %v6726 = vmul.f32 %v4038, %v6278
        %v6727 = vmul.f32 %v4039, %v6279
        %v6728 = vmul.f32 %v4040, %v6280
        %v6729 = vmul.f32 %v4041, %v6281
        %v6730 = vmul.f32 %v4042, %v6282
        %v6731 = vmul.f32 %v4043, %v6283
        %v6732 = vmul.f32 %v4044, %v6284
        %v6733 = vmul.f32 %v4045, %v6285
        %v6734 = vmul.f32 %v4046, %v6286
        %v6735 = vmul.f32 %v4047, %v6287
        %v6736 = vmul.f32 %v4048, %v6288
        %v6737 = vmul.f32 %v4049, %v6289
        %v6738 = vmul.f32 %v4050, %v6290
        %v6739 = vmul.f32 %v4051, %v6291
        %v6740 = vmul.f32 %v4052, %v6292
        %v6741 = vmul.f32 %v4053, %v6293
        %v6742 = vmul.f32 %v4054, %v6294
        %v6743 = vmul.f32 %v4055, %v6295
        %v6744 = vmul.f32 %v4056, %v6296
        %v6745 = vmul.f32 %v4057, %v6297
        %v6746 = vmul.f32 %v4058, %v6298
        %v6747 = vmul.f32 %v4059, %v6299
        %v6748 = vmul.f32 %v4060, %v6300
        %v6749 = vmul.f32 %v4061, %v6301
        %v6750 = vmul.f32 %v4062, %v6302
        %v6751 = vmul.f32 %v4063, %v6303
        %v6752 = vmul.f32 %v4064, %v6304
        %v6753 = vmul.f32 %v4065, %v6305
        %v6754 = vmul.f32 %v4066, %v6306
        %v6755 = vmul.f32 %v4067, %v6307
        %v6756 = vmul.f32 %v4068, %v6308
        %v6757 = vmul.f32 %v4069, %v6309
        %v6758 = vmul.f32 %v4070, %v6310
        %v6759 = vmul.f32 %v4071, %v6311
        %v6760 = vmul.f32 %v4072, %v6312
        %v6761 = vmul.f32 %v4073, %v6313
        %v6762 = vmul.f32 %v4074, %v6314
        %v6763 = vmul.f32 %v4075, %v6315
        %v6764 = vmul.f32 %v4076, %v6316
        %v6765 = vmul.f32 %v4077, %v6317
        %v6766 = vmul.f32 %v4078, %v6318
        %v6767 = vmul.f32 %v4079, %v6319
        %v6768 = vmul.f32 %v4080, %v6320
        %v6769 = vmul.f32 %v4081, %v6321
        %v6770 = vmul.f32 %v4082, %v6322
        %v6771 = vmul.f32 %v4083, %v6323
        %v6772 = vmul.f32 %v4084, %v6324
        %v6773 = vmul.f32 %v4085, %v6325
        %v6774 = vmul.f32 %v4086, %v6326
        %v6775 = vmul.f32 %v4087, %v6327
        %v6776 = vmul.f32 %v4088, %v6328
        %v6777 = vmul.f32 %v4089, %v6329
        %v6778 = vmul.f32 %v4090, %v6330
        %v6779 = vmul.f32 %v4091, %v6331
        %v6780 = vmul.f32 %v4092, %v6332
        %v6781 = vmul.f32 %v4093, %v6333
        %v6782 = vmul.f32 %v4094, %v6334
        %v6783 = vmul.f32 %v4095, %v6335
        %v6784 = vmul.f32 %v4096, %v6336
        %v6785 = vmul.f32 %v4097, %v6337
        %v6786 = vmul.f32 %v4098, %v6338
        %v6787 = vmul.f32 %v4099, %v6339
        %v6788 = vmul.f32 %v4100, %v6340
        %v6789 = vmul.f32 %v4101, %v6341
        %v6790 = vmul.f32 %v4102, %v6342
        %v6791 = vmul.f32 %v4103, %v6343
        %v6792 = vmul.f32 %v4104, %v6344
        %v6793 = vmul.f32 %v4105, %v6345
        %v6794 = vmul.f32 %v4106, %v6346
        %v6795 = vmul.f32 %v4107, %v6347
        %v6796 = vmul.f32 %v4108, %v6348
        %v6797 = vmul.f32 %v4109, %v6349
        %v6798 = vmul.f32 %v4110, %v6350
        %v6799 = vmul.f32 %v4111, %v6351
        %v6800 = vmul.f32 %v4112, %v6352
        %v6801 = vmul.f32 %v4113, %v6353
        %v6802 = vmul.f32 %v4114, %v6354
        %v6803 = vmul.f32 %v4115, %v6355
        %v6804 = vmul.f32 %v4116, %v6356
        %v6805 = vmul.f32 %v4117, %v6357
        %v6806 = vmul.f32 %v4118, %v6358
        %v6807 = vmul.f32 %v4119, %v6359
        %v6808 = vmul.f32 %v4120, %v6360
        %v6809 = vmul.f32 %v4121, %v6361
        %v6810 = vmul.f32 %v4122, %v6362
        %v6811 = vmul.f32 %v4123, %v6363
        %v6812 = vmul.f32 %v4124, %v6364
        %v6813 = vmul.f32 %v4125, %v6365
        %v6814 = vmul.f32 %v4126, %v6366
        %v6815 = vmul.f32 %v4127, %v6367
        %v6816 = vmul.f32 %v4128, %v6368
        %v6817 = vmul.f32 %v4129, %v6369
        %v6818 = vmul.f32 %v4130, %v6370
        %v6819 = vmul.f32 %v4131, %v6371
        %v6820 = vmul.f32 %v4132, %v6372
        %v6821 = vmul.f32 %v4133, %v6373
        %v6822 = vmul.f32 %v4134, %v6374
        %v6823 = vmul.f32 %v4135, %v6375
        %v6824 = vmul.f32 %v4136, %v6376
        %v6825 = vmul.f32 %v4137, %v6377
        %v6826 = vmul.f32 %v4138, %v6378
        %v6827 = vmul.f32 %v4139, %v6379
        %v6828 = vmul.f32 %v4140, %v6380
        %v6829 = vmul.f32 %v4141, %v6381
        %v6830 = vmul.f32 %v4142, %v6382
        %v6831 = vmul.f32 %v4143, %v6383
        %v6832 = vmul.f32 %v4144, %v6384
        %v6833 = vmul.f32 %v4145, %v6385
        %v6834 = vmul.f32 %v4146, %v6386
        %v6835 = vmul.f32 %v4147, %v6387
        %v6836 = vmul.f32 %v4148, %v6388
        %v6837 = vmul.f32 %v4149, %v6389
        %v6838 = vmul.f32 %v4150, %v6390
        %v6839 = vmul.f32 %v4151, %v6391
        %v6840 = vmul.f32 %v4152, %v6392
        %v6841 = vmul.f32 %v4153, %v6393
        %v6842 = vmul.f32 %v4154, %v6394
        %v6843 = vmul.f32 %v4155, %v6395
        %v6844 = vmul.f32 %v4156, %v6396
        %v6845 = vmul.f32 %v4157, %v6397
        %v6846 = vmul.f32 %v4158, %v6398
        %v6847 = vmul.f32 %v4159, %v6399
        %v6848 = vmul.f32 %v4160, %v6400
        %v6849 = vmul.f32 %v4161, %v6401
        %v6850 = vmul.f32 %v4162, %v6402
        %v6851 = vmul.f32 %v4163, %v6403
        %v6852 = vmul.f32 %v4164, %v6404
        %v6853 = vmul.f32 %v4165, %v6405
        %v6854 = vmul.f32 %v4166, %v6406
        %v6855 = vmul.f32 %v4167, %v6407
        %v6856 = vmul.f32 %v4168, %v6408
        %v6857 = vmul.f32 %v4169, %v6409
        %v6858 = vmul.f32 %v4170, %v6410
        %v6859 = vmul.f32 %v4171, %v6411
        %v6860 = vmul.f32 %v4172, %v6412
        %v6861 = vmul.f32 %v4173, %v6413
        %v6862 = vmul.f32 %v4174, %v6414
        %v6863 = vmul.f32 %v4175, %v6415
        %v6864 = vmul.f32 %v4176, %v6416
        %v6865 = vmul.f32 %v4177, %v6417
        %v6866 = vmul.f32 %v4178, %v6418
        %v6867 = vmul.f32 %v4179, %v6419
        %v6868 = vmul.f32 %v4180, %v6420
        %v6869 = vpack.c.bf16 %v6435, %v6421
        %v6870 = vpack.c.bf16 %v6436, %v6422
        %v6871 = vpack.c.bf16 %v6437, %v6423
        %v6872 = vpack.c.bf16 %v6438, %v6424
        %v6873 = vpack.c.bf16 %v6439, %v6425
        %v6874 = vpack.c.bf16 %v6440, %v6426
        %v6875 = vpack.c.bf16 %v6441, %v6427
        %v6876 = vpack.c.bf16 %v6442, %v6428
        %v6877 = vpack.c.bf16 %v6443, %v6429
        %v6878 = vpack.c.bf16 %v6444, %v6430
        %v6879 = vpack.c.bf16 %v6445, %v6431
        %v6880 = vpack.c.bf16 %v6446, %v6432
        %v6881 = vpack.c.bf16 %v6447, %v6433
        %v6882 = vpack.c.bf16 %v6448, %v6434
        %v6883 = vpack.c.bf16 %v6463, %v6449
        %v6884 = vpack.c.bf16 %v6464, %v6450
        %v6885 = vpack.c.bf16 %v6465, %v6451
        %v6886 = vpack.c.bf16 %v6466, %v6452
        %v6887 = vpack.c.bf16 %v6467, %v6453
        %v6888 = vpack.c.bf16 %v6468, %v6454
        %v6889 = vpack.c.bf16 %v6469, %v6455
        %v6890 = vpack.c.bf16 %v6470, %v6456
        %v6891 = vpack.c.bf16 %v6471, %v6457
        %v6892 = vpack.c.bf16 %v6472, %v6458
        %v6893 = vpack.c.bf16 %v6473, %v6459
        %v6894 = vpack.c.bf16 %v6474, %v6460
        %v6895 = vpack.c.bf16 %v6475, %v6461
        %v6896 = vpack.c.bf16 %v6476, %v6462
        %v6897 = vpack.c.bf16 %v6491, %v6477
        %v6898 = vpack.c.bf16 %v6492, %v6478
        %v6899 = vpack.c.bf16 %v6493, %v6479
        %v6900 = vpack.c.bf16 %v6494, %v6480
        %v6901 = vpack.c.bf16 %v6495, %v6481
        %v6902 = vpack.c.bf16 %v6496, %v6482
        %v6903 = vpack.c.bf16 %v6497, %v6483
        %v6904 = vpack.c.bf16 %v6498, %v6484
        %v6905 = vpack.c.bf16 %v6499, %v6485
        %v6906 = vpack.c.bf16 %v6500, %v6486
        %v6907 = vpack.c.bf16 %v6501, %v6487
        %v6908 = vpack.c.bf16 %v6502, %v6488
        %v6909 = vpack.c.bf16 %v6503, %v6489
        %v6910 = vpack.c.bf16 %v6504, %v6490
        %v6911 = vpack.c.bf16 %v6519, %v6505
        %v6912 = vpack.c.bf16 %v6520, %v6506
        %v6913 = vpack.c.bf16 %v6521, %v6507
        %v6914 = vpack.c.bf16 %v6522, %v6508
        %v6915 = vpack.c.bf16 %v6523, %v6509
        %v6916 = vpack.c.bf16 %v6524, %v6510
        %v6917 = vpack.c.bf16 %v6525, %v6511
        %v6918 = vpack.c.bf16 %v6526, %v6512
        %v6919 = vpack.c.bf16 %v6527, %v6513
        %v6920 = vpack.c.bf16 %v6528, %v6514
        %v6921 = vpack.c.bf16 %v6529, %v6515
        %v6922 = vpack.c.bf16 %v6530, %v6516
        %v6923 = vpack.c.bf16 %v6531, %v6517
        %v6924 = vpack.c.bf16 %v6532, %v6518
        %v6925 = vpack.c.bf16 %v6547, %v6533
        %v6926 = vpack.c.bf16 %v6548, %v6534
        %v6927 = vpack.c.bf16 %v6549, %v6535
        %v6928 = vpack.c.bf16 %v6550, %v6536
        %v6929 = vpack.c.bf16 %v6551, %v6537
        %v6930 = vpack.c.bf16 %v6552, %v6538
        %v6931 = vpack.c.bf16 %v6553, %v6539
        %v6932 = vpack.c.bf16 %v6554, %v6540
        %v6933 = vpack.c.bf16 %v6555, %v6541
        %v6934 = vpack.c.bf16 %v6556, %v6542
        %v6935 = vpack.c.bf16 %v6557, %v6543
        %v6936 = vpack.c.bf16 %v6558, %v6544
        %v6937 = vpack.c.bf16 %v6559, %v6545
        %v6938 = vpack.c.bf16 %v6560, %v6546
        %v6939 = vpack.c.bf16 %v6575, %v6561
        %v6940 = vpack.c.bf16 %v6576, %v6562
        %v6941 = vpack.c.bf16 %v6577, %v6563
        %v6942 = vpack.c.bf16 %v6578, %v6564
        %v6943 = vpack.c.bf16 %v6579, %v6565
        %v6944 = vpack.c.bf16 %v6580, %v6566
        %v6945 = vpack.c.bf16 %v6581, %v6567
        %v6946 = vpack.c.bf16 %v6582, %v6568
        %v6947 = vpack.c.bf16 %v6583, %v6569
        %v6948 = vpack.c.bf16 %v6584, %v6570
        %v6949 = vpack.c.bf16 %v6585, %v6571
        %v6950 = vpack.c.bf16 %v6586, %v6572
        %v6951 = vpack.c.bf16 %v6587, %v6573
        %v6952 = vpack.c.bf16 %v6588, %v6574
        %v6953 = vpack.c.bf16 %v6603, %v6589
        %v6954 = vpack.c.bf16 %v6604, %v6590
        %v6955 = vpack.c.bf16 %v6605, %v6591
        %v6956 = vpack.c.bf16 %v6606, %v6592
        %v6957 = vpack.c.bf16 %v6607, %v6593
        %v6958 = vpack.c.bf16 %v6608, %v6594
        %v6959 = vpack.c.bf16 %v6609, %v6595
        %v6960 = vpack.c.bf16 %v6610, %v6596
        %v6961 = vpack.c.bf16 %v6611, %v6597
        %v6962 = vpack.c.bf16 %v6612, %v6598
        %v6963 = vpack.c.bf16 %v6613, %v6599
        %v6964 = vpack.c.bf16 %v6614, %v6600
        %v6965 = vpack.c.bf16 %v6615, %v6601
        %v6966 = vpack.c.bf16 %v6616, %v6602
        %v6967 = vpack.c.bf16 %v6631, %v6617
        %v6968 = vpack.c.bf16 %v6632, %v6618
        %v6969 = vpack.c.bf16 %v6633, %v6619
        %v6970 = vpack.c.bf16 %v6634, %v6620
        %v6971 = vpack.c.bf16 %v6635, %v6621
        %v6972 = vpack.c.bf16 %v6636, %v6622
        %v6973 = vpack.c.bf16 %v6637, %v6623
        %v6974 = vpack.c.bf16 %v6638, %v6624
        %v6975 = vpack.c.bf16 %v6639, %v6625
        %v6976 = vpack.c.bf16 %v6640, %v6626
        %v6977 = vpack.c.bf16 %v6641, %v6627
        %v6978 = vpack.c.bf16 %v6642, %v6628
        %v6979 = vpack.c.bf16 %v6643, %v6629
        %v6980 = vpack.c.bf16 %v6644, %v6630
        %v6981 = vpack.c.bf16 %v6659, %v6645
        %v6982 = vpack.c.bf16 %v6660, %v6646
        %v6983 = vpack.c.bf16 %v6661, %v6647
        %v6984 = vpack.c.bf16 %v6662, %v6648
        %v6985 = vpack.c.bf16 %v6663, %v6649
        %v6986 = vpack.c.bf16 %v6664, %v6650
        %v6987 = vpack.c.bf16 %v6665, %v6651
        %v6988 = vpack.c.bf16 %v6666, %v6652
        %v6989 = vpack.c.bf16 %v6667, %v6653
        %v6990 = vpack.c.bf16 %v6668, %v6654
        %v6991 = vpack.c.bf16 %v6669, %v6655
        %v6992 = vpack.c.bf16 %v6670, %v6656
        %v6993 = vpack.c.bf16 %v6671, %v6657
        %v6994 = vpack.c.bf16 %v6672, %v6658
        %v6995 = vpack.c.bf16 %v6687, %v6673
        %v6996 = vpack.c.bf16 %v6688, %v6674
        %v6997 = vpack.c.bf16 %v6689, %v6675
        %v6998 = vpack.c.bf16 %v6690, %v6676
        %v6999 = vpack.c.bf16 %v6691, %v6677
        %v7000 = vpack.c.bf16 %v6692, %v6678
        %v7001 = vpack.c.bf16 %v6693, %v6679
        %v7002 = vpack.c.bf16 %v6694, %v6680
        %v7003 = vpack.c.bf16 %v6695, %v6681
        %v7004 = vpack.c.bf16 %v6696, %v6682
        %v7005 = vpack.c.bf16 %v6697, %v6683
        %v7006 = vpack.c.bf16 %v6698, %v6684
        %v7007 = vpack.c.bf16 %v6699, %v6685
        %v7008 = vpack.c.bf16 %v6700, %v6686
        %v7009 = vpack.c.bf16 %v6715, %v6701
        %v7010 = vpack.c.bf16 %v6716, %v6702
        %v7011 = vpack.c.bf16 %v6717, %v6703
        %v7012 = vpack.c.bf16 %v6718, %v6704
        %v7013 = vpack.c.bf16 %v6719, %v6705
        %v7014 = vpack.c.bf16 %v6720, %v6706
        %v7015 = vpack.c.bf16 %v6721, %v6707
        %v7016 = vpack.c.bf16 %v6722, %v6708
        %v7017 = vpack.c.bf16 %v6723, %v6709
        %v7018 = vpack.c.bf16 %v6724, %v6710
        %v7019 = vpack.c.bf16 %v6725, %v6711
        %v7020 = vpack.c.bf16 %v6726, %v6712
        %v7021 = vpack.c.bf16 %v6727, %v6713
        %v7022 = vpack.c.bf16 %v6728, %v6714
        %v7023 = vpack.c.bf16 %v6743, %v6729
        %v7024 = vpack.c.bf16 %v6744, %v6730
        %v7025 = vpack.c.bf16 %v6745, %v6731
        %v7026 = vpack.c.bf16 %v6746, %v6732
        %v7027 = vpack.c.bf16 %v6747, %v6733
        %v7028 = vpack.c.bf16 %v6748, %v6734
        %v7029 = vpack.c.bf16 %v6749, %v6735
        %v7030 = vpack.c.bf16 %v6750, %v6736
        %v7031 = vpack.c.bf16 %v6751, %v6737
        %v7032 = vpack.c.bf16 %v6752, %v6738
        %v7033 = vpack.c.bf16 %v6753, %v6739
        %v7034 = vpack.c.bf16 %v6754, %v6740
        %v7035 = vpack.c.bf16 %v6755, %v6741
        %v7036 = vpack.c.bf16 %v6756, %v6742
        %v7037 = vpack.c.bf16 %v6771, %v6757
        %v7038 = vpack.c.bf16 %v6772, %v6758
        %v7039 = vpack.c.bf16 %v6773, %v6759
        %v7040 = vpack.c.bf16 %v6774, %v6760
        %v7041 = vpack.c.bf16 %v6775, %v6761
        %v7042 = vpack.c.bf16 %v6776, %v6762
        %v7043 = vpack.c.bf16 %v6777, %v6763
        %v7044 = vpack.c.bf16 %v6778, %v6764
        %v7045 = vpack.c.bf16 %v6779, %v6765
        %v7046 = vpack.c.bf16 %v6780, %v6766
        %v7047 = vpack.c.bf16 %v6781, %v6767
        %v7048 = vpack.c.bf16 %v6782, %v6768
        %v7049 = vpack.c.bf16 %v6783, %v6769
        %v7050 = vpack.c.bf16 %v6784, %v6770
        %v7051 = vpack.c.bf16 %v6799, %v6785
        %v7052 = vpack.c.bf16 %v6800, %v6786
        %v7053 = vpack.c.bf16 %v6801, %v6787
        %v7054 = vpack.c.bf16 %v6802, %v6788
        %v7055 = vpack.c.bf16 %v6803, %v6789
        %v7056 = vpack.c.bf16 %v6804, %v6790
        %v7057 = vpack.c.bf16 %v6805, %v6791
        %v7058 = vpack.c.bf16 %v6806, %v6792
        %v7059 = vpack.c.bf16 %v6807, %v6793
        %v7060 = vpack.c.bf16 %v6808, %v6794
        %v7061 = vpack.c.bf16 %v6809, %v6795
        %v7062 = vpack.c.bf16 %v6810, %v6796
        %v7063 = vpack.c.bf16 %v6811, %v6797
        %v7064 = vpack.c.bf16 %v6812, %v6798
        %v7065 = vpack.c.bf16 %v6827, %v6813
        %v7066 = vpack.c.bf16 %v6828, %v6814
        %v7067 = vpack.c.bf16 %v6829, %v6815
        %v7068 = vpack.c.bf16 %v6830, %v6816
        %v7069 = vpack.c.bf16 %v6831, %v6817
        %v7070 = vpack.c.bf16 %v6832, %v6818
        %v7071 = vpack.c.bf16 %v6833, %v6819
        %v7072 = vpack.c.bf16 %v6834, %v6820
        %v7073 = vpack.c.bf16 %v6835, %v6821
        %v7074 = vpack.c.bf16 %v6836, %v6822
        %v7075 = vpack.c.bf16 %v6837, %v6823
        %v7076 = vpack.c.bf16 %v6838, %v6824
        %v7077 = vpack.c.bf16 %v6839, %v6825
        %v7078 = vpack.c.bf16 %v6840, %v6826
        %v7079 = vpack.c.bf16 %v6855, %v6841
        %v7080 = vpack.c.bf16 %v6856, %v6842
        %v7081 = vpack.c.bf16 %v6857, %v6843
        %v7082 = vpack.c.bf16 %v6858, %v6844
        %v7083 = vpack.c.bf16 %v6859, %v6845
        %v7084 = vpack.c.bf16 %v6860, %v6846
        %v7085 = vpack.c.bf16 %v6861, %v6847
        %v7086 = vpack.c.bf16 %v6862, %v6848
        %v7087 = vpack.c.bf16 %v6863, %v6849
        %v7088 = vpack.c.bf16 %v6864, %v6850
        %v7089 = vpack.c.bf16 %v6865, %v6851
        %v7090 = vpack.c.bf16 %v6866, %v6852
        %v7091 = vpack.c.bf16 %v6867, %v6853
        %v7092 = vpack.c.bf16 %v6868, %v6854
        %v7093 = vlaneseq
        %v7094 = vand.u32 %v7093, 127
        %v7095 = vadd.s32 %v7094, 128
        %s7096 = smul.u32 %s35, 256
        %v7097 = vstv %s7096
        %v7098 = vadd.s32 %v7094, %v7097
        %v7099 = vadd.s32 %v7095, %v7097
        %vm7100 = vcmp.lt.s32.totalorder %v7098, 256
        %vm7101 = vcmp.lt.s32.totalorder %v7099, 256
        %v7102 = vsel %vm7100, 1, 0
        %v7103 = vsel %vm7101, 1, 0
        %v7104 = vcvt.s32.f32 %v7102
        %v7105 = vcvt.s32.f32 %v7103
        %v7106 = vpack.c.bf16 %v7104, %v7104
        %v7107 = vpack.c.bf16 %v7105, %v7105
        %v7108 = vld [vmem:[#allocation2] sm:$0xff]
        %v7109 = vld [vmem:[#allocation2 + $0x8] sm:$0x3f]
        %7110 = vmatprep.subr.bf16.mxu0 %v6870
        %7111 = vmatpush1.bf16.msra.mxu0 %v6869
        %7112 = vmatprep.subr.bf16.mxu0 %v6884
        %7113 = vmatpush1.bf16.msra.mxu0 %v6883
        %7114 = vmatprep.subr.bf16.mxu0 %v6898
        %7115 = vmatpush1.bf16.msra.mxu0 %v6897
        %7116 = vmatprep.subr.bf16.mxu0 %v6912
        %7117 = vmatpush1.bf16.msra.mxu0 %v6911
        %7118 = vmatprep.subr.bf16.mxu0 %v6926
        %7119 = vmatpush1.bf16.msra.mxu0 %v6925
        %7120 = vmatprep.subr.bf16.mxu0 %v6940
        %7121 = vmatpush1.bf16.msra.mxu0 %v6939
        %7122 = vmatprep.subr.bf16.mxu0 %v6954
        %7123 = vmatpush1.bf16.msra.mxu0 %v6953
        %7124 = vmatprep.subr.bf16.mxu0 %v6968
        %7125 = vmatpush1.bf16.msra.mxu0 %v6967
        %7126 = vmatprep.subr.bf16.mxu0 %v6982
        %7127 = vmatpush1.bf16.msra.mxu0 %v6981
        %7128 = vmatprep.subr.bf16.mxu0 %v6996
        %7129 = vmatpush1.bf16.msra.mxu0 %v6995
        %7130 = vmatprep.subr.bf16.mxu0 %v7010
        %7131 = vmatpush1.bf16.msra.mxu0 %v7009
        %7132 = vmatprep.subr.bf16.mxu0 %v7024
        %7133 = vmatpush1.bf16.msra.mxu0 %v7023
        %7134 = vmatprep.subr.bf16.mxu0 %v7038
        %7135 = vmatpush1.bf16.msra.mxu0 %v7037
        %7136 = vmatprep.subr.bf16.mxu0 %v7052
        %7137 = vmatpush1.bf16.msra.mxu0 %v7051
        %7138 = vmatprep.subr.bf16.mxu0 %v7066
        %7139 = vmatpush1.bf16.msra.mxu0 %v7065
        %7140 = vmatprep.subr.bf16.mxu0 %v7080
        %7141 = vmatpush1.bf16.msra.mxu0 %v7079
        %7142 = vmatprep.mubr.bf16.mxu0 %v7107
        %7143 = vmatmul.mubr.bf16.gmra.mrb[0].mxu0 %v7106
        %v7144 = vpop.f32.mrb[0].mxu0
        %v7145 = vadd.f32 0.0, %v7144
        %v7146 = vpop.f32.mrb[0].mxu0
        %v7147 = vadd.f32 0.0, %v7146
        %v7148 = vpop.f32.mrb[0].mxu0
        %v7149 = vpop.f32.mrb[0].mxu0
        %7150 = vdwg.mxu0
        %7151 = vmatprep.subr.bf16.mxu0 %v6872
        %7152 = vmatpush1.bf16.msra.mxu0 %v6871
        %7153 = vmatprep.subr.bf16.mxu0 %v6886
        %7154 = vmatpush1.bf16.msra.mxu0 %v6885
        %7155 = vmatprep.subr.bf16.mxu0 %v6900
        %7156 = vmatpush1.bf16.msra.mxu0 %v6899
        %7157 = vmatprep.subr.bf16.mxu0 %v6914
        %7158 = vmatpush1.bf16.msra.mxu0 %v6913
        %7159 = vmatprep.subr.bf16.mxu0 %v6928
        %7160 = vmatpush1.bf16.msra.mxu0 %v6927
        %7161 = vmatprep.subr.bf16.mxu0 %v6942
        %7162 = vmatpush1.bf16.msra.mxu0 %v6941
        %7163 = vmatprep.subr.bf16.mxu0 %v6956
        %7164 = vmatpush1.bf16.msra.mxu0 %v6955
        %7165 = vmatprep.subr.bf16.mxu0 %v6970
        %7166 = vmatpush1.bf16.msra.mxu0 %v6969
        %7167 = vmatprep.subr.bf16.mxu0 %v6984
        %7168 = vmatpush1.bf16.msra.mxu0 %v6983
        %7169 = vmatprep.subr.bf16.mxu0 %v6998
        %7170 = vmatpush1.bf16.msra.mxu0 %v6997
        %7171 = vmatprep.subr.bf16.mxu0 %v7012
        %7172 = vmatpush1.bf16.msra.mxu0 %v7011
        %7173 = vmatprep.subr.bf16.mxu0 %v7026
        %7174 = vmatpush1.bf16.msra.mxu0 %v7025
        %7175 = vmatprep.subr.bf16.mxu0 %v7040
        %7176 = vmatpush1.bf16.msra.mxu0 %v7039
        %7177 = vmatprep.subr.bf16.mxu0 %v7054
        %7178 = vmatpush1.bf16.msra.mxu0 %v7053
        %7179 = vmatprep.subr.bf16.mxu0 %v7068
        %7180 = vmatpush1.bf16.msra.mxu0 %v7067
        %7181 = vmatprep.subr.bf16.mxu0 %v7082
        %7182 = vmatpush1.bf16.msra.mxu0 %v7081
        %7183 = vmatprep.mubr.bf16.mxu0 %v7107
        %7184 = vmatmul.mubr.bf16.gmra.mrb[0].mxu0 %v7106
        %v7185 = vpop.f32.mrb[0].mxu0
        %v7186 = vadd.f32 0.0, %v7185
        %v7187 = vpop.f32.mrb[0].mxu0
        %v7188 = vadd.f32 0.0, %v7187
        %v7189 = vpop.f32.mrb[0].mxu0
        %v7190 = vpop.f32.mrb[0].mxu0
        %7191 = vdwg.mxu0
        %7192 = vmatprep.subr.bf16.mxu0 %v6874
        %7193 = vmatpush1.bf16.msra.mxu0 %v6873
        %7194 = vmatprep.subr.bf16.mxu0 %v6888
        %7195 = vmatpush1.bf16.msra.mxu0 %v6887
        %7196 = vmatprep.subr.bf16.mxu0 %v6902
        %7197 = vmatpush1.bf16.msra.mxu0 %v6901
        %7198 = vmatprep.subr.bf16.mxu0 %v6916
        %7199 = vmatpush1.bf16.msra.mxu0 %v6915
        %7200 = vmatprep.subr.bf16.mxu0 %v6930
        %7201 = vmatpush1.bf16.msra.mxu0 %v6929
        %7202 = vmatprep.subr.bf16.mxu0 %v6944
        %7203 = vmatpush1.bf16.msra.mxu0 %v6943
        %7204 = vmatprep.subr.bf16.mxu0 %v6958
        %7205 = vmatpush1.bf16.msra.mxu0 %v6957
        %7206 = vmatprep.subr.bf16.mxu0 %v6972
        %7207 = vmatpush1.bf16.msra.mxu0 %v6971
        %7208 = vmatprep.subr.bf16.mxu0 %v6986
        %7209 = vmatpush1.bf16.msra.mxu0 %v6985
        %7210 = vmatprep.subr.bf16.mxu0 %v7000
        %7211 = vmatpush1.bf16.msra.mxu0 %v6999
        %7212 = vmatprep.subr.bf16.mxu0 %v7014
        %7213 = vmatpush1.bf16.msra.mxu0 %v7013
        %7214 = vmatprep.subr.bf16.mxu0 %v7028
        %7215 = vmatpush1.bf16.msra.mxu0 %v7027
        %7216 = vmatprep.subr.bf16.mxu0 %v7042
        %7217 = vmatpush1.bf16.msra.mxu0 %v7041
        %7218 = vmatprep.subr.bf16.mxu0 %v7056
        %7219 = vmatpush1.bf16.msra.mxu0 %v7055
        %7220 = vmatprep.subr.bf16.mxu0 %v7070
        %7221 = vmatpush1.bf16.msra.mxu0 %v7069
        %7222 = vmatprep.subr.bf16.mxu0 %v7084
        %7223 = vmatpush1.bf16.msra.mxu0 %v7083
        %7224 = vmatprep.mubr.bf16.mxu0 %v7107
        %7225 = vmatmul.mubr.bf16.gmra.mrb[0].mxu0 %v7106
        %v7226 = vpop.f32.mrb[0].mxu0
        %v7227 = vadd.f32 0.0, %v7226
        %v7228 = vpop.f32.mrb[0].mxu0
        %v7229 = vadd.f32 0.0, %v7228
        %v7230 = vpop.f32.mrb[0].mxu0
        %v7231 = vpop.f32.mrb[0].mxu0
        %7232 = vdwg.mxu0
        %7233 = vmatprep.subr.bf16.mxu0 %v6876
        %7234 = vmatpush1.bf16.msra.mxu0 %v6875
        %7235 = vmatprep.subr.bf16.mxu0 %v6890
        %7236 = vmatpush1.bf16.msra.mxu0 %v6889
        %7237 = vmatprep.subr.bf16.mxu0 %v6904
        %7238 = vmatpush1.bf16.msra.mxu0 %v6903
        %7239 = vmatprep.subr.bf16.mxu0 %v6918
        %7240 = vmatpush1.bf16.msra.mxu0 %v6917
        %7241 = vmatprep.subr.bf16.mxu0 %v6932
        %7242 = vmatpush1.bf16.msra.mxu0 %v6931
        %7243 = vmatprep.subr.bf16.mxu0 %v6946
        %7244 = vmatpush1.bf16.msra.mxu0 %v6945
        %7245 = vmatprep.subr.bf16.mxu0 %v6960
        %7246 = vmatpush1.bf16.msra.mxu0 %v6959
        %7247 = vmatprep.subr.bf16.mxu0 %v6974
        %7248 = vmatpush1.bf16.msra.mxu0 %v6973
        %7249 = vmatprep.subr.bf16.mxu0 %v6988
        %7250 = vmatpush1.bf16.msra.mxu0 %v6987
        %7251 = vmatprep.subr.bf16.mxu0 %v7002
        %7252 = vmatpush1.bf16.msra.mxu0 %v7001
        %7253 = vmatprep.subr.bf16.mxu0 %v7016
        %7254 = vmatpush1.bf16.msra.mxu0 %v7015
        %7255 = vmatprep.subr.bf16.mxu0 %v7030
        %7256 = vmatpush1.bf16.msra.mxu0 %v7029
        %7257 = vmatprep.subr.bf16.mxu0 %v7044
        %7258 = vmatpush1.bf16.msra.mxu0 %v7043
        %7259 = vmatprep.subr.bf16.mxu0 %v7058
        %7260 = vmatpush1.bf16.msra.mxu0 %v7057
        %7261 = vmatprep.subr.bf16.mxu0 %v7072
        %7262 = vmatpush1.bf16.msra.mxu0 %v7071
        %7263 = vmatprep.subr.bf16.mxu0 %v7086
        %7264 = vmatpush1.bf16.msra.mxu0 %v7085
        %7265 = vmatprep.mubr.bf16.mxu0 %v7107
        %7266 = vmatmul.mubr.bf16.gmra.mrb[0].mxu0 %v7106
        %v7267 = vpop.f32.mrb[0].mxu0
        %v7268 = vadd.f32 0.0, %v7267
        %v7269 = vpop.f32.mrb[0].mxu0
        %v7270 = vadd.f32 0.0, %v7269
        %v7271 = vpop.f32.mrb[0].mxu0
        %v7272 = vpop.f32.mrb[0].mxu0
        %7273 = vdwg.mxu0
        %7274 = vmatprep.subr.bf16.mxu0 %v6878
        %7275 = vmatpush1.bf16.msra.mxu0 %v6877
        %7276 = vmatprep.subr.bf16.mxu0 %v6892
        %7277 = vmatpush1.bf16.msra.mxu0 %v6891
        %7278 = vmatprep.subr.bf16.mxu0 %v6906
        %7279 = vmatpush1.bf16.msra.mxu0 %v6905
        %7280 = vmatprep.subr.bf16.mxu0 %v6920
        %7281 = vmatpush1.bf16.msra.mxu0 %v6919
        %7282 = vmatprep.subr.bf16.mxu0 %v6934
        %7283 = vmatpush1.bf16.msra.mxu0 %v6933
        %7284 = vmatprep.subr.bf16.mxu0 %v6948
        %7285 = vmatpush1.bf16.msra.mxu0 %v6947
        %7286 = vmatprep.subr.bf16.mxu0 %v6962
        %7287 = vmatpush1.bf16.msra.mxu0 %v6961
        %7288 = vmatprep.subr.bf16.mxu0 %v6976
        %7289 = vmatpush1.bf16.msra.mxu0 %v6975
        %7290 = vmatprep.subr.bf16.mxu0 %v6990
        %7291 = vmatpush1.bf16.msra.mxu0 %v6989
        %7292 = vmatprep.subr.bf16.mxu0 %v7004
        %7293 = vmatpush1.bf16.msra.mxu0 %v7003
        %7294 = vmatprep.subr.bf16.mxu0 %v7018
        %7295 = vmatpush1.bf16.msra.mxu0 %v7017
        %7296 = vmatprep.subr.bf16.mxu0 %v7032
        %7297 = vmatpush1.bf16.msra.mxu0 %v7031
        %7298 = vmatprep.subr.bf16.mxu0 %v7046
        %7299 = vmatpush1.bf16.msra.mxu0 %v7045
        %7300 = vmatprep.subr.bf16.mxu0 %v7060
        %7301 = vmatpush1.bf16.msra.mxu0 %v7059
        %7302 = vmatprep.subr.bf16.mxu0 %v7074
        %7303 = vmatpush1.bf16.msra.mxu0 %v7073
        %7304 = vmatprep.subr.bf16.mxu0 %v7088
        %7305 = vmatpush1.bf16.msra.mxu0 %v7087
        %7306 = vmatprep.mubr.bf16.mxu0 %v7107
        %7307 = vmatmul.mubr.bf16.gmra.mrb[0].mxu0 %v7106
        %v7308 = vpop.f32.mrb[0].mxu0
        %v7309 = vadd.f32 0.0, %v7308
        %v7310 = vpop.f32.mrb[0].mxu0
        %v7311 = vadd.f32 0.0, %v7310
        %v7312 = vpop.f32.mrb[0].mxu0
        %v7313 = vpop.f32.mrb[0].mxu0
        %7314 = vdwg.mxu0
        %7315 = vmatprep.subr.bf16.mxu0 %v6880
        %7316 = vmatpush1.bf16.msra.mxu0 %v6879
        %7317 = vmatprep.subr.bf16.mxu0 %v6894
        %7318 = vmatpush1.bf16.msra.mxu0 %v6893
        %7319 = vmatprep.subr.bf16.mxu0 %v6908
        %7320 = vmatpush1.bf16.msra.mxu0 %v6907
        %7321 = vmatprep.subr.bf16.mxu0 %v6922
        %7322 = vmatpush1.bf16.msra.mxu0 %v6921
        %7323 = vmatprep.subr.bf16.mxu0 %v6936
        %7324 = vmatpush1.bf16.msra.mxu0 %v6935
        %7325 = vmatprep.subr.bf16.mxu0 %v6950
        %7326 = vmatpush1.bf16.msra.mxu0 %v6949
        %7327 = vmatprep.subr.bf16.mxu0 %v6964
        %7328 = vmatpush1.bf16.msra.mxu0 %v6963
        %7329 = vmatprep.subr.bf16.mxu0 %v6978
        %7330 = vmatpush1.bf16.msra.mxu0 %v6977
        %7331 = vmatprep.subr.bf16.mxu0 %v6992
        %7332 = vmatpush1.bf16.msra.mxu0 %v6991
        %7333 = vmatprep.subr.bf16.mxu0 %v7006
        %7334 = vmatpush1.bf16.msra.mxu0 %v7005
        %7335 = vmatprep.subr.bf16.mxu0 %v7020
        %7336 = vmatpush1.bf16.msra.mxu0 %v7019
        %7337 = vmatprep.subr.bf16.mxu0 %v7034
        %7338 = vmatpush1.bf16.msra.mxu0 %v7033
        %7339 = vmatprep.subr.bf16.mxu0 %v7048
        %7340 = vmatpush1.bf16.msra.mxu0 %v7047
        %7341 = vmatprep.subr.bf16.mxu0 %v7062
        %7342 = vmatpush1.bf16.msra.mxu0 %v7061
        %7343 = vmatprep.subr.bf16.mxu0 %v7076
        %7344 = vmatpush1.bf16.msra.mxu0 %v7075
        %7345 = vmatprep.subr.bf16.mxu0 %v7090
        %7346 = vmatpush1.bf16.msra.mxu0 %v7089
        %7347 = vmatprep.mubr.bf16.mxu0 %v7107
        %7348 = vmatmul.mubr.bf16.gmra.mrb[0].mxu0 %v7106
        %v7349 = vpop.f32.mrb[0].mxu0
        %v7350 = vadd.f32 0.0, %v7349
        %v7351 = vpop.f32.mrb[0].mxu0
        %v7352 = vadd.f32 0.0, %v7351
        %v7353 = vpop.f32.mrb[0].mxu0
        %v7354 = vpop.f32.mrb[0].mxu0
        %7355 = vdwg.mxu0
        %7356 = vmatprep.subr.bf16.mxu0 %v6882
        %7357 = vmatpush1.bf16.msra.mxu0 %v6881
        %7358 = vmatprep.subr.bf16.mxu0 %v6896
        %7359 = vmatpush1.bf16.msra.mxu0 %v6895
        %7360 = vmatprep.subr.bf16.mxu0 %v6910
        %7361 = vmatpush1.bf16.msra.mxu0 %v6909
        %7362 = vmatprep.subr.bf16.mxu0 %v6924
        %7363 = vmatpush1.bf16.msra.mxu0 %v6923
        %7364 = vmatprep.subr.bf16.mxu0 %v6938
        %7365 = vmatpush1.bf16.msra.mxu0 %v6937
        %7366 = vmatprep.subr.bf16.mxu0 %v6952
        %7367 = vmatpush1.bf16.msra.mxu0 %v6951
        %7368 = vmatprep.subr.bf16.mxu0 %v6966
        %7369 = vmatpush1.bf16.msra.mxu0 %v6965
        %7370 = vmatprep.subr.bf16.mxu0 %v6980
        %7371 = vmatpush1.bf16.msra.mxu0 %v6979
        %7372 = vmatprep.subr.bf16.mxu0 %v6994
        %7373 = vmatpush1.bf16.msra.mxu0 %v6993
        %7374 = vmatprep.subr.bf16.mxu0 %v7008
        %7375 = vmatpush1.bf16.msra.mxu0 %v7007
        %7376 = vmatprep.subr.bf16.mxu0 %v7022
        %7377 = vmatpush1.bf16.msra.mxu0 %v7021
        %7378 = vmatprep.subr.bf16.mxu0 %v7036
        %7379 = vmatpush1.bf16.msra.mxu0 %v7035
        %7380 = vmatprep.subr.bf16.mxu0 %v7050
        %7381 = vmatpush1.bf16.msra.mxu0 %v7049
        %7382 = vmatprep.subr.bf16.mxu0 %v7064
        %7383 = vmatpush1.bf16.msra.mxu0 %v7063
        %7384 = vmatprep.subr.bf16.mxu0 %v7078
        %7385 = vmatpush1.bf16.msra.mxu0 %v7077
        %7386 = vmatprep.subr.bf16.mxu0 %v7092
        %7387 = vmatpush1.bf16.msra.mxu0 %v7091
        %7388 = vmatprep.mubr.bf16.mxu0 %v7107
        %7389 = vmatmul.mubr.bf16.gmra.mrb[0].mxu0 %v7106
        %v7390 = vpop.f32.mrb[0].mxu0
        %v7391 = vadd.f32 0.0, %v7390
        %v7392 = vpop.f32.mrb[0].mxu0
        %v7393 = vadd.f32 0.0, %v7392
        %v7394 = vpop.f32.mrb[0].mxu0
        %v7395 = vpop.f32.mrb[0].mxu0
        %7396 = vdwg.mxu0
        %v7411 = vcombine.low %v7145, %v7147
        %v7412 = vcombine.low %v7186, %v7188
        %v7413 = vcombine.low %v7227, %v7229
        %v7414 = vcombine.low %v7268, %v7270
        %v7416 = vunpack.c.l.s4 1966171168
        %v7417 = vunpack.c.0.s8 %v7416
        %v7418 = vlaneseq
        %v7419 = vshrl.u32 %v7418, 7
        %v7420 = vsub.s32 %v7417, %v7419
        %v7421 = vrot.slane %v7411, %v7420
        %v7423 = vunpack.c.l.s4 1966171168
        %v7424 = vunpack.c.0.s8 %v7423
        %v7425 = vlaneseq
        %v7426 = vshrl.u32 %v7425, 7
        %v7427 = vsub.s32 %v7424, %v7426
        %v7428 = vrot.slane %v7412, %v7427
        %v7430 = vunpack.c.l.s4 1966171168
        %v7431 = vunpack.c.0.s8 %v7430
        %v7432 = vlaneseq
        %v7433 = vshrl.u32 %v7432, 7
        %v7434 = vsub.s32 %v7431, %v7433
        %v7435 = vrot.slane %v7413, %v7434
        %v7437 = vunpack.c.l.s4 1966171168
        %v7438 = vunpack.c.0.s8 %v7437
        %v7439 = vlaneseq
        %v7440 = vshrl.u32 %v7439, 7
        %v7441 = vsub.s32 %v7438, %v7440
        %v7442 = vrot.slane %v7414, %v7441
        %v7443 = vcombine.low %v7421, %v7428
        %v7444 = vcombine.low %v7435, %v7442
        %v7446 = vunpack.c.l.s4 1966171168
        %v7447 = vunpack.c.0.s8 %v7446
        %v7448 = vlaneseq
        %v7449 = vshrl.u32 %v7448, 7
        %v7450 = vsub.s32 %v7447, %v7449
        %v7451 = vrot.slane %v7443, %v7450
        %v7453 = vunpack.c.l.s4 1966171168
        %v7454 = vunpack.c.0.s8 %v7453
        %v7455 = vlaneseq
        %v7456 = vshrl.u32 %v7455, 7
        %v7457 = vsub.s32 %v7454, %v7456
        %v7458 = vrot.slane %v7444, %v7457
        %v7459 = vcombine.low %v7451, %v7458
        %v7460 = vcombine.low %v7309, %v7311
        %v7461 = vcombine.low %v7350, %v7352
        %v7462 = vcombine.low %v7391, %v7393
        %v7464 = vunpack.c.l.s4 1966171168
        %v7465 = vunpack.c.0.s8 %v7464
        %v7466 = vlaneseq
        %v7467 = vshrl.u32 %v7466, 7
        %v7468 = vsub.s32 %v7465, %v7467
        %v7469 = vrot.slane %v7460, %v7468
        %v7471 = vunpack.c.l.s4 1966171168
        %v7472 = vunpack.c.0.s8 %v7471
        %v7473 = vlaneseq
        %v7474 = vshrl.u32 %v7473, 7
        %v7475 = vsub.s32 %v7472, %v7474
        %v7476 = vrot.slane %v7461, %v7475
        %v7478 = vunpack.c.l.s4 1966171168
        %v7479 = vunpack.c.0.s8 %v7478
        %v7480 = vlaneseq
        %v7481 = vshrl.u32 %v7480, 7
        %v7482 = vsub.s32 %v7479, %v7481
        %v7483 = vrot.slane %v7462, %v7482
        %v7484 = vcombine.low %v7469, %v7476
        %v7486 = vunpack.c.l.s4 1966171168
        %v7487 = vunpack.c.0.s8 %v7486
        %v7488 = vlaneseq
        %v7489 = vshrl.u32 %v7488, 7
        %v7490 = vsub.s32 %v7487, %v7489
        %v7491 = vrot.slane %v7484, %v7490
        %v7493 = vunpack.c.l.s4 1966171168
        %v7494 = vunpack.c.0.s8 %v7493
        %v7495 = vlaneseq
        %v7496 = vshrl.u32 %v7495, 7
        %v7497 = vsub.s32 %v7494, %v7496
        %v7498 = vrot.slane %v7483, %v7497
        %v7499 = vcombine.low %v7491, %v7498
        %v7502 = vadd.f32 %v7108, %v7459
        %v7503 = vadd.f32 %v7109, %v7499
        %7504 = vst [vmem:[#allocation2] sm:$0xff] %v7502
        %v7505 = vlaneseq
        %vm7506 = vcmp.ge.s32.totalorder %v7505, 0
        %vm7507 = vcmp.lt.s32.totalorder %v7505, 768
        %vm7508 = vmand %vm7506, %vm7507
        %7509 = vst.msk [vmem:[#allocation2 + $0x8] sm:$0x3f] %vm7508, %v7503
        // Predicated region
        $region97: #{melanoma_classifier_forward.1} parent=55 // pred_check
          %p7510 = pneg %p474
        $region98: #{melanoma_classifier_forward.1} parent=55 // pred_check_branch
          %7512 = sbr.rel (%p7510) target = $region100
        $region99: #{melanoma_classifier_forward.1} parent=55 // pred_region
          %v7513 = vld [vmem:[#allocation2] sm:$0xff]
          %v7514 = vld [vmem:[#allocation2 + $0x8] sm:$0x3f]
          %v7515 = vmul.f32 %v7513, 0.00390625
          %v7516 = vmul.f32 %v7514, 0.00390625
          %v7519 = vlaneseq
          %v7520 = vshrl.u32 %v7519, 7
          %v7521 = vsub.s32 0, %v7520
          %v7522 = vrot.slane %v7515, %v7521
          %v7523 = vlaneseq
          %v7524 = vshrl.u32 %v7523, 7
          %v7525 = vsub.s32 1, %v7524
          %v7526 = vrot.slane %v7515, %v7525
          %v7527 = vlaneseq
          %v7528 = vshrl.u32 %v7527, 7
          %v7529 = vsub.s32 2, %v7528
          %v7530 = vrot.slane %v7515, %v7529
          %v7531 = vlaneseq
          %v7532 = vshrl.u32 %v7531, 7
          %v7533 = vsub.s32 3, %v7532
          %v7534 = vrot.slane %v7515, %v7533
          %v7535 = vlaneseq
          %v7536 = vshrl.u32 %v7535, 7
          %v7537 = vsub.s32 4, %v7536
          %v7538 = vrot.slane %v7515, %v7537
          %v7539 = vlaneseq
          %v7540 = vshrl.u32 %v7539, 7
          %v7541 = vsub.s32 5, %v7540
          %v7542 = vrot.slane %v7515, %v7541
          %v7543 = vlaneseq
          %v7544 = vshrl.u32 %v7543, 7
          %v7545 = vsub.s32 6, %v7544
          %v7546 = vrot.slane %v7515, %v7545
          %v7547 = vlaneseq
          %v7548 = vshrl.u32 %v7547, 7
          %v7549 = vsub.s32 7, %v7548
          %v7550 = vrot.slane %v7515, %v7549
          %v7551 = vlaneseq
          %v7552 = vshrl.u32 %v7551, 7
          %v7553 = vsub.s32 0, %v7552
          %v7554 = vrot.slane %v7516, %v7553
          %v7555 = vlaneseq
          %v7556 = vshrl.u32 %v7555, 7
          %v7557 = vsub.s32 1, %v7556
          %v7558 = vrot.slane %v7516, %v7557
          %v7559 = vlaneseq
          %v7560 = vshrl.u32 %v7559, 7
          %v7561 = vsub.s32 2, %v7560
          %v7562 = vrot.slane %v7516, %v7561
          %v7563 = vlaneseq
          %v7564 = vshrl.u32 %v7563, 7
          %v7565 = vsub.s32 3, %v7564
          %v7566 = vrot.slane %v7516, %v7565
          %v7567 = vlaneseq
          %v7568 = vshrl.u32 %v7567, 7
          %v7569 = vsub.s32 4, %v7568
          %v7570 = vrot.slane %v7516, %v7569
          %v7571 = vlaneseq
          %v7572 = vshrl.u32 %v7571, 7
          %v7573 = vsub.s32 5, %v7572
          %v7574 = vrot.slane %v7516, %v7573
          %v7589 = vpack.c.bf16 %v7522, %v7522
          %v7590 = vpack.c.bf16 %v7526, %v7526
          %v7591 = vpack.c.bf16 %v7530, %v7530
          %v7592 = vpack.c.bf16 %v7534, %v7534
          %v7593 = vpack.c.bf16 %v7538, %v7538
          %v7594 = vpack.c.bf16 %v7542, %v7542
          %v7595 = vpack.c.bf16 %v7546, %v7546
          %v7596 = vpack.c.bf16 %v7550, %v7550
          %v7597 = vpack.c.bf16 %v7554, %v7554
          %v7598 = vpack.c.bf16 %v7558, %v7558
          %v7599 = vpack.c.bf16 %v7562, %v7562
          %v7600 = vpack.c.bf16 %v7566, %v7566
          %v7601 = vpack.c.bf16 %v7570, %v7570
          %v7602 = vpack.c.bf16 %v7574, %v7574
          %v7603 = vld [vmem:[#allocation15] sm:$0xf]
          %v7604 = vld [vmem:[#allocation15 + $0x4] sm:$0xf]
          %v7605 = vld [vmem:[#allocation15 + $0x8] sm:$0xf]
          %v7606 = vld [vmem:[#allocation15 + $0xc] sm:$0xf]
          %v7607 = vld [vmem:[#allocation15 + $0x10] sm:$0xf]
          %v7608 = vld [vmem:[#allocation15 + $0x14] sm:$0xf]
          %v7609 = vld [vmem:[#allocation15 + $0x18] sm:$0xf]
          %v7610 = vld [vmem:[#allocation15 + $0x1c] sm:$0xf]
          %v7611 = vld [vmem:[#allocation15 + $0x20] sm:$0xf]
          %v7612 = vld [vmem:[#allocation15 + $0x24] sm:$0xf]
          %v7613 = vld [vmem:[#allocation15 + $0x28] sm:$0xf]
          %v7614 = vld [vmem:[#allocation15 + $0x2c] sm:$0xf]
          %v7615 = vld [vmem:[#allocation15 + $0x30] sm:$0xf]
          %v7616 = vld [vmem:[#allocation15 + $0x34] sm:$0xf]
          %v7617 = vld [vmem:[#allocation15 + $0x38] sm:$0xf]
          %v7618 = vld [vmem:[#allocation15 + $0x3c] sm:$0xf]
          %v7619 = vld [vmem:[#allocation15 + $0x40] sm:$0xf]
          %v7620 = vld [vmem:[#allocation15 + $0x44] sm:$0xf]
          %v7621 = vld [vmem:[#allocation15 + $0x48] sm:$0xf]
          %v7622 = vld [vmem:[#allocation15 + $0x4c] sm:$0xf]
          %v7623 = vld [vmem:[#allocation15 + $0x50] sm:$0xf]
          %v7624 = vld [vmem:[#allocation15 + $0x54] sm:$0xf]
          %v7625 = vld [vmem:[#allocation15 + $0x58] sm:$0xf]
          %v7626 = vld [vmem:[#allocation15 + $0x5c] sm:$0xf]
          %v7627 = vld [vmem:[#allocation15 + $0x60] sm:$0xf]
          %v7628 = vld [vmem:[#allocation15 + $0x64] sm:$0xf]
          %v7629 = vld [vmem:[#allocation15 + $0x68] sm:$0xf]
          %v7630 = vld [vmem:[#allocation15 + $0x6c] sm:$0xf]
          %v7631 = vld [vmem:[#allocation15 + $0x70] sm:$0xf]
          %v7632 = vld [vmem:[#allocation15 + $0x74] sm:$0xf]
          %v7633 = vld [vmem:[#allocation15 + $0x78] sm:$0xf]
          %v7634 = vld [vmem:[#allocation15 + $0x7c] sm:$0xf]
          %v7635 = vld [vmem:[#allocation15 + $0x80] sm:$0xf]
          %v7636 = vld [vmem:[#allocation15 + $0x84] sm:$0xf]
          %v7637 = vld [vmem:[#allocation15 + $0x88] sm:$0xf]
          %v7638 = vld [vmem:[#allocation15 + $0x8c] sm:$0xf]
          %v7639 = vld [vmem:[#allocation15 + $0x90] sm:$0xf]
          %v7640 = vld [vmem:[#allocation15 + $0x94] sm:$0xf]
          %v7641 = vld [vmem:[#allocation15 + $0x98] sm:$0xf]
          %v7642 = vld [vmem:[#allocation15 + $0x9c] sm:$0xf]
          %v7643 = vld [vmem:[#allocation15 + $0xa0] sm:$0xf]
          %v7644 = vld [vmem:[#allocation15 + $0xa4] sm:$0xf]
          %v7645 = vld [vmem:[#allocation15 + $0xa8] sm:$0xf]
          %v7646 = vld [vmem:[#allocation15 + $0xac] sm:$0xf]
          %v7647 = vld [vmem:[#allocation15 + $0xb0] sm:$0xf]
          %v7648 = vld [vmem:[#allocation15 + $0xb4] sm:$0xf]
          %v7649 = vld [vmem:[#allocation15 + $0xb8] sm:$0xf]
          %v7650 = vld [vmem:[#allocation15 + $0xbc] sm:$0xf]
          %v7651 = vld [vmem:[#allocation15 + $0xc0] sm:$0xf]
          %v7652 = vld [vmem:[#allocation15 + $0xc4] sm:$0xf]
          %v7653 = vld [vmem:[#allocation15 + $0xc8] sm:$0xf]
          %v7654 = vld [vmem:[#allocation15 + $0xcc] sm:$0xf]
          %v7655 = vld [vmem:[#allocation15 + $0xd0] sm:$0xf]
          %v7656 = vld [vmem:[#allocation15 + $0xd4] sm:$0xf]
          %v7657 = vld [vmem:[#allocation15 + $0xd8] sm:$0xf]
          %v7658 = vld [vmem:[#allocation15 + $0xdc] sm:$0xf]
          %v7659 = vld [vmem:[#allocation15 + $0xe0] sm:$0xf]
          %v7660 = vld [vmem:[#allocation15 + $0xe4] sm:$0xf]
          %v7661 = vld [vmem:[#allocation15 + $0xe8] sm:$0xf]
          %v7662 = vld [vmem:[#allocation15 + $0xec] sm:$0xf]
          %v7663 = vld [vmem:[#allocation15 + $0xf0] sm:$0xf]
          %v7664 = vld [vmem:[#allocation15 + $0xf4] sm:$0xf]
          %v7665 = vld [vmem:[#allocation15 + $0xf8] sm:$0xf]
          %v7666 = vld [vmem:[#allocation15 + $0xfc] sm:$0xf]
          %v7667 = vld [vmem:[#allocation15 + $0x100] sm:$0xf]
          %v7668 = vld [vmem:[#allocation15 + $0x104] sm:$0xf]
          %v7669 = vld [vmem:[#allocation15 + $0x108] sm:$0xf]
          %v7670 = vld [vmem:[#allocation15 + $0x10c] sm:$0xf]
          %v7671 = vld [vmem:[#allocation15 + $0x110] sm:$0xf]
          %v7672 = vld [vmem:[#allocation15 + $0x114] sm:$0xf]
          %v7673 = vld [vmem:[#allocation15 + $0x118] sm:$0xf]
          %v7674 = vld [vmem:[#allocation15 + $0x11c] sm:$0xf]
          %v7675 = vld [vmem:[#allocation15 + $0x120] sm:$0xf]
          %v7676 = vld [vmem:[#allocation15 + $0x124] sm:$0xf]
          %v7677 = vld [vmem:[#allocation15 + $0x128] sm:$0xf]
          %v7678 = vld [vmem:[#allocation15 + $0x12c] sm:$0xf]
          %v7679 = vld [vmem:[#allocation15 + $0x130] sm:$0xf]
          %v7680 = vld [vmem:[#allocation15 + $0x134] sm:$0xf]
          %v7681 = vld [vmem:[#allocation15 + $0x138] sm:$0xf]
          %v7682 = vld [vmem:[#allocation15 + $0x13c] sm:$0xf]
          %v7683 = vld [vmem:[#allocation15 + $0x140] sm:$0xf]
          %v7684 = vld [vmem:[#allocation15 + $0x144] sm:$0xf]
          %v7685 = vld [vmem:[#allocation15 + $0x148] sm:$0xf]
          %v7686 = vld [vmem:[#allocation15 + $0x14c] sm:$0xf]
          %v7687 = vld [vmem:[#allocation15 + $0x150] sm:$0xf]
          %v7688 = vld [vmem:[#allocation15 + $0x154] sm:$0xf]
          %v7689 = vld [vmem:[#allocation15 + $0x158] sm:$0xf]
          %v7690 = vld [vmem:[#allocation15 + $0x15c] sm:$0xf]
          %v7691 = vld [vmem:[#allocation15 + $0x160] sm:$0xf]
          %v7692 = vld [vmem:[#allocation15 + $0x164] sm:$0xf]
          %v7693 = vld [vmem:[#allocation15 + $0x168] sm:$0xf]
          %v7694 = vld [vmem:[#allocation15 + $0x16c] sm:$0xf]
          %v7695 = vld [vmem:[#allocation15 + $0x170] sm:$0xf]
          %v7696 = vld [vmem:[#allocation15 + $0x174] sm:$0xf]
          %v7697 = vld [vmem:[#allocation15 + $0x178] sm:$0xf]
          %v7698 = vld [vmem:[#allocation15 + $0x17c] sm:$0xf]
          %v7699 = vld [vmem:[#allocation15 + $0x180] sm:$0xf]
          %v7700 = vld [vmem:[#allocation15 + $0x184] sm:$0xf]
          %v7701 = vld [vmem:[#allocation15 + $0x188] sm:$0xf]
          %v7702 = vld [vmem:[#allocation15 + $0x18c] sm:$0xf]
          %v7703 = vld [vmem:[#allocation15 + $0x190] sm:$0xf]
          %v7704 = vld [vmem:[#allocation15 + $0x194] sm:$0xf]
          %v7705 = vld [vmem:[#allocation15 + $0x198] sm:$0xf]
          %v7706 = vld [vmem:[#allocation15 + $0x19c] sm:$0xf]
          %v7707 = vld [vmem:[#allocation15 + $0x1a0] sm:$0xf]
          %v7708 = vld [vmem:[#allocation15 + $0x1a4] sm:$0xf]
          %v7709 = vld [vmem:[#allocation15 + $0x1a8] sm:$0xf]
          %v7710 = vld [vmem:[#allocation15 + $0x1ac] sm:$0xf]
          %v7711 = vld [vmem:[#allocation15 + $0x1b0] sm:$0xf]
          %v7712 = vld [vmem:[#allocation15 + $0x1b4] sm:$0xf]
          %v7713 = vld [vmem:[#allocation15 + $0x1b8] sm:$0xf]
          %v7714 = vld [vmem:[#allocation15 + $0x1bc] sm:$0xf]
          %v7715 = vld [vmem:[#allocation15 + $0x1c0] sm:$0xf]
          %v7716 = vld [vmem:[#allocation15 + $0x1c4] sm:$0xf]
          %v7717 = vld [vmem:[#allocation15 + $0x1c8] sm:$0xf]
          %v7718 = vld [vmem:[#allocation15 + $0x1cc] sm:$0xf]
          %v7719 = vld [vmem:[#allocation15 + $0x1d0] sm:$0xf]
          %v7720 = vld [vmem:[#allocation15 + $0x1d4] sm:$0xf]
          %v7721 = vld [vmem:[#allocation15 + $0x1d8] sm:$0xf]
          %v7722 = vld [vmem:[#allocation15 + $0x1dc] sm:$0xf]
          %v7723 = vld [vmem:[#allocation15 + $0x1e0] sm:$0xf]
          %v7724 = vld [vmem:[#allocation15 + $0x1e4] sm:$0xf]
          %v7725 = vld [vmem:[#allocation15 + $0x1e8] sm:$0xf]
          %v7726 = vld [vmem:[#allocation15 + $0x1ec] sm:$0xf]
          %v7727 = vld [vmem:[#allocation15 + $0x1f0] sm:$0xf]
          %v7728 = vld [vmem:[#allocation15 + $0x1f4] sm:$0xf]
          %v7729 = vld [vmem:[#allocation15 + $0x1f8] sm:$0xf]
          %v7730 = vld [vmem:[#allocation15 + $0x1fc] sm:$0xf]
          %v7731 = vld [vmem:[#allocation15 + $0x200] sm:$0xf]
          %v7732 = vld [vmem:[#allocation15 + $0x204] sm:$0xf]
          %v7733 = vld [vmem:[#allocation15 + $0x208] sm:$0xf]
          %v7734 = vld [vmem:[#allocation15 + $0x20c] sm:$0xf]
          %v7735 = vld [vmem:[#allocation15 + $0x210] sm:$0xf]
          %v7736 = vld [vmem:[#allocation15 + $0x214] sm:$0xf]
          %v7737 = vld [vmem:[#allocation15 + $0x218] sm:$0xf]
          %v7738 = vld [vmem:[#allocation15 + $0x21c] sm:$0xf]
          %v7739 = vld [vmem:[#allocation15 + $0x220] sm:$0xf]
          %v7740 = vld [vmem:[#allocation15 + $0x224] sm:$0xf]
          %v7741 = vld [vmem:[#allocation15 + $0x228] sm:$0xf]
          %v7742 = vld [vmem:[#allocation15 + $0x22c] sm:$0xf]
          %v7743 = vld [vmem:[#allocation15 + $0x230] sm:$0xf]
          %v7744 = vld [vmem:[#allocation15 + $0x234] sm:$0xf]
          %v7745 = vld [vmem:[#allocation15 + $0x238] sm:$0xf]
          %v7746 = vld [vmem:[#allocation15 + $0x23c] sm:$0xf]
          %v7747 = vld [vmem:[#allocation15 + $0x240] sm:$0xf]
          %v7748 = vld [vmem:[#allocation15 + $0x244] sm:$0xf]
          %v7749 = vld [vmem:[#allocation15 + $0x248] sm:$0xf]
          %v7750 = vld [vmem:[#allocation15 + $0x24c] sm:$0xf]
          %v7751 = vld [vmem:[#allocation15 + $0x250] sm:$0xf]
          %v7752 = vld [vmem:[#allocation15 + $0x254] sm:$0xf]
          %v7753 = vld [vmem:[#allocation15 + $0x258] sm:$0xf]
          %v7754 = vld [vmem:[#allocation15 + $0x25c] sm:$0xf]
          %v7755 = vld [vmem:[#allocation15 + $0x260] sm:$0xf]
          %v7756 = vld [vmem:[#allocation15 + $0x264] sm:$0xf]
          %v7757 = vld [vmem:[#allocation15 + $0x268] sm:$0xf]
          %v7758 = vld [vmem:[#allocation15 + $0x26c] sm:$0xf]
          %v7759 = vld [vmem:[#allocation15 + $0x270] sm:$0xf]
          %v7760 = vld [vmem:[#allocation15 + $0x274] sm:$0xf]
          %v7761 = vld [vmem:[#allocation15 + $0x278] sm:$0xf]
          %v7762 = vld [vmem:[#allocation15 + $0x27c] sm:$0xf]
          %v7763 = vld [vmem:[#allocation15 + $0x280] sm:$0xf]
          %v7764 = vld [vmem:[#allocation15 + $0x284] sm:$0xf]
          %v7765 = vld [vmem:[#allocation15 + $0x288] sm:$0xf]
          %v7766 = vld [vmem:[#allocation15 + $0x28c] sm:$0xf]
          %v7767 = vld [vmem:[#allocation15 + $0x290] sm:$0xf]
          %v7768 = vld [vmem:[#allocation15 + $0x294] sm:$0xf]
          %v7769 = vld [vmem:[#allocation15 + $0x298] sm:$0xf]
          %v7770 = vld [vmem:[#allocation15 + $0x29c] sm:$0xf]
          %v7771 = vld [vmem:[#allocation15 + $0x2a0] sm:$0xf]
          %v7772 = vld [vmem:[#allocation15 + $0x2a4] sm:$0xf]
          %v7773 = vld [vmem:[#allocation15 + $0x2a8] sm:$0xf]
          %v7774 = vld [vmem:[#allocation15 + $0x2ac] sm:$0xf]
          %v7775 = vld [vmem:[#allocation15 + $0x2b0] sm:$0xf]
          %v7776 = vld [vmem:[#allocation15 + $0x2b4] sm:$0xf]
          %v7777 = vld [vmem:[#allocation15 + $0x2b8] sm:$0xf]
          %v7778 = vld [vmem:[#allocation15 + $0x2bc] sm:$0xf]
          %v7779 = vld [vmem:[#allocation15 + $0x2c0] sm:$0xf]
          %v7780 = vld [vmem:[#allocation15 + $0x2c4] sm:$0xf]
          %v7781 = vld [vmem:[#allocation15 + $0x2c8] sm:$0xf]
          %v7782 = vld [vmem:[#allocation15 + $0x2cc] sm:$0xf]
          %v7783 = vld [vmem:[#allocation15 + $0x2d0] sm:$0xf]
          %v7784 = vld [vmem:[#allocation15 + $0x2d4] sm:$0xf]
          %v7785 = vld [vmem:[#allocation15 + $0x2d8] sm:$0xf]
          %v7786 = vld [vmem:[#allocation15 + $0x2dc] sm:$0xf]
          %v7787 = vld [vmem:[#allocation15 + $0x2e0] sm:$0xf]
          %v7788 = vld [vmem:[#allocation15 + $0x2e4] sm:$0xf]
          %v7789 = vld [vmem:[#allocation15 + $0x2e8] sm:$0xf]
          %v7790 = vld [vmem:[#allocation15 + $0x2ec] sm:$0xf]
          %v7791 = vld [vmem:[#allocation15 + $0x2f0] sm:$0xf]
          %v7792 = vld [vmem:[#allocation15 + $0x2f4] sm:$0xf]
          %v7793 = vld [vmem:[#allocation15 + $0x2f8] sm:$0xf]
          %v7794 = vld [vmem:[#allocation15 + $0x2fc] sm:$0xf]
          %v7795 = vld [vmem:[#allocation15 + $0x300] sm:$0xf]
          %v7796 = vld [vmem:[#allocation15 + $0x304] sm:$0xf]
          %v7797 = vld [vmem:[#allocation15 + $0x308] sm:$0xf]
          %v7798 = vld [vmem:[#allocation15 + $0x30c] sm:$0xf]
          %v7799 = vld [vmem:[#allocation15 + $0x310] sm:$0xf]
          %v7800 = vld [vmem:[#allocation15 + $0x314] sm:$0xf]
          %v7801 = vld [vmem:[#allocation15 + $0x318] sm:$0xf]
          %v7802 = vld [vmem:[#allocation15 + $0x31c] sm:$0xf]
          %v7803 = vld [vmem:[#allocation15 + $0x320] sm:$0xf]
          %v7804 = vld [vmem:[#allocation15 + $0x324] sm:$0xf]
          %v7805 = vld [vmem:[#allocation15 + $0x328] sm:$0xf]
          %v7806 = vld [vmem:[#allocation15 + $0x32c] sm:$0xf]
          %v7807 = vld [vmem:[#allocation15 + $0x330] sm:$0xf]
          %v7808 = vld [vmem:[#allocation15 + $0x334] sm:$0xf]
          %v7809 = vld [vmem:[#allocation15 + $0x338] sm:$0xf]
          %v7810 = vld [vmem:[#allocation15 + $0x33c] sm:$0xf]
          %v7811 = vld [vmem:[#allocation15 + $0x340] sm:$0xf]
          %v7812 = vld [vmem:[#allocation15 + $0x344] sm:$0xf]
          %v7813 = vld [vmem:[#allocation15 + $0x348] sm:$0xf]
          %v7814 = vld [vmem:[#allocation15 + $0x34c] sm:$0xf]
          %v7815 = vld [vmem:[#allocation15 + $0x350] sm:$0xf]
          %v7816 = vld [vmem:[#allocation15 + $0x354] sm:$0xf]
          %v7817 = vld [vmem:[#allocation15 + $0x358] sm:$0xf]
          %v7818 = vld [vmem:[#allocation15 + $0x35c] sm:$0xf]
          %v7819 = vld [vmem:[#allocation15 + $0x360] sm:$0xf]
          %v7820 = vld [vmem:[#allocation15 + $0x364] sm:$0xf]
          %v7821 = vld [vmem:[#allocation15 + $0x368] sm:$0xf]
          %v7822 = vld [vmem:[#allocation15 + $0x36c] sm:$0xf]
          %v7823 = vld [vmem:[#allocation15 + $0x370] sm:$0xf]
          %v7824 = vld [vmem:[#allocation15 + $0x374] sm:$0xf]
          %v7825 = vld [vmem:[#allocation15 + $0x378] sm:$0xf]
          %v7826 = vld [vmem:[#allocation15 + $0x37c] sm:$0xf]
          %v7827 = vld [vmem:[#allocation17] sm:$0x1]
          %v8052 = vunpack.c.l.b16 %v7603
          %v8053 = vunpack.c.l.b16 %v7604
          %v8054 = vunpack.c.l.b16 %v7605
          %v8055 = vunpack.c.l.b16 %v7606
          %v8056 = vunpack.c.l.b16 %v7607
          %v8057 = vunpack.c.l.b16 %v7608
          %v8058 = vunpack.c.l.b16 %v7609
          %v8059 = vunpack.c.l.b16 %v7610
          %v8060 = vunpack.c.l.b16 %v7611
          %v8061 = vunpack.c.l.b16 %v7612
          %v8062 = vunpack.c.l.b16 %v7613
          %v8063 = vunpack.c.l.b16 %v7614
          %v8064 = vunpack.c.l.b16 %v7615
          %v8065 = vunpack.c.l.b16 %v7616
          %v8066 = vunpack.c.l.b16 %v7617
          %v8067 = vunpack.c.l.b16 %v7618
          %v8068 = vunpack.c.l.b16 %v7619
          %v8069 = vunpack.c.l.b16 %v7620
          %v8070 = vunpack.c.l.b16 %v7621
          %v8071 = vunpack.c.l.b16 %v7622
          %v8072 = vunpack.c.l.b16 %v7623
          %v8073 = vunpack.c.l.b16 %v7624
          %v8074 = vunpack.c.l.b16 %v7625
          %v8075 = vunpack.c.l.b16 %v7626
          %v8076 = vunpack.c.l.b16 %v7627
          %v8077 = vunpack.c.l.b16 %v7628
          %v8078 = vunpack.c.l.b16 %v7629
          %v8079 = vunpack.c.l.b16 %v7630
          %v8080 = vunpack.c.l.b16 %v7631
          %v8081 = vunpack.c.l.b16 %v7632
          %v8082 = vunpack.c.l.b16 %v7633
          %v8083 = vunpack.c.l.b16 %v7634
          %v8084 = vunpack.c.l.b16 %v7635
          %v8085 = vunpack.c.l.b16 %v7636
          %v8086 = vunpack.c.l.b16 %v7637
          %v8087 = vunpack.c.l.b16 %v7638
          %v8088 = vunpack.c.l.b16 %v7639
          %v8089 = vunpack.c.l.b16 %v7640
          %v8090 = vunpack.c.l.b16 %v7641
          %v8091 = vunpack.c.l.b16 %v7642
          %v8092 = vunpack.c.l.b16 %v7643
          %v8093 = vunpack.c.l.b16 %v7644
          %v8094 = vunpack.c.l.b16 %v7645
          %v8095 = vunpack.c.l.b16 %v7646
          %v8096 = vunpack.c.l.b16 %v7647
          %v8097 = vunpack.c.l.b16 %v7648
          %v8098 = vunpack.c.l.b16 %v7649
          %v8099 = vunpack.c.l.b16 %v7650
          %v8100 = vunpack.c.l.b16 %v7651
          %v8101 = vunpack.c.l.b16 %v7652
          %v8102 = vunpack.c.l.b16 %v7653
          %v8103 = vunpack.c.l.b16 %v7654
          %v8104 = vunpack.c.l.b16 %v7655
          %v8105 = vunpack.c.l.b16 %v7656
          %v8106 = vunpack.c.l.b16 %v7657
          %v8107 = vunpack.c.l.b16 %v7658
          %v8108 = vunpack.c.l.b16 %v7659
          %v8109 = vunpack.c.l.b16 %v7660
          %v8110 = vunpack.c.l.b16 %v7661
          %v8111 = vunpack.c.l.b16 %v7662
          %v8112 = vunpack.c.l.b16 %v7663
          %v8113 = vunpack.c.l.b16 %v7664
          %v8114 = vunpack.c.l.b16 %v7665
          %v8115 = vunpack.c.l.b16 %v7666
          %v8116 = vunpack.c.l.b16 %v7667
          %v8117 = vunpack.c.l.b16 %v7668
          %v8118 = vunpack.c.l.b16 %v7669
          %v8119 = vunpack.c.l.b16 %v7670
          %v8120 = vunpack.c.l.b16 %v7671
          %v8121 = vunpack.c.l.b16 %v7672
          %v8122 = vunpack.c.l.b16 %v7673
          %v8123 = vunpack.c.l.b16 %v7674
          %v8124 = vunpack.c.l.b16 %v7675
          %v8125 = vunpack.c.l.b16 %v7676
          %v8126 = vunpack.c.l.b16 %v7677
          %v8127 = vunpack.c.l.b16 %v7678
          %v8128 = vunpack.c.l.b16 %v7679
          %v8129 = vunpack.c.l.b16 %v7680
          %v8130 = vunpack.c.l.b16 %v7681
          %v8131 = vunpack.c.l.b16 %v7682
          %v8132 = vunpack.c.l.b16 %v7683
          %v8133 = vunpack.c.l.b16 %v7684
          %v8134 = vunpack.c.l.b16 %v7685
          %v8135 = vunpack.c.l.b16 %v7686
          %v8136 = vunpack.c.l.b16 %v7687
          %v8137 = vunpack.c.l.b16 %v7688
          %v8138 = vunpack.c.l.b16 %v7689
          %v8139 = vunpack.c.l.b16 %v7690
          %v8140 = vunpack.c.l.b16 %v7691
          %v8141 = vunpack.c.l.b16 %v7692
          %v8142 = vunpack.c.l.b16 %v7693
          %v8143 = vunpack.c.l.b16 %v7694
          %v8144 = vunpack.c.l.b16 %v7695
          %v8145 = vunpack.c.l.b16 %v7696
          %v8146 = vunpack.c.l.b16 %v7697
          %v8147 = vunpack.c.l.b16 %v7698
          %v8148 = vunpack.c.l.b16 %v7699
          %v8149 = vunpack.c.l.b16 %v7700
          %v8150 = vunpack.c.l.b16 %v7701
          %v8151 = vunpack.c.l.b16 %v7702
          %v8152 = vunpack.c.l.b16 %v7703
          %v8153 = vunpack.c.l.b16 %v7704
          %v8154 = vunpack.c.l.b16 %v7705
          %v8155 = vunpack.c.l.b16 %v7706
          %v8156 = vunpack.c.l.b16 %v7707
          %v8157 = vunpack.c.l.b16 %v7708
          %v8158 = vunpack.c.l.b16 %v7709
          %v8159 = vunpack.c.l.b16 %v7710
          %v8160 = vunpack.c.l.b16 %v7711
          %v8161 = vunpack.c.l.b16 %v7712
          %v8162 = vunpack.c.l.b16 %v7713
          %v8163 = vunpack.c.l.b16 %v7714
          %v8164 = vunpack.c.l.b16 %v7715
          %v8165 = vunpack.c.l.b16 %v7716
          %v8166 = vunpack.c.l.b16 %v7717
          %v8167 = vunpack.c.l.b16 %v7718
          %v8168 = vunpack.c.l.b16 %v7719
          %v8169 = vunpack.c.l.b16 %v7720
          %v8170 = vunpack.c.l.b16 %v7721
          %v8171 = vunpack.c.l.b16 %v7722
          %v8172 = vunpack.c.l.b16 %v7723
          %v8173 = vunpack.c.l.b16 %v7724
          %v8174 = vunpack.c.l.b16 %v7725
          %v8175 = vunpack.c.l.b16 %v7726
          %v8176 = vunpack.c.l.b16 %v7727
          %v8177 = vunpack.c.l.b16 %v7728
          %v8178 = vunpack.c.l.b16 %v7729
          %v8179 = vunpack.c.l.b16 %v7730
          %v8180 = vunpack.c.l.b16 %v7731
          %v8181 = vunpack.c.l.b16 %v7732
          %v8182 = vunpack.c.l.b16 %v7733
          %v8183 = vunpack.c.l.b16 %v7734
          %v8184 = vunpack.c.l.b16 %v7735
          %v8185 = vunpack.c.l.b16 %v7736
          %v8186 = vunpack.c.l.b16 %v7737
          %v8187 = vunpack.c.l.b16 %v7738
          %v8188 = vunpack.c.l.b16 %v7739
          %v8189 = vunpack.c.l.b16 %v7740
          %v8190 = vunpack.c.l.b16 %v7741
          %v8191 = vunpack.c.l.b16 %v7742
          %v8192 = vunpack.c.l.b16 %v7743
          %v8193 = vunpack.c.l.b16 %v7744
          %v8194 = vunpack.c.l.b16 %v7745
          %v8195 = vunpack.c.l.b16 %v7746
          %v8196 = vunpack.c.l.b16 %v7747
          %v8197 = vunpack.c.l.b16 %v7748
          %v8198 = vunpack.c.l.b16 %v7749
          %v8199 = vunpack.c.l.b16 %v7750
          %v8200 = vunpack.c.l.b16 %v7751
          %v8201 = vunpack.c.l.b16 %v7752
          %v8202 = vunpack.c.l.b16 %v7753
          %v8203 = vunpack.c.l.b16 %v7754
          %v8204 = vunpack.c.l.b16 %v7755
          %v8205 = vunpack.c.l.b16 %v7756
          %v8206 = vunpack.c.l.b16 %v7757
          %v8207 = vunpack.c.l.b16 %v7758
          %v8208 = vunpack.c.l.b16 %v7759
          %v8209 = vunpack.c.l.b16 %v7760
          %v8210 = vunpack.c.l.b16 %v7761
          %v8211 = vunpack.c.l.b16 %v7762
          %v8212 = vunpack.c.l.b16 %v7763
          %v8213 = vunpack.c.l.b16 %v7764
          %v8214 = vunpack.c.l.b16 %v7765
          %v8215 = vunpack.c.l.b16 %v7766
          %v8216 = vunpack.c.l.b16 %v7767
          %v8217 = vunpack.c.l.b16 %v7768
          %v8218 = vunpack.c.l.b16 %v7769
          %v8219 = vunpack.c.l.b16 %v7770
          %v8220 = vunpack.c.l.b16 %v7771
          %v8221 = vunpack.c.l.b16 %v7772
          %v8222 = vunpack.c.l.b16 %v7773
          %v8223 = vunpack.c.l.b16 %v7774
          %v8224 = vunpack.c.l.b16 %v7775
          %v8225 = vunpack.c.l.b16 %v7776
          %v8226 = vunpack.c.l.b16 %v7777
          %v8227 = vunpack.c.l.b16 %v7778
          %v8228 = vunpack.c.l.b16 %v7779
          %v8229 = vunpack.c.l.b16 %v7780
          %v8230 = vunpack.c.l.b16 %v7781
          %v8231 = vunpack.c.l.b16 %v7782
          %v8232 = vunpack.c.l.b16 %v7783
          %v8233 = vunpack.c.l.b16 %v7784
          %v8234 = vunpack.c.l.b16 %v7785
          %v8235 = vunpack.c.l.b16 %v7786
          %v8236 = vunpack.c.l.b16 %v7787
          %v8237 = vunpack.c.l.b16 %v7788
          %v8238 = vunpack.c.l.b16 %v7789
          %v8239 = vunpack.c.l.b16 %v7790
          %v8240 = vunpack.c.l.b16 %v7791
          %v8241 = vunpack.c.l.b16 %v7792
          %v8242 = vunpack.c.l.b16 %v7793
          %v8243 = vunpack.c.l.b16 %v7794
          %v8244 = vunpack.c.l.b16 %v7795
          %v8245 = vunpack.c.l.b16 %v7796
          %v8246 = vunpack.c.l.b16 %v7797
          %v8247 = vunpack.c.l.b16 %v7798
          %v8248 = vunpack.c.l.b16 %v7799
          %v8249 = vunpack.c.l.b16 %v7800
          %v8250 = vunpack.c.l.b16 %v7801
          %v8251 = vunpack.c.l.b16 %v7802
          %v8252 = vunpack.c.l.b16 %v7803
          %v8253 = vunpack.c.l.b16 %v7804
          %v8254 = vunpack.c.l.b16 %v7805
          %v8255 = vunpack.c.l.b16 %v7806
          %v8256 = vunpack.c.l.b16 %v7807
          %v8257 = vunpack.c.l.b16 %v7808
          %v8258 = vunpack.c.l.b16 %v7809
          %v8259 = vunpack.c.l.b16 %v7810
          %v8260 = vunpack.c.l.b16 %v7811
          %v8261 = vunpack.c.l.b16 %v7812
          %v8262 = vunpack.c.l.b16 %v7813
          %v8263 = vunpack.c.l.b16 %v7814
          %v8264 = vunpack.c.l.b16 %v7815
          %v8265 = vunpack.c.l.b16 %v7816
          %v8266 = vunpack.c.l.b16 %v7817
          %v8267 = vunpack.c.l.b16 %v7818
          %v8268 = vunpack.c.l.b16 %v7819
          %v8269 = vunpack.c.l.b16 %v7820
          %v8270 = vunpack.c.l.b16 %v7821
          %v8271 = vunpack.c.l.b16 %v7822
          %v8272 = vunpack.c.l.b16 %v7823
          %v8273 = vunpack.c.l.b16 %v7824
          %v8274 = vunpack.c.l.b16 %v7825
          %v8275 = vunpack.c.l.b16 %v7826
          %v8276 = vpack.c.b16 %v8053, %v8052
          %v8277 = vpack.c.b16 %v8055, %v8054
          %v8278 = vpack.c.b16 %v8057, %v8056
          %v8279 = vpack.c.b16 %v8059, %v8058
          %v8280 = vpack.c.b16 %v8061, %v8060
          %v8281 = vpack.c.b16 %v8063, %v8062
          %v8282 = vpack.c.b16 %v8065, %v8064
          %v8283 = vpack.c.b16 %v8067, %v8066
          %v8284 = vpack.c.b16 %v8069, %v8068
          %v8285 = vpack.c.b16 %v8071, %v8070
          %v8286 = vpack.c.b16 %v8073, %v8072
          %v8287 = vpack.c.b16 %v8075, %v8074
          %v8288 = vpack.c.b16 %v8077, %v8076
          %v8289 = vpack.c.b16 %v8079, %v8078
          %v8290 = vpack.c.b16 %v8081, %v8080
          %v8291 = vpack.c.b16 %v8083, %v8082
          %v8292 = vpack.c.b16 %v8085, %v8084
          %v8293 = vpack.c.b16 %v8087, %v8086
          %v8294 = vpack.c.b16 %v8089, %v8088
          %v8295 = vpack.c.b16 %v8091, %v8090
          %v8296 = vpack.c.b16 %v8093, %v8092
          %v8297 = vpack.c.b16 %v8095, %v8094
          %v8298 = vpack.c.b16 %v8097, %v8096
          %v8299 = vpack.c.b16 %v8099, %v8098
          %v8300 = vpack.c.b16 %v8101, %v8100
          %v8301 = vpack.c.b16 %v8103, %v8102
          %v8302 = vpack.c.b16 %v8105, %v8104
          %v8303 = vpack.c.b16 %v8107, %v8106
          %v8304 = vpack.c.b16 %v8109, %v8108
          %v8305 = vpack.c.b16 %v8111, %v8110
          %v8306 = vpack.c.b16 %v8113, %v8112
          %v8307 = vpack.c.b16 %v8115, %v8114
          %v8308 = vpack.c.b16 %v8117, %v8116
          %v8309 = vpack.c.b16 %v8119, %v8118
          %v8310 = vpack.c.b16 %v8121, %v8120
          %v8311 = vpack.c.b16 %v8123, %v8122
          %v8312 = vpack.c.b16 %v8125, %v8124
          %v8313 = vpack.c.b16 %v8127, %v8126
          %v8314 = vpack.c.b16 %v8129, %v8128
          %v8315 = vpack.c.b16 %v8131, %v8130
          %v8316 = vpack.c.b16 %v8133, %v8132
          %v8317 = vpack.c.b16 %v8135, %v8134
          %v8318 = vpack.c.b16 %v8137, %v8136
          %v8319 = vpack.c.b16 %v8139, %v8138
          %v8320 = vpack.c.b16 %v8141, %v8140
          %v8321 = vpack.c.b16 %v8143, %v8142
          %v8322 = vpack.c.b16 %v8145, %v8144
          %v8323 = vpack.c.b16 %v8147, %v8146
          %v8324 = vpack.c.b16 %v8149, %v8148
          %v8325 = vpack.c.b16 %v8151, %v8150
          %v8326 = vpack.c.b16 %v8153, %v8152
          %v8327 = vpack.c.b16 %v8155, %v8154
          %v8328 = vpack.c.b16 %v8157, %v8156
          %v8329 = vpack.c.b16 %v8159, %v8158
          %v8330 = vpack.c.b16 %v8161, %v8160
          %v8331 = vpack.c.b16 %v8163, %v8162
          %v8332 = vpack.c.b16 %v8165, %v8164
          %v8333 = vpack.c.b16 %v8167, %v8166
          %v8334 = vpack.c.b16 %v8169, %v8168
          %v8335 = vpack.c.b16 %v8171, %v8170
          %v8336 = vpack.c.b16 %v8173, %v8172
          %v8337 = vpack.c.b16 %v8175, %v8174
          %v8338 = vpack.c.b16 %v8177, %v8176
          %v8339 = vpack.c.b16 %v8179, %v8178
          %v8340 = vpack.c.b16 %v8181, %v8180
          %v8341 = vpack.c.b16 %v8183, %v8182
          %v8342 = vpack.c.b16 %v8185, %v8184
          %v8343 = vpack.c.b16 %v8187, %v8186
          %v8344 = vpack.c.b16 %v8189, %v8188
          %v8345 = vpack.c.b16 %v8191, %v8190
          %v8346 = vpack.c.b16 %v8193, %v8192
          %v8347 = vpack.c.b16 %v8195, %v8194
          %v8348 = vpack.c.b16 %v8197, %v8196
          %v8349 = vpack.c.b16 %v8199, %v8198
          %v8350 = vpack.c.b16 %v8201, %v8200
          %v8351 = vpack.c.b16 %v8203, %v8202
          %v8352 = vpack.c.b16 %v8205, %v8204
          %v8353 = vpack.c.b16 %v8207, %v8206
          %v8354 = vpack.c.b16 %v8209, %v8208
          %v8355 = vpack.c.b16 %v8211, %v8210
          %v8356 = vpack.c.b16 %v8213, %v8212
          %v8357 = vpack.c.b16 %v8215, %v8214
          %v8358 = vpack.c.b16 %v8217, %v8216
          %v8359 = vpack.c.b16 %v8219, %v8218
          %v8360 = vpack.c.b16 %v8221, %v8220
          %v8361 = vpack.c.b16 %v8223, %v8222
          %v8362 = vpack.c.b16 %v8225, %v8224
          %v8363 = vpack.c.b16 %v8227, %v8226
          %v8364 = vpack.c.b16 %v8229, %v8228
          %v8365 = vpack.c.b16 %v8231, %v8230
          %v8366 = vpack.c.b16 %v8233, %v8232
          %v8367 = vpack.c.b16 %v8235, %v8234
          %v8368 = vpack.c.b16 %v8237, %v8236
          %v8369 = vpack.c.b16 %v8239, %v8238
          %v8370 = vpack.c.b16 %v8241, %v8240
          %v8371 = vpack.c.b16 %v8243, %v8242
          %v8372 = vpack.c.b16 %v8245, %v8244
          %v8373 = vpack.c.b16 %v8247, %v8246
          %v8374 = vpack.c.b16 %v8249, %v8248
          %v8375 = vpack.c.b16 %v8251, %v8250
          %v8376 = vpack.c.b16 %v8253, %v8252
          %v8377 = vpack.c.b16 %v8255, %v8254
          %v8378 = vpack.c.b16 %v8257, %v8256
          %v8379 = vpack.c.b16 %v8259, %v8258
          %v8380 = vpack.c.b16 %v8261, %v8260
          %v8381 = vpack.c.b16 %v8263, %v8262
          %v8382 = vpack.c.b16 %v8265, %v8264
          %v8383 = vpack.c.b16 %v8267, %v8266
          %v8384 = vpack.c.b16 %v8269, %v8268
          %v8385 = vpack.c.b16 %v8271, %v8270
          %v8386 = vpack.c.b16 %v8273, %v8272
          %v8387 = vpack.c.b16 %v8275, %v8274
          %8500 = vmatprep.subr.bf16.mxu0 0
          %8501 = vmatpush1.bf16.msra.mxu0 %v8276
          %8502 = vmatprep.subr.bf16.mxu0 0
          %8503 = vmatpush1.bf16.msra.mxu0 %v8277
          %8504 = vmatprep.subr.bf16.mxu0 0
          %8505 = vmatpush1.bf16.msra.mxu0 %v8278
          %8506 = vmatprep.subr.bf16.mxu0 0
          %8507 = vmatpush1.bf16.msra.mxu0 %v8279
          %8508 = vmatprep.subr.bf16.mxu0 0
          %8509 = vmatpush1.bf16.msra.mxu0 %v8280
          %8510 = vmatprep.subr.bf16.mxu0 0
          %8511 = vmatpush1.bf16.msra.mxu0 %v8281
          %8512 = vmatprep.subr.bf16.mxu0 0
          %8513 = vmatpush1.bf16.msra.mxu0 %v8282
          %8514 = vmatprep.subr.bf16.mxu0 0
          %8515 = vmatpush1.bf16.msra.mxu0 %v8283
          %8516 = vmatprep.subr.bf16.mxu0 0
          %8517 = vmatpush1.bf16.msra.mxu0 %v8284
          %8518 = vmatprep.subr.bf16.mxu0 0
          %8519 = vmatpush1.bf16.msra.mxu0 %v8285
          %8520 = vmatprep.subr.bf16.mxu0 0
          %8521 = vmatpush1.bf16.msra.mxu0 %v8286
          %8522 = vmatprep.subr.bf16.mxu0 0
          %8523 = vmatpush1.bf16.msra.mxu0 %v8287
          %8524 = vmatprep.subr.bf16.mxu0 0
          %8525 = vmatpush1.bf16.msra.mxu0 %v8288
          %8526 = vmatprep.subr.bf16.mxu0 0
          %8527 = vmatpush1.bf16.msra.mxu0 %v8289
          %8528 = vmatprep.subr.bf16.mxu0 0
          %8529 = vmatpush1.bf16.msra.mxu0 %v8290
          %8530 = vmatprep.subr.bf16.mxu0 0
          %8531 = vmatpush1.bf16.msra.mxu0 %v8291
          %8532 = vmatprep.mubr.bf16.mxu0 %v7590
          %8533 = vmatmul.mubr.bf16.gmra.mrb[0].mxu0 %v7589
          %v8534 = vpop.f32.mrb[0].mxu0
          %v8535 = vadd.f32 %v7827, %v8534
          %v8536 = vpop.f32.mrb[0].mxu0
          %v8537 = vpop.f32.mrb[0].mxu0
          %v8538 = vpop.f32.mrb[0].mxu0
          %8539 = vdwg.mxu0
          %8540 = vmatprep.subr.bf16.mxu0 0
          %8541 = vmatpush1.bf16.msra.mxu0 %v8292
          %8542 = vmatprep.subr.bf16.mxu0 0
          %8543 = vmatpush1.bf16.msra.mxu0 %v8293
          %8544 = vmatprep.subr.bf16.mxu0 0
          %8545 = vmatpush1.bf16.msra.mxu0 %v8294
          %8546 = vmatprep.subr.bf16.mxu0 0
          %8547 = vmatpush1.bf16.msra.mxu0 %v8295
          %8548 = vmatprep.subr.bf16.mxu0 0
          %8549 = vmatpush1.bf16.msra.mxu0 %v8296
          %8550 = vmatprep.subr.bf16.mxu0 0
          %8551 = vmatpush1.bf16.msra.mxu0 %v8297
          %8552 = vmatprep.subr.bf16.mxu0 0
          %8553 = vmatpush1.bf16.msra.mxu0 %v8298
          %8554 = vmatprep.subr.bf16.mxu0 0
          %8555 = vmatpush1.bf16.msra.mxu0 %v8299
          %8556 = vmatprep.subr.bf16.mxu0 0
          %8557 = vmatpush1.bf16.msra.mxu0 %v8300
          %8558 = vmatprep.subr.bf16.mxu0 0
          %8559 = vmatpush1.bf16.msra.mxu0 %v8301
          %8560 = vmatprep.subr.bf16.mxu0 0
          %8561 = vmatpush1.bf16.msra.mxu0 %v8302
          %8562 = vmatprep.subr.bf16.mxu0 0
          %8563 = vmatpush1.bf16.msra.mxu0 %v8303
          %8564 = vmatprep.subr.bf16.mxu0 0
          %8565 = vmatpush1.bf16.msra.mxu0 %v8304
          %8566 = vmatprep.subr.bf16.mxu0 0
          %8567 = vmatpush1.bf16.msra.mxu0 %v8305
          %8568 = vmatprep.subr.bf16.mxu0 0
          %8569 = vmatpush1.bf16.msra.mxu0 %v8306
          %8570 = vmatprep.subr.bf16.mxu0 0
          %8571 = vmatpush1.bf16.msra.mxu0 %v8307
          %8572 = vmatprep.mubr.bf16.mxu0 %v7592
          %8573 = vmatmul.mubr.bf16.gmra.mrb[0].mxu0 %v7591
          %v8574 = vpop.f32.mrb[0].mxu0
          %v8575 = vadd.f32 %v8535, %v8574
          %v8576 = vpop.f32.mrb[0].mxu0
          %v8577 = vpop.f32.mrb[0].mxu0
          %v8578 = vpop.f32.mrb[0].mxu0
          %8579 = vdwg.mxu0
          %8580 = vmatprep.subr.bf16.mxu0 0
          %8581 = vmatpush1.bf16.msra.mxu0 %v8308
          %8582 = vmatprep.subr.bf16.mxu0 0
          %8583 = vmatpush1.bf16.msra.mxu0 %v8309
          %8584 = vmatprep.subr.bf16.mxu0 0
          %8585 = vmatpush1.bf16.msra.mxu0 %v8310
          %8586 = vmatprep.subr.bf16.mxu0 0
          %8587 = vmatpush1.bf16.msra.mxu0 %v8311
          %8588 = vmatprep.subr.bf16.mxu0 0
          %8589 = vmatpush1.bf16.msra.mxu0 %v8312
          %8590 = vmatprep.subr.bf16.mxu0 0
          %8591 = vmatpush1.bf16.msra.mxu0 %v8313
          %8592 = vmatprep.subr.bf16.mxu0 0
          %8593 = vmatpush1.bf16.msra.mxu0 %v8314
          %8594 = vmatprep.subr.bf16.mxu0 0
          %8595 = vmatpush1.bf16.msra.mxu0 %v8315
          %8596 = vmatprep.subr.bf16.mxu0 0
          %8597 = vmatpush1.bf16.msra.mxu0 %v8316
          %8598 = vmatprep.subr.bf16.mxu0 0
          %8599 = vmatpush1.bf16.msra.mxu0 %v8317
          %8600 = vmatprep.subr.bf16.mxu0 0
          %8601 = vmatpush1.bf16.msra.mxu0 %v8318
          %8602 = vmatprep.subr.bf16.mxu0 0
          %8603 = vmatpush1.bf16.msra.mxu0 %v8319
          %8604 = vmatprep.subr.bf16.mxu0 0
          %8605 = vmatpush1.bf16.msra.mxu0 %v8320
          %8606 = vmatprep.subr.bf16.mxu0 0
          %8607 = vmatpush1.bf16.msra.mxu0 %v8321
          %8608 = vmatprep.subr.bf16.mxu0 0
          %8609 = vmatpush1.bf16.msra.mxu0 %v8322
          %8610 = vmatprep.subr.bf16.mxu0 0
          %8611 = vmatpush1.bf16.msra.mxu0 %v8323
          %8612 = vmatprep.mubr.bf16.mxu0 %v7594
          %8613 = vmatmul.mubr.bf16.gmra.mrb[0].mxu0 %v7593
          %v8614 = vpop.f32.mrb[0].mxu0
          %v8615 = vadd.f32 %v8575, %v8614
          %v8616 = vpop.f32.mrb[0].mxu0
          %v8617 = vpop.f32.mrb[0].mxu0
          %v8618 = vpop.f32.mrb[0].mxu0
          %8619 = vdwg.mxu0
          %8620 = vmatprep.subr.bf16.mxu0 0
          %8621 = vmatpush1.bf16.msra.mxu0 %v8324
          %8622 = vmatprep.subr.bf16.mxu0 0
          %8623 = vmatpush1.bf16.msra.mxu0 %v8325
          %8624 = vmatprep.subr.bf16.mxu0 0
          %8625 = vmatpush1.bf16.msra.mxu0 %v8326
          %8626 = vmatprep.subr.bf16.mxu0 0
          %8627 = vmatpush1.bf16.msra.mxu0 %v8327
          %8628 = vmatprep.subr.bf16.mxu0 0
          %8629 = vmatpush1.bf16.msra.mxu0 %v8328
          %8630 = vmatprep.subr.bf16.mxu0 0
          %8631 = vmatpush1.bf16.msra.mxu0 %v8329
          %8632 = vmatprep.subr.bf16.mxu0 0
          %8633 = vmatpush1.bf16.msra.mxu0 %v8330
          %8634 = vmatprep.subr.bf16.mxu0 0
          %8635 = vmatpush1.bf16.msra.mxu0 %v8331
          %8636 = vmatprep.subr.bf16.mxu0 0
          %8637 = vmatpush1.bf16.msra.mxu0 %v8332
          %8638 = vmatprep.subr.bf16.mxu0 0
          %8639 = vmatpush1.bf16.msra.mxu0 %v8333
          %8640 = vmatprep.subr.bf16.mxu0 0
          %8641 = vmatpush1.bf16.msra.mxu0 %v8334
          %8642 = vmatprep.subr.bf16.mxu0 0
          %8643 = vmatpush1.bf16.msra.mxu0 %v8335
          %8644 = vmatprep.subr.bf16.mxu0 0
          %8645 = vmatpush1.bf16.msra.mxu0 %v8336
          %8646 = vmatprep.subr.bf16.mxu0 0
          %8647 = vmatpush1.bf16.msra.mxu0 %v8337
          %8648 = vmatprep.subr.bf16.mxu0 0
          %8649 = vmatpush1.bf16.msra.mxu0 %v8338
          %8650 = vmatprep.subr.bf16.mxu0 0
          %8651 = vmatpush1.bf16.msra.mxu0 %v8339
          %8652 = vmatprep.mubr.bf16.mxu0 %v7596
          %8653 = vmatmul.mubr.bf16.gmra.mrb[0].mxu0 %v7595
          %v8654 = vpop.f32.mrb[0].mxu0
          %v8655 = vadd.f32 %v8615, %v8654
          %v8656 = vpop.f32.mrb[0].mxu0
          %v8657 = vpop.f32.mrb[0].mxu0
          %v8658 = vpop.f32.mrb[0].mxu0
          %8659 = vdwg.mxu0
          %8660 = vmatprep.subr.bf16.mxu0 0
          %8661 = vmatpush1.bf16.msra.mxu0 %v8340
          %8662 = vmatprep.subr.bf16.mxu0 0
          %8663 = vmatpush1.bf16.msra.mxu0 %v8341
          %8664 = vmatprep.subr.bf16.mxu0 0
          %8665 = vmatpush1.bf16.msra.mxu0 %v8342
          %8666 = vmatprep.subr.bf16.mxu0 0
          %8667 = vmatpush1.bf16.msra.mxu0 %v8343
          %8668 = vmatprep.subr.bf16.mxu0 0
          %8669 = vmatpush1.bf16.msra.mxu0 %v8344
          %8670 = vmatprep.subr.bf16.mxu0 0
          %8671 = vmatpush1.bf16.msra.mxu0 %v8345
          %8672 = vmatprep.subr.bf16.mxu0 0
          %8673 = vmatpush1.bf16.msra.mxu0 %v8346
          %8674 = vmatprep.subr.bf16.mxu0 0
          %8675 = vmatpush1.bf16.msra.mxu0 %v8347
          %8676 = vmatprep.subr.bf16.mxu0 0
          %8677 = vmatpush1.bf16.msra.mxu0 %v8348
          %8678 = vmatprep.subr.bf16.mxu0 0
          %8679 = vmatpush1.bf16.msra.mxu0 %v8349
          %8680 = vmatprep.subr.bf16.mxu0 0
          %8681 = vmatpush1.bf16.msra.mxu0 %v8350
          %8682 = vmatprep.subr.bf16.mxu0 0
          %8683 = vmatpush1.bf16.msra.mxu0 %v8351
          %8684 = vmatprep.subr.bf16.mxu0 0
          %8685 = vmatpush1.bf16.msra.mxu0 %v8352
          %8686 = vmatprep.subr.bf16.mxu0 0
          %8687 = vmatpush1.bf16.msra.mxu0 %v8353
          %8688 = vmatprep.subr.bf16.mxu0 0
          %8689 = vmatpush1.bf16.msra.mxu0 %v8354
          %8690 = vmatprep.subr.bf16.mxu0 0
          %8691 = vmatpush1.bf16.msra.mxu0 %v8355
          %8692 = vmatprep.mubr.bf16.mxu0 %v7598
          %8693 = vmatmul.mubr.bf16.gmra.mrb[0].mxu0 %v7597
          %v8694 = vpop.f32.mrb[0].mxu0
          %v8695 = vadd.f32 %v8655, %v8694
          %v8696 = vpop.f32.mrb[0].mxu0
          %v8697 = vpop.f32.mrb[0].mxu0
          %v8698 = vpop.f32.mrb[0].mxu0
          %8699 = vdwg.mxu0
          %8700 = vmatprep.subr.bf16.mxu0 0
          %8701 = vmatpush1.bf16.msra.mxu0 %v8356
          %8702 = vmatprep.subr.bf16.mxu0 0
          %8703 = vmatpush1.bf16.msra.mxu0 %v8357
          %8704 = vmatprep.subr.bf16.mxu0 0
          %8705 = vmatpush1.bf16.msra.mxu0 %v8358
          %8706 = vmatprep.subr.bf16.mxu0 0
          %8707 = vmatpush1.bf16.msra.mxu0 %v8359
          %8708 = vmatprep.subr.bf16.mxu0 0
          %8709 = vmatpush1.bf16.msra.mxu0 %v8360
          %8710 = vmatprep.subr.bf16.mxu0 0
          %8711 = vmatpush1.bf16.msra.mxu0 %v8361
          %8712 = vmatprep.subr.bf16.mxu0 0
          %8713 = vmatpush1.bf16.msra.mxu0 %v8362
          %8714 = vmatprep.subr.bf16.mxu0 0
          %8715 = vmatpush1.bf16.msra.mxu0 %v8363
          %8716 = vmatprep.subr.bf16.mxu0 0
          %8717 = vmatpush1.bf16.msra.mxu0 %v8364
          %8718 = vmatprep.subr.bf16.mxu0 0
          %8719 = vmatpush1.bf16.msra.mxu0 %v8365
          %8720 = vmatprep.subr.bf16.mxu0 0
          %8721 = vmatpush1.bf16.msra.mxu0 %v8366
          %8722 = vmatprep.subr.bf16.mxu0 0
          %8723 = vmatpush1.bf16.msra.mxu0 %v8367
          %8724 = vmatprep.subr.bf16.mxu0 0
          %8725 = vmatpush1.bf16.msra.mxu0 %v8368
          %8726 = vmatprep.subr.bf16.mxu0 0
          %8727 = vmatpush1.bf16.msra.mxu0 %v8369
          %8728 = vmatprep.subr.bf16.mxu0 0
          %8729 = vmatpush1.bf16.msra.mxu0 %v8370
          %8730 = vmatprep.subr.bf16.mxu0 0
          %8731 = vmatpush1.bf16.msra.mxu0 %v8371
          %8732 = vmatprep.mubr.bf16.mxu0 %v7600
          %8733 = vmatmul.mubr.bf16.gmra.mrb[0].mxu0 %v7599
          %v8734 = vpop.f32.mrb[0].mxu0
          %v8735 = vadd.f32 %v8695, %v8734
          %v8736 = vpop.f32.mrb[0].mxu0
          %v8737 = vpop.f32.mrb[0].mxu0
          %v8738 = vpop.f32.mrb[0].mxu0
          %8739 = vdwg.mxu0
          %8740 = vmatprep.subr.bf16.mxu0 0
          %8741 = vmatpush1.bf16.msra.mxu0 %v8372
          %8742 = vmatprep.subr.bf16.mxu0 0
          %8743 = vmatpush1.bf16.msra.mxu0 %v8373
          %8744 = vmatprep.subr.bf16.mxu0 0
          %8745 = vmatpush1.bf16.msra.mxu0 %v8374
          %8746 = vmatprep.subr.bf16.mxu0 0
          %8747 = vmatpush1.bf16.msra.mxu0 %v8375
          %8748 = vmatprep.subr.bf16.mxu0 0
          %8749 = vmatpush1.bf16.msra.mxu0 %v8376
          %8750 = vmatprep.subr.bf16.mxu0 0
          %8751 = vmatpush1.bf16.msra.mxu0 %v8377
          %8752 = vmatprep.subr.bf16.mxu0 0
          %8753 = vmatpush1.bf16.msra.mxu0 %v8378
          %8754 = vmatprep.subr.bf16.mxu0 0
          %8755 = vmatpush1.bf16.msra.mxu0 %v8379
          %8756 = vmatprep.subr.bf16.mxu0 0
          %8757 = vmatpush1.bf16.msra.mxu0 %v8380
          %8758 = vmatprep.subr.bf16.mxu0 0
          %8759 = vmatpush1.bf16.msra.mxu0 %v8381
          %8760 = vmatprep.subr.bf16.mxu0 0
          %8761 = vmatpush1.bf16.msra.mxu0 %v8382
          %8762 = vmatprep.subr.bf16.mxu0 0
          %8763 = vmatpush1.bf16.msra.mxu0 %v8383
          %8764 = vmatprep.subr.bf16.mxu0 0
          %8765 = vmatpush1.bf16.msra.mxu0 %v8384
          %8766 = vmatprep.subr.bf16.mxu0 0
          %8767 = vmatpush1.bf16.msra.mxu0 %v8385
          %8768 = vmatprep.subr.bf16.mxu0 0
          %8769 = vmatpush1.bf16.msra.mxu0 %v8386
          %8770 = vmatprep.subr.bf16.mxu0 0
          %8771 = vmatpush1.bf16.msra.mxu0 %v8387
          %8772 = vmatprep.mubr.bf16.mxu0 %v7602
          %8773 = vmatmul.mubr.bf16.gmra.mrb[0].mxu0 %v7601
          %v8774 = vpop.f32.mrb[0].mxu0
          %v8775 = vadd.f32 %v8735, %v8774
          %v8776 = vpop.f32.mrb[0].mxu0
          %v8777 = vpop.f32.mrb[0].mxu0
          %v8778 = vpop.f32.mrb[0].mxu0
          %8779 = vdwg.mxu0
          %8780 = vst [vmem:[%s471] sm:$0x1] %v8775
        $region100: #{melanoma_classifier_forward.1} parent=55 // pred_fallthru
          _
        %s8781 = sand.u32 %s246, 1
        %s8782 = scalar_lea.sflag [#allocation5], %s8781
        %s8783 = sand.u32 %s246, 1
        %s8784 = scalar_lea.vmem [#allocation18], %s8783
        // Predicated region
        $region101: #{melanoma_classifier_forward.1} parent=55 // pred_check
          %p8785 = pneg %p256
        $region102: #{melanoma_classifier_forward.1} parent=55 // pred_check_branch
          %8787 = sbr.rel (%p8785) target = $region104
        $region103: #{melanoma_classifier_forward.1} parent=55 // pred_region
          %s8789 = ssub.s32 16, 16
          %8790 = vsyncadd %s8782, %s8789
          %s8791 = smul.addr %s34, 16
          %s8792 = scalar_lea.hbm %s9, %s8791
          %s8794 = sshll.u32 %s8784, 4
          %s8795 = int_to_ptr.vmem [resolvable:$true] %s8794
          %8797 = dma.vmem_to_hbm [thread:$0]  %s8795, 16, %s8792, %s8782
        $region104: #{melanoma_classifier_forward.1} parent=55 // pred_fallthru
          _
      $region56: #{melanoma_classifier_forward.1} parent=5 // pred_fallthru
        _
      %p8798 = scmp.le.s32.totalorder 2, %s25
      // Predicated region
      $region105: #{melanoma_classifier_forward.1} parent=5 // pred_check
        %p8799 = pneg %p8798
      $region106: #{melanoma_classifier_forward.1} parent=5 // pred_check_branch
        %8801 = sbr.rel (%p8799) target = $region108
      $region107: #{melanoma_classifier_forward.1} parent=5 // pred_region
        %s8802 = ssub.s32 %s25, 2
        // Predicated region
        $region109: #{melanoma_classifier_forward.1} parent=107 // pred_check
          %p8803 = pneg %p262
        $region110: #{melanoma_classifier_forward.1} parent=107 // pred_check_branch
          %8805 = sbr.rel (%p8803) target = $region112
        $region111: #{melanoma_classifier_forward.1} parent=107 // pred_region
          %s8806 = sand.u32 %s247, 1
          %s8807 = scalar_lea.sflag [#allocation5], %s8806
          %s8808 = sand.u32 %s247, 1
          %s8809 = scalar_lea.vmem [#allocation18], %s8808
          %8810 = dma.done %s8807, 16
        $region112: #{melanoma_classifier_forward.1} parent=107 // pred_fallthru
          _
      $region108: #{melanoma_classifier_forward.1} parent=5 // pred_fallthru
        _
    $region6: #{melanoma_classifier_forward.1} parent=1 // loop_footer
      %s29 = sadd.s32 1, %s25
    $region7: #{melanoma_classifier_forward.1} parent=1 // loop_footer_branch
      %24 = sbr.rel target = $region3
    $region8: #{melanoma_classifier_forward.1} parent=1 // loop_exit
      _
    %8811 = vsyncpa [#allocation4], 1
    %s8812 = scalar_lea.sflag [#allocation4], 1
    %8813 = vsyncpa %s8812, 1
    %8814 = vsyncpa [#allocation7], 1
    %8815 = vsyncpa [#allocation10], 1
    %8816 = vsyncpa [#allocation13], 1
    %8817 = vsyncpa [#allocation16], 1
    %8818 = vsyncpa [#allocation5], 1
    %s8819 = scalar_lea.sflag [#allocation5], 1
    %8820 = vsyncpa %s8819, 1

</llo_original>
